<compile_context>
chip_gen: v7x
topology: tpu7x:2x2x1
jax: 0.10.0
libtpu: 0.0.40
codegen_flags: <defaults>
</compile_context>

<pallas_src>
import functools

import jax
import jax.numpy as jnp
from jax import lax
from jax.experimental import pallas as pl
from jax.experimental.pallas import tpu as pltpu

LN_EPS = 1e-5                   # F.layer_norm default eps
MXU_DTYPE = jnp.bfloat16        # MXU operand dtype (f32 accumulation everywhere);
                                # set jnp.float32 to track the PyTorch reference.
_TILE_USERS = 512               # default adjacency row tile  (multiple of 16)
_TILE_ITEMS = 1024              # default adjacency col tile  (multiple of 128)


# ----------------------------------------------------------------------------
# Fused propagation kernel: grid = (layer, user_tiles, item_tiles)
# ----------------------------------------------------------------------------
def _intentgcl_kernel(adj_ref, e0_ref, p_ref, w_ref, b_ref, out_ref,
                      prev_ref, prev_mxu_ref, msg_ref, e_sum_ref, msg_sum_ref,
                      *, n_layers, nu_pad, tu, ti, inv_temp, eps, mxu_dtype):
    l = pl.program_id(0)
    i = pl.program_id(1)
    j = pl.program_id(2)
    last_i = pl.num_programs(1) - 1
    last_j = pl.num_programs(2) - 1

    # ---- one-time init (first grid step) -----------------------------------
    @pl.when((l == 0) & (i == 0) & (j == 0))
    def _init():
        e0 = e0_ref[...]                          # concatenated [user; item] layer-0
        prev_ref[...] = e0
        prev_mxu_ref[...] = e0.astype(mxu_dtype)
        e_sum_ref[...] = e0                       # layer-0 term of the layer mean
        msg_sum_ref[...] = jnp.zeros_like(msg_sum_ref)

    # ---- per-layer init: clear this layer's message accumulator ------------
    @pl.when((i == 0) & (j == 0))
    def _layer_init():
        msg_ref[...] = jnp.zeros_like(msg_ref)

    # ---- message passing for this adjacency tile ---------------------------
    u_rows = pl.ds(pl.multiple_of(i * tu, 16), tu)             # user rows of tile
    i_rows = pl.ds(pl.multiple_of(nu_pad + j * ti, 16), ti)    # item rows of tile
    adj = adj_ref[...]                                         # (tu, ti), MXU dtype
    # users aggregate item embeddings:  msg_u[iu] += A[iu, ij] @ E_item[ij]
    msg_ref[u_rows, :] = msg_ref[u_rows, :] + jnp.dot(
        adj, prev_mxu_ref[i_rows, :], preferred_element_type=jnp.float32)
    # items aggregate user embeddings:  msg_i[ij] += A[iu, ij].T @ E_user[iu]
    # (transposed contraction -> adj.T is never materialized)
    msg_ref[i_rows, :] = msg_ref[i_rows, :] + lax.dot_general(
        adj, prev_mxu_ref[u_rows, :], (((0,), (0,)), ((), ())),
        preferred_element_type=jnp.float32)

    # ---- layer finalize: intent attention + Linear + residual + LayerNorm --
    # (runs once per layer on the concatenated user||item rows: 3 matmuls/layer)
    @pl.when((i == last_i) & (j == last_j))
    def _layer_fini():
        m = msg_ref[...]                                    # (Ntot, D) f32
        p = p_ref[...].astype(mxu_dtype)                    # (D, K) prototypes
        w = w_ref[0].astype(mxu_dtype)                      # (D, D) torch (out,in)
        b = b_ref[0]                                        # (1, D)
        # IntentModule: att = softmax(m @ p / temp); intent_out = att @ p.T
        logits = jnp.dot(m.astype(mxu_dtype), p,
                         preferred_element_type=jnp.float32) * inv_temp
        logits = logits - jnp.max(logits, axis=-1, keepdims=True)
        ex = jnp.exp(logits)
        att = ex * pl.reciprocal(jnp.sum(ex, axis=-1, keepdims=True), approx=True)
        intent_out = lax.dot_general(                       # att @ p.T
            att.astype(mxu_dtype), p, (((1,), (1,)), ((), ())),
            preferred_element_type=jnp.float32)
        # Linear: y = x @ W.T + b (W.T never materialized), residual, LayerNorm
        y = lax.dot_general(
            intent_out.astype(mxu_dtype), w, (((1,), (1,)), ((), ())),
            preferred_element_type=jnp.float32) + b
        y = y + prev_ref[...]
        mu = jnp.mean(y, axis=-1, keepdims=True)
        var = jnp.mean(jnp.square(y - mu), axis=-1, keepdims=True)
        e_new = (y - mu) * lax.rsqrt(var + eps)
        prev_ref[...] = e_new
        prev_mxu_ref[...] = e_new.astype(mxu_dtype)
        e_sum_ref[...] = e_sum_ref[...] + e_new
        msg_sum_ref[...] = msg_sum_ref[...] + m

    # ---- kernel finalize: pack [layer-mean | msg-mean] and store once ------
    @pl.when((l == n_layers - 1) & (i == last_i) & (j == last_j))
    def _fini():
        inv_lp1 = 1.0 / (n_layers + 1)
        inv_l = 1.0 / n_layers
        out_ref[...] = jnp.concatenate(
            [e_sum_ref[...] * inv_lp1, msg_sum_ref[...] * inv_l],
            axis=-1).astype(out_ref.dtype)


def _round_up(x, m):
    return ((x + m - 1) // m) * m


def _tile_and_pad(n, target, align):
    """Pick a tile size (multiple of `align`) and padded extent (multiple of tile)."""
    n_aligned = _round_up(n, align)
    if n_aligned <= target:
        return n_aligned, n_aligned
    tile = _round_up(target, align)
    return tile, _round_up(n, tile)


def intentgcl_propagate(user_emb, item_emb, adj_norm, intents, w_stack, b_stack,
                        *, n_layers, temp,
                        tile_users=_TILE_USERS, tile_items=_TILE_ITEMS):
    if n_layers < 1:
        raise ValueError("n_layers must be >= 1")
    nu, d = user_emb.shape
    ni = item_emb.shape[0]
    k = intents.shape[1]

    # Row tiles aligned to 16 sublanes (bf16 packing); column tiles aligned to
    # 128 lanes.  Defaults -> (512, 1024) bf16 adjacency tile = 1 MiB, 2 MiB
    # double-buffered: comfortably inside v7x's 64 MiB VMEM.
    tu, nu_pad = _tile_and_pad(nu, tile_users, 16)
    ti, ni_pad = _tile_and_pad(ni, tile_items, 128)
    ntot_pad = nu_pad + ni_pad

    # One-time operand prep (XLA, outside the kernel): bf16 adjacency, zero
    # padding, user/item layer-0 embeddings concatenated into one operand.
    adj_p = jnp.zeros((nu_pad, ni_pad), MXU_DTYPE)
    adj_p = adj_p.at[:nu, :ni].set(adj_norm.astype(MXU_DTYPE))
    e0 = jnp.zeros((ntot_pad, d), jnp.float32)
    e0 = e0.at[:nu].set(user_emb.astype(jnp.float32))
    e0 = e0.at[nu_pad:nu_pad + ni].set(item_emb.astype(jnp.float32))

    kernel = functools.partial(
        _intentgcl_kernel, n_layers=n_layers, nu_pad=nu_pad, tu=tu, ti=ti,
        inv_temp=1.0 / temp, eps=LN_EPS, mxu_dtype=MXU_DTYPE)

    out = pl.pallas_call(
        kernel,
        out_shape=jax.ShapeDtypeStruct((ntot_pad, 2 * d), jnp.float32),
        grid_spec=pltpu.PrefetchScalarGridSpec(
            num_scalar_prefetch=0,
            grid=(n_layers, nu_pad // tu, ni_pad // ti),
            in_specs=[
                pl.BlockSpec((tu, ti), lambda l, i, j: (i, j)),       # adj tile stream
                pl.BlockSpec((ntot_pad, d), lambda l, i, j: (0, 0)),  # layer-0 emb
                pl.BlockSpec((d, k), lambda l, i, j: (0, 0)),         # intent protos
                pl.BlockSpec((1, d, d), lambda l, i, j: (l, 0, 0)),   # per-layer W
                pl.BlockSpec((1, 1, d), lambda l, i, j: (l, 0, 0)),   # per-layer b
            ],
            out_specs=pl.BlockSpec((ntot_pad, 2 * d), lambda l, i, j: (0, 0)),
            scratch_shapes=[
                pltpu.VMEM((ntot_pad, d), jnp.float32),   # current embeddings (f32)
                pltpu.VMEM((ntot_pad, d), MXU_DTYPE),     # MXU-dtype mirror
                pltpu.VMEM((ntot_pad, d), jnp.float32),   # this layer's messages
                pltpu.VMEM((ntot_pad, d), jnp.float32),   # running sum of layers
                pltpu.VMEM((ntot_pad, d), jnp.float32),   # running sum of messages
            ]),
        compiler_params=pltpu.CompilerParams(
            # All three axes carry a sequential dependency (layer chain; both
            # tile axes feed grid-resident accumulators), so none can be
            # "parallel".  TODO(synk): for v7x (2 TCs) split the user-row axis
            # across cores with per-core partial item-message accumulators.
            dimension_semantics=("arbitrary", "arbitrary", "arbitrary"),
            vmem_limit_bytes=48 * 1024 * 1024),
    )(adj_p, e0, intents, w_stack, b_stack)

    final = out[:, :d]
    aug = out[:, d:]
    return (final[:nu], final[nu_pad:nu_pad + ni],
            aug[:nu], aug[nu_pad:nu_pad + ni])


# ----------------------------------------------------------------------------
# IntentGCL forward (jitted; tiny loss glue stays in plain XLA)
# ----------------------------------------------------------------------------
@functools.partial(
    jax.jit,
    static_argnames=("n_layers", "temp", "lambda_1", "lambda_2", "lambda_3",
                     "test", "tile_users", "tile_items"))
def intentgcl_forward(params, adj_norm, user_ids, item_ids, pos_items, neg_items,
                      *, n_layers, temp, lambda_1, lambda_2, lambda_3, test=False,
                      tile_users=_TILE_USERS, tile_items=_TILE_ITEMS):
    intents = params["intents"]            # (D, K)
    w_stack = params["W_weight"]           # (n_layers, D, D)  torch (out, in) layout
    b_stack = params["W_bias"]             # (n_layers, 1, D)

    final_user, final_item, user_aug_mean, item_aug_mean = intentgcl_propagate(
        params["user_embedding"], params["item_embedding"], adj_norm, intents,
        w_stack, b_stack, n_layers=n_layers, temp=temp,
        tile_users=tile_users, tile_items=tile_items)

    if test:
        # tiny (B, D) @ (D, n_items): leave to XLA, a Pallas launch is overhead
        return jnp.dot(final_user[user_ids], final_item.T)

    user_emb = final_user[user_ids]
    pos_emb = final_item[pos_items]
    neg_emb = final_item[neg_items]
    pos_scores = jnp.sum(user_emb * pos_emb, axis=1)
    neg_scores = jnp.sum(user_emb * neg_emb, axis=1)
    loss_bpr = -jnp.mean(jnp.log(jax.nn.sigmoid(pos_scores - neg_scores) + 1e-10))

    user_aug = user_aug_mean[user_ids]
    item_aug = item_aug_mean[item_ids]
    sim = jnp.dot(user_aug, item_aug.T) / temp               # (B, B), tiny -> XLA
    batch = user_ids.shape[0]
    diag = sim[jnp.arange(batch), jnp.arange(batch)]
    loss_contrast = jnp.mean(jax.nn.logsumexp(sim, axis=1) - diag)  # CE, arange labels

    reg_loss = lambda_3 * (
        jnp.linalg.norm(user_emb) + jnp.linalg.norm(pos_emb)
        + jnp.linalg.norm(neg_emb) + jnp.linalg.norm(intents))

    loss = lambda_1 * loss_bpr + lambda_2 * loss_contrast + reg_loss
    return loss, loss_bpr, loss_contrast, reg_loss


# ----------------------------------------------------------------------------
# Deterministic parameter / input construction and smoke test
# ----------------------------------------------------------------------------
if __name__ == "__main__":
    n_users, n_items, embed_dim = 192, 512, 32
    n_layers, n_intents = 2, 16
    batch = 16
    temp = 0.2
    lambda_1, lambda_2, lambda_3 = 1.0, 0.2, 1e-4

    key = jax.random.PRNGKey(0)
    keys = jax.random.split(key, 16)
    glorot = jax.nn.initializers.glorot_uniform()

    params = {
        "user_embedding": glorot(keys[0], (n_users, embed_dim), jnp.float32),
        "item_embedding": glorot(keys[1], (n_items, embed_dim), jnp.float32),
        "intents": glorot(keys[2], (embed_dim, n_intents), jnp.float32),
        # stacked (n_layers, D, D) weights and (n_layers, 1, D) biases
        "W_weight": jnp.stack([glorot(keys[3 + l], (embed_dim, embed_dim), jnp.float32)
                               for l in range(n_layers)]),
        "W_bias": jnp.stack([jax.random.uniform(
            keys[5 + l], (1, embed_dim), jnp.float32,
            -1.0 / embed_dim ** 0.5, 1.0 / embed_dim ** 0.5)
            for l in range(n_layers)]),
    }

    # synthetic normalized bipartite adjacency (dense stand-in for sparse adj_norm)
    mask = (jax.random.uniform(keys[7], (n_users, n_items)) < 0.05).astype(jnp.float32)
    mask = jnp.maximum(mask, jnp.eye(n_users, n_items, dtype=jnp.float32))
    du = jnp.maximum(jnp.sum(mask, axis=1, keepdims=True), 1.0)
    di = jnp.maximum(jnp.sum(mask, axis=0, keepdims=True), 1.0)
    adj_norm = mask / jnp.sqrt(du) / jnp.sqrt(di)

    # NOTE: u_mul_s / v_mul_s / ut / vt of the reference only feed the
    # intent_user/intent_item branch, which never reaches any returned value;
    # that dead branch (4 matmuls/layer) is omitted.

    user_ids = jax.random.randint(keys[12], (batch,), 0, n_users)
    item_ids = jax.random.randint(keys[13], (batch,), 0, n_items)
    pos_items = jax.random.randint(keys[14], (batch,), 0, n_items)
    neg_items = jax.random.randint(keys[15], (batch,), 0, n_items)

    # small tiles so the toy shapes still exercise a (layers, 3, 2) grid
    loss, loss_bpr, loss_contrast, reg_loss = intentgcl_forward(
        params, adj_norm, user_ids, item_ids, pos_items, neg_items,
        n_layers=n_layers, temp=temp,
        lambda_1=lambda_1, lambda_2=lambda_2, lambda_3=lambda_3,
        tile_users=64, tile_items=256)

    jax.block_until_ready((loss, loss_bpr, loss_contrast, reg_loss))
    assert jnp.isfinite(loss)
    print("KERNEL_OK")
</pallas_src>

<mosaic_0001>
module attributes {stable_mosaic.version = 11 : i64} {
  func.func @_intentgcl_kernel(%arg0: i32, %arg1: i32, %arg2: i32, %arg3: memref<64x256xbf16, #tpu.memory_space<vmem>>, %arg4: memref<704x32xf32, #tpu.memory_space<vmem>>, %arg5: memref<32x16xf32, #tpu.memory_space<vmem>>, %arg6: memref<1x32x32xf32, #tpu.memory_space<vmem>>, %arg7: memref<1x1x32xf32, #tpu.memory_space<vmem>>, %arg8: memref<704x64xf32, #tpu.memory_space<vmem>>, %arg9: memref<704x32xf32, #tpu.memory_space<vmem>>, %arg10: memref<704x32xbf16, #tpu.memory_space<vmem>>, %arg11: memref<704x32xf32, #tpu.memory_space<vmem>>, %arg12: memref<704x32xf32, #tpu.memory_space<vmem>>, %arg13: memref<704x32xf32, #tpu.memory_space<vmem>>) attributes {dimension_semantics = [#tpu.dimension_semantics<arbitrary>, #tpu.dimension_semantics<arbitrary>, #tpu.dimension_semantics<arbitrary>], iteration_bounds = array<i64: 2, 3, 2>, scalar_prefetch = 0 : i64, scratch_operands = 5 : i64, tpu.core_type = #tpu.core_type<tc>, window_params = [{transform_indices = @transform_0, window_bounds = array<i64: 64, 256>}, {pipeline_mode = #tpu.pipeline_mode<synchronous>, transform_indices = @transform_1, window_bounds = array<i64: 704, 32>}, {pipeline_mode = #tpu.pipeline_mode<synchronous>, transform_indices = @transform_2, window_bounds = array<i64: 32, 16>}, {transform_indices = @transform_3, window_bounds = array<i64: 1, 32, 32>}, {transform_indices = @transform_4, window_bounds = array<i64: 1, 1, 32>}, {pipeline_mode = #tpu.pipeline_mode<synchronous>, transform_indices = @transform_5, window_bounds = array<i64: 704, 64>}]} {
    %c0_i32 = arith.constant 0 : i32
    %0 = arith.cmpi eq, %arg0, %c0_i32 : i32
    %c0_i32_0 = arith.constant 0 : i32
    %1 = arith.cmpi eq, %arg1, %c0_i32_0 : i32
    %2 = arith.andi %0, %1 : i1
    %c0_i32_1 = arith.constant 0 : i32
    %3 = arith.cmpi eq, %arg2, %c0_i32_1 : i32
    %4 = arith.andi %2, %3 : i1
    %5 = arith.extui %4 : i1 to i32
    %c0_i32_2 = arith.constant 0 : i32
    %6 = arith.cmpi ne, %5, %c0_i32_2 : i32
    scf.if %6 {
      %c0_19 = arith.constant 0 : index
      %c0_20 = arith.constant 0 : index
      %46 = vector.load %arg4[%c0_19, %c0_20] : memref<704x32xf32, #tpu.memory_space<vmem>>, vector<704x32xf32>
      %c0_21 = arith.constant 0 : index
      %c0_22 = arith.constant 0 : index
      %47 = vector.load %arg9[%c0_21, %c0_22] : memref<704x32xf32, #tpu.memory_space<vmem>>, vector<704x32xf32>
      tpu.vector_store %arg9[%c0_21, %c0_22], %46 {strides = array<i32>} : memref<704x32xf32, #tpu.memory_space<vmem>>, vector<704x32xf32>,
      %48 = arith.truncf %46 : vector<704x32xf32> to vector<704x32xbf16>
      %c0_23 = arith.constant 0 : index
      %c0_24 = arith.constant 0 : index
      %49 = vector.load %arg10[%c0_23, %c0_24] : memref<704x32xbf16, #tpu.memory_space<vmem>>, vector<704x32xbf16>
      tpu.vector_store %arg10[%c0_23, %c0_24], %48 {strides = array<i32>} : memref<704x32xbf16, #tpu.memory_space<vmem>>, vector<704x32xbf16>,
      %c0_25 = arith.constant 0 : index
      %c0_26 = arith.constant 0 : index
      %50 = vector.load %arg12[%c0_25, %c0_26] : memref<704x32xf32, #tpu.memory_space<vmem>>, vector<704x32xf32>
      tpu.vector_store %arg12[%c0_25, %c0_26], %46 {strides = array<i32>} : memref<704x32xf32, #tpu.memory_space<vmem>>, vector<704x32xf32>,
      %cst_27 = arith.constant 0.000000e+00 : f32
      %51 = vector.broadcast %cst_27 : f32 to vector<704x32xf32>
      %c0_28 = arith.constant 0 : index
      %c0_29 = arith.constant 0 : index
      %52 = vector.load %arg13[%c0_28, %c0_29] : memref<704x32xf32, #tpu.memory_space<vmem>>, vector<704x32xf32>
      tpu.vector_store %arg13[%c0_28, %c0_29], %51 {strides = array<i32>} : memref<704x32xf32, #tpu.memory_space<vmem>>, vector<704x32xf32>,
    } else {
    }
    %c0_i32_3 = arith.constant 0 : i32
    %7 = arith.cmpi eq, %arg1, %c0_i32_3 : i32
    %c0_i32_4 = arith.constant 0 : i32
    %8 = arith.cmpi eq, %arg2, %c0_i32_4 : i32
    %9 = arith.andi %7, %8 : i1
    %10 = arith.extui %9 : i1 to i32
    %c0_i32_5 = arith.constant 0 : i32
    %11 = arith.cmpi ne, %10, %c0_i32_5 : i32
    scf.if %11 {
      %cst_19 = arith.constant 0.000000e+00 : f32
      %46 = vector.broadcast %cst_19 : f32 to vector<704x32xf32>
      %c0_20 = arith.constant 0 : index
      %c0_21 = arith.constant 0 : index
      %47 = vector.load %arg11[%c0_20, %c0_21] : memref<704x32xf32, #tpu.memory_space<vmem>>, vector<704x32xf32>
      tpu.vector_store %arg11[%c0_20, %c0_21], %46 {strides = array<i32>} : memref<704x32xf32, #tpu.memory_space<vmem>>, vector<704x32xf32>,
    } else {
    }
    %c64_i32 = arith.constant 64 : i32
    %12 = arith.muli %arg1, %c64_i32 : i32
    %13 = tpu.assume_multiple %12, 16 : i32
    %c256_i32 = arith.constant 256 : i32
    %14 = arith.muli %arg2, %c256_i32 : i32
    %c192_i32 = arith.constant 192 : i32
    %15 = arith.addi %c192_i32, %14 : i32
    %16 = tpu.assume_multiple %15, 16 : i32
    %c0 = arith.constant 0 : index
    %c0_6 = arith.constant 0 : index
    %17 = vector.load %arg3[%c0, %c0_6] : memref<64x256xbf16, #tpu.memory_space<vmem>>, vector<64x256xbf16>
    %18 = arith.index_cast %13 : i32 to index
    %c0_7 = arith.constant 0 : index
    %19 = vector.load %arg11[%18, %c0_7] : memref<704x32xf32, #tpu.memory_space<vmem>>, vector<64x32xf32>
    %20 = arith.index_cast %16 : i32 to index
    %c0_8 = arith.constant 0 : index
    %21 = vector.load %arg10[%20, %c0_8] : memref<704x32xbf16, #tpu.memory_space<vmem>>, vector<256x32xbf16>
    %cst = arith.constant dense<0.000000e+00> : vector<64x32xf32>
    %22 = tpu.matmul %17, %21, %cst {dimension_numbers = #tpu.dot_dimension_numbers<[1], [0], [0], [1], [0, 0, 1, 1], [], []>} : vector<64x256xbf16>, vector<256x32xbf16>, vector<64x32xf32> -> vector<64x32xf32>
    %23 = arith.addf %19, %22 : vector<64x32xf32>
    %24 = arith.index_cast %13 : i32 to index
    %c0_9 = arith.constant 0 : index
    %25 = vector.load %arg11[%24, %c0_9] : memref<704x32xf32, #tpu.memory_space<vmem>>, vector<64x32xf32>
    tpu.vector_store %arg11[%24, %c0_9], %23 {strides = array<i32>} : memref<704x32xf32, #tpu.memory_space<vmem>>, vector<64x32xf32>,
    %26 = arith.index_cast %16 : i32 to index
    %c0_10 = arith.constant 0 : index
    %27 = vector.load %arg11[%26, %c0_10] : memref<704x32xf32, #tpu.memory_space<vmem>>, vector<256x32xf32>
    %28 = arith.index_cast %13 : i32 to index
    %c0_11 = arith.constant 0 : index
    %29 = vector.load %arg10[%28, %c0_11] : memref<704x32xbf16, #tpu.memory_space<vmem>>, vector<64x32xbf16>
    %cst_12 = arith.constant dense<0.000000e+00> : vector<256x32xf32>
    %30 = tpu.matmul %17, %29, %cst_12 {dimension_numbers = #tpu.dot_dimension_numbers<[0], [0], [1], [1], [0, 1, 1, 1], [], []>} : vector<64x256xbf16>, vector<64x32xbf16>, vector<256x32xf32> -> vector<256x32xf32>
    %31 = arith.addf %27, %30 : vector<256x32xf32>
    %32 = arith.index_cast %16 : i32 to index
    %c0_13 = arith.constant 0 : index
    %33 = vector.load %arg11[%32, %c0_13] : memref<704x32xf32, #tpu.memory_space<vmem>>, vector<256x32xf32>
    tpu.vector_store %arg11[%32, %c0_13], %31 {strides = array<i32>} : memref<704x32xf32, #tpu.memory_space<vmem>>, vector<256x32xf32>,
    %c2_i32 = arith.constant 2 : i32
    %34 = arith.cmpi eq, %arg1, %c2_i32 : i32
    %c1_i32 = arith.constant 1 : i32
    %35 = arith.cmpi eq, %arg2, %c1_i32 : i32
    %36 = arith.andi %34, %35 : i1
    %37 = arith.extui %36 : i1 to i32
    %c0_i32_14 = arith.constant 0 : i32
    %38 = arith.cmpi ne, %37, %c0_i32_14 : i32
    scf.if %38 {
      %c0_19 = arith.constant 0 : index
      %c0_20 = arith.constant 0 : index
      %46 = vector.load %arg11[%c0_19, %c0_20] : memref<704x32xf32, #tpu.memory_space<vmem>>, vector<704x32xf32>
      %c0_21 = arith.constant 0 : index
      %c0_22 = arith.constant 0 : index
      %47 = vector.load %arg5[%c0_21, %c0_22] : memref<32x16xf32, #tpu.memory_space<vmem>>, vector<32x16xf32>
      %48 = arith.truncf %47 : vector<32x16xf32> to vector<32x16xbf16>
      %c0_23 = arith.constant 0 : index
      %c0_24 = arith.constant 0 : index
      %c0_25 = arith.constant 0 : index
      %49 = vector.load %arg6[%c0_23, %c0_24, %c0_25] : memref<1x32x32xf32, #tpu.memory_space<vmem>>, vector<1x32x32xf32>
      %50 = vector.shape_cast %49 : vector<1x32x32xf32> to vector<32x32xf32>
      %51 = arith.truncf %50 : vector<32x32xf32> to vector<32x32xbf16>
      %c0_26 = arith.constant 0 : index
      %c0_27 = arith.constant 0 : index
      %c0_28 = arith.constant 0 : index
      %52 = vector.load %arg7[%c0_26, %c0_27, %c0_28] : memref<1x1x32xf32, #tpu.memory_space<vmem>>, vector<1x1x32xf32>
      %53 = vector.shape_cast %52 : vector<1x1x32xf32> to vector<1x32xf32>
      %54 = arith.truncf %46 : vector<704x32xf32> to vector<704x32xbf16>
      %cst_29 = arith.constant dense<0.000000e+00> : vector<704x16xf32>
      %55 = tpu.matmul %54, %48, %cst_29 {dimension_numbers = #tpu.dot_dimension_numbers<[1], [0], [0], [1], [0, 0, 1, 1], [], []>} : vector<704x32xbf16>, vector<32x16xbf16>, vector<704x16xf32> -> vector<704x16xf32>
      %cst_30 = arith.constant 5.000000e+00 : f32
      %56 = vector.broadcast %cst_30 : f32 to vector<704x16xf32>
      %57 = arith.mulf %55, %56 : vector<704x16xf32>
      %cst_31 = arith.constant dense<0xFF800000> : vector<704xf32>
      %58 = vector.multi_reduction <maximumf>, %57, %cst_31 [1] : vector<704x16xf32> to vector<704xf32>
      %59 = vector.shape_cast %58 : vector<704xf32> to vector<704x1xf32>
      %60 = vector.broadcast %59 : vector<704x1xf32> to vector<704x16xf32>
      %61 = arith.subf %57, %60 : vector<704x16xf32>
      %62 = math.exp %61 : vector<704x16xf32>
      %cst_32 = arith.constant dense<0.000000e+00> : vector<704xf32>
      %63 = vector.multi_reduction <add>, %62, %cst_32 [1] : vector<704x16xf32> to vector<704xf32>
      %64 = vector.shape_cast %63 : vector<704xf32> to vector<704x1xf32>
      %65 = tpu.reciprocal %64 {approx = true} : vector<704x1xf32> -> vector<704x1xf32>
      %66 = vector.broadcast %65 : vector<704x1xf32> to vector<704x16xf32>
      %67 = arith.mulf %62, %66 : vector<704x16xf32>
      %68 = arith.truncf %67 : vector<704x16xf32> to vector<704x16xbf16>
      %cst_33 = arith.constant dense<0.000000e+00> : vector<704x32xf32>
      %69 = tpu.matmul %68, %48, %cst_33 {dimension_numbers = #tpu.dot_dimension_numbers<[1], [1], [0], [0], [0, 0, 1, 0], [], []>} : vector<704x16xbf16>, vector<32x16xbf16>, vector<704x32xf32> -> vector<704x32xf32>
      %70 = arith.truncf %69 : vector<704x32xf32> to vector<704x32xbf16>
      %cst_34 = arith.constant dense<0.000000e+00> : vector<704x32xf32>
      %71 = tpu.matmul %70, %51, %cst_34 {dimension_numbers = #tpu.dot_dimension_numbers<[1], [1], [0], [0], [0, 0, 1, 0], [], []>} : vector<704x32xbf16>, vector<32x32xbf16>, vector<704x32xf32> -> vector<704x32xf32>
      %72 = vector.broadcast %53 : vector<1x32xf32> to vector<704x32xf32>
      %73 = arith.addf %71, %72 : vector<704x32xf32>
      %c0_35 = arith.constant 0 : index
      %c0_36 = arith.constant 0 : index
      %74 = vector.load %arg9[%c0_35, %c0_36] : memref<704x32xf32, #tpu.memory_space<vmem>>, vector<704x32xf32>
      %75 = arith.addf %73, %74 : vector<704x32xf32>
      %cst_37 = arith.constant dense<0.000000e+00> : vector<704xf32>
      %76 = vector.multi_reduction <add>, %75, %cst_37 [1] : vector<704x32xf32> to vector<704xf32>
      %77 = vector.shape_cast %76 : vector<704xf32> to vector<704x1xf32>
      %cst_38 = arith.constant 3.200000e+01 : f32
      %78 = vector.broadcast %cst_38 : f32 to vector<704x1xf32>
      %79 = arith.divf %77, %78 : vector<704x1xf32>
      %80 = vector.broadcast %79 : vector<704x1xf32> to vector<704x32xf32>
      %81 = arith.subf %75, %80 : vector<704x32xf32>
      %82 = arith.mulf %81, %81 : vector<704x32xf32>
      %cst_39 = arith.constant dense<0.000000e+00> : vector<704xf32>
      %83 = vector.multi_reduction <add>, %82, %cst_39 [1] : vector<704x32xf32> to vector<704xf32>
      %84 = vector.shape_cast %83 : vector<704xf32> to vector<704x1xf32>
      %cst_40 = arith.constant 3.200000e+01 : f32
      %85 = vector.broadcast %cst_40 : f32 to vector<704x1xf32>
      %86 = arith.divf %84, %85 : vector<704x1xf32>
      %87 = vector.broadcast %79 : vector<704x1xf32> to vector<704x32xf32>
      %88 = arith.subf %75, %87 : vector<704x32xf32>
      %cst_41 = arith.constant 9.99999974E-6 : f32
      %89 = vector.broadcast %cst_41 : f32 to vector<704x1xf32>
      %90 = arith.addf %86, %89 : vector<704x1xf32>
      %91 = math.rsqrt %90 : vector<704x1xf32>
      %92 = vector.broadcast %91 : vector<704x1xf32> to vector<704x32xf32>
      %93 = arith.mulf %88, %92 : vector<704x32xf32>
      %c0_42 = arith.constant 0 : index
      %c0_43 = arith.constant 0 : index
      %94 = vector.load %arg9[%c0_42, %c0_43] : memref<704x32xf32, #tpu.memory_space<vmem>>, vector<704x32xf32>
      tpu.vector_store %arg9[%c0_42, %c0_43], %93 {strides = array<i32>} : memref<704x32xf32, #tpu.memory_space<vmem>>, vector<704x32xf32>,
      %95 = arith.truncf %93 : vector<704x32xf32> to vector<704x32xbf16>
      %c0_44 = arith.constant 0 : index
      %c0_45 = arith.constant 0 : index
      %96 = vector.load %arg10[%c0_44, %c0_45] : memref<704x32xbf16, #tpu.memory_space<vmem>>, vector<704x32xbf16>
      tpu.vector_store %arg10[%c0_44, %c0_45], %95 {strides = array<i32>} : memref<704x32xbf16, #tpu.memory_space<vmem>>, vector<704x32xbf16>,
      %c0_46 = arith.constant 0 : index
      %c0_47 = arith.constant 0 : index
      %97 = vector.load %arg12[%c0_46, %c0_47] : memref<704x32xf32, #tpu.memory_space<vmem>>, vector<704x32xf32>
      %98 = arith.addf %97, %93 : vector<704x32xf32>
      %c0_48 = arith.constant 0 : index
      %c0_49 = arith.constant 0 : index
      %99 = vector.load %arg12[%c0_48, %c0_49] : memref<704x32xf32, #tpu.memory_space<vmem>>, vector<704x32xf32>
      tpu.vector_store %arg12[%c0_48, %c0_49], %98 {strides = array<i32>} : memref<704x32xf32, #tpu.memory_space<vmem>>, vector<704x32xf32>,
      %c0_50 = arith.constant 0 : index
      %c0_51 = arith.constant 0 : index
      %100 = vector.load %arg13[%c0_50, %c0_51] : memref<704x32xf32, #tpu.memory_space<vmem>>, vector<704x32xf32>
      %101 = arith.addf %100, %46 : vector<704x32xf32>
      %c0_52 = arith.constant 0 : index
      %c0_53 = arith.constant 0 : index
      %102 = vector.load %arg13[%c0_52, %c0_53] : memref<704x32xf32, #tpu.memory_space<vmem>>, vector<704x32xf32>
      tpu.vector_store %arg13[%c0_52, %c0_53], %101 {strides = array<i32>} : memref<704x32xf32, #tpu.memory_space<vmem>>, vector<704x32xf32>,
    } else {
    }
    %c1_i32_15 = arith.constant 1 : i32
    %39 = arith.cmpi eq, %arg0, %c1_i32_15 : i32
    %c2_i32_16 = arith.constant 2 : i32
    %40 = arith.cmpi eq, %arg1, %c2_i32_16 : i32
    %41 = arith.andi %39, %40 : i1
    %c1_i32_17 = arith.constant 1 : i32
    %42 = arith.cmpi eq, %arg2, %c1_i32_17 : i32
    %43 = arith.andi %41, %42 : i1
    %44 = arith.extui %43 : i1 to i32
    %c0_i32_18 = arith.constant 0 : i32
    %45 = arith.cmpi ne, %44, %c0_i32_18 : i32
    scf.if %45 {
      %c0_19 = arith.constant 0 : index
      %c0_20 = arith.constant 0 : index
      %46 = vector.load %arg12[%c0_19, %c0_20] : memref<704x32xf32, #tpu.memory_space<vmem>>, vector<704x32xf32>
      %cst_21 = arith.constant 0.333333343 : f32
      %47 = vector.broadcast %cst_21 : f32 to vector<704x32xf32>
      %48 = arith.mulf %46, %47 : vector<704x32xf32>
      %c0_22 = arith.constant 0 : index
      %c0_23 = arith.constant 0 : index
      %49 = vector.load %arg13[%c0_22, %c0_23] : memref<704x32xf32, #tpu.memory_space<vmem>>, vector<704x32xf32>
      %cst_24 = arith.constant 5.000000e-01 : f32
      %50 = vector.broadcast %cst_24 : f32 to vector<704x32xf32>
      %51 = arith.mulf %49, %50 : vector<704x32xf32>
      %52 = tpu.concatenate %48, %51 in 1 : vector<704x32xf32>, vector<704x32xf32> -> vector<704x64xf32>
      %c0_25 = arith.constant 0 : index
      %c0_26 = arith.constant 0 : index
      %53 = vector.load %arg8[%c0_25, %c0_26] : memref<704x64xf32, #tpu.memory_space<vmem>>, vector<704x64xf32>
      tpu.vector_store %arg8[%c0_25, %c0_26], %52 {strides = array<i32>} : memref<704x64xf32, #tpu.memory_space<vmem>>, vector<704x64xf32>,
    } else {
    }
    return
  }
  func.func @transform_0(%arg0: i32, %arg1: i32, %arg2: i32) -> (i32, i32) {
    %c0_i32 = arith.constant 0 : i32
    return %arg1, %arg2 : i32, i32
  }
  func.func @transform_1(%arg0: i32, %arg1: i32, %arg2: i32) -> (i32, i32) {
    %c0_i32 = arith.constant 0 : i32
    %c0_i32_0 = arith.constant 0 : i32
    %c0_i32_1 = arith.constant 0 : i32
    return %c0_i32, %c0_i32_0 : i32, i32
  }
  func.func @transform_2(%arg0: i32, %arg1: i32, %arg2: i32) -> (i32, i32) {
    %c0_i32 = arith.constant 0 : i32
    %c0_i32_0 = arith.constant 0 : i32
    %c0_i32_1 = arith.constant 0 : i32
    return %c0_i32, %c0_i32_0 : i32, i32
  }
  func.func @transform_3(%arg0: i32, %arg1: i32, %arg2: i32) -> (i32, i32, i32) {
    %c0_i32 = arith.constant 0 : i32
    %c0_i32_0 = arith.constant 0 : i32
    %c0_i32_1 = arith.constant 0 : i32
    return %arg0, %c0_i32, %c0_i32_0 : i32, i32, i32
  }
  func.func @transform_4(%arg0: i32, %arg1: i32, %arg2: i32) -> (i32, i32, i32) {
    %c0_i32 = arith.constant 0 : i32
    %c0_i32_0 = arith.constant 0 : i32
    %c0_i32_1 = arith.constant 0 : i32
    return %arg0, %c0_i32, %c0_i32_0 : i32, i32, i32
  }
  func.func @transform_5(%arg0: i32, %arg1: i32, %arg2: i32) -> (i32, i32) {
    %c0_i32 = arith.constant 0 : i32
    %c0_i32_0 = arith.constant 0 : i32
    %c0_i32_1 = arith.constant 0 : i32
    return %c0_i32, %c0_i32_0 : i32, i32
  }
}

</mosaic_0001>

<llo_original>
// kernel: intentgcl_forward.1
$region0: #{intentgcl_forward.1}
  #allocation0 [shape = 'u32[]', space=smem, size = 0x4, offset = 0x4, fixed_abs, tag = 'smem constant byte address 0x4 - core index']
  #allocation1 [shape = 'u32[144,128]{1,0:T(1,128)}', space=vmem, size = 0x12000, scoped, tag = 'internal scratch']
  #allocation2 [shape = 'f32[704,32]{1,0:T(8,128)}', space=vmem, size = 0x58000, scoped, tag = 'scratch operand']
  #allocation3 [shape = 'bf16[704,32]{1,0:T(16,128)(2,1)}', space=vmem, size = 0x2c000, scoped, tag = 'scratch operand']
  #allocation4 [shape = 'f32[704,32]{1,0:T(8,128)}', space=vmem, size = 0x58000, scoped, tag = 'scratch operand']
  #allocation5 [shape = 'f32[704,32]{1,0:T(8,128)}', space=vmem, size = 0x58000, scoped, tag = 'scratch operand']
  #allocation6 [shape = 'f32[704,32]{1,0:T(8,128)}', space=vmem, size = 0x58000, scoped, tag = 'scratch operand']
  %s0 = inlined_call_operand.vmem [shape: bf16[192,512], index: 0, kind: input, shape index: {}]
  %s1 = inlined_call_operand.vmem [shape: f32[704,32], index: 1, kind: input, shape index: {}]
  %s2 = inlined_call_operand.vmem [shape: f32[32,16], index: 2, kind: input, shape index: {}]
  %s3 = inlined_call_operand.vmem [shape: f32[2,32,32], index: 3, kind: input, shape index: {}]
  %s4 = inlined_call_operand.vmem [shape: f32[2,1,32], index: 4, kind: input, shape index: {}]
  %s5 = inlined_call_operand.vmem [shape: f32[704,64], index: 5, kind: output, shape index: {}]
  %s6 = sld [smem:[#allocation0]]
  $region107: #{intentgcl_forward.1} parent=0
    _
  %s8 = ssub.s32 1, %s6
  %s9 = scalar_select 0, %s8, %s6
  $region1: #{intentgcl_forward.1} parent=0
    #allocation7 [shape = 'u8[65536]{0}', space=vmem, size = 0x10000, scoped, tag = 'input window, operand 0']
    loop: start=0, step=1, limit=14
    $region2: #{intentgcl_forward.1} parent=1 // loop_pre_header
      _
    $region3: #{intentgcl_forward.1} parent=1 // loop_header
      %s11 = sphi 0, %s15
      %p12 = scmp.ge.s32.totalorder %s11, 14
      %s18 = sphi 0, %s37
      %s19 = sphi 0, %s33
      %s20 = sphi 0, %s29
      %s21 = sphi 0, %s18
      %s22 = sphi 0, %s19
      %s23 = sphi 0, %s20
      %s24 = sphi 0, %s21
      %s25 = sphi 0, %s22
      %s26 = sphi 0, %s23
      %s42 = sphi 0, %s44
      %s45 = sphi 0, %s42
      %s46 = sphi 0, %s45
      %s62 = sphi 0, %s46
      %s66 = sphi 0, %s66
      %s68 = sphi 0, %s66
      %s69 = sphi 0, %s68
      %s83 = sphi 0, %s69
      %s87 = sphi 0, %s87
      %s89 = sphi 0, %s87
      %s90 = sphi 0, %s89
      %s104 = sphi 0, %s90
      %s110 = sphi 0, %s112
      %s113 = sphi 0, %s110
      %s114 = sphi 0, %s113
      %s130 = sphi 0, %s114
      %s136 = sphi 0, %s138
      %s139 = sphi 0, %s136
      %s140 = sphi 0, %s139
      %s156 = sphi 0, %s140
      %s160 = sphi 0, %s160
      %s162 = sphi 0, %s160
      %s163 = sphi 0, %s162
      %s177 = sphi 0, %s163
    $region4: #{intentgcl_forward.1} parent=1 // loop_header_branch
      %14 = sbr.rel (%p12) target = $region8
    $region5: #{intentgcl_forward.1} parent=1 // loop_body
      %s16 = ssub.s32 %s11, 1
      %s17 = ssub.s32 %s11, 2
      %s27 = sadd.s32 1, %s20
      %p28 = scmp.ge.s32.totalorder %s27, 2
      %s29 = scalar_select %p28, 0, %s27
      %s30 = sadd.s32 1, %s19
      %s31 = scalar_select %p28, %s30, %s19
      %p32 = scmp.ge.s32.totalorder %s31, 3
      %s33 = scalar_select %p32, 0, %s31
      %s34 = sadd.s32 1, %s18
      %s35 = scalar_select %p32, %s34, %s18
      %p36 = scmp.ge.s32.totalorder %s35, 2
      %s37 = scalar_select %p36, 0, %s35
      %s38 = ssub.s32 %s19, %s33
      %s39 = ssub.s32 %s20, %s29
      %s40 = sor.u32 %s38, %s39
      %p41 = scmp.eq.s32.totalorder %s40, 0
      %s43 = sadd.s32 %s42, 1
      %s44 = scalar_select %p41, %s42, %s43
      %p47 = pneg %p41
      %p48 = scmp.eq.s32.totalorder %s11, 11
      %p49 = por %p47, %p48
      %p50 = scmp.ne.s32.totalorder %s42, %s45
      %p51 = scmp.eq.s32.totalorder %s11, 0
      %p52 = por %p50, %p51
      %p53 = scmp.ne.s32.totalorder %s42, %s45
      %p54 = scmp.eq.s32.totalorder %s16, 11
      %p55 = por %p53, %p54
      %p56 = scmp.ne.s32.totalorder %s45, %s46
      %p57 = scmp.eq.s32.totalorder %s16, 0
      %p58 = por %p56, %p57
      %p59 = scmp.ne.s32.totalorder %s45, %s46
      %p60 = scmp.eq.s32.totalorder %s17, 11
      %p61 = por %p59, %p60
      %p63 = scmp.ne.s32.totalorder %s46, %s62
      %p64 = scmp.eq.s32.totalorder %s17, 0
      %p65 = por %p63, %p64
      %s67 = sadd.s32 %s66, 1
      %p70 = scmp.eq.s32.totalorder %s11, 11
      %p71 = scmp.ne.s32.totalorder %s66, %s68
      %p72 = scmp.eq.s32.totalorder %s11, 0
      %p73 = por %p71, %p72
      %p74 = scmp.ne.s32.totalorder %s66, %s68
      %p75 = scmp.eq.s32.totalorder %s16, 11
      %p76 = por %p74, %p75
      %p77 = scmp.ne.s32.totalorder %s68, %s69
      %p78 = scmp.eq.s32.totalorder %s16, 0
      %p79 = por %p77, %p78
      %p80 = scmp.ne.s32.totalorder %s68, %s69
      %p81 = scmp.eq.s32.totalorder %s17, 11
      %p82 = por %p80, %p81
      %p84 = scmp.ne.s32.totalorder %s69, %s83
      %p85 = scmp.eq.s32.totalorder %s17, 0
      %p86 = por %p84, %p85
      %s88 = sadd.s32 %s87, 1
      %p91 = scmp.eq.s32.totalorder %s11, 11
      %p92 = scmp.ne.s32.totalorder %s87, %s89
      %p93 = scmp.eq.s32.totalorder %s11, 0
      %p94 = por %p92, %p93
      %p95 = scmp.ne.s32.totalorder %s87, %s89
      %p96 = scmp.eq.s32.totalorder %s16, 11
      %p97 = por %p95, %p96
      %p98 = scmp.ne.s32.totalorder %s89, %s90
      %p99 = scmp.eq.s32.totalorder %s16, 0
      %p100 = por %p98, %p99
      %p101 = scmp.ne.s32.totalorder %s89, %s90
      %p102 = scmp.eq.s32.totalorder %s17, 11
      %p103 = por %p101, %p102
      %p105 = scmp.ne.s32.totalorder %s90, %s104
      %p106 = scmp.eq.s32.totalorder %s17, 0
      %p107 = por %p105, %p106
      %s108 = ssub.s32 %s18, %s37
      %p109 = scmp.eq.s32.totalorder %s108, 0
      %s111 = sadd.s32 %s110, 1
      %s112 = scalar_select %p109, %s110, %s111
      %p115 = pneg %p109
      %p116 = scmp.eq.s32.totalorder %s11, 11
      %p117 = por %p115, %p116
      %p118 = scmp.ne.s32.totalorder %s110, %s113
      %p119 = scmp.eq.s32.totalorder %s11, 0
      %p120 = por %p118, %p119
      %p121 = scmp.ne.s32.totalorder %s110, %s113
      %p122 = scmp.eq.s32.totalorder %s16, 11
      %p123 = por %p121, %p122
      %p124 = scmp.ne.s32.totalorder %s113, %s114
      %p125 = scmp.eq.s32.totalorder %s16, 0
      %p126 = por %p124, %p125
      %p127 = scmp.ne.s32.totalorder %s113, %s114
      %p128 = scmp.eq.s32.totalorder %s17, 11
      %p129 = por %p127, %p128
      %p131 = scmp.ne.s32.totalorder %s114, %s130
      %p132 = scmp.eq.s32.totalorder %s17, 0
      %p133 = por %p131, %p132
      %s134 = ssub.s32 %s18, %s37
      %p135 = scmp.eq.s32.totalorder %s134, 0
      %s137 = sadd.s32 %s136, 1
      %s138 = scalar_select %p135, %s136, %s137
      %p141 = pneg %p135
      %p142 = scmp.eq.s32.totalorder %s11, 11
      %p143 = por %p141, %p142
      %p144 = scmp.ne.s32.totalorder %s136, %s139
      %p145 = scmp.eq.s32.totalorder %s11, 0
      %p146 = por %p144, %p145
      %p147 = scmp.ne.s32.totalorder %s136, %s139
      %p148 = scmp.eq.s32.totalorder %s16, 11
      %p149 = por %p147, %p148
      %p150 = scmp.ne.s32.totalorder %s139, %s140
      %p151 = scmp.eq.s32.totalorder %s16, 0
      %p152 = por %p150, %p151
      %p153 = scmp.ne.s32.totalorder %s139, %s140
      %p154 = scmp.eq.s32.totalorder %s17, 11
      %p155 = por %p153, %p154
      %p157 = scmp.ne.s32.totalorder %s140, %s156
      %p158 = scmp.eq.s32.totalorder %s17, 0
      %p159 = por %p157, %p158
      %s161 = sadd.s32 %s160, 1
      %p164 = scmp.eq.s32.totalorder %s11, 11
      %p165 = scmp.ne.s32.totalorder %s160, %s162
      %p166 = scmp.eq.s32.totalorder %s11, 0
      %p167 = por %p165, %p166
      %p168 = scmp.ne.s32.totalorder %s160, %s162
      %p169 = scmp.eq.s32.totalorder %s16, 11
      %p170 = por %p168, %p169
      %p171 = scmp.ne.s32.totalorder %s162, %s163
      %p172 = scmp.eq.s32.totalorder %s16, 0
      %p173 = por %p171, %p172
      %p174 = scmp.ne.s32.totalorder %s162, %s163
      %p175 = scmp.eq.s32.totalorder %s17, 11
      %p176 = por %p174, %p175
      %p178 = scmp.ne.s32.totalorder %s163, %s177
      %p179 = scmp.eq.s32.totalorder %s17, 0
      %p180 = por %p178, %p179
      %p181 = scmp.le.s32.totalorder 1, %s11
      %p182 = scmp.lt.s32.totalorder %s11, 13
      %p183 = pnand %p181, %p182
      %p184 = pneg %p183
      // Predicated region
      $region9: #{intentgcl_forward.1} parent=5 // pred_check
        _
      $region10: #{intentgcl_forward.1} parent=5 // pred_check_branch
        %186 = sbr.rel (%p183) target = $region12
      $region11: #{intentgcl_forward.1} parent=5 // pred_region
        %s187 = ssub.s32 %s11, 1
        // Predicated region
        $region13: #{intentgcl_forward.1} parent=11 // pred_check
          %p188 = pneg %p79
        $region14: #{intentgcl_forward.1} parent=11 // pred_check_branch
          %190 = sbr.rel (%p188) target = $region16
        $region15: #{intentgcl_forward.1} parent=11 // pred_region
          _
        $region16: #{intentgcl_forward.1} parent=11 // pred_fallthru
          _
        // Predicated region
        $region17: #{intentgcl_forward.1} parent=11 // pred_check
          %p191 = pneg %p100
        $region18: #{intentgcl_forward.1} parent=11 // pred_check_branch
          %193 = sbr.rel (%p191) target = $region20
        $region19: #{intentgcl_forward.1} parent=11 // pred_region
          _
        $region20: #{intentgcl_forward.1} parent=11 // pred_fallthru
          _
      $region12: #{intentgcl_forward.1} parent=5 // pred_fallthru
        _
      %p194 = scmp.lt.s32.totalorder %s11, 12
      // Predicated region
      $region21: #{intentgcl_forward.1} parent=5 // pred_check
        %p195 = pneg %p194
      $region22: #{intentgcl_forward.1} parent=5 // pred_check_branch
        %197 = sbr.rel (%p195) target = $region24
      $region23: #{intentgcl_forward.1} parent=5 // pred_region
        // Predicated region
        $region25: #{intentgcl_forward.1} parent=23 // pred_check
          %p198 = pneg %p52
        $region26: #{intentgcl_forward.1} parent=23 // pred_check_branch
          %200 = sbr.rel (%p198) target = $region28
        $region27: #{intentgcl_forward.1} parent=23 // pred_region
          %s201 = sand.u32 %s42, 1
          %s202 = sand.u32 %s42, 1
          %s203 = smul.addr %s202, 64
          %s204 = scalar_lea.vmem [#allocation7], %s203
          %s205 = smul.u32 8, %s19
          %s206 = smul.u32 2, %s20
          %s207 = smul.addr %s205, 4
          %s208 = sadd.s32 %s206, %s207
          %s209 = smul.addr %s208, 4
          %s210 = scalar_lea.vmem %s0, %s209
          // Predicated region
          $region29: #{intentgcl_forward.1} parent=27 // pred_check
            _
          $region30: #{intentgcl_forward.1} parent=27 // pred_check_branch
            %212 = sbr.rel (0) target = $region32
          $region31: #{intentgcl_forward.1} parent=27 // pred_region
            // Predicated region
            $region33: #{intentgcl_forward.1} parent=31 // pred_check
              _
            $region34: #{intentgcl_forward.1} parent=31 // pred_check_branch
              %214 = sbr.rel (0) target = $region36
            $region35: #{intentgcl_forward.1} parent=31 // pred_region
              // Predicated region
              $region48: #{intentgcl_forward.1} parent=35 // pred_check
                _
              $region49: #{intentgcl_forward.1} parent=35 // pred_check_branch
                %243 = sbr.rel (0) target = $region51
              $region50: #{intentgcl_forward.1} parent=35 // pred_region
                loop: start=0, step=1, limit=1
                $region52: #{intentgcl_forward.1} parent=50 // loop_pre_header
                  _
                $region53: #{intentgcl_forward.1} parent=50 // loop_header
                  %s245 = sphi 0, %s249
                  %p246 = scmp.ge.s32.totalorder %s245, 1
                  %s250 = sphi %s210, %s210
                  %s251 = sphi %s204, %s204
                $region54: #{intentgcl_forward.1} parent=50 // loop_header_branch
                  %248 = sbr.rel (%p246) target = $region58
                $region55: #{intentgcl_forward.1} parent=50 // loop_body
                  %v252 = vld [vmem:[%s250] sm:$0xff]
                  %253 = vst [vmem:[%s251] sm:$0xff] %v252
                  %v254 = vld [vmem:[%s250 + $0x10] sm:$0xff]
                  %255 = vst [vmem:[%s251 + $0x8] sm:$0xff] %v254
                  %v256 = vld [vmem:[%s250 + $0x20] sm:$0xff]
                  %257 = vst [vmem:[%s251 + $0x10] sm:$0xff] %v256
                  %v258 = vld [vmem:[%s250 + $0x30] sm:$0xff]
                  %259 = vst [vmem:[%s251 + $0x18] sm:$0xff] %v258
                  %v260 = vld [vmem:[%s250 + $0x40] sm:$0xff]
                  %261 = vst [vmem:[%s251 + $0x20] sm:$0xff] %v260
                  %v262 = vld [vmem:[%s250 + $0x50] sm:$0xff]
                  %263 = vst [vmem:[%s251 + $0x28] sm:$0xff] %v262
                  %v264 = vld [vmem:[%s250 + $0x60] sm:$0xff]
                  %265 = vst [vmem:[%s251 + $0x30] sm:$0xff] %v264
                  %v266 = vld [vmem:[%s250 + $0x70] sm:$0xff]
                  %267 = vst [vmem:[%s251 + $0x38] sm:$0xff] %v266
                $region56: #{intentgcl_forward.1} parent=50 // loop_footer
                  %s249 = sadd.s32 1, %s245
                $region57: #{intentgcl_forward.1} parent=50 // loop_footer_branch
                  %244 = sbr.rel target = $region53
                $region58: #{intentgcl_forward.1} parent=50 // loop_exit
                  _
              $region51: #{intentgcl_forward.1} parent=35 // pred_fallthru
                _
              // Predicated region
              $region59: #{intentgcl_forward.1} parent=35 // pred_check
                _
              $region60: #{intentgcl_forward.1} parent=35 // pred_check_branch
                %269 = sbr.rel target = $region62
              $region61: #{intentgcl_forward.1} parent=35 // pred_region
                _
              $region62: #{intentgcl_forward.1} parent=35 // pred_fallthru
                _
            $region36: #{intentgcl_forward.1} parent=31 // pred_fallthru
              _
            // Predicated region
            $region37: #{intentgcl_forward.1} parent=31 // pred_check
              _
            $region38: #{intentgcl_forward.1} parent=31 // pred_check_branch
              %216 = sbr.rel target = $region40
            $region39: #{intentgcl_forward.1} parent=31 // pred_region
              loop: start=0, step=1, limit=1
              $region41: #{intentgcl_forward.1} parent=39 // loop_pre_header
                _
              $region42: #{intentgcl_forward.1} parent=39 // loop_header
                %s219 = sphi 0, %s223
                %p220 = scmp.ge.s32.totalorder %s219, 1
                %s224 = sphi %s210, %s210
                %s225 = sphi %s204, %s204
              $region43: #{intentgcl_forward.1} parent=39 // loop_header_branch
                %222 = sbr.rel (%p220) target = $region47
              $region44: #{intentgcl_forward.1} parent=39 // loop_body
                %v226 = vld [vmem:[%s224] sm:$0xff]
                %227 = vst [vmem:[%s225] sm:$0xff] %v226
                %v228 = vld [vmem:[%s224 + $0x10] sm:$0xff]
                %229 = vst [vmem:[%s225 + $0x8] sm:$0xff] %v228
                %v230 = vld [vmem:[%s224 + $0x20] sm:$0xff]
                %231 = vst [vmem:[%s225 + $0x10] sm:$0xff] %v230
                %v232 = vld [vmem:[%s224 + $0x30] sm:$0xff]
                %233 = vst [vmem:[%s225 + $0x18] sm:$0xff] %v232
                %v234 = vld [vmem:[%s224 + $0x40] sm:$0xff]
                %235 = vst [vmem:[%s225 + $0x20] sm:$0xff] %v234
                %v236 = vld [vmem:[%s224 + $0x50] sm:$0xff]
                %237 = vst [vmem:[%s225 + $0x28] sm:$0xff] %v236
                %v238 = vld [vmem:[%s224 + $0x60] sm:$0xff]
                %239 = vst [vmem:[%s225 + $0x30] sm:$0xff] %v238
                %v240 = vld [vmem:[%s224 + $0x70] sm:$0xff]
                %241 = vst [vmem:[%s225 + $0x38] sm:$0xff] %v240
              $region45: #{intentgcl_forward.1} parent=39 // loop_footer
                %s223 = sadd.s32 1, %s219
              $region46: #{intentgcl_forward.1} parent=39 // loop_footer_branch
                %218 = sbr.rel target = $region42
              $region47: #{intentgcl_forward.1} parent=39 // loop_exit
                _
            $region40: #{intentgcl_forward.1} parent=31 // pred_fallthru
              _
          $region32: #{intentgcl_forward.1} parent=27 // pred_fallthru
            _
          %270 = vnop
        $region28: #{intentgcl_forward.1} parent=23 // pred_fallthru
          _
        // Predicated region
        $region63: #{intentgcl_forward.1} parent=23 // pred_check
          %p271 = pneg %p120
        $region64: #{intentgcl_forward.1} parent=23 // pred_check_branch
          %273 = sbr.rel (%p271) target = $region66
        $region65: #{intentgcl_forward.1} parent=23 // pred_region
          %p274 = scmp.lt.s32.totalorder %s18, 1
          %s275 = scalar_select %p274, %s18, 1
          %s276 = smul.addr %s275, 4
          %s277 = smul.addr %s276, 8
          %s278 = scalar_lea.vmem %s3, %s277
        $region66: #{intentgcl_forward.1} parent=23 // pred_fallthru
          _
        // Predicated region
        $region67: #{intentgcl_forward.1} parent=23 // pred_check
          %p279 = pneg %p146
        $region68: #{intentgcl_forward.1} parent=23 // pred_check_branch
          %281 = sbr.rel (%p279) target = $region70
        $region69: #{intentgcl_forward.1} parent=23 // pred_region
          %p282 = scmp.lt.s32.totalorder %s18, 1
          %s283 = scalar_select %p282, %s18, 1
          %s284 = scalar_lea.vmem %s4, %s283
        $region70: #{intentgcl_forward.1} parent=23 // pred_fallthru
          _
      $region24: #{intentgcl_forward.1} parent=5 // pred_fallthru
        _
      %p285 = scmp.le.s32.totalorder 1, %s11
      %p286 = scmp.lt.s32.totalorder %s11, 13
      %p287 = pnand %p285, %p286
      %p288 = pneg %p287
      // Predicated region
      $region71: #{intentgcl_forward.1} parent=5 // pred_check
        _
      $region72: #{intentgcl_forward.1} parent=5 // pred_check_branch
        %290 = sbr.rel (%p287) target = $region74
      $region73: #{intentgcl_forward.1} parent=5 // pred_region
        %s291 = ssub.s32 %s11, 1
        %s292 = sand.u32 %s45, 1
        %s293 = sand.u32 %s45, 1
        %s294 = smul.addr %s293, 64
        %s295 = scalar_lea.vmem [#allocation7], %s294
        // Predicated region
        $region75: #{intentgcl_forward.1} parent=73 // pred_check
          %p296 = pneg %p58
        $region76: #{intentgcl_forward.1} parent=73 // pred_check_branch
          %298 = sbr.rel (%p296) target = $region78
        $region77: #{intentgcl_forward.1} parent=73 // pred_region
          _
        $region78: #{intentgcl_forward.1} parent=73 // pred_fallthru
          _
        %s299 = sand.u32 %s45, 1
        %s300 = sand.u32 %s45, 1
        %s301 = smul.addr %s300, 64
        %s302 = scalar_lea.vmem [#allocation7], %s301
        %p303 = pneg %p58
        %p304 = pneg %p55
        %p305 = pneg %p79
        %p306 = pneg %p76
        %p307 = pneg %p100
        %p308 = pneg %p97
        %p309 = scmp.lt.s32.totalorder %s21, 1
        %s310 = scalar_select %p309, %s21, 1
        %s311 = smul.addr %s310, 4
        %s312 = smul.addr %s311, 8
        %s313 = scalar_lea.vmem %s3, %s312
        %p314 = pneg %p126
        %p315 = pneg %p123
        %p316 = scmp.lt.s32.totalorder %s21, 1
        %s317 = scalar_select %p316, %s21, 1
        %s318 = scalar_lea.vmem %s4, %s317
        %p319 = pneg %p152
        %p320 = pneg %p149
        %p321 = pneg %p173
        %p322 = pneg %p170
        %s323 = smul.u32 8, %s22
        %s324 = smul.u32 2, %s23
        %p325 = scmp.lt.s32.totalorder %s21, 1
        %s326 = scalar_select %p325, %s21, 1
        %s327 = smul.addr %s326, 4
        %s328 = smul.addr %s327, 8
        %s329 = scalar_lea.vmem %s3, %s328
        %p330 = scmp.lt.s32.totalorder %s21, 1
        %s331 = scalar_select %p330, %s21, 1
        %s332 = scalar_lea.vmem %s4, %s331
        %p334 = scmp.eq.s32.totalorder %s21, 0
        %p335 = scmp.eq.s32.totalorder %s22, 0
        %p336 = pnand %p334, %p335
        %p337 = pneg %p336
        %p338 = scmp.eq.s32.totalorder %s23, 0
        %p339 = pnand %p337, %p338
        %p340 = pneg %p339
        // Predicated region
        $region79: #{intentgcl_forward.1} parent=73 // pred_check
          _
        $region80: #{intentgcl_forward.1} parent=73 // pred_check_branch
          %342 = sbr.rel (%p339) target = $region82
        $region81: #{intentgcl_forward.1} parent=73 // pred_region
          %v343 = vld [vmem:[%s1] sm:$0xff]
          %v344 = vld [vmem:[%s1 + $0x8] sm:$0xff]
          %v345 = vld [vmem:[%s1 + $0x10] sm:$0xff]
          %v346 = vld [vmem:[%s1 + $0x18] sm:$0xff]
          %v347 = vld [vmem:[%s1 + $0x20] sm:$0xff]
          %v348 = vld [vmem:[%s1 + $0x28] sm:$0xff]
          %v349 = vld [vmem:[%s1 + $0x30] sm:$0xff]
          %v350 = vld [vmem:[%s1 + $0x38] sm:$0xff]
          %v351 = vld [vmem:[%s1 + $0x40] sm:$0xff]
          %v352 = vld [vmem:[%s1 + $0x48] sm:$0xff]
          %v353 = vld [vmem:[%s1 + $0x50] sm:$0xff]
          %v354 = vld [vmem:[%s1 + $0x58] sm:$0xff]
          %v355 = vld [vmem:[%s1 + $0x60] sm:$0xff]
          %v356 = vld [vmem:[%s1 + $0x68] sm:$0xff]
          %v357 = vld [vmem:[%s1 + $0x70] sm:$0xff]
          %v358 = vld [vmem:[%s1 + $0x78] sm:$0xff]
          %v359 = vld [vmem:[%s1 + $0x80] sm:$0xff]
          %v360 = vld [vmem:[%s1 + $0x88] sm:$0xff]
          %v361 = vld [vmem:[%s1 + $0x90] sm:$0xff]
          %v362 = vld [vmem:[%s1 + $0x98] sm:$0xff]
          %v363 = vld [vmem:[%s1 + $0xa0] sm:$0xff]
          %v364 = vld [vmem:[%s1 + $0xa8] sm:$0xff]
          %v365 = vld [vmem:[%s1 + $0xb0] sm:$0xff]
          %v366 = vld [vmem:[%s1 + $0xb8] sm:$0xff]
          %v367 = vld [vmem:[%s1 + $0xc0] sm:$0xff]
          %v368 = vld [vmem:[%s1 + $0xc8] sm:$0xff]
          %v369 = vld [vmem:[%s1 + $0xd0] sm:$0xff]
          %v370 = vld [vmem:[%s1 + $0xd8] sm:$0xff]
          %v371 = vld [vmem:[%s1 + $0xe0] sm:$0xff]
          %v372 = vld [vmem:[%s1 + $0xe8] sm:$0xff]
          %v373 = vld [vmem:[%s1 + $0xf0] sm:$0xff]
          %v374 = vld [vmem:[%s1 + $0xf8] sm:$0xff]
          %v375 = vld [vmem:[%s1 + $0x100] sm:$0xff]
          %v376 = vld [vmem:[%s1 + $0x108] sm:$0xff]
          %v377 = vld [vmem:[%s1 + $0x110] sm:$0xff]
          %v378 = vld [vmem:[%s1 + $0x118] sm:$0xff]
          %v379 = vld [vmem:[%s1 + $0x120] sm:$0xff]
          %v380 = vld [vmem:[%s1 + $0x128] sm:$0xff]
          %v381 = vld [vmem:[%s1 + $0x130] sm:$0xff]
          %v382 = vld [vmem:[%s1 + $0x138] sm:$0xff]
          %v383 = vld [vmem:[%s1 + $0x140] sm:$0xff]
          %v384 = vld [vmem:[%s1 + $0x148] sm:$0xff]
          %v385 = vld [vmem:[%s1 + $0x150] sm:$0xff]
          %v386 = vld [vmem:[%s1 + $0x158] sm:$0xff]
          %v387 = vld [vmem:[%s1 + $0x160] sm:$0xff]
          %v388 = vld [vmem:[%s1 + $0x168] sm:$0xff]
          %v389 = vld [vmem:[%s1 + $0x170] sm:$0xff]
          %v390 = vld [vmem:[%s1 + $0x178] sm:$0xff]
          %v391 = vld [vmem:[%s1 + $0x180] sm:$0xff]
          %v392 = vld [vmem:[%s1 + $0x188] sm:$0xff]
          %v393 = vld [vmem:[%s1 + $0x190] sm:$0xff]
          %v394 = vld [vmem:[%s1 + $0x198] sm:$0xff]
          %v395 = vld [vmem:[%s1 + $0x1a0] sm:$0xff]
          %v396 = vld [vmem:[%s1 + $0x1a8] sm:$0xff]
          %v397 = vld [vmem:[%s1 + $0x1b0] sm:$0xff]
          %v398 = vld [vmem:[%s1 + $0x1b8] sm:$0xff]
          %v399 = vld [vmem:[%s1 + $0x1c0] sm:$0xff]
          %v400 = vld [vmem:[%s1 + $0x1c8] sm:$0xff]
          %v401 = vld [vmem:[%s1 + $0x1d0] sm:$0xff]
          %v402 = vld [vmem:[%s1 + $0x1d8] sm:$0xff]
          %v403 = vld [vmem:[%s1 + $0x1e0] sm:$0xff]
          %v404 = vld [vmem:[%s1 + $0x1e8] sm:$0xff]
          %v405 = vld [vmem:[%s1 + $0x1f0] sm:$0xff]
          %v406 = vld [vmem:[%s1 + $0x1f8] sm:$0xff]
          %v407 = vld [vmem:[%s1 + $0x200] sm:$0xff]
          %v408 = vld [vmem:[%s1 + $0x208] sm:$0xff]
          %v409 = vld [vmem:[%s1 + $0x210] sm:$0xff]
          %v410 = vld [vmem:[%s1 + $0x218] sm:$0xff]
          %v411 = vld [vmem:[%s1 + $0x220] sm:$0xff]
          %v412 = vld [vmem:[%s1 + $0x228] sm:$0xff]
          %v413 = vld [vmem:[%s1 + $0x230] sm:$0xff]
          %v414 = vld [vmem:[%s1 + $0x238] sm:$0xff]
          %v415 = vld [vmem:[%s1 + $0x240] sm:$0xff]
          %v416 = vld [vmem:[%s1 + $0x248] sm:$0xff]
          %v417 = vld [vmem:[%s1 + $0x250] sm:$0xff]
          %v418 = vld [vmem:[%s1 + $0x258] sm:$0xff]
          %v419 = vld [vmem:[%s1 + $0x260] sm:$0xff]
          %v420 = vld [vmem:[%s1 + $0x268] sm:$0xff]
          %v421 = vld [vmem:[%s1 + $0x270] sm:$0xff]
          %v422 = vld [vmem:[%s1 + $0x278] sm:$0xff]
          %v423 = vld [vmem:[%s1 + $0x280] sm:$0xff]
          %v424 = vld [vmem:[%s1 + $0x288] sm:$0xff]
          %v425 = vld [vmem:[%s1 + $0x290] sm:$0xff]
          %v426 = vld [vmem:[%s1 + $0x298] sm:$0xff]
          %v427 = vld [vmem:[%s1 + $0x2a0] sm:$0xff]
          %v428 = vld [vmem:[%s1 + $0x2a8] sm:$0xff]
          %v429 = vld [vmem:[%s1 + $0x2b0] sm:$0xff]
          %v430 = vld [vmem:[%s1 + $0x2b8] sm:$0xff]
          %vm431 = vcmask 261120
          %432 = vst.msk [vmem:[#allocation2] sm:$0xff] %vm431, %v343
          %433 = vst.msk [vmem:[#allocation2 + $0x8] sm:$0xff] %vm431, %v344
          %434 = vst.msk [vmem:[#allocation2 + $0x10] sm:$0xff] %vm431, %v345
          %435 = vst.msk [vmem:[#allocation2 + $0x18] sm:$0xff] %vm431, %v346
          %436 = vst.msk [vmem:[#allocation2 + $0x20] sm:$0xff] %vm431, %v347
          %437 = vst.msk [vmem:[#allocation2 + $0x28] sm:$0xff] %vm431, %v348
          %438 = vst.msk [vmem:[#allocation2 + $0x30] sm:$0xff] %vm431, %v349
          %439 = vst.msk [vmem:[#allocation2 + $0x38] sm:$0xff] %vm431, %v350
          %440 = vst.msk [vmem:[#allocation2 + $0x40] sm:$0xff] %vm431, %v351
          %441 = vst.msk [vmem:[#allocation2 + $0x48] sm:$0xff] %vm431, %v352
          %442 = vst.msk [vmem:[#allocation2 + $0x50] sm:$0xff] %vm431, %v353
          %443 = vst.msk [vmem:[#allocation2 + $0x58] sm:$0xff] %vm431, %v354
          %444 = vst.msk [vmem:[#allocation2 + $0x60] sm:$0xff] %vm431, %v355
          %445 = vst.msk [vmem:[#allocation2 + $0x68] sm:$0xff] %vm431, %v356
          %446 = vst.msk [vmem:[#allocation2 + $0x70] sm:$0xff] %vm431, %v357
          %447 = vst.msk [vmem:[#allocation2 + $0x78] sm:$0xff] %vm431, %v358
          %448 = vst.msk [vmem:[#allocation2 + $0x80] sm:$0xff] %vm431, %v359
          %449 = vst.msk [vmem:[#allocation2 + $0x88] sm:$0xff] %vm431, %v360
          %450 = vst.msk [vmem:[#allocation2 + $0x90] sm:$0xff] %vm431, %v361
          %451 = vst.msk [vmem:[#allocation2 + $0x98] sm:$0xff] %vm431, %v362
          %452 = vst.msk [vmem:[#allocation2 + $0xa0] sm:$0xff] %vm431, %v363
          %453 = vst.msk [vmem:[#allocation2 + $0xa8] sm:$0xff] %vm431, %v364
          %454 = vst.msk [vmem:[#allocation2 + $0xb0] sm:$0xff] %vm431, %v365
          %455 = vst.msk [vmem:[#allocation2 + $0xb8] sm:$0xff] %vm431, %v366
          %456 = vst.msk [vmem:[#allocation2 + $0xc0] sm:$0xff] %vm431, %v367
          %457 = vst.msk [vmem:[#allocation2 + $0xc8] sm:$0xff] %vm431, %v368
          %458 = vst.msk [vmem:[#allocation2 + $0xd0] sm:$0xff] %vm431, %v369
          %459 = vst.msk [vmem:[#allocation2 + $0xd8] sm:$0xff] %vm431, %v370
          %460 = vst.msk [vmem:[#allocation2 + $0xe0] sm:$0xff] %vm431, %v371
          %461 = vst.msk [vmem:[#allocation2 + $0xe8] sm:$0xff] %vm431, %v372
          %462 = vst.msk [vmem:[#allocation2 + $0xf0] sm:$0xff] %vm431, %v373
          %463 = vst.msk [vmem:[#allocation2 + $0xf8] sm:$0xff] %vm431, %v374
          %464 = vst.msk [vmem:[#allocation2 + $0x100] sm:$0xff] %vm431, %v375
          %465 = vst.msk [vmem:[#allocation2 + $0x108] sm:$0xff] %vm431, %v376
          %466 = vst.msk [vmem:[#allocation2 + $0x110] sm:$0xff] %vm431, %v377
          %467 = vst.msk [vmem:[#allocation2 + $0x118] sm:$0xff] %vm431, %v378
          %468 = vst.msk [vmem:[#allocation2 + $0x120] sm:$0xff] %vm431, %v379
          %469 = vst.msk [vmem:[#allocation2 + $0x128] sm:$0xff] %vm431, %v380
          %470 = vst.msk [vmem:[#allocation2 + $0x130] sm:$0xff] %vm431, %v381
          %471 = vst.msk [vmem:[#allocation2 + $0x138] sm:$0xff] %vm431, %v382
          %472 = vst.msk [vmem:[#allocation2 + $0x140] sm:$0xff] %vm431, %v383
          %473 = vst.msk [vmem:[#allocation2 + $0x148] sm:$0xff] %vm431, %v384
          %474 = vst.msk [vmem:[#allocation2 + $0x150] sm:$0xff] %vm431, %v385
          %475 = vst.msk [vmem:[#allocation2 + $0x158] sm:$0xff] %vm431, %v386
          %476 = vst.msk [vmem:[#allocation2 + $0x160] sm:$0xff] %vm431, %v387
          %477 = vst.msk [vmem:[#allocation2 + $0x168] sm:$0xff] %vm431, %v388
          %478 = vst.msk [vmem:[#allocation2 + $0x170] sm:$0xff] %vm431, %v389
          %479 = vst.msk [vmem:[#allocation2 + $0x178] sm:$0xff] %vm431, %v390
          %480 = vst.msk [vmem:[#allocation2 + $0x180] sm:$0xff] %vm431, %v391
          %481 = vst.msk [vmem:[#allocation2 + $0x188] sm:$0xff] %vm431, %v392
          %482 = vst.msk [vmem:[#allocation2 + $0x190] sm:$0xff] %vm431, %v393
          %483 = vst.msk [vmem:[#allocation2 + $0x198] sm:$0xff] %vm431, %v394
          %484 = vst.msk [vmem:[#allocation2 + $0x1a0] sm:$0xff] %vm431, %v395
          %485 = vst.msk [vmem:[#allocation2 + $0x1a8] sm:$0xff] %vm431, %v396
          %486 = vst.msk [vmem:[#allocation2 + $0x1b0] sm:$0xff] %vm431, %v397
          %487 = vst.msk [vmem:[#allocation2 + $0x1b8] sm:$0xff] %vm431, %v398
          %488 = vst.msk [vmem:[#allocation2 + $0x1c0] sm:$0xff] %vm431, %v399
          %489 = vst.msk [vmem:[#allocation2 + $0x1c8] sm:$0xff] %vm431, %v400
          %490 = vst.msk [vmem:[#allocation2 + $0x1d0] sm:$0xff] %vm431, %v401
          %491 = vst.msk [vmem:[#allocation2 + $0x1d8] sm:$0xff] %vm431, %v402
          %492 = vst.msk [vmem:[#allocation2 + $0x1e0] sm:$0xff] %vm431, %v403
          %493 = vst.msk [vmem:[#allocation2 + $0x1e8] sm:$0xff] %vm431, %v404
          %494 = vst.msk [vmem:[#allocation2 + $0x1f0] sm:$0xff] %vm431, %v405
          %495 = vst.msk [vmem:[#allocation2 + $0x1f8] sm:$0xff] %vm431, %v406
          %496 = vst.msk [vmem:[#allocation2 + $0x200] sm:$0xff] %vm431, %v407
          %497 = vst.msk [vmem:[#allocation2 + $0x208] sm:$0xff] %vm431, %v408
          %498 = vst.msk [vmem:[#allocation2 + $0x210] sm:$0xff] %vm431, %v409
          %499 = vst.msk [vmem:[#allocation2 + $0x218] sm:$0xff] %vm431, %v410
          %500 = vst.msk [vmem:[#allocation2 + $0x220] sm:$0xff] %vm431, %v411
          %501 = vst.msk [vmem:[#allocation2 + $0x228] sm:$0xff] %vm431, %v412
          %502 = vst.msk [vmem:[#allocation2 + $0x230] sm:$0xff] %vm431, %v413
          %503 = vst.msk [vmem:[#allocation2 + $0x238] sm:$0xff] %vm431, %v414
          %504 = vst.msk [vmem:[#allocation2 + $0x240] sm:$0xff] %vm431, %v415
          %505 = vst.msk [vmem:[#allocation2 + $0x248] sm:$0xff] %vm431, %v416
          %506 = vst.msk [vmem:[#allocation2 + $0x250] sm:$0xff] %vm431, %v417
          %507 = vst.msk [vmem:[#allocation2 + $0x258] sm:$0xff] %vm431, %v418
          %508 = vst.msk [vmem:[#allocation2 + $0x260] sm:$0xff] %vm431, %v419
          %509 = vst.msk [vmem:[#allocation2 + $0x268] sm:$0xff] %vm431, %v420
          %510 = vst.msk [vmem:[#allocation2 + $0x270] sm:$0xff] %vm431, %v421
          %511 = vst.msk [vmem:[#allocation2 + $0x278] sm:$0xff] %vm431, %v422
          %512 = vst.msk [vmem:[#allocation2 + $0x280] sm:$0xff] %vm431, %v423
          %513 = vst.msk [vmem:[#allocation2 + $0x288] sm:$0xff] %vm431, %v424
          %514 = vst.msk [vmem:[#allocation2 + $0x290] sm:$0xff] %vm431, %v425
          %515 = vst.msk [vmem:[#allocation2 + $0x298] sm:$0xff] %vm431, %v426
          %516 = vst.msk [vmem:[#allocation2 + $0x2a0] sm:$0xff] %vm431, %v427
          %517 = vst.msk [vmem:[#allocation2 + $0x2a8] sm:$0xff] %vm431, %v428
          %518 = vst.msk [vmem:[#allocation2 + $0x2b0] sm:$0xff] %vm431, %v429
          %519 = vst.msk [vmem:[#allocation2 + $0x2b8] sm:$0xff] %vm431, %v430
          %v520 = vpack.c.bf16 %v344, %v343
          %v521 = vpack.c.bf16 %v346, %v345
          %v522 = vpack.c.bf16 %v348, %v347
          %v523 = vpack.c.bf16 %v350, %v349
          %v524 = vpack.c.bf16 %v352, %v351
          %v525 = vpack.c.bf16 %v354, %v353
          %v526 = vpack.c.bf16 %v356, %v355
          %v527 = vpack.c.bf16 %v358, %v357
          %v528 = vpack.c.bf16 %v360, %v359
          %v529 = vpack.c.bf16 %v362, %v361
          %v530 = vpack.c.bf16 %v364, %v363
          %v531 = vpack.c.bf16 %v366, %v365
          %v532 = vpack.c.bf16 %v368, %v367
          %v533 = vpack.c.bf16 %v370, %v369
          %v534 = vpack.c.bf16 %v372, %v371
          %v535 = vpack.c.bf16 %v374, %v373
          %v536 = vpack.c.bf16 %v376, %v375
          %v537 = vpack.c.bf16 %v378, %v377
          %v538 = vpack.c.bf16 %v380, %v379
          %v539 = vpack.c.bf16 %v382, %v381
          %v540 = vpack.c.bf16 %v384, %v383
          %v541 = vpack.c.bf16 %v386, %v385
          %v542 = vpack.c.bf16 %v388, %v387
          %v543 = vpack.c.bf16 %v390, %v389
          %v544 = vpack.c.bf16 %v392, %v391
          %v545 = vpack.c.bf16 %v394, %v393
          %v546 = vpack.c.bf16 %v396, %v395
          %v547 = vpack.c.bf16 %v398, %v397
          %v548 = vpack.c.bf16 %v400, %v399
          %v549 = vpack.c.bf16 %v402, %v401
          %v550 = vpack.c.bf16 %v404, %v403
          %v551 = vpack.c.bf16 %v406, %v405
          %v552 = vpack.c.bf16 %v408, %v407
          %v553 = vpack.c.bf16 %v410, %v409
          %v554 = vpack.c.bf16 %v412, %v411
          %v555 = vpack.c.bf16 %v414, %v413
          %v556 = vpack.c.bf16 %v416, %v415
          %v557 = vpack.c.bf16 %v418, %v417
          %v558 = vpack.c.bf16 %v420, %v419
          %v559 = vpack.c.bf16 %v422, %v421
          %v560 = vpack.c.bf16 %v424, %v423
          %v561 = vpack.c.bf16 %v426, %v425
          %v562 = vpack.c.bf16 %v428, %v427
          %v563 = vpack.c.bf16 %v430, %v429
          %564 = vst.msk [vmem:[#allocation3] sm:$0xff] %vm431, %v520
          %565 = vst.msk [vmem:[#allocation3 + $0x8] sm:$0xff] %vm431, %v521
          %566 = vst.msk [vmem:[#allocation3 + $0x10] sm:$0xff] %vm431, %v522
          %567 = vst.msk [vmem:[#allocation3 + $0x18] sm:$0xff] %vm431, %v523
          %568 = vst.msk [vmem:[#allocation3 + $0x20] sm:$0xff] %vm431, %v524
          %569 = vst.msk [vmem:[#allocation3 + $0x28] sm:$0xff] %vm431, %v525
          %570 = vst.msk [vmem:[#allocation3 + $0x30] sm:$0xff] %vm431, %v526
          %571 = vst.msk [vmem:[#allocation3 + $0x38] sm:$0xff] %vm431, %v527
          %572 = vst.msk [vmem:[#allocation3 + $0x40] sm:$0xff] %vm431, %v528
          %573 = vst.msk [vmem:[#allocation3 + $0x48] sm:$0xff] %vm431, %v529
          %574 = vst.msk [vmem:[#allocation3 + $0x50] sm:$0xff] %vm431, %v530
          %575 = vst.msk [vmem:[#allocation3 + $0x58] sm:$0xff] %vm431, %v531
          %576 = vst.msk [vmem:[#allocation3 + $0x60] sm:$0xff] %vm431, %v532
          %577 = vst.msk [vmem:[#allocation3 + $0x68] sm:$0xff] %vm431, %v533
          %578 = vst.msk [vmem:[#allocation3 + $0x70] sm:$0xff] %vm431, %v534
          %579 = vst.msk [vmem:[#allocation3 + $0x78] sm:$0xff] %vm431, %v535
          %580 = vst.msk [vmem:[#allocation3 + $0x80] sm:$0xff] %vm431, %v536
          %581 = vst.msk [vmem:[#allocation3 + $0x88] sm:$0xff] %vm431, %v537
          %582 = vst.msk [vmem:[#allocation3 + $0x90] sm:$0xff] %vm431, %v538
          %583 = vst.msk [vmem:[#allocation3 + $0x98] sm:$0xff] %vm431, %v539
          %584 = vst.msk [vmem:[#allocation3 + $0xa0] sm:$0xff] %vm431, %v540
          %585 = vst.msk [vmem:[#allocation3 + $0xa8] sm:$0xff] %vm431, %v541
          %586 = vst.msk [vmem:[#allocation3 + $0xb0] sm:$0xff] %vm431, %v542
          %587 = vst.msk [vmem:[#allocation3 + $0xb8] sm:$0xff] %vm431, %v543
          %588 = vst.msk [vmem:[#allocation3 + $0xc0] sm:$0xff] %vm431, %v544
          %589 = vst.msk [vmem:[#allocation3 + $0xc8] sm:$0xff] %vm431, %v545
          %590 = vst.msk [vmem:[#allocation3 + $0xd0] sm:$0xff] %vm431, %v546
          %591 = vst.msk [vmem:[#allocation3 + $0xd8] sm:$0xff] %vm431, %v547
          %592 = vst.msk [vmem:[#allocation3 + $0xe0] sm:$0xff] %vm431, %v548
          %593 = vst.msk [vmem:[#allocation3 + $0xe8] sm:$0xff] %vm431, %v549
          %594 = vst.msk [vmem:[#allocation3 + $0xf0] sm:$0xff] %vm431, %v550
          %595 = vst.msk [vmem:[#allocation3 + $0xf8] sm:$0xff] %vm431, %v551
          %596 = vst.msk [vmem:[#allocation3 + $0x100] sm:$0xff] %vm431, %v552
          %597 = vst.msk [vmem:[#allocation3 + $0x108] sm:$0xff] %vm431, %v553
          %598 = vst.msk [vmem:[#allocation3 + $0x110] sm:$0xff] %vm431, %v554
          %599 = vst.msk [vmem:[#allocation3 + $0x118] sm:$0xff] %vm431, %v555
          %600 = vst.msk [vmem:[#allocation3 + $0x120] sm:$0xff] %vm431, %v556
          %601 = vst.msk [vmem:[#allocation3 + $0x128] sm:$0xff] %vm431, %v557
          %602 = vst.msk [vmem:[#allocation3 + $0x130] sm:$0xff] %vm431, %v558
          %603 = vst.msk [vmem:[#allocation3 + $0x138] sm:$0xff] %vm431, %v559
          %604 = vst.msk [vmem:[#allocation3 + $0x140] sm:$0xff] %vm431, %v560
          %605 = vst.msk [vmem:[#allocation3 + $0x148] sm:$0xff] %vm431, %v561
          %606 = vst.msk [vmem:[#allocation3 + $0x150] sm:$0xff] %vm431, %v562
          %607 = vst.msk [vmem:[#allocation3 + $0x158] sm:$0xff] %vm431, %v563
          %608 = vst.msk [vmem:[#allocation5] sm:$0xff] %vm431, %v343
          %609 = vst.msk [vmem:[#allocation5 + $0x8] sm:$0xff] %vm431, %v344
          %610 = vst.msk [vmem:[#allocation5 + $0x10] sm:$0xff] %vm431, %v345
          %611 = vst.msk [vmem:[#allocation5 + $0x18] sm:$0xff] %vm431, %v346
          %612 = vst.msk [vmem:[#allocation5 + $0x20] sm:$0xff] %vm431, %v347
          %613 = vst.msk [vmem:[#allocation5 + $0x28] sm:$0xff] %vm431, %v348
          %614 = vst.msk [vmem:[#allocation5 + $0x30] sm:$0xff] %vm431, %v349
          %615 = vst.msk [vmem:[#allocation5 + $0x38] sm:$0xff] %vm431, %v350
          %616 = vst.msk [vmem:[#allocation5 + $0x40] sm:$0xff] %vm431, %v351
          %617 = vst.msk [vmem:[#allocation5 + $0x48] sm:$0xff] %vm431, %v352
          %618 = vst.msk [vmem:[#allocation5 + $0x50] sm:$0xff] %vm431, %v353
          %619 = vst.msk [vmem:[#allocation5 + $0x58] sm:$0xff] %vm431, %v354
          %620 = vst.msk [vmem:[#allocation5 + $0x60] sm:$0xff] %vm431, %v355
          %621 = vst.msk [vmem:[#allocation5 + $0x68] sm:$0xff] %vm431, %v356
          %622 = vst.msk [vmem:[#allocation5 + $0x70] sm:$0xff] %vm431, %v357
          %623 = vst.msk [vmem:[#allocation5 + $0x78] sm:$0xff] %vm431, %v358
          %624 = vst.msk [vmem:[#allocation5 + $0x80] sm:$0xff] %vm431, %v359
          %625 = vst.msk [vmem:[#allocation5 + $0x88] sm:$0xff] %vm431, %v360
          %626 = vst.msk [vmem:[#allocation5 + $0x90] sm:$0xff] %vm431, %v361
          %627 = vst.msk [vmem:[#allocation5 + $0x98] sm:$0xff] %vm431, %v362
          %628 = vst.msk [vmem:[#allocation5 + $0xa0] sm:$0xff] %vm431, %v363
          %629 = vst.msk [vmem:[#allocation5 + $0xa8] sm:$0xff] %vm431, %v364
          %630 = vst.msk [vmem:[#allocation5 + $0xb0] sm:$0xff] %vm431, %v365
          %631 = vst.msk [vmem:[#allocation5 + $0xb8] sm:$0xff] %vm431, %v366
          %632 = vst.msk [vmem:[#allocation5 + $0xc0] sm:$0xff] %vm431, %v367
          %633 = vst.msk [vmem:[#allocation5 + $0xc8] sm:$0xff] %vm431, %v368
          %634 = vst.msk [vmem:[#allocation5 + $0xd0] sm:$0xff] %vm431, %v369
          %635 = vst.msk [vmem:[#allocation5 + $0xd8] sm:$0xff] %vm431, %v370
          %636 = vst.msk [vmem:[#allocation5 + $0xe0] sm:$0xff] %vm431, %v371
          %637 = vst.msk [vmem:[#allocation5 + $0xe8] sm:$0xff] %vm431, %v372
          %638 = vst.msk [vmem:[#allocation5 + $0xf0] sm:$0xff] %vm431, %v373
          %639 = vst.msk [vmem:[#allocation5 + $0xf8] sm:$0xff] %vm431, %v374
          %640 = vst.msk [vmem:[#allocation5 + $0x100] sm:$0xff] %vm431, %v375
          %641 = vst.msk [vmem:[#allocation5 + $0x108] sm:$0xff] %vm431, %v376
          %642 = vst.msk [vmem:[#allocation5 + $0x110] sm:$0xff] %vm431, %v377
          %643 = vst.msk [vmem:[#allocation5 + $0x118] sm:$0xff] %vm431, %v378
          %644 = vst.msk [vmem:[#allocation5 + $0x120] sm:$0xff] %vm431, %v379
          %645 = vst.msk [vmem:[#allocation5 + $0x128] sm:$0xff] %vm431, %v380
          %646 = vst.msk [vmem:[#allocation5 + $0x130] sm:$0xff] %vm431, %v381
          %647 = vst.msk [vmem:[#allocation5 + $0x138] sm:$0xff] %vm431, %v382
          %648 = vst.msk [vmem:[#allocation5 + $0x140] sm:$0xff] %vm431, %v383
          %649 = vst.msk [vmem:[#allocation5 + $0x148] sm:$0xff] %vm431, %v384
          %650 = vst.msk [vmem:[#allocation5 + $0x150] sm:$0xff] %vm431, %v385
          %651 = vst.msk [vmem:[#allocation5 + $0x158] sm:$0xff] %vm431, %v386
          %652 = vst.msk [vmem:[#allocation5 + $0x160] sm:$0xff] %vm431, %v387
          %653 = vst.msk [vmem:[#allocation5 + $0x168] sm:$0xff] %vm431, %v388
          %654 = vst.msk [vmem:[#allocation5 + $0x170] sm:$0xff] %vm431, %v389
          %655 = vst.msk [vmem:[#allocation5 + $0x178] sm:$0xff] %vm431, %v390
          %656 = vst.msk [vmem:[#allocation5 + $0x180] sm:$0xff] %vm431, %v391
          %657 = vst.msk [vmem:[#allocation5 + $0x188] sm:$0xff] %vm431, %v392
          %658 = vst.msk [vmem:[#allocation5 + $0x190] sm:$0xff] %vm431, %v393
          %659 = vst.msk [vmem:[#allocation5 + $0x198] sm:$0xff] %vm431, %v394
          %660 = vst.msk [vmem:[#allocation5 + $0x1a0] sm:$0xff] %vm431, %v395
          %661 = vst.msk [vmem:[#allocation5 + $0x1a8] sm:$0xff] %vm431, %v396
          %662 = vst.msk [vmem:[#allocation5 + $0x1b0] sm:$0xff] %vm431, %v397
          %663 = vst.msk [vmem:[#allocation5 + $0x1b8] sm:$0xff] %vm431, %v398
          %664 = vst.msk [vmem:[#allocation5 + $0x1c0] sm:$0xff] %vm431, %v399
          %665 = vst.msk [vmem:[#allocation5 + $0x1c8] sm:$0xff] %vm431, %v400
          %666 = vst.msk [vmem:[#allocation5 + $0x1d0] sm:$0xff] %vm431, %v401
          %667 = vst.msk [vmem:[#allocation5 + $0x1d8] sm:$0xff] %vm431, %v402
          %668 = vst.msk [vmem:[#allocation5 + $0x1e0] sm:$0xff] %vm431, %v403
          %669 = vst.msk [vmem:[#allocation5 + $0x1e8] sm:$0xff] %vm431, %v404
          %670 = vst.msk [vmem:[#allocation5 + $0x1f0] sm:$0xff] %vm431, %v405
          %671 = vst.msk [vmem:[#allocation5 + $0x1f8] sm:$0xff] %vm431, %v406
          %672 = vst.msk [vmem:[#allocation5 + $0x200] sm:$0xff] %vm431, %v407
          %673 = vst.msk [vmem:[#allocation5 + $0x208] sm:$0xff] %vm431, %v408
          %674 = vst.msk [vmem:[#allocation5 + $0x210] sm:$0xff] %vm431, %v409
          %675 = vst.msk [vmem:[#allocation5 + $0x218] sm:$0xff] %vm431, %v410
          %676 = vst.msk [vmem:[#allocation5 + $0x220] sm:$0xff] %vm431, %v411
          %677 = vst.msk [vmem:[#allocation5 + $0x228] sm:$0xff] %vm431, %v412
          %678 = vst.msk [vmem:[#allocation5 + $0x230] sm:$0xff] %vm431, %v413
          %679 = vst.msk [vmem:[#allocation5 + $0x238] sm:$0xff] %vm431, %v414
          %680 = vst.msk [vmem:[#allocation5 + $0x240] sm:$0xff] %vm431, %v415
          %681 = vst.msk [vmem:[#allocation5 + $0x248] sm:$0xff] %vm431, %v416
          %682 = vst.msk [vmem:[#allocation5 + $0x250] sm:$0xff] %vm431, %v417
          %683 = vst.msk [vmem:[#allocation5 + $0x258] sm:$0xff] %vm431, %v418
          %684 = vst.msk [vmem:[#allocation5 + $0x260] sm:$0xff] %vm431, %v419
          %685 = vst.msk [vmem:[#allocation5 + $0x268] sm:$0xff] %vm431, %v420
          %686 = vst.msk [vmem:[#allocation5 + $0x270] sm:$0xff] %vm431, %v421
          %687 = vst.msk [vmem:[#allocation5 + $0x278] sm:$0xff] %vm431, %v422
          %688 = vst.msk [vmem:[#allocation5 + $0x280] sm:$0xff] %vm431, %v423
          %689 = vst.msk [vmem:[#allocation5 + $0x288] sm:$0xff] %vm431, %v424
          %690 = vst.msk [vmem:[#allocation5 + $0x290] sm:$0xff] %vm431, %v425
          %691 = vst.msk [vmem:[#allocation5 + $0x298] sm:$0xff] %vm431, %v426
          %692 = vst.msk [vmem:[#allocation5 + $0x2a0] sm:$0xff] %vm431, %v427
          %693 = vst.msk [vmem:[#allocation5 + $0x2a8] sm:$0xff] %vm431, %v428
          %694 = vst.msk [vmem:[#allocation5 + $0x2b0] sm:$0xff] %vm431, %v429
          %695 = vst.msk [vmem:[#allocation5 + $0x2b8] sm:$0xff] %vm431, %v430
          %696 = vst.msk [vmem:[#allocation6] sm:$0xff] %vm431, 0.0
          %697 = vst.msk [vmem:[#allocation6 + $0x8] sm:$0xff] %vm431, 0.0
          %698 = vst.msk [vmem:[#allocation6 + $0x10] sm:$0xff] %vm431, 0.0
          %699 = vst.msk [vmem:[#allocation6 + $0x18] sm:$0xff] %vm431, 0.0
          %700 = vst.msk [vmem:[#allocation6 + $0x20] sm:$0xff] %vm431, 0.0
          %701 = vst.msk [vmem:[#allocation6 + $0x28] sm:$0xff] %vm431, 0.0
          %702 = vst.msk [vmem:[#allocation6 + $0x30] sm:$0xff] %vm431, 0.0
          %703 = vst.msk [vmem:[#allocation6 + $0x38] sm:$0xff] %vm431, 0.0
          %704 = vst.msk [vmem:[#allocation6 + $0x40] sm:$0xff] %vm431, 0.0
          %705 = vst.msk [vmem:[#allocation6 + $0x48] sm:$0xff] %vm431, 0.0
          %706 = vst.msk [vmem:[#allocation6 + $0x50] sm:$0xff] %vm431, 0.0
          %707 = vst.msk [vmem:[#allocation6 + $0x58] sm:$0xff] %vm431, 0.0
          %708 = vst.msk [vmem:[#allocation6 + $0x60] sm:$0xff] %vm431, 0.0
          %709 = vst.msk [vmem:[#allocation6 + $0x68] sm:$0xff] %vm431, 0.0
          %710 = vst.msk [vmem:[#allocation6 + $0x70] sm:$0xff] %vm431, 0.0
          %711 = vst.msk [vmem:[#allocation6 + $0x78] sm:$0xff] %vm431, 0.0
          %712 = vst.msk [vmem:[#allocation6 + $0x80] sm:$0xff] %vm431, 0.0
          %713 = vst.msk [vmem:[#allocation6 + $0x88] sm:$0xff] %vm431, 0.0
          %714 = vst.msk [vmem:[#allocation6 + $0x90] sm:$0xff] %vm431, 0.0
          %715 = vst.msk [vmem:[#allocation6 + $0x98] sm:$0xff] %vm431, 0.0
          %716 = vst.msk [vmem:[#allocation6 + $0xa0] sm:$0xff] %vm431, 0.0
          %717 = vst.msk [vmem:[#allocation6 + $0xa8] sm:$0xff] %vm431, 0.0
          %718 = vst.msk [vmem:[#allocation6 + $0xb0] sm:$0xff] %vm431, 0.0
          %719 = vst.msk [vmem:[#allocation6 + $0xb8] sm:$0xff] %vm431, 0.0
          %720 = vst.msk [vmem:[#allocation6 + $0xc0] sm:$0xff] %vm431, 0.0
          %721 = vst.msk [vmem:[#allocation6 + $0xc8] sm:$0xff] %vm431, 0.0
          %722 = vst.msk [vmem:[#allocation6 + $0xd0] sm:$0xff] %vm431, 0.0
          %723 = vst.msk [vmem:[#allocation6 + $0xd8] sm:$0xff] %vm431, 0.0
          %724 = vst.msk [vmem:[#allocation6 + $0xe0] sm:$0xff] %vm431, 0.0
          %725 = vst.msk [vmem:[#allocation6 + $0xe8] sm:$0xff] %vm431, 0.0
          %726 = vst.msk [vmem:[#allocation6 + $0xf0] sm:$0xff] %vm431, 0.0
          %727 = vst.msk [vmem:[#allocation6 + $0xf8] sm:$0xff] %vm431, 0.0
          %728 = vst.msk [vmem:[#allocation6 + $0x100] sm:$0xff] %vm431, 0.0
          %729 = vst.msk [vmem:[#allocation6 + $0x108] sm:$0xff] %vm431, 0.0
          %730 = vst.msk [vmem:[#allocation6 + $0x110] sm:$0xff] %vm431, 0.0
          %731 = vst.msk [vmem:[#allocation6 + $0x118] sm:$0xff] %vm431, 0.0
          %732 = vst.msk [vmem:[#allocation6 + $0x120] sm:$0xff] %vm431, 0.0
          %733 = vst.msk [vmem:[#allocation6 + $0x128] sm:$0xff] %vm431, 0.0
          %734 = vst.msk [vmem:[#allocation6 + $0x130] sm:$0xff] %vm431, 0.0
          %735 = vst.msk [vmem:[#allocation6 + $0x138] sm:$0xff] %vm431, 0.0
          %736 = vst.msk [vmem:[#allocation6 + $0x140] sm:$0xff] %vm431, 0.0
          %737 = vst.msk [vmem:[#allocation6 + $0x148] sm:$0xff] %vm431, 0.0
          %738 = vst.msk [vmem:[#allocation6 + $0x150] sm:$0xff] %vm431, 0.0
          %739 = vst.msk [vmem:[#allocation6 + $0x158] sm:$0xff] %vm431, 0.0
          %740 = vst.msk [vmem:[#allocation6 + $0x160] sm:$0xff] %vm431, 0.0
          %741 = vst.msk [vmem:[#allocation6 + $0x168] sm:$0xff] %vm431, 0.0
          %742 = vst.msk [vmem:[#allocation6 + $0x170] sm:$0xff] %vm431, 0.0
          %743 = vst.msk [vmem:[#allocation6 + $0x178] sm:$0xff] %vm431, 0.0
          %744 = vst.msk [vmem:[#allocation6 + $0x180] sm:$0xff] %vm431, 0.0
          %745 = vst.msk [vmem:[#allocation6 + $0x188] sm:$0xff] %vm431, 0.0
          %746 = vst.msk [vmem:[#allocation6 + $0x190] sm:$0xff] %vm431, 0.0
          %747 = vst.msk [vmem:[#allocation6 + $0x198] sm:$0xff] %vm431, 0.0
          %748 = vst.msk [vmem:[#allocation6 + $0x1a0] sm:$0xff] %vm431, 0.0
          %749 = vst.msk [vmem:[#allocation6 + $0x1a8] sm:$0xff] %vm431, 0.0
          %750 = vst.msk [vmem:[#allocation6 + $0x1b0] sm:$0xff] %vm431, 0.0
          %751 = vst.msk [vmem:[#allocation6 + $0x1b8] sm:$0xff] %vm431, 0.0
          %752 = vst.msk [vmem:[#allocation6 + $0x1c0] sm:$0xff] %vm431, 0.0
          %753 = vst.msk [vmem:[#allocation6 + $0x1c8] sm:$0xff] %vm431, 0.0
          %754 = vst.msk [vmem:[#allocation6 + $0x1d0] sm:$0xff] %vm431, 0.0
          %755 = vst.msk [vmem:[#allocation6 + $0x1d8] sm:$0xff] %vm431, 0.0
          %756 = vst.msk [vmem:[#allocation6 + $0x1e0] sm:$0xff] %vm431, 0.0
          %757 = vst.msk [vmem:[#allocation6 + $0x1e8] sm:$0xff] %vm431, 0.0
          %758 = vst.msk [vmem:[#allocation6 + $0x1f0] sm:$0xff] %vm431, 0.0
          %759 = vst.msk [vmem:[#allocation6 + $0x1f8] sm:$0xff] %vm431, 0.0
          %760 = vst.msk [vmem:[#allocation6 + $0x200] sm:$0xff] %vm431, 0.0
          %761 = vst.msk [vmem:[#allocation6 + $0x208] sm:$0xff] %vm431, 0.0
          %762 = vst.msk [vmem:[#allocation6 + $0x210] sm:$0xff] %vm431, 0.0
          %763 = vst.msk [vmem:[#allocation6 + $0x218] sm:$0xff] %vm431, 0.0
          %764 = vst.msk [vmem:[#allocation6 + $0x220] sm:$0xff] %vm431, 0.0
          %765 = vst.msk [vmem:[#allocation6 + $0x228] sm:$0xff] %vm431, 0.0
          %766 = vst.msk [vmem:[#allocation6 + $0x230] sm:$0xff] %vm431, 0.0
          %767 = vst.msk [vmem:[#allocation6 + $0x238] sm:$0xff] %vm431, 0.0
          %768 = vst.msk [vmem:[#allocation6 + $0x240] sm:$0xff] %vm431, 0.0
          %769 = vst.msk [vmem:[#allocation6 + $0x248] sm:$0xff] %vm431, 0.0
          %770 = vst.msk [vmem:[#allocation6 + $0x250] sm:$0xff] %vm431, 0.0
          %771 = vst.msk [vmem:[#allocation6 + $0x258] sm:$0xff] %vm431, 0.0
          %772 = vst.msk [vmem:[#allocation6 + $0x260] sm:$0xff] %vm431, 0.0
          %773 = vst.msk [vmem:[#allocation6 + $0x268] sm:$0xff] %vm431, 0.0
          %774 = vst.msk [vmem:[#allocation6 + $0x270] sm:$0xff] %vm431, 0.0
          %775 = vst.msk [vmem:[#allocation6 + $0x278] sm:$0xff] %vm431, 0.0
          %776 = vst.msk [vmem:[#allocation6 + $0x280] sm:$0xff] %vm431, 0.0
          %777 = vst.msk [vmem:[#allocation6 + $0x288] sm:$0xff] %vm431, 0.0
          %778 = vst.msk [vmem:[#allocation6 + $0x290] sm:$0xff] %vm431, 0.0
          %779 = vst.msk [vmem:[#allocation6 + $0x298] sm:$0xff] %vm431, 0.0
          %780 = vst.msk [vmem:[#allocation6 + $0x2a0] sm:$0xff] %vm431, 0.0
          %781 = vst.msk [vmem:[#allocation6 + $0x2a8] sm:$0xff] %vm431, 0.0
          %782 = vst.msk [vmem:[#allocation6 + $0x2b0] sm:$0xff] %vm431, 0.0
          %783 = vst.msk [vmem:[#allocation6 + $0x2b8] sm:$0xff] %vm431, 0.0
        $region82: #{intentgcl_forward.1} parent=73 // pred_fallthru
          _
        %p784 = pnand %p335, %p338
        %p785 = pneg %p784
        // Predicated region
        $region83: #{intentgcl_forward.1} parent=73 // pred_check
          _
        $region84: #{intentgcl_forward.1} parent=73 // pred_check_branch
          %787 = sbr.rel (%p784) target = $region86
        $region85: #{intentgcl_forward.1} parent=73 // pred_region
          %vm788 = vcmask 261120
          %789 = vst.msk [vmem:[#allocation4] sm:$0xff] %vm788, 0.0
          %790 = vst.msk [vmem:[#allocation4 + $0x8] sm:$0xff] %vm788, 0.0
          %791 = vst.msk [vmem:[#allocation4 + $0x10] sm:$0xff] %vm788, 0.0
          %792 = vst.msk [vmem:[#allocation4 + $0x18] sm:$0xff] %vm788, 0.0
          %793 = vst.msk [vmem:[#allocation4 + $0x20] sm:$0xff] %vm788, 0.0
          %794 = vst.msk [vmem:[#allocation4 + $0x28] sm:$0xff] %vm788, 0.0
          %795 = vst.msk [vmem:[#allocation4 + $0x30] sm:$0xff] %vm788, 0.0
          %796 = vst.msk [vmem:[#allocation4 + $0x38] sm:$0xff] %vm788, 0.0
          %797 = vst.msk [vmem:[#allocation4 + $0x40] sm:$0xff] %vm788, 0.0
          %798 = vst.msk [vmem:[#allocation4 + $0x48] sm:$0xff] %vm788, 0.0
          %799 = vst.msk [vmem:[#allocation4 + $0x50] sm:$0xff] %vm788, 0.0
          %800 = vst.msk [vmem:[#allocation4 + $0x58] sm:$0xff] %vm788, 0.0
          %801 = vst.msk [vmem:[#allocation4 + $0x60] sm:$0xff] %vm788, 0.0
          %802 = vst.msk [vmem:[#allocation4 + $0x68] sm:$0xff] %vm788, 0.0
          %803 = vst.msk [vmem:[#allocation4 + $0x70] sm:$0xff] %vm788, 0.0
          %804 = vst.msk [vmem:[#allocation4 + $0x78] sm:$0xff] %vm788, 0.0
          %805 = vst.msk [vmem:[#allocation4 + $0x80] sm:$0xff] %vm788, 0.0
          %806 = vst.msk [vmem:[#allocation4 + $0x88] sm:$0xff] %vm788, 0.0
          %807 = vst.msk [vmem:[#allocation4 + $0x90] sm:$0xff] %vm788, 0.0
          %808 = vst.msk [vmem:[#allocation4 + $0x98] sm:$0xff] %vm788, 0.0
          %809 = vst.msk [vmem:[#allocation4 + $0xa0] sm:$0xff] %vm788, 0.0
          %810 = vst.msk [vmem:[#allocation4 + $0xa8] sm:$0xff] %vm788, 0.0
          %811 = vst.msk [vmem:[#allocation4 + $0xb0] sm:$0xff] %vm788, 0.0
          %812 = vst.msk [vmem:[#allocation4 + $0xb8] sm:$0xff] %vm788, 0.0
          %813 = vst.msk [vmem:[#allocation4 + $0xc0] sm:$0xff] %vm788, 0.0
          %814 = vst.msk [vmem:[#allocation4 + $0xc8] sm:$0xff] %vm788, 0.0
          %815 = vst.msk [vmem:[#allocation4 + $0xd0] sm:$0xff] %vm788, 0.0
          %816 = vst.msk [vmem:[#allocation4 + $0xd8] sm:$0xff] %vm788, 0.0
          %817 = vst.msk [vmem:[#allocation4 + $0xe0] sm:$0xff] %vm788, 0.0
          %818 = vst.msk [vmem:[#allocation4 + $0xe8] sm:$0xff] %vm788, 0.0
          %819 = vst.msk [vmem:[#allocation4 + $0xf0] sm:$0xff] %vm788, 0.0
          %820 = vst.msk [vmem:[#allocation4 + $0xf8] sm:$0xff] %vm788, 0.0
          %821 = vst.msk [vmem:[#allocation4 + $0x100] sm:$0xff] %vm788, 0.0
          %822 = vst.msk [vmem:[#allocation4 + $0x108] sm:$0xff] %vm788, 0.0
          %823 = vst.msk [vmem:[#allocation4 + $0x110] sm:$0xff] %vm788, 0.0
          %824 = vst.msk [vmem:[#allocation4 + $0x118] sm:$0xff] %vm788, 0.0
          %825 = vst.msk [vmem:[#allocation4 + $0x120] sm:$0xff] %vm788, 0.0
          %826 = vst.msk [vmem:[#allocation4 + $0x128] sm:$0xff] %vm788, 0.0
          %827 = vst.msk [vmem:[#allocation4 + $0x130] sm:$0xff] %vm788, 0.0
          %828 = vst.msk [vmem:[#allocation4 + $0x138] sm:$0xff] %vm788, 0.0
          %829 = vst.msk [vmem:[#allocation4 + $0x140] sm:$0xff] %vm788, 0.0
          %830 = vst.msk [vmem:[#allocation4 + $0x148] sm:$0xff] %vm788, 0.0
          %831 = vst.msk [vmem:[#allocation4 + $0x150] sm:$0xff] %vm788, 0.0
          %832 = vst.msk [vmem:[#allocation4 + $0x158] sm:$0xff] %vm788, 0.0
          %833 = vst.msk [vmem:[#allocation4 + $0x160] sm:$0xff] %vm788, 0.0
          %834 = vst.msk [vmem:[#allocation4 + $0x168] sm:$0xff] %vm788, 0.0
          %835 = vst.msk [vmem:[#allocation4 + $0x170] sm:$0xff] %vm788, 0.0
          %836 = vst.msk [vmem:[#allocation4 + $0x178] sm:$0xff] %vm788, 0.0
          %837 = vst.msk [vmem:[#allocation4 + $0x180] sm:$0xff] %vm788, 0.0
          %838 = vst.msk [vmem:[#allocation4 + $0x188] sm:$0xff] %vm788, 0.0
          %839 = vst.msk [vmem:[#allocation4 + $0x190] sm:$0xff] %vm788, 0.0
          %840 = vst.msk [vmem:[#allocation4 + $0x198] sm:$0xff] %vm788, 0.0
          %841 = vst.msk [vmem:[#allocation4 + $0x1a0] sm:$0xff] %vm788, 0.0
          %842 = vst.msk [vmem:[#allocation4 + $0x1a8] sm:$0xff] %vm788, 0.0
          %843 = vst.msk [vmem:[#allocation4 + $0x1b0] sm:$0xff] %vm788, 0.0
          %844 = vst.msk [vmem:[#allocation4 + $0x1b8] sm:$0xff] %vm788, 0.0
          %845 = vst.msk [vmem:[#allocation4 + $0x1c0] sm:$0xff] %vm788, 0.0
          %846 = vst.msk [vmem:[#allocation4 + $0x1c8] sm:$0xff] %vm788, 0.0
          %847 = vst.msk [vmem:[#allocation4 + $0x1d0] sm:$0xff] %vm788, 0.0
          %848 = vst.msk [vmem:[#allocation4 + $0x1d8] sm:$0xff] %vm788, 0.0
          %849 = vst.msk [vmem:[#allocation4 + $0x1e0] sm:$0xff] %vm788, 0.0
          %850 = vst.msk [vmem:[#allocation4 + $0x1e8] sm:$0xff] %vm788, 0.0
          %851 = vst.msk [vmem:[#allocation4 + $0x1f0] sm:$0xff] %vm788, 0.0
          %852 = vst.msk [vmem:[#allocation4 + $0x1f8] sm:$0xff] %vm788, 0.0
          %853 = vst.msk [vmem:[#allocation4 + $0x200] sm:$0xff] %vm788, 0.0
          %854 = vst.msk [vmem:[#allocation4 + $0x208] sm:$0xff] %vm788, 0.0
          %855 = vst.msk [vmem:[#allocation4 + $0x210] sm:$0xff] %vm788, 0.0
          %856 = vst.msk [vmem:[#allocation4 + $0x218] sm:$0xff] %vm788, 0.0
          %857 = vst.msk [vmem:[#allocation4 + $0x220] sm:$0xff] %vm788, 0.0
          %858 = vst.msk [vmem:[#allocation4 + $0x228] sm:$0xff] %vm788, 0.0
          %859 = vst.msk [vmem:[#allocation4 + $0x230] sm:$0xff] %vm788, 0.0
          %860 = vst.msk [vmem:[#allocation4 + $0x238] sm:$0xff] %vm788, 0.0
          %861 = vst.msk [vmem:[#allocation4 + $0x240] sm:$0xff] %vm788, 0.0
          %862 = vst.msk [vmem:[#allocation4 + $0x248] sm:$0xff] %vm788, 0.0
          %863 = vst.msk [vmem:[#allocation4 + $0x250] sm:$0xff] %vm788, 0.0
          %864 = vst.msk [vmem:[#allocation4 + $0x258] sm:$0xff] %vm788, 0.0
          %865 = vst.msk [vmem:[#allocation4 + $0x260] sm:$0xff] %vm788, 0.0
          %866 = vst.msk [vmem:[#allocation4 + $0x268] sm:$0xff] %vm788, 0.0
          %867 = vst.msk [vmem:[#allocation4 + $0x270] sm:$0xff] %vm788, 0.0
          %868 = vst.msk [vmem:[#allocation4 + $0x278] sm:$0xff] %vm788, 0.0
          %869 = vst.msk [vmem:[#allocation4 + $0x280] sm:$0xff] %vm788, 0.0
          %870 = vst.msk [vmem:[#allocation4 + $0x288] sm:$0xff] %vm788, 0.0
          %871 = vst.msk [vmem:[#allocation4 + $0x290] sm:$0xff] %vm788, 0.0
          %872 = vst.msk [vmem:[#allocation4 + $0x298] sm:$0xff] %vm788, 0.0
          %873 = vst.msk [vmem:[#allocation4 + $0x2a0] sm:$0xff] %vm788, 0.0
          %874 = vst.msk [vmem:[#allocation4 + $0x2a8] sm:$0xff] %vm788, 0.0
          %875 = vst.msk [vmem:[#allocation4 + $0x2b0] sm:$0xff] %vm788, 0.0
          %876 = vst.msk [vmem:[#allocation4 + $0x2b8] sm:$0xff] %vm788, 0.0
        $region86: #{intentgcl_forward.1} parent=73 // pred_fallthru
          _
        %s877 = smul.u32 %s22, 64
        %s878 = smul.u32 %s23, 256
        %s879 = sadd.s32 %s878, 192
        %v880 = vld [vmem:[%s295] sm:$0xff]
        %v881 = vld [vmem:[%s295 + $0x8] sm:$0xff]
        %v882 = vld [vmem:[%s295 + $0x10] sm:$0xff]
        %v883 = vld [vmem:[%s295 + $0x18] sm:$0xff]
        %v884 = vld [vmem:[%s295 + $0x20] sm:$0xff]
        %v885 = vld [vmem:[%s295 + $0x28] sm:$0xff]
        %v886 = vld [vmem:[%s295 + $0x30] sm:$0xff]
        %v887 = vld [vmem:[%s295 + $0x38] sm:$0xff]
        %s888 = scalar_lea.vmem [#allocation4], %s877
        %v889 = vld [vmem:[%s888] sm:$0xff]
        %v890 = vld [vmem:[%s888 + $0x8] sm:$0xff]
        %v891 = vld [vmem:[%s888 + $0x10] sm:$0xff]
        %v892 = vld [vmem:[%s888 + $0x18] sm:$0xff]
        %v893 = vld [vmem:[%s888 + $0x20] sm:$0xff]
        %v894 = vld [vmem:[%s888 + $0x28] sm:$0xff]
        %v895 = vld [vmem:[%s888 + $0x30] sm:$0xff]
        %v896 = vld [vmem:[%s888 + $0x38] sm:$0xff]
        %s897 = sshra.s32 %s879, 4
        %s898 = sand.u32 %s879, 15
        %s899 = smul.addr %s897, 8
        %s900 = scalar_lea.vmem [#allocation3], %s899
        %v901 = vld [vmem:[%s900] sm:$0xff]
        %v902 = vld [vmem:[%s900 + $0x8] sm:$0xff]
        %v903 = vld [vmem:[%s900 + $0x10] sm:$0xff]
        %v904 = vld [vmem:[%s900 + $0x18] sm:$0xff]
        %v905 = vld [vmem:[%s900 + $0x20] sm:$0xff]
        %v906 = vld [vmem:[%s900 + $0x28] sm:$0xff]
        %v907 = vld [vmem:[%s900 + $0x30] sm:$0xff]
        %v908 = vld [vmem:[%s900 + $0x38] sm:$0xff]
        %v909 = vld [vmem:[%s900 + $0x40] sm:$0xff]
        %v910 = vld [vmem:[%s900 + $0x48] sm:$0xff]
        %v911 = vld [vmem:[%s900 + $0x50] sm:$0xff]
        %v912 = vld [vmem:[%s900 + $0x58] sm:$0xff]
        %v913 = vld [vmem:[%s900 + $0x60] sm:$0xff]
        %v914 = vld [vmem:[%s900 + $0x68] sm:$0xff]
        %v915 = vld [vmem:[%s900 + $0x70] sm:$0xff]
        %v916 = vld [vmem:[%s900 + $0x78] sm:$0xff]
        %v925 = vunpack.c.l.b16 %v880
        %v926 = vunpack.c.h.b16 %v880
        %v927 = vunpack.c.l.b16 %v881
        %v928 = vunpack.c.h.b16 %v881
        %v929 = vunpack.c.l.b16 %v882
        %v930 = vunpack.c.h.b16 %v882
        %v931 = vunpack.c.l.b16 %v883
        %v932 = vunpack.c.h.b16 %v883
        %v933 = vunpack.c.l.b16 %v884
        %v934 = vunpack.c.h.b16 %v884
        %v935 = vunpack.c.l.b16 %v885
        %v936 = vunpack.c.h.b16 %v885
        %v937 = vunpack.c.l.b16 %v886
        %v938 = vunpack.c.h.b16 %v886
        %v939 = vunpack.c.l.b16 %v887
        %v940 = vunpack.c.h.b16 %v887
        %v941 = vpack.c.b16 %v927, %v925
        %v942 = vpack.c.b16 %v928, %v926
        %v943 = vpack.c.b16 %v931, %v929
        %v944 = vpack.c.b16 %v932, %v930
        %v945 = vpack.c.b16 %v935, %v933
        %v946 = vpack.c.b16 %v936, %v934
        %v947 = vpack.c.b16 %v939, %v937
        %v948 = vpack.c.b16 %v940, %v938
        %957 = vmatprep.subr.bf16.mxu0 0
        %958 = vmatpush1.bf16.msra.mxu0 %v901
        %959 = vmatprep.subr.bf16.mxu0 0
        %960 = vmatpush1.bf16.msra.mxu0 %v902
        %961 = vmatprep.subr.bf16.mxu0 0
        %962 = vmatpush1.bf16.msra.mxu0 %v903
        %963 = vmatprep.subr.bf16.mxu0 0
        %964 = vmatpush1.bf16.msra.mxu0 %v904
        %965 = vmatprep.subr.bf16.mxu0 0
        %966 = vmatpush1.bf16.msra.mxu0 %v905
        %967 = vmatprep.subr.bf16.mxu0 0
        %968 = vmatpush1.bf16.msra.mxu0 %v906
        %969 = vmatprep.subr.bf16.mxu0 0
        %970 = vmatpush1.bf16.msra.mxu0 %v907
        %971 = vmatprep.subr.bf16.mxu0 0
        %972 = vmatpush1.bf16.msra.mxu0 %v908
        %973 = vmatprep.subr.bf16.mxu0 0
        %974 = vmatpush1.bf16.msra.mxu0 %v909
        %975 = vmatprep.subr.bf16.mxu0 0
        %976 = vmatpush1.bf16.msra.mxu0 %v910
        %977 = vmatprep.subr.bf16.mxu0 0
        %978 = vmatpush1.bf16.msra.mxu0 %v911
        %979 = vmatprep.subr.bf16.mxu0 0
        %980 = vmatpush1.bf16.msra.mxu0 %v912
        %981 = vmatprep.subr.bf16.mxu0 0
        %982 = vmatpush1.bf16.msra.mxu0 %v913
        %983 = vmatprep.subr.bf16.mxu0 0
        %984 = vmatpush1.bf16.msra.mxu0 %v914
        %985 = vmatprep.subr.bf16.mxu0 0
        %986 = vmatpush1.bf16.msra.mxu0 %v915
        %987 = vmatprep.subr.bf16.mxu0 0
        %988 = vmatpush1.bf16.msra.mxu0 %v916
        %989 = vmatprep.mubr.bf16.mxu0 %v942
        %990 = vmatmul.mubr.bf16.gmra.mrb[0].mxu0 %v941
        %v991 = vpop.f32.mrb[0].mxu0
        %v992 = vadd.f32 0.0, %v991
        %v993 = vpop.f32.mrb[0].mxu0
        %v994 = vpop.f32.mrb[0].mxu0
        %v995 = vadd.f32 0.0, %v994
        %v996 = vpop.f32.mrb[0].mxu0
        %997 = vmatprep.mubr.bf16.mxu0 %v944
        %998 = vmatmul.mubr.bf16.gmra.mrb[0].mxu0 %v943
        %v999 = vpop.f32.mrb[0].mxu0
        %v1000 = vadd.f32 0.0, %v999
        %v1001 = vpop.f32.mrb[0].mxu0
        %v1002 = vpop.f32.mrb[0].mxu0
        %v1003 = vadd.f32 0.0, %v1002
        %v1004 = vpop.f32.mrb[0].mxu0
        %1005 = vmatprep.mubr.bf16.mxu0 %v946
        %1006 = vmatmul.mubr.bf16.gmra.mrb[0].mxu0 %v945
        %v1007 = vpop.f32.mrb[0].mxu0
        %v1008 = vadd.f32 0.0, %v1007
        %v1009 = vpop.f32.mrb[0].mxu0
        %v1010 = vpop.f32.mrb[0].mxu0
        %v1011 = vadd.f32 0.0, %v1010
        %v1012 = vpop.f32.mrb[0].mxu0
        %1013 = vmatprep.mubr.bf16.mxu0 %v948
        %1014 = vmatmul.mubr.bf16.gmra.mrb[0].mxu0 %v947
        %v1015 = vpop.f32.mrb[0].mxu0
        %v1016 = vadd.f32 0.0, %v1015
        %v1017 = vpop.f32.mrb[0].mxu0
        %v1018 = vpop.f32.mrb[0].mxu0
        %v1019 = vadd.f32 0.0, %v1018
        %v1020 = vpop.f32.mrb[0].mxu0
        %1021 = vdwg.mxu0
        %v1022 = vadd.f32 %v889, %v992
        %v1023 = vadd.f32 %v890, %v995
        %v1024 = vadd.f32 %v891, %v1000
        %v1025 = vadd.f32 %v892, %v1003
        %v1026 = vadd.f32 %v893, %v1008
        %v1027 = vadd.f32 %v894, %v1011
        %v1028 = vadd.f32 %v895, %v1016
        %v1029 = vadd.f32 %v896, %v1019
        %vm1030 = vcmask 261120
        %1031 = vst.msk [vmem:[%s888] sm:$0xff] %vm1030, %v1022
        %1032 = vst.msk [vmem:[%s888 + $0x8] sm:$0xff] %vm1030, %v1023
        %1033 = vst.msk [vmem:[%s888 + $0x10] sm:$0xff] %vm1030, %v1024
        %1034 = vst.msk [vmem:[%s888 + $0x18] sm:$0xff] %vm1030, %v1025
        %1035 = vst.msk [vmem:[%s888 + $0x20] sm:$0xff] %vm1030, %v1026
        %1036 = vst.msk [vmem:[%s888 + $0x28] sm:$0xff] %vm1030, %v1027
        %1037 = vst.msk [vmem:[%s888 + $0x30] sm:$0xff] %vm1030, %v1028
        %1038 = vst.msk [vmem:[%s888 + $0x38] sm:$0xff] %vm1030, %v1029
        %s1039 = scalar_lea.vmem [#allocation4], %s879
        %v1040 = vld [vmem:[%s1039] sm:$0xff]
        %v1041 = vld [vmem:[%s1039 + $0x8] sm:$0xff]
        %v1042 = vld [vmem:[%s1039 + $0x10] sm:$0xff]
        %v1043 = vld [vmem:[%s1039 + $0x18] sm:$0xff]
        %v1044 = vld [vmem:[%s1039 + $0x20] sm:$0xff]
        %v1045 = vld [vmem:[%s1039 + $0x28] sm:$0xff]
        %v1046 = vld [vmem:[%s1039 + $0x30] sm:$0xff]
        %v1047 = vld [vmem:[%s1039 + $0x38] sm:$0xff]
        %v1048 = vld [vmem:[%s1039 + $0x40] sm:$0xff]
        %v1049 = vld [vmem:[%s1039 + $0x48] sm:$0xff]
        %v1050 = vld [vmem:[%s1039 + $0x50] sm:$0xff]
        %v1051 = vld [vmem:[%s1039 + $0x58] sm:$0xff]
        %v1052 = vld [vmem:[%s1039 + $0x60] sm:$0xff]
        %v1053 = vld [vmem:[%s1039 + $0x68] sm:$0xff]
        %v1054 = vld [vmem:[%s1039 + $0x70] sm:$0xff]
        %v1055 = vld [vmem:[%s1039 + $0x78] sm:$0xff]
        %v1056 = vld [vmem:[%s1039 + $0x80] sm:$0xff]
        %v1057 = vld [vmem:[%s1039 + $0x88] sm:$0xff]
        %v1058 = vld [vmem:[%s1039 + $0x90] sm:$0xff]
        %v1059 = vld [vmem:[%s1039 + $0x98] sm:$0xff]
        %v1060 = vld [vmem:[%s1039 + $0xa0] sm:$0xff]
        %v1061 = vld [vmem:[%s1039 + $0xa8] sm:$0xff]
        %v1062 = vld [vmem:[%s1039 + $0xb0] sm:$0xff]
        %v1063 = vld [vmem:[%s1039 + $0xb8] sm:$0xff]
        %v1064 = vld [vmem:[%s1039 + $0xc0] sm:$0xff]
        %v1065 = vld [vmem:[%s1039 + $0xc8] sm:$0xff]
        %v1066 = vld [vmem:[%s1039 + $0xd0] sm:$0xff]
        %v1067 = vld [vmem:[%s1039 + $0xd8] sm:$0xff]
        %v1068 = vld [vmem:[%s1039 + $0xe0] sm:$0xff]
        %v1069 = vld [vmem:[%s1039 + $0xe8] sm:$0xff]
        %v1070 = vld [vmem:[%s1039 + $0xf0] sm:$0xff]
        %v1071 = vld [vmem:[%s1039 + $0xf8] sm:$0xff]
        %s1072 = sshra.s32 %s877, 4
        %s1073 = sand.u32 %s877, 15
        %s1074 = smul.addr %s1072, 8
        %s1075 = scalar_lea.vmem [#allocation3], %s1074
        %v1076 = vld [vmem:[%s1075] sm:$0xff]
        %v1077 = vld [vmem:[%s1075 + $0x8] sm:$0xff]
        %v1078 = vld [vmem:[%s1075 + $0x10] sm:$0xff]
        %v1079 = vld [vmem:[%s1075 + $0x18] sm:$0xff]
        %1080 = vxpose.xlu0.c.b16.start [1/8] %v941, 128
        %1081 = vxpose.xlu0.c.b16.cont [2/8] %v943, 128
        %1082 = vxpose.xlu0.c.b16.cont [3/8] %v945, 128
        %1083 = vxpose.xlu0.c.b16.cont [4/8] %v947, 128
        %1084 = vxpose.xlu0.c.b16.cont [5/8] 0, 128
        %1085 = vxpose.xlu0.c.b16.cont [6/8] 0, 128
        %1086 = vxpose.xlu0.c.b16.cont [7/8] 0, 128
        %1087 = vxpose.xlu0.c.b16.end [8/8] 0, 128
        %v1088 = vpop.trf.xlu0
        %v1089 = vpop.trf.xlu0
        %v1090 = vpop.trf.xlu0
        %v1091 = vpop.trf.xlu0
        %v1092 = vpop.trf.xlu0
        %v1093 = vpop.trf.xlu0
        %v1094 = vpop.trf.xlu0
        %v1095 = vpop.trf.xlu0
        %1096 = vxpose.xlu0.c.b16.start [1/8] %v942, 128
        %1097 = vxpose.xlu0.c.b16.cont [2/8] %v944, 128
        %1098 = vxpose.xlu0.c.b16.cont [3/8] %v946, 128
        %1099 = vxpose.xlu0.c.b16.cont [4/8] %v948, 128
        %1100 = vxpose.xlu0.c.b16.cont [5/8] 0, 128
        %1101 = vxpose.xlu0.c.b16.cont [6/8] 0, 128
        %1102 = vxpose.xlu0.c.b16.cont [7/8] 0, 128
        %1103 = vxpose.xlu0.c.b16.end [8/8] 0, 128
        %v1104 = vpop.trf.xlu0
        %v1105 = vpop.trf.xlu0
        %v1106 = vpop.trf.xlu0
        %v1107 = vpop.trf.xlu0
        %v1108 = vpop.trf.xlu0
        %v1109 = vpop.trf.xlu0
        %v1110 = vpop.trf.xlu0
        %v1111 = vpop.trf.xlu0
        %vm1112 = vcmask 523264
        %v1114 = vsel %vm1112, %v1088, 0
        %v1117 = vsel %vm1112, %v1089, 0
        %v1120 = vsel %vm1112, %v1090, 0
        %v1123 = vsel %vm1112, %v1091, 0
        %v1126 = vsel %vm1112, %v1092, 0
        %v1129 = vsel %vm1112, %v1093, 0
        %v1132 = vsel %vm1112, %v1094, 0
        %v1135 = vsel %vm1112, %v1095, 0
        %v1138 = vsel %vm1112, %v1104, 0
        %v1141 = vsel %vm1112, %v1105, 0
        %v1144 = vsel %vm1112, %v1106, 0
        %v1147 = vsel %vm1112, %v1107, 0
        %v1150 = vsel %vm1112, %v1108, 0
        %v1153 = vsel %vm1112, %v1109, 0
        %v1156 = vsel %vm1112, %v1110, 0
        %v1159 = vsel %vm1112, %v1111, 0
        %1161 = vmatprep.subr.bf16.mxu0 0
        %1162 = vmatpush1.bf16.msra.mxu0 %v1076
        %1163 = vmatprep.subr.bf16.mxu0 0
        %1164 = vmatpush1.bf16.msra.mxu0 %v1077
        %1165 = vmatprep.subr.bf16.mxu0 0
        %1166 = vmatpush1.bf16.msra.mxu0 %v1078
        %1167 = vmatprep.subr.bf16.mxu0 0
        %1168 = vmatpush1.bf16.msra.mxu0 %v1079
        %1169 = vmatprep.subr.bf16.mxu0 0
        %1170 = vmatpush1.bf16.msra.mxu0 0
        %1171 = vmatprep.subr.bf16.mxu0 0
        %1172 = vmatpush1.bf16.msra.mxu0 0
        %1173 = vmatprep.subr.bf16.mxu0 0
        %1174 = vmatpush1.bf16.msra.mxu0 0
        %1175 = vmatprep.subr.bf16.mxu0 0
        %1176 = vmatpush1.bf16.msra.mxu0 0
        %1177 = vmatprep.subr.bf16.mxu0 0
        %1178 = vmatpush1.bf16.msra.mxu0 0
        %1179 = vmatprep.subr.bf16.mxu0 0
        %1180 = vmatpush1.bf16.msra.mxu0 0
        %1181 = vmatprep.subr.bf16.mxu0 0
        %1182 = vmatpush1.bf16.msra.mxu0 0
        %1183 = vmatprep.subr.bf16.mxu0 0
        %1184 = vmatpush1.bf16.msra.mxu0 0
        %1185 = vmatprep.subr.bf16.mxu0 0
        %1186 = vmatpush1.bf16.msra.mxu0 0
        %1187 = vmatprep.subr.bf16.mxu0 0
        %1188 = vmatpush1.bf16.msra.mxu0 0
        %1189 = vmatprep.subr.bf16.mxu0 0
        %1190 = vmatpush1.bf16.msra.mxu0 0
        %1191 = vmatprep.subr.bf16.mxu0 0
        %1192 = vmatpush1.bf16.msra.mxu0 0
        %1193 = vmatprep.mubr.bf16.mxu0 0
        %1194 = vmatmul.mubr.bf16.gmra.mrb[0].mxu0 %v1114
        %v1195 = vpop.f32.mrb[0].mxu0
        %v1196 = vadd.f32 0.0, %v1195
        %v1197 = vpop.f32.mrb[0].mxu0
        %v1198 = vpop.f32.mrb[0].mxu0
        %v1199 = vadd.f32 0.0, %v1198
        %v1200 = vpop.f32.mrb[0].mxu0
        %1201 = vmatprep.mubr.bf16.mxu0 0
        %1202 = vmatmul.mubr.bf16.gmra.mrb[0].mxu0 %v1117
        %v1203 = vpop.f32.mrb[0].mxu0
        %v1204 = vadd.f32 0.0, %v1203
        %v1205 = vpop.f32.mrb[0].mxu0
        %v1206 = vpop.f32.mrb[0].mxu0
        %v1207 = vadd.f32 0.0, %v1206
        %v1208 = vpop.f32.mrb[0].mxu0
        %1209 = vmatprep.mubr.bf16.mxu0 0
        %1210 = vmatmul.mubr.bf16.gmra.mrb[0].mxu0 %v1120
        %v1211 = vpop.f32.mrb[0].mxu0
        %v1212 = vadd.f32 0.0, %v1211
        %v1213 = vpop.f32.mrb[0].mxu0
        %v1214 = vpop.f32.mrb[0].mxu0
        %v1215 = vadd.f32 0.0, %v1214
        %v1216 = vpop.f32.mrb[0].mxu0
        %1217 = vmatprep.mubr.bf16.mxu0 0
        %1218 = vmatmul.mubr.bf16.gmra.mrb[0].mxu0 %v1123
        %v1219 = vpop.f32.mrb[0].mxu0
        %v1220 = vadd.f32 0.0, %v1219
        %v1221 = vpop.f32.mrb[0].mxu0
        %v1222 = vpop.f32.mrb[0].mxu0
        %v1223 = vadd.f32 0.0, %v1222
        %v1224 = vpop.f32.mrb[0].mxu0
        %1225 = vmatprep.mubr.bf16.mxu0 0
        %1226 = vmatmul.mubr.bf16.gmra.mrb[0].mxu0 %v1126
        %v1227 = vpop.f32.mrb[0].mxu0
        %v1228 = vadd.f32 0.0, %v1227
        %v1229 = vpop.f32.mrb[0].mxu0
        %v1230 = vpop.f32.mrb[0].mxu0
        %v1231 = vadd.f32 0.0, %v1230
        %v1232 = vpop.f32.mrb[0].mxu0
        %1233 = vmatprep.mubr.bf16.mxu0 0
        %1234 = vmatmul.mubr.bf16.gmra.mrb[0].mxu0 %v1129
        %v1235 = vpop.f32.mrb[0].mxu0
        %v1236 = vadd.f32 0.0, %v1235
        %v1237 = vpop.f32.mrb[0].mxu0
        %v1238 = vpop.f32.mrb[0].mxu0
        %v1239 = vadd.f32 0.0, %v1238
        %v1240 = vpop.f32.mrb[0].mxu0
        %1241 = vmatprep.mubr.bf16.mxu0 0
        %1242 = vmatmul.mubr.bf16.gmra.mrb[0].mxu0 %v1132
        %v1243 = vpop.f32.mrb[0].mxu0
        %v1244 = vadd.f32 0.0, %v1243
        %v1245 = vpop.f32.mrb[0].mxu0
        %v1246 = vpop.f32.mrb[0].mxu0
        %v1247 = vadd.f32 0.0, %v1246
        %v1248 = vpop.f32.mrb[0].mxu0
        %1249 = vmatprep.mubr.bf16.mxu0 0
        %1250 = vmatmul.mubr.bf16.gmra.mrb[0].mxu0 %v1135
        %v1251 = vpop.f32.mrb[0].mxu0
        %v1252 = vadd.f32 0.0, %v1251
        %v1253 = vpop.f32.mrb[0].mxu0
        %v1254 = vpop.f32.mrb[0].mxu0
        %v1255 = vadd.f32 0.0, %v1254
        %v1256 = vpop.f32.mrb[0].mxu0
        %1257 = vmatprep.mubr.bf16.mxu0 0
        %1258 = vmatmul.mubr.bf16.gmra.mrb[0].mxu0 %v1138
        %v1259 = vpop.f32.mrb[0].mxu0
        %v1260 = vadd.f32 0.0, %v1259
        %v1261 = vpop.f32.mrb[0].mxu0
        %v1262 = vpop.f32.mrb[0].mxu0
        %v1263 = vadd.f32 0.0, %v1262
        %v1264 = vpop.f32.mrb[0].mxu0
        %1265 = vmatprep.mubr.bf16.mxu0 0
        %1266 = vmatmul.mubr.bf16.gmra.mrb[0].mxu0 %v1141
        %v1267 = vpop.f32.mrb[0].mxu0
        %v1268 = vadd.f32 0.0, %v1267
        %v1269 = vpop.f32.mrb[0].mxu0
        %v1270 = vpop.f32.mrb[0].mxu0
        %v1271 = vadd.f32 0.0, %v1270
        %v1272 = vpop.f32.mrb[0].mxu0
        %1273 = vmatprep.mubr.bf16.mxu0 0
        %1274 = vmatmul.mubr.bf16.gmra.mrb[0].mxu0 %v1144
        %v1275 = vpop.f32.mrb[0].mxu0
        %v1276 = vadd.f32 0.0, %v1275
        %v1277 = vpop.f32.mrb[0].mxu0
        %v1278 = vpop.f32.mrb[0].mxu0
        %v1279 = vadd.f32 0.0, %v1278
        %v1280 = vpop.f32.mrb[0].mxu0
        %1281 = vmatprep.mubr.bf16.mxu0 0
        %1282 = vmatmul.mubr.bf16.gmra.mrb[0].mxu0 %v1147
        %v1283 = vpop.f32.mrb[0].mxu0
        %v1284 = vadd.f32 0.0, %v1283
        %v1285 = vpop.f32.mrb[0].mxu0
        %v1286 = vpop.f32.mrb[0].mxu0
        %v1287 = vadd.f32 0.0, %v1286
        %v1288 = vpop.f32.mrb[0].mxu0
        %1289 = vmatprep.mubr.bf16.mxu0 0
        %1290 = vmatmul.mubr.bf16.gmra.mrb[0].mxu0 %v1150
        %v1291 = vpop.f32.mrb[0].mxu0
        %v1292 = vadd.f32 0.0, %v1291
        %v1293 = vpop.f32.mrb[0].mxu0
        %v1294 = vpop.f32.mrb[0].mxu0
        %v1295 = vadd.f32 0.0, %v1294
        %v1296 = vpop.f32.mrb[0].mxu0
        %1297 = vmatprep.mubr.bf16.mxu0 0
        %1298 = vmatmul.mubr.bf16.gmra.mrb[0].mxu0 %v1153
        %v1299 = vpop.f32.mrb[0].mxu0
        %v1300 = vadd.f32 0.0, %v1299
        %v1301 = vpop.f32.mrb[0].mxu0
        %v1302 = vpop.f32.mrb[0].mxu0
        %v1303 = vadd.f32 0.0, %v1302
        %v1304 = vpop.f32.mrb[0].mxu0
        %1305 = vmatprep.mubr.bf16.mxu0 0
        %1306 = vmatmul.mubr.bf16.gmra.mrb[0].mxu0 %v1156
        %v1307 = vpop.f32.mrb[0].mxu0
        %v1308 = vadd.f32 0.0, %v1307
        %v1309 = vpop.f32.mrb[0].mxu0
        %v1310 = vpop.f32.mrb[0].mxu0
        %v1311 = vadd.f32 0.0, %v1310
        %v1312 = vpop.f32.mrb[0].mxu0
        %1313 = vmatprep.mubr.bf16.mxu0 0
        %1314 = vmatmul.mubr.bf16.gmra.mrb[0].mxu0 %v1159
        %v1315 = vpop.f32.mrb[0].mxu0
        %v1316 = vadd.f32 0.0, %v1315
        %v1317 = vpop.f32.mrb[0].mxu0
        %v1318 = vpop.f32.mrb[0].mxu0
        %v1319 = vadd.f32 0.0, %v1318
        %v1320 = vpop.f32.mrb[0].mxu0
        %1321 = vdwg.mxu0
        %v1322 = vadd.f32 %v1040, %v1196
        %v1323 = vadd.f32 %v1041, %v1199
        %v1324 = vadd.f32 %v1042, %v1204
        %v1325 = vadd.f32 %v1043, %v1207
        %v1326 = vadd.f32 %v1044, %v1212
        %v1327 = vadd.f32 %v1045, %v1215
        %v1328 = vadd.f32 %v1046, %v1220
        %v1329 = vadd.f32 %v1047, %v1223
        %v1330 = vadd.f32 %v1048, %v1228
        %v1331 = vadd.f32 %v1049, %v1231
        %v1332 = vadd.f32 %v1050, %v1236
        %v1333 = vadd.f32 %v1051, %v1239
        %v1334 = vadd.f32 %v1052, %v1244
        %v1335 = vadd.f32 %v1053, %v1247
        %v1336 = vadd.f32 %v1054, %v1252
        %v1337 = vadd.f32 %v1055, %v1255
        %v1338 = vadd.f32 %v1056, %v1260
        %v1339 = vadd.f32 %v1057, %v1263
        %v1340 = vadd.f32 %v1058, %v1268
        %v1341 = vadd.f32 %v1059, %v1271
        %v1342 = vadd.f32 %v1060, %v1276
        %v1343 = vadd.f32 %v1061, %v1279
        %v1344 = vadd.f32 %v1062, %v1284
        %v1345 = vadd.f32 %v1063, %v1287
        %v1346 = vadd.f32 %v1064, %v1292
        %v1347 = vadd.f32 %v1065, %v1295
        %v1348 = vadd.f32 %v1066, %v1300
        %v1349 = vadd.f32 %v1067, %v1303
        %v1350 = vadd.f32 %v1068, %v1308
        %v1351 = vadd.f32 %v1069, %v1311
        %v1352 = vadd.f32 %v1070, %v1316
        %v1353 = vadd.f32 %v1071, %v1319
        %1354 = vst.msk [vmem:[%s1039] sm:$0xff] %vm1030, %v1322
        %1355 = vst.msk [vmem:[%s1039 + $0x8] sm:$0xff] %vm1030, %v1323
        %1356 = vst.msk [vmem:[%s1039 + $0x10] sm:$0xff] %vm1030, %v1324
        %1357 = vst.msk [vmem:[%s1039 + $0x18] sm:$0xff] %vm1030, %v1325
        %1358 = vst.msk [vmem:[%s1039 + $0x20] sm:$0xff] %vm1030, %v1326
        %1359 = vst.msk [vmem:[%s1039 + $0x28] sm:$0xff] %vm1030, %v1327
        %1360 = vst.msk [vmem:[%s1039 + $0x30] sm:$0xff] %vm1030, %v1328
        %1361 = vst.msk [vmem:[%s1039 + $0x38] sm:$0xff] %vm1030, %v1329
        %1362 = vst.msk [vmem:[%s1039 + $0x40] sm:$0xff] %vm1030, %v1330
        %1363 = vst.msk [vmem:[%s1039 + $0x48] sm:$0xff] %vm1030, %v1331
        %1364 = vst.msk [vmem:[%s1039 + $0x50] sm:$0xff] %vm1030, %v1332
        %1365 = vst.msk [vmem:[%s1039 + $0x58] sm:$0xff] %vm1030, %v1333
        %1366 = vst.msk [vmem:[%s1039 + $0x60] sm:$0xff] %vm1030, %v1334
        %1367 = vst.msk [vmem:[%s1039 + $0x68] sm:$0xff] %vm1030, %v1335
        %1368 = vst.msk [vmem:[%s1039 + $0x70] sm:$0xff] %vm1030, %v1336
        %1369 = vst.msk [vmem:[%s1039 + $0x78] sm:$0xff] %vm1030, %v1337
        %1370 = vst.msk [vmem:[%s1039 + $0x80] sm:$0xff] %vm1030, %v1338
        %1371 = vst.msk [vmem:[%s1039 + $0x88] sm:$0xff] %vm1030, %v1339
        %1372 = vst.msk [vmem:[%s1039 + $0x90] sm:$0xff] %vm1030, %v1340
        %1373 = vst.msk [vmem:[%s1039 + $0x98] sm:$0xff] %vm1030, %v1341
        %1374 = vst.msk [vmem:[%s1039 + $0xa0] sm:$0xff] %vm1030, %v1342
        %1375 = vst.msk [vmem:[%s1039 + $0xa8] sm:$0xff] %vm1030, %v1343
        %1376 = vst.msk [vmem:[%s1039 + $0xb0] sm:$0xff] %vm1030, %v1344
        %1377 = vst.msk [vmem:[%s1039 + $0xb8] sm:$0xff] %vm1030, %v1345
        %1378 = vst.msk [vmem:[%s1039 + $0xc0] sm:$0xff] %vm1030, %v1346
        %1379 = vst.msk [vmem:[%s1039 + $0xc8] sm:$0xff] %vm1030, %v1347
        %1380 = vst.msk [vmem:[%s1039 + $0xd0] sm:$0xff] %vm1030, %v1348
        %1381 = vst.msk [vmem:[%s1039 + $0xd8] sm:$0xff] %vm1030, %v1349
        %1382 = vst.msk [vmem:[%s1039 + $0xe0] sm:$0xff] %vm1030, %v1350
        %1383 = vst.msk [vmem:[%s1039 + $0xe8] sm:$0xff] %vm1030, %v1351
        %1384 = vst.msk [vmem:[%s1039 + $0xf0] sm:$0xff] %vm1030, %v1352
        %1385 = vst.msk [vmem:[%s1039 + $0xf8] sm:$0xff] %vm1030, %v1353
        %p1386 = scmp.eq.s32.totalorder %s22, 2
        %p1387 = scmp.eq.s32.totalorder %s23, 1
        %p1388 = pnand %p1386, %p1387
        %p1389 = pneg %p1388
        // Predicated region
        $region87: #{intentgcl_forward.1} parent=73 // pred_check
          _
        $region88: #{intentgcl_forward.1} parent=73 // pred_check_branch
          %1391 = sbr.rel (%p1388) target = $region90
        $region89: #{intentgcl_forward.1} parent=73 // pred_region
          %v1392 = vld [vmem:[#allocation4] sm:$0xff]
          %v1393 = vld [vmem:[#allocation4 + $0x8] sm:$0xff]
          %v1394 = vld [vmem:[#allocation4 + $0x10] sm:$0xff]
          %v1395 = vld [vmem:[#allocation4 + $0x18] sm:$0xff]
          %v1396 = vld [vmem:[#allocation4 + $0x20] sm:$0xff]
          %v1397 = vld [vmem:[#allocation4 + $0x28] sm:$0xff]
          %v1398 = vld [vmem:[#allocation4 + $0x30] sm:$0xff]
          %v1399 = vld [vmem:[#allocation4 + $0x38] sm:$0xff]
          %v1400 = vld [vmem:[#allocation4 + $0x40] sm:$0xff]
          %v1401 = vld [vmem:[#allocation4 + $0x48] sm:$0xff]
          %v1402 = vld [vmem:[#allocation4 + $0x50] sm:$0xff]
          %v1403 = vld [vmem:[#allocation4 + $0x58] sm:$0xff]
          %v1404 = vld [vmem:[#allocation4 + $0x60] sm:$0xff]
          %v1405 = vld [vmem:[#allocation4 + $0x68] sm:$0xff]
          %v1406 = vld [vmem:[#allocation4 + $0x70] sm:$0xff]
          %v1407 = vld [vmem:[#allocation4 + $0x78] sm:$0xff]
          %v1408 = vld [vmem:[#allocation4 + $0x80] sm:$0xff]
          %v1409 = vld [vmem:[#allocation4 + $0x88] sm:$0xff]
          %v1410 = vld [vmem:[#allocation4 + $0x90] sm:$0xff]
          %v1411 = vld [vmem:[#allocation4 + $0x98] sm:$0xff]
          %v1412 = vld [vmem:[#allocation4 + $0xa0] sm:$0xff]
          %v1413 = vld [vmem:[#allocation4 + $0xa8] sm:$0xff]
          %v1414 = vld [vmem:[#allocation4 + $0xb0] sm:$0xff]
          %v1415 = vld [vmem:[#allocation4 + $0xb8] sm:$0xff]
          %v1416 = vld [vmem:[#allocation4 + $0xc0] sm:$0xff]
          %v1417 = vld [vmem:[#allocation4 + $0xc8] sm:$0xff]
          %v1418 = vld [vmem:[#allocation4 + $0xd0] sm:$0xff]
          %v1419 = vld [vmem:[#allocation4 + $0xd8] sm:$0xff]
          %v1420 = vld [vmem:[#allocation4 + $0xe0] sm:$0xff]
          %v1421 = vld [vmem:[#allocation4 + $0xe8] sm:$0xff]
          %v1422 = vld [vmem:[#allocation4 + $0xf0] sm:$0xff]
          %v1423 = vld [vmem:[#allocation4 + $0xf8] sm:$0xff]
          %v1424 = vld [vmem:[#allocation4 + $0x100] sm:$0xff]
          %v1425 = vld [vmem:[#allocation4 + $0x108] sm:$0xff]
          %v1426 = vld [vmem:[#allocation4 + $0x110] sm:$0xff]
          %v1427 = vld [vmem:[#allocation4 + $0x118] sm:$0xff]
          %v1428 = vld [vmem:[#allocation4 + $0x120] sm:$0xff]
          %v1429 = vld [vmem:[#allocation4 + $0x128] sm:$0xff]
          %v1430 = vld [vmem:[#allocation4 + $0x130] sm:$0xff]
          %v1431 = vld [vmem:[#allocation4 + $0x138] sm:$0xff]
          %v1432 = vld [vmem:[#allocation4 + $0x140] sm:$0xff]
          %v1433 = vld [vmem:[#allocation4 + $0x148] sm:$0xff]
          %v1434 = vld [vmem:[#allocation4 + $0x150] sm:$0xff]
          %v1435 = vld [vmem:[#allocation4 + $0x158] sm:$0xff]
          %v1436 = vld [vmem:[#allocation4 + $0x160] sm:$0xff]
          %v1437 = vld [vmem:[#allocation4 + $0x168] sm:$0xff]
          %v1438 = vld [vmem:[#allocation4 + $0x170] sm:$0xff]
          %v1439 = vld [vmem:[#allocation4 + $0x178] sm:$0xff]
          %v1440 = vld [vmem:[#allocation4 + $0x180] sm:$0xff]
          %v1441 = vld [vmem:[#allocation4 + $0x188] sm:$0xff]
          %v1442 = vld [vmem:[#allocation4 + $0x190] sm:$0xff]
          %v1443 = vld [vmem:[#allocation4 + $0x198] sm:$0xff]
          %v1444 = vld [vmem:[#allocation4 + $0x1a0] sm:$0xff]
          %v1445 = vld [vmem:[#allocation4 + $0x1a8] sm:$0xff]
          %v1446 = vld [vmem:[#allocation4 + $0x1b0] sm:$0xff]
          %v1447 = vld [vmem:[#allocation4 + $0x1b8] sm:$0xff]
          %v1448 = vld [vmem:[#allocation4 + $0x1c0] sm:$0xff]
          %v1449 = vld [vmem:[#allocation4 + $0x1c8] sm:$0xff]
          %v1450 = vld [vmem:[#allocation4 + $0x1d0] sm:$0xff]
          %v1451 = vld [vmem:[#allocation4 + $0x1d8] sm:$0xff]
          %v1452 = vld [vmem:[#allocation4 + $0x1e0] sm:$0xff]
          %v1453 = vld [vmem:[#allocation4 + $0x1e8] sm:$0xff]
          %v1454 = vld [vmem:[#allocation4 + $0x1f0] sm:$0xff]
          %v1455 = vld [vmem:[#allocation4 + $0x1f8] sm:$0xff]
          %v1456 = vld [vmem:[#allocation4 + $0x200] sm:$0xff]
          %v1457 = vld [vmem:[#allocation4 + $0x208] sm:$0xff]
          %v1458 = vld [vmem:[#allocation4 + $0x210] sm:$0xff]
          %v1459 = vld [vmem:[#allocation4 + $0x218] sm:$0xff]
          %v1460 = vld [vmem:[#allocation4 + $0x220] sm:$0xff]
          %v1461 = vld [vmem:[#allocation4 + $0x228] sm:$0xff]
          %v1462 = vld [vmem:[#allocation4 + $0x230] sm:$0xff]
          %v1463 = vld [vmem:[#allocation4 + $0x238] sm:$0xff]
          %v1464 = vld [vmem:[#allocation4 + $0x240] sm:$0xff]
          %v1465 = vld [vmem:[#allocation4 + $0x248] sm:$0xff]
          %v1466 = vld [vmem:[#allocation4 + $0x250] sm:$0xff]
          %v1467 = vld [vmem:[#allocation4 + $0x258] sm:$0xff]
          %v1468 = vld [vmem:[#allocation4 + $0x260] sm:$0xff]
          %v1469 = vld [vmem:[#allocation4 + $0x268] sm:$0xff]
          %v1470 = vld [vmem:[#allocation4 + $0x270] sm:$0xff]
          %v1471 = vld [vmem:[#allocation4 + $0x278] sm:$0xff]
          %v1472 = vld [vmem:[#allocation4 + $0x280] sm:$0xff]
          %v1473 = vld [vmem:[#allocation4 + $0x288] sm:$0xff]
          %v1474 = vld [vmem:[#allocation4 + $0x290] sm:$0xff]
          %v1475 = vld [vmem:[#allocation4 + $0x298] sm:$0xff]
          %v1476 = vld [vmem:[#allocation4 + $0x2a0] sm:$0xff]
          %v1477 = vld [vmem:[#allocation4 + $0x2a8] sm:$0xff]
          %v1478 = vld [vmem:[#allocation4 + $0x2b0] sm:$0xff]
          %v1479 = vld [vmem:[#allocation4 + $0x2b8] sm:$0xff]
          %v1480 = vld [vmem:[%s2] sm:$0xff]
          %v1481 = vld [vmem:[%s2 + $0x8] sm:$0xff]
          %v1482 = vld [vmem:[%s2 + $0x10] sm:$0xff]
          %v1483 = vld [vmem:[%s2 + $0x18] sm:$0xff]
          %v1484 = vpack.c.bf16 %v1481, %v1480
          %v1485 = vpack.c.bf16 %v1483, %v1482
          %v1486 = vld [vmem:[%s329] sm:$0xff]
          %v1487 = vld [vmem:[%s329 + $0x8] sm:$0xff]
          %v1488 = vld [vmem:[%s329 + $0x10] sm:$0xff]
          %v1489 = vld [vmem:[%s329 + $0x18] sm:$0xff]
          %v1490 = vpack.c.bf16 %v1487, %v1486
          %v1491 = vpack.c.bf16 %v1489, %v1488
          %v1492 = vld [vmem:[%s332] sm:$0x1]
          %v1493 = vpack.c.bf16 %v1393, %v1392
          %v1494 = vpack.c.bf16 %v1395, %v1394
          %v1495 = vpack.c.bf16 %v1397, %v1396
          %v1496 = vpack.c.bf16 %v1399, %v1398
          %v1497 = vpack.c.bf16 %v1401, %v1400
          %v1498 = vpack.c.bf16 %v1403, %v1402
          %v1499 = vpack.c.bf16 %v1405, %v1404
          %v1500 = vpack.c.bf16 %v1407, %v1406
          %v1501 = vpack.c.bf16 %v1409, %v1408
          %v1502 = vpack.c.bf16 %v1411, %v1410
          %v1503 = vpack.c.bf16 %v1413, %v1412
          %v1504 = vpack.c.bf16 %v1415, %v1414
          %v1505 = vpack.c.bf16 %v1417, %v1416
          %v1506 = vpack.c.bf16 %v1419, %v1418
          %v1507 = vpack.c.bf16 %v1421, %v1420
          %v1508 = vpack.c.bf16 %v1423, %v1422
          %v1509 = vpack.c.bf16 %v1425, %v1424
          %v1510 = vpack.c.bf16 %v1427, %v1426
          %v1511 = vpack.c.bf16 %v1429, %v1428
          %v1512 = vpack.c.bf16 %v1431, %v1430
          %v1513 = vpack.c.bf16 %v1433, %v1432
          %v1514 = vpack.c.bf16 %v1435, %v1434
          %v1515 = vpack.c.bf16 %v1437, %v1436
          %v1516 = vpack.c.bf16 %v1439, %v1438
          %v1517 = vpack.c.bf16 %v1441, %v1440
          %v1518 = vpack.c.bf16 %v1443, %v1442
          %v1519 = vpack.c.bf16 %v1445, %v1444
          %v1520 = vpack.c.bf16 %v1447, %v1446
          %v1521 = vpack.c.bf16 %v1449, %v1448
          %v1522 = vpack.c.bf16 %v1451, %v1450
          %v1523 = vpack.c.bf16 %v1453, %v1452
          %v1524 = vpack.c.bf16 %v1455, %v1454
          %v1525 = vpack.c.bf16 %v1457, %v1456
          %v1526 = vpack.c.bf16 %v1459, %v1458
          %v1527 = vpack.c.bf16 %v1461, %v1460
          %v1528 = vpack.c.bf16 %v1463, %v1462
          %v1529 = vpack.c.bf16 %v1465, %v1464
          %v1530 = vpack.c.bf16 %v1467, %v1466
          %v1531 = vpack.c.bf16 %v1469, %v1468
          %v1532 = vpack.c.bf16 %v1471, %v1470
          %v1533 = vpack.c.bf16 %v1473, %v1472
          %v1534 = vpack.c.bf16 %v1475, %v1474
          %v1535 = vpack.c.bf16 %v1477, %v1476
          %v1536 = vpack.c.bf16 %v1479, %v1478
          %v1538 = vsel %vm1030, %v1493, 0
          %v1541 = vsel %vm1030, %v1494, 0
          %v1544 = vsel %vm1030, %v1495, 0
          %v1547 = vsel %vm1030, %v1496, 0
          %v1550 = vsel %vm1030, %v1497, 0
          %v1553 = vsel %vm1030, %v1498, 0
          %v1556 = vsel %vm1030, %v1499, 0
          %v1559 = vsel %vm1030, %v1500, 0
          %v1562 = vsel %vm1030, %v1501, 0
          %v1565 = vsel %vm1030, %v1502, 0
          %v1568 = vsel %vm1030, %v1503, 0
          %v1571 = vsel %vm1030, %v1504, 0
          %v1574 = vsel %vm1030, %v1505, 0
          %v1577 = vsel %vm1030, %v1506, 0
          %v1580 = vsel %vm1030, %v1507, 0
          %v1583 = vsel %vm1030, %v1508, 0
          %v1586 = vsel %vm1030, %v1509, 0
          %v1589 = vsel %vm1030, %v1510, 0
          %v1592 = vsel %vm1030, %v1511, 0
          %v1595 = vsel %vm1030, %v1512, 0
          %v1598 = vsel %vm1030, %v1513, 0
          %v1601 = vsel %vm1030, %v1514, 0
          %v1604 = vsel %vm1030, %v1515, 0
          %v1607 = vsel %vm1030, %v1516, 0
          %v1610 = vsel %vm1030, %v1517, 0
          %v1613 = vsel %vm1030, %v1518, 0
          %v1616 = vsel %vm1030, %v1519, 0
          %v1619 = vsel %vm1030, %v1520, 0
          %v1622 = vsel %vm1030, %v1521, 0
          %v1625 = vsel %vm1030, %v1522, 0
          %v1628 = vsel %vm1030, %v1523, 0
          %v1631 = vsel %vm1030, %v1524, 0
          %v1634 = vsel %vm1030, %v1525, 0
          %v1637 = vsel %vm1030, %v1526, 0
          %v1640 = vsel %vm1030, %v1527, 0
          %v1643 = vsel %vm1030, %v1528, 0
          %v1646 = vsel %vm1030, %v1529, 0
          %v1649 = vsel %vm1030, %v1530, 0
          %v1652 = vsel %vm1030, %v1531, 0
          %v1655 = vsel %vm1030, %v1532, 0
          %v1658 = vsel %vm1030, %v1533, 0
          %v1661 = vsel %vm1030, %v1534, 0
          %v1664 = vsel %vm1030, %v1535, 0
          %v1667 = vsel %vm1030, %v1536, 0
          %1669 = vmatprep.subr.bf16.mxu0 0
          %1670 = vmatpush1.bf16.msra.mxu0 %v1484
          %1671 = vmatprep.subr.bf16.mxu0 0
          %1672 = vmatpush1.bf16.msra.mxu0 %v1485
          %1673 = vmatprep.subr.bf16.mxu0 0
          %1674 = vmatpush1.bf16.msra.mxu0 0
          %1675 = vmatprep.subr.bf16.mxu0 0
          %1676 = vmatpush1.bf16.msra.mxu0 0
          %1677 = vmatprep.subr.bf16.mxu0 0
          %1678 = vmatpush1.bf16.msra.mxu0 0
          %1679 = vmatprep.subr.bf16.mxu0 0
          %1680 = vmatpush1.bf16.msra.mxu0 0
          %1681 = vmatprep.subr.bf16.mxu0 0
          %1682 = vmatpush1.bf16.msra.mxu0 0
          %1683 = vmatprep.subr.bf16.mxu0 0
          %1684 = vmatpush1.bf16.msra.mxu0 0
          %1685 = vmatprep.subr.bf16.mxu0 0
          %1686 = vmatpush1.bf16.msra.mxu0 0
          %1687 = vmatprep.subr.bf16.mxu0 0
          %1688 = vmatpush1.bf16.msra.mxu0 0
          %1689 = vmatprep.subr.bf16.mxu0 0
          %1690 = vmatpush1.bf16.msra.mxu0 0
          %1691 = vmatprep.subr.bf16.mxu0 0
          %1692 = vmatpush1.bf16.msra.mxu0 0
          %1693 = vmatprep.subr.bf16.mxu0 0
          %1694 = vmatpush1.bf16.msra.mxu0 0
          %1695 = vmatprep.subr.bf16.mxu0 0
          %1696 = vmatpush1.bf16.msra.mxu0 0
          %1697 = vmatprep.subr.bf16.mxu0 0
          %1698 = vmatpush1.bf16.msra.mxu0 0
          %1699 = vmatprep.subr.bf16.mxu0 0
          %1700 = vmatpush1.bf16.msra.mxu0 0
          %1701 = vmatprep.mubr.bf16.mxu0 0
          %1702 = vmatmul.mubr.bf16.gmra.mrb[0].mxu0 %v1538
          %v1703 = vpop.f32.mrb[0].mxu0
          %v1704 = vadd.f32 0.0, %v1703
          %v1705 = vpop.f32.mrb[0].mxu0
          %v1706 = vpop.f32.mrb[0].mxu0
          %v1707 = vadd.f32 0.0, %v1706
          %v1708 = vpop.f32.mrb[0].mxu0
          %1709 = vmatprep.mubr.bf16.mxu0 0
          %1710 = vmatmul.mubr.bf16.gmra.mrb[0].mxu0 %v1541
          %v1711 = vpop.f32.mrb[0].mxu0
          %v1712 = vadd.f32 0.0, %v1711
          %v1713 = vpop.f32.mrb[0].mxu0
          %v1714 = vpop.f32.mrb[0].mxu0
          %v1715 = vadd.f32 0.0, %v1714
          %v1716 = vpop.f32.mrb[0].mxu0
          %1717 = vmatprep.mubr.bf16.mxu0 0
          %1718 = vmatmul.mubr.bf16.gmra.mrb[0].mxu0 %v1544
          %v1719 = vpop.f32.mrb[0].mxu0
          %v1720 = vadd.f32 0.0, %v1719
          %v1721 = vpop.f32.mrb[0].mxu0
          %v1722 = vpop.f32.mrb[0].mxu0
          %v1723 = vadd.f32 0.0, %v1722
          %v1724 = vpop.f32.mrb[0].mxu0
          %1725 = vmatprep.mubr.bf16.mxu0 0
          %1726 = vmatmul.mubr.bf16.gmra.mrb[0].mxu0 %v1547
          %v1727 = vpop.f32.mrb[0].mxu0
          %v1728 = vadd.f32 0.0, %v1727
          %v1729 = vpop.f32.mrb[0].mxu0
          %v1730 = vpop.f32.mrb[0].mxu0
          %v1731 = vadd.f32 0.0, %v1730
          %v1732 = vpop.f32.mrb[0].mxu0
          %1733 = vmatprep.mubr.bf16.mxu0 0
          %1734 = vmatmul.mubr.bf16.gmra.mrb[0].mxu0 %v1550
          %v1735 = vpop.f32.mrb[0].mxu0
          %v1736 = vadd.f32 0.0, %v1735
          %v1737 = vpop.f32.mrb[0].mxu0
          %v1738 = vpop.f32.mrb[0].mxu0
          %v1739 = vadd.f32 0.0, %v1738
          %v1740 = vpop.f32.mrb[0].mxu0
          %1741 = vmatprep.mubr.bf16.mxu0 0
          %1742 = vmatmul.mubr.bf16.gmra.mrb[0].mxu0 %v1553
          %v1743 = vpop.f32.mrb[0].mxu0
          %v1744 = vadd.f32 0.0, %v1743
          %v1745 = vpop.f32.mrb[0].mxu0
          %v1746 = vpop.f32.mrb[0].mxu0
          %v1747 = vadd.f32 0.0, %v1746
          %v1748 = vpop.f32.mrb[0].mxu0
          %1749 = vmatprep.mubr.bf16.mxu0 0
          %1750 = vmatmul.mubr.bf16.gmra.mrb[0].mxu0 %v1556
          %v1751 = vpop.f32.mrb[0].mxu0
          %v1752 = vadd.f32 0.0, %v1751
          %v1753 = vpop.f32.mrb[0].mxu0
          %v1754 = vpop.f32.mrb[0].mxu0
          %v1755 = vadd.f32 0.0, %v1754
          %v1756 = vpop.f32.mrb[0].mxu0
          %1757 = vmatprep.mubr.bf16.mxu0 0
          %1758 = vmatmul.mubr.bf16.gmra.mrb[0].mxu0 %v1559
          %v1759 = vpop.f32.mrb[0].mxu0
          %v1760 = vadd.f32 0.0, %v1759
          %v1761 = vpop.f32.mrb[0].mxu0
          %v1762 = vpop.f32.mrb[0].mxu0
          %v1763 = vadd.f32 0.0, %v1762
          %v1764 = vpop.f32.mrb[0].mxu0
          %1765 = vmatprep.mubr.bf16.mxu0 0
          %1766 = vmatmul.mubr.bf16.gmra.mrb[0].mxu0 %v1562
          %v1767 = vpop.f32.mrb[0].mxu0
          %v1768 = vadd.f32 0.0, %v1767
          %v1769 = vpop.f32.mrb[0].mxu0
          %v1770 = vpop.f32.mrb[0].mxu0
          %v1771 = vadd.f32 0.0, %v1770
          %v1772 = vpop.f32.mrb[0].mxu0
          %1773 = vmatprep.mubr.bf16.mxu0 0
          %1774 = vmatmul.mubr.bf16.gmra.mrb[0].mxu0 %v1565
          %v1775 = vpop.f32.mrb[0].mxu0
          %v1776 = vadd.f32 0.0, %v1775
          %v1777 = vpop.f32.mrb[0].mxu0
          %v1778 = vpop.f32.mrb[0].mxu0
          %v1779 = vadd.f32 0.0, %v1778
          %v1780 = vpop.f32.mrb[0].mxu0
          %1781 = vmatprep.mubr.bf16.mxu0 0
          %1782 = vmatmul.mubr.bf16.gmra.mrb[0].mxu0 %v1568
          %v1783 = vpop.f32.mrb[0].mxu0
          %v1784 = vadd.f32 0.0, %v1783
          %v1785 = vpop.f32.mrb[0].mxu0
          %v1786 = vpop.f32.mrb[0].mxu0
          %v1787 = vadd.f32 0.0, %v1786
          %v1788 = vpop.f32.mrb[0].mxu0
          %1789 = vmatprep.mubr.bf16.mxu0 0
          %1790 = vmatmul.mubr.bf16.gmra.mrb[0].mxu0 %v1571
          %v1791 = vpop.f32.mrb[0].mxu0
          %v1792 = vadd.f32 0.0, %v1791
          %v1793 = vpop.f32.mrb[0].mxu0
          %v1794 = vpop.f32.mrb[0].mxu0
          %v1795 = vadd.f32 0.0, %v1794
          %v1796 = vpop.f32.mrb[0].mxu0
          %1797 = vmatprep.mubr.bf16.mxu0 0
          %1798 = vmatmul.mubr.bf16.gmra.mrb[0].mxu0 %v1574
          %v1799 = vpop.f32.mrb[0].mxu0
          %v1800 = vadd.f32 0.0, %v1799
          %v1801 = vpop.f32.mrb[0].mxu0
          %v1802 = vpop.f32.mrb[0].mxu0
          %v1803 = vadd.f32 0.0, %v1802
          %v1804 = vpop.f32.mrb[0].mxu0
          %1805 = vmatprep.mubr.bf16.mxu0 0
          %1806 = vmatmul.mubr.bf16.gmra.mrb[0].mxu0 %v1577
          %v1807 = vpop.f32.mrb[0].mxu0
          %v1808 = vadd.f32 0.0, %v1807
          %v1809 = vpop.f32.mrb[0].mxu0
          %v1810 = vpop.f32.mrb[0].mxu0
          %v1811 = vadd.f32 0.0, %v1810
          %v1812 = vpop.f32.mrb[0].mxu0
          %1813 = vmatprep.mubr.bf16.mxu0 0
          %1814 = vmatmul.mubr.bf16.gmra.mrb[0].mxu0 %v1580
          %v1815 = vpop.f32.mrb[0].mxu0
          %v1816 = vadd.f32 0.0, %v1815
          %v1817 = vpop.f32.mrb[0].mxu0
          %v1818 = vpop.f32.mrb[0].mxu0
          %v1819 = vadd.f32 0.0, %v1818
          %v1820 = vpop.f32.mrb[0].mxu0
          %1821 = vmatprep.mubr.bf16.mxu0 0
          %1822 = vmatmul.mubr.bf16.gmra.mrb[0].mxu0 %v1583
          %v1823 = vpop.f32.mrb[0].mxu0
          %v1824 = vadd.f32 0.0, %v1823
          %v1825 = vpop.f32.mrb[0].mxu0
          %v1826 = vpop.f32.mrb[0].mxu0
          %v1827 = vadd.f32 0.0, %v1826
          %v1828 = vpop.f32.mrb[0].mxu0
          %1829 = vmatprep.mubr.bf16.mxu0 0
          %1830 = vmatmul.mubr.bf16.gmra.mrb[0].mxu0 %v1586
          %v1831 = vpop.f32.mrb[0].mxu0
          %v1832 = vadd.f32 0.0, %v1831
          %v1833 = vpop.f32.mrb[0].mxu0
          %v1834 = vpop.f32.mrb[0].mxu0
          %v1835 = vadd.f32 0.0, %v1834
          %v1836 = vpop.f32.mrb[0].mxu0
          %1837 = vmatprep.mubr.bf16.mxu0 0
          %1838 = vmatmul.mubr.bf16.gmra.mrb[0].mxu0 %v1589
          %v1839 = vpop.f32.mrb[0].mxu0
          %v1840 = vadd.f32 0.0, %v1839
          %v1841 = vpop.f32.mrb[0].mxu0
          %v1842 = vpop.f32.mrb[0].mxu0
          %v1843 = vadd.f32 0.0, %v1842
          %v1844 = vpop.f32.mrb[0].mxu0
          %1845 = vmatprep.mubr.bf16.mxu0 0
          %1846 = vmatmul.mubr.bf16.gmra.mrb[0].mxu0 %v1592
          %v1847 = vpop.f32.mrb[0].mxu0
          %v1848 = vadd.f32 0.0, %v1847
          %v1849 = vpop.f32.mrb[0].mxu0
          %v1850 = vpop.f32.mrb[0].mxu0
          %v1851 = vadd.f32 0.0, %v1850
          %v1852 = vpop.f32.mrb[0].mxu0
          %1853 = vmatprep.mubr.bf16.mxu0 0
          %1854 = vmatmul.mubr.bf16.gmra.mrb[0].mxu0 %v1595
          %v1855 = vpop.f32.mrb[0].mxu0
          %v1856 = vadd.f32 0.0, %v1855
          %v1857 = vpop.f32.mrb[0].mxu0
          %v1858 = vpop.f32.mrb[0].mxu0
          %v1859 = vadd.f32 0.0, %v1858
          %v1860 = vpop.f32.mrb[0].mxu0
          %1861 = vmatprep.mubr.bf16.mxu0 0
          %1862 = vmatmul.mubr.bf16.gmra.mrb[0].mxu0 %v1598
          %v1863 = vpop.f32.mrb[0].mxu0
          %v1864 = vadd.f32 0.0, %v1863
          %v1865 = vpop.f32.mrb[0].mxu0
          %v1866 = vpop.f32.mrb[0].mxu0
          %v1867 = vadd.f32 0.0, %v1866
          %v1868 = vpop.f32.mrb[0].mxu0
          %1869 = vmatprep.mubr.bf16.mxu0 0
          %1870 = vmatmul.mubr.bf16.gmra.mrb[0].mxu0 %v1601
          %v1871 = vpop.f32.mrb[0].mxu0
          %v1872 = vadd.f32 0.0, %v1871
          %v1873 = vpop.f32.mrb[0].mxu0
          %v1874 = vpop.f32.mrb[0].mxu0
          %v1875 = vadd.f32 0.0, %v1874
          %v1876 = vpop.f32.mrb[0].mxu0
          %1877 = vmatprep.mubr.bf16.mxu0 0
          %1878 = vmatmul.mubr.bf16.gmra.mrb[0].mxu0 %v1604
          %v1879 = vpop.f32.mrb[0].mxu0
          %v1880 = vadd.f32 0.0, %v1879
          %v1881 = vpop.f32.mrb[0].mxu0
          %v1882 = vpop.f32.mrb[0].mxu0
          %v1883 = vadd.f32 0.0, %v1882
          %v1884 = vpop.f32.mrb[0].mxu0
          %1885 = vmatprep.mubr.bf16.mxu0 0
          %1886 = vmatmul.mubr.bf16.gmra.mrb[0].mxu0 %v1607
          %v1887 = vpop.f32.mrb[0].mxu0
          %v1888 = vadd.f32 0.0, %v1887
          %v1889 = vpop.f32.mrb[0].mxu0
          %v1890 = vpop.f32.mrb[0].mxu0
          %v1891 = vadd.f32 0.0, %v1890
          %v1892 = vpop.f32.mrb[0].mxu0
          %1893 = vmatprep.mubr.bf16.mxu0 0
          %1894 = vmatmul.mubr.bf16.gmra.mrb[0].mxu0 %v1610
          %v1895 = vpop.f32.mrb[0].mxu0
          %v1896 = vadd.f32 0.0, %v1895
          %v1897 = vpop.f32.mrb[0].mxu0
          %v1898 = vpop.f32.mrb[0].mxu0
          %v1899 = vadd.f32 0.0, %v1898
          %v1900 = vpop.f32.mrb[0].mxu0
          %1901 = vmatprep.mubr.bf16.mxu0 0
          %1902 = vmatmul.mubr.bf16.gmra.mrb[0].mxu0 %v1613
          %v1903 = vpop.f32.mrb[0].mxu0
          %v1904 = vadd.f32 0.0, %v1903
          %v1905 = vpop.f32.mrb[0].mxu0
          %v1906 = vpop.f32.mrb[0].mxu0
          %v1907 = vadd.f32 0.0, %v1906
          %v1908 = vpop.f32.mrb[0].mxu0
          %1909 = vmatprep.mubr.bf16.mxu0 0
          %1910 = vmatmul.mubr.bf16.gmra.mrb[0].mxu0 %v1616
          %v1911 = vpop.f32.mrb[0].mxu0
          %v1912 = vadd.f32 0.0, %v1911
          %v1913 = vpop.f32.mrb[0].mxu0
          %v1914 = vpop.f32.mrb[0].mxu0
          %v1915 = vadd.f32 0.0, %v1914
          %v1916 = vpop.f32.mrb[0].mxu0
          %1917 = vmatprep.mubr.bf16.mxu0 0
          %1918 = vmatmul.mubr.bf16.gmra.mrb[0].mxu0 %v1619
          %v1919 = vpop.f32.mrb[0].mxu0
          %v1920 = vadd.f32 0.0, %v1919
          %v1921 = vpop.f32.mrb[0].mxu0
          %v1922 = vpop.f32.mrb[0].mxu0
          %v1923 = vadd.f32 0.0, %v1922
          %v1924 = vpop.f32.mrb[0].mxu0
          %1925 = vmatprep.mubr.bf16.mxu0 0
          %1926 = vmatmul.mubr.bf16.gmra.mrb[0].mxu0 %v1622
          %v1927 = vpop.f32.mrb[0].mxu0
          %v1928 = vadd.f32 0.0, %v1927
          %v1929 = vpop.f32.mrb[0].mxu0
          %v1930 = vpop.f32.mrb[0].mxu0
          %v1931 = vadd.f32 0.0, %v1930
          %v1932 = vpop.f32.mrb[0].mxu0
          %1933 = vmatprep.mubr.bf16.mxu0 0
          %1934 = vmatmul.mubr.bf16.gmra.mrb[0].mxu0 %v1625
          %v1935 = vpop.f32.mrb[0].mxu0
          %v1936 = vadd.f32 0.0, %v1935
          %v1937 = vpop.f32.mrb[0].mxu0
          %v1938 = vpop.f32.mrb[0].mxu0
          %v1939 = vadd.f32 0.0, %v1938
          %v1940 = vpop.f32.mrb[0].mxu0
          %1941 = vmatprep.mubr.bf16.mxu0 0
          %1942 = vmatmul.mubr.bf16.gmra.mrb[0].mxu0 %v1628
          %v1943 = vpop.f32.mrb[0].mxu0
          %v1944 = vadd.f32 0.0, %v1943
          %v1945 = vpop.f32.mrb[0].mxu0
          %v1946 = vpop.f32.mrb[0].mxu0
          %v1947 = vadd.f32 0.0, %v1946
          %v1948 = vpop.f32.mrb[0].mxu0
          %1949 = vmatprep.mubr.bf16.mxu0 0
          %1950 = vmatmul.mubr.bf16.gmra.mrb[0].mxu0 %v1631
          %v1951 = vpop.f32.mrb[0].mxu0
          %v1952 = vadd.f32 0.0, %v1951
          %v1953 = vpop.f32.mrb[0].mxu0
          %v1954 = vpop.f32.mrb[0].mxu0
          %v1955 = vadd.f32 0.0, %v1954
          %v1956 = vpop.f32.mrb[0].mxu0
          %1957 = vmatprep.mubr.bf16.mxu0 0
          %1958 = vmatmul.mubr.bf16.gmra.mrb[0].mxu0 %v1634
          %v1959 = vpop.f32.mrb[0].mxu0
          %v1960 = vadd.f32 0.0, %v1959
          %v1961 = vpop.f32.mrb[0].mxu0
          %v1962 = vpop.f32.mrb[0].mxu0
          %v1963 = vadd.f32 0.0, %v1962
          %v1964 = vpop.f32.mrb[0].mxu0
          %1965 = vmatprep.mubr.bf16.mxu0 0
          %1966 = vmatmul.mubr.bf16.gmra.mrb[0].mxu0 %v1637
          %v1967 = vpop.f32.mrb[0].mxu0
          %v1968 = vadd.f32 0.0, %v1967
          %v1969 = vpop.f32.mrb[0].mxu0
          %v1970 = vpop.f32.mrb[0].mxu0
          %v1971 = vadd.f32 0.0, %v1970
          %v1972 = vpop.f32.mrb[0].mxu0
          %1973 = vmatprep.mubr.bf16.mxu0 0
          %1974 = vmatmul.mubr.bf16.gmra.mrb[0].mxu0 %v1640
          %v1975 = vpop.f32.mrb[0].mxu0
          %v1976 = vadd.f32 0.0, %v1975
          %v1977 = vpop.f32.mrb[0].mxu0
          %v1978 = vpop.f32.mrb[0].mxu0
          %v1979 = vadd.f32 0.0, %v1978
          %v1980 = vpop.f32.mrb[0].mxu0
          %1981 = vmatprep.mubr.bf16.mxu0 0
          %1982 = vmatmul.mubr.bf16.gmra.mrb[0].mxu0 %v1643
          %v1983 = vpop.f32.mrb[0].mxu0
          %v1984 = vadd.f32 0.0, %v1983
          %v1985 = vpop.f32.mrb[0].mxu0
          %v1986 = vpop.f32.mrb[0].mxu0
          %v1987 = vadd.f32 0.0, %v1986
          %v1988 = vpop.f32.mrb[0].mxu0
          %1989 = vmatprep.mubr.bf16.mxu0 0
          %1990 = vmatmul.mubr.bf16.gmra.mrb[0].mxu0 %v1646
          %v1991 = vpop.f32.mrb[0].mxu0
          %v1992 = vadd.f32 0.0, %v1991
          %v1993 = vpop.f32.mrb[0].mxu0
          %v1994 = vpop.f32.mrb[0].mxu0
          %v1995 = vadd.f32 0.0, %v1994
          %v1996 = vpop.f32.mrb[0].mxu0
          %1997 = vmatprep.mubr.bf16.mxu0 0
          %1998 = vmatmul.mubr.bf16.gmra.mrb[0].mxu0 %v1649
          %v1999 = vpop.f32.mrb[0].mxu0
          %v2000 = vadd.f32 0.0, %v1999
          %v2001 = vpop.f32.mrb[0].mxu0
          %v2002 = vpop.f32.mrb[0].mxu0
          %v2003 = vadd.f32 0.0, %v2002
          %v2004 = vpop.f32.mrb[0].mxu0
          %2005 = vmatprep.mubr.bf16.mxu0 0
          %2006 = vmatmul.mubr.bf16.gmra.mrb[0].mxu0 %v1652
          %v2007 = vpop.f32.mrb[0].mxu0
          %v2008 = vadd.f32 0.0, %v2007
          %v2009 = vpop.f32.mrb[0].mxu0
          %v2010 = vpop.f32.mrb[0].mxu0
          %v2011 = vadd.f32 0.0, %v2010
          %v2012 = vpop.f32.mrb[0].mxu0
          %2013 = vmatprep.mubr.bf16.mxu0 0
          %2014 = vmatmul.mubr.bf16.gmra.mrb[0].mxu0 %v1655
          %v2015 = vpop.f32.mrb[0].mxu0
          %v2016 = vadd.f32 0.0, %v2015
          %v2017 = vpop.f32.mrb[0].mxu0
          %v2018 = vpop.f32.mrb[0].mxu0
          %v2019 = vadd.f32 0.0, %v2018
          %v2020 = vpop.f32.mrb[0].mxu0
          %2021 = vmatprep.mubr.bf16.mxu0 0
          %2022 = vmatmul.mubr.bf16.gmra.mrb[0].mxu0 %v1658
          %v2023 = vpop.f32.mrb[0].mxu0
          %v2024 = vadd.f32 0.0, %v2023
          %v2025 = vpop.f32.mrb[0].mxu0
          %v2026 = vpop.f32.mrb[0].mxu0
          %v2027 = vadd.f32 0.0, %v2026
          %v2028 = vpop.f32.mrb[0].mxu0
          %2029 = vmatprep.mubr.bf16.mxu0 0
          %2030 = vmatmul.mubr.bf16.gmra.mrb[0].mxu0 %v1661
          %v2031 = vpop.f32.mrb[0].mxu0
          %v2032 = vadd.f32 0.0, %v2031
          %v2033 = vpop.f32.mrb[0].mxu0
          %v2034 = vpop.f32.mrb[0].mxu0
          %v2035 = vadd.f32 0.0, %v2034
          %v2036 = vpop.f32.mrb[0].mxu0
          %2037 = vmatprep.mubr.bf16.mxu0 0
          %2038 = vmatmul.mubr.bf16.gmra.mrb[0].mxu0 %v1664
          %v2039 = vpop.f32.mrb[0].mxu0
          %v2040 = vadd.f32 0.0, %v2039
          %v2041 = vpop.f32.mrb[0].mxu0
          %v2042 = vpop.f32.mrb[0].mxu0
          %v2043 = vadd.f32 0.0, %v2042
          %v2044 = vpop.f32.mrb[0].mxu0
          %2045 = vmatprep.mubr.bf16.mxu0 0
          %2046 = vmatmul.mubr.bf16.gmra.mrb[0].mxu0 %v1667
          %v2047 = vpop.f32.mrb[0].mxu0
          %v2048 = vadd.f32 0.0, %v2047
          %v2049 = vpop.f32.mrb[0].mxu0
          %v2050 = vpop.f32.mrb[0].mxu0
          %v2051 = vadd.f32 0.0, %v2050
          %v2052 = vpop.f32.mrb[0].mxu0
          %2053 = vdwg.mxu0
          %v2054 = vmul.f32 %v1704, 5.0
          %v2055 = vmul.f32 %v1707, 5.0
          %v2056 = vmul.f32 %v1712, 5.0
          %v2057 = vmul.f32 %v1715, 5.0
          %v2058 = vmul.f32 %v1720, 5.0
          %v2059 = vmul.f32 %v1723, 5.0
          %v2060 = vmul.f32 %v1728, 5.0
          %v2061 = vmul.f32 %v1731, 5.0
          %v2062 = vmul.f32 %v1736, 5.0
          %v2063 = vmul.f32 %v1739, 5.0
          %v2064 = vmul.f32 %v1744, 5.0
          %v2065 = vmul.f32 %v1747, 5.0
          %v2066 = vmul.f32 %v1752, 5.0
          %v2067 = vmul.f32 %v1755, 5.0
          %v2068 = vmul.f32 %v1760, 5.0
          %v2069 = vmul.f32 %v1763, 5.0
          %v2070 = vmul.f32 %v1768, 5.0
          %v2071 = vmul.f32 %v1771, 5.0
          %v2072 = vmul.f32 %v1776, 5.0
          %v2073 = vmul.f32 %v1779, 5.0
          %v2074 = vmul.f32 %v1784, 5.0
          %v2075 = vmul.f32 %v1787, 5.0
          %v2076 = vmul.f32 %v1792, 5.0
          %v2077 = vmul.f32 %v1795, 5.0
          %v2078 = vmul.f32 %v1800, 5.0
          %v2079 = vmul.f32 %v1803, 5.0
          %v2080 = vmul.f32 %v1808, 5.0
          %v2081 = vmul.f32 %v1811, 5.0
          %v2082 = vmul.f32 %v1816, 5.0
          %v2083 = vmul.f32 %v1819, 5.0
          %v2084 = vmul.f32 %v1824, 5.0
          %v2085 = vmul.f32 %v1827, 5.0
          %v2086 = vmul.f32 %v1832, 5.0
          %v2087 = vmul.f32 %v1835, 5.0
          %v2088 = vmul.f32 %v1840, 5.0
          %v2089 = vmul.f32 %v1843, 5.0
          %v2090 = vmul.f32 %v1848, 5.0
          %v2091 = vmul.f32 %v1851, 5.0
          %v2092 = vmul.f32 %v1856, 5.0
          %v2093 = vmul.f32 %v1859, 5.0
          %v2094 = vmul.f32 %v1864, 5.0
          %v2095 = vmul.f32 %v1867, 5.0
          %v2096 = vmul.f32 %v1872, 5.0
          %v2097 = vmul.f32 %v1875, 5.0
          %v2098 = vmul.f32 %v1880, 5.0
          %v2099 = vmul.f32 %v1883, 5.0
          %v2100 = vmul.f32 %v1888, 5.0
          %v2101 = vmul.f32 %v1891, 5.0
          %v2102 = vmul.f32 %v1896, 5.0
          %v2103 = vmul.f32 %v1899, 5.0
          %v2104 = vmul.f32 %v1904, 5.0
          %v2105 = vmul.f32 %v1907, 5.0
          %v2106 = vmul.f32 %v1912, 5.0
          %v2107 = vmul.f32 %v1915, 5.0
          %v2108 = vmul.f32 %v1920, 5.0
          %v2109 = vmul.f32 %v1923, 5.0
          %v2110 = vmul.f32 %v1928, 5.0
          %v2111 = vmul.f32 %v1931, 5.0
          %v2112 = vmul.f32 %v1936, 5.0
          %v2113 = vmul.f32 %v1939, 5.0
          %v2114 = vmul.f32 %v1944, 5.0
          %v2115 = vmul.f32 %v1947, 5.0
          %v2116 = vmul.f32 %v1952, 5.0
          %v2117 = vmul.f32 %v1955, 5.0
          %v2118 = vmul.f32 %v1960, 5.0
          %v2119 = vmul.f32 %v1963, 5.0
          %v2120 = vmul.f32 %v1968, 5.0
          %v2121 = vmul.f32 %v1971, 5.0
          %v2122 = vmul.f32 %v1976, 5.0
          %v2123 = vmul.f32 %v1979, 5.0
          %v2124 = vmul.f32 %v1984, 5.0
          %v2125 = vmul.f32 %v1987, 5.0
          %v2126 = vmul.f32 %v1992, 5.0
          %v2127 = vmul.f32 %v1995, 5.0
          %v2128 = vmul.f32 %v2000, 5.0
          %v2129 = vmul.f32 %v2003, 5.0
          %v2130 = vmul.f32 %v2008, 5.0
          %v2131 = vmul.f32 %v2011, 5.0
          %v2132 = vmul.f32 %v2016, 5.0
          %v2133 = vmul.f32 %v2019, 5.0
          %v2134 = vmul.f32 %v2024, 5.0
          %v2135 = vmul.f32 %v2027, 5.0
          %v2136 = vmul.f32 %v2032, 5.0
          %v2137 = vmul.f32 %v2035, 5.0
          %v2138 = vmul.f32 %v2040, 5.0
          %v2139 = vmul.f32 %v2043, 5.0
          %v2140 = vmul.f32 %v2048, 5.0
          %v2141 = vmul.f32 %v2051, 5.0
          %vm2142 = vcmask 130048
          %v2143 = vsel %vm2142, %v2054, -inf
          %2144 = vmax.xlane.f32.xlu0 %v2143
          %v2145 = vpop.xlane.xlu0 %2144
          %v2146 = vsel %vm2142, %v2055, -inf
          %2147 = vmax.xlane.f32.xlu0 %v2146
          %v2148 = vpop.xlane.xlu0 %2147
          %v2149 = vsel %vm2142, %v2056, -inf
          %2150 = vmax.xlane.f32.xlu0 %v2149
          %v2151 = vpop.xlane.xlu0 %2150
          %v2152 = vsel %vm2142, %v2057, -inf
          %2153 = vmax.xlane.f32.xlu0 %v2152
          %v2154 = vpop.xlane.xlu0 %2153
          %v2155 = vsel %vm2142, %v2058, -inf
          %2156 = vmax.xlane.f32.xlu0 %v2155
          %v2157 = vpop.xlane.xlu0 %2156
          %v2158 = vsel %vm2142, %v2059, -inf
          %2159 = vmax.xlane.f32.xlu0 %v2158
          %v2160 = vpop.xlane.xlu0 %2159
          %v2161 = vsel %vm2142, %v2060, -inf
          %2162 = vmax.xlane.f32.xlu0 %v2161
          %v2163 = vpop.xlane.xlu0 %2162
          %v2164 = vsel %vm2142, %v2061, -inf
          %2165 = vmax.xlane.f32.xlu0 %v2164
          %v2166 = vpop.xlane.xlu0 %2165
          %v2167 = vsel %vm2142, %v2062, -inf
          %2168 = vmax.xlane.f32.xlu0 %v2167
          %v2169 = vpop.xlane.xlu0 %2168
          %v2170 = vsel %vm2142, %v2063, -inf
          %2171 = vmax.xlane.f32.xlu0 %v2170
          %v2172 = vpop.xlane.xlu0 %2171
          %v2173 = vsel %vm2142, %v2064, -inf
          %2174 = vmax.xlane.f32.xlu0 %v2173
          %v2175 = vpop.xlane.xlu0 %2174
          %v2176 = vsel %vm2142, %v2065, -inf
          %2177 = vmax.xlane.f32.xlu0 %v2176
          %v2178 = vpop.xlane.xlu0 %2177
          %v2179 = vsel %vm2142, %v2066, -inf
          %2180 = vmax.xlane.f32.xlu0 %v2179
          %v2181 = vpop.xlane.xlu0 %2180
          %v2182 = vsel %vm2142, %v2067, -inf
          %2183 = vmax.xlane.f32.xlu0 %v2182
          %v2184 = vpop.xlane.xlu0 %2183
          %v2185 = vsel %vm2142, %v2068, -inf
          %2186 = vmax.xlane.f32.xlu0 %v2185
          %v2187 = vpop.xlane.xlu0 %2186
          %v2188 = vsel %vm2142, %v2069, -inf
          %2189 = vmax.xlane.f32.xlu0 %v2188
          %v2190 = vpop.xlane.xlu0 %2189
          %v2191 = vsel %vm2142, %v2070, -inf
          %2192 = vmax.xlane.f32.xlu0 %v2191
          %v2193 = vpop.xlane.xlu0 %2192
          %v2194 = vsel %vm2142, %v2071, -inf
          %2195 = vmax.xlane.f32.xlu0 %v2194
          %v2196 = vpop.xlane.xlu0 %2195
          %v2197 = vsel %vm2142, %v2072, -inf
          %2198 = vmax.xlane.f32.xlu0 %v2197
          %v2199 = vpop.xlane.xlu0 %2198
          %v2200 = vsel %vm2142, %v2073, -inf
          %2201 = vmax.xlane.f32.xlu0 %v2200
          %v2202 = vpop.xlane.xlu0 %2201
          %v2203 = vsel %vm2142, %v2074, -inf
          %2204 = vmax.xlane.f32.xlu0 %v2203
          %v2205 = vpop.xlane.xlu0 %2204
          %v2206 = vsel %vm2142, %v2075, -inf
          %2207 = vmax.xlane.f32.xlu0 %v2206
          %v2208 = vpop.xlane.xlu0 %2207
          %v2209 = vsel %vm2142, %v2076, -inf
          %2210 = vmax.xlane.f32.xlu0 %v2209
          %v2211 = vpop.xlane.xlu0 %2210
          %v2212 = vsel %vm2142, %v2077, -inf
          %2213 = vmax.xlane.f32.xlu0 %v2212
          %v2214 = vpop.xlane.xlu0 %2213
          %v2215 = vsel %vm2142, %v2078, -inf
          %2216 = vmax.xlane.f32.xlu0 %v2215
          %v2217 = vpop.xlane.xlu0 %2216
          %v2218 = vsel %vm2142, %v2079, -inf
          %2219 = vmax.xlane.f32.xlu0 %v2218
          %v2220 = vpop.xlane.xlu0 %2219
          %v2221 = vsel %vm2142, %v2080, -inf
          %2222 = vmax.xlane.f32.xlu0 %v2221
          %v2223 = vpop.xlane.xlu0 %2222
          %v2224 = vsel %vm2142, %v2081, -inf
          %2225 = vmax.xlane.f32.xlu0 %v2224
          %v2226 = vpop.xlane.xlu0 %2225
          %v2227 = vsel %vm2142, %v2082, -inf
          %2228 = vmax.xlane.f32.xlu0 %v2227
          %v2229 = vpop.xlane.xlu0 %2228
          %v2230 = vsel %vm2142, %v2083, -inf
          %2231 = vmax.xlane.f32.xlu0 %v2230
          %v2232 = vpop.xlane.xlu0 %2231
          %v2233 = vsel %vm2142, %v2084, -inf
          %2234 = vmax.xlane.f32.xlu0 %v2233
          %v2235 = vpop.xlane.xlu0 %2234
          %v2236 = vsel %vm2142, %v2085, -inf
          %2237 = vmax.xlane.f32.xlu0 %v2236
          %v2238 = vpop.xlane.xlu0 %2237
          %v2239 = vsel %vm2142, %v2086, -inf
          %2240 = vmax.xlane.f32.xlu0 %v2239
          %v2241 = vpop.xlane.xlu0 %2240
          %v2242 = vsel %vm2142, %v2087, -inf
          %2243 = vmax.xlane.f32.xlu0 %v2242
          %v2244 = vpop.xlane.xlu0 %2243
          %v2245 = vsel %vm2142, %v2088, -inf
          %2246 = vmax.xlane.f32.xlu0 %v2245
          %v2247 = vpop.xlane.xlu0 %2246
          %v2248 = vsel %vm2142, %v2089, -inf
          %2249 = vmax.xlane.f32.xlu0 %v2248
          %v2250 = vpop.xlane.xlu0 %2249
          %v2251 = vsel %vm2142, %v2090, -inf
          %2252 = vmax.xlane.f32.xlu0 %v2251
          %v2253 = vpop.xlane.xlu0 %2252
          %v2254 = vsel %vm2142, %v2091, -inf
          %2255 = vmax.xlane.f32.xlu0 %v2254
          %v2256 = vpop.xlane.xlu0 %2255
          %v2257 = vsel %vm2142, %v2092, -inf
          %2258 = vmax.xlane.f32.xlu0 %v2257
          %v2259 = vpop.xlane.xlu0 %2258
          %v2260 = vsel %vm2142, %v2093, -inf
          %2261 = vmax.xlane.f32.xlu0 %v2260
          %v2262 = vpop.xlane.xlu0 %2261
          %v2263 = vsel %vm2142, %v2094, -inf
          %2264 = vmax.xlane.f32.xlu0 %v2263
          %v2265 = vpop.xlane.xlu0 %2264
          %v2266 = vsel %vm2142, %v2095, -inf
          %2267 = vmax.xlane.f32.xlu0 %v2266
          %v2268 = vpop.xlane.xlu0 %2267
          %v2269 = vsel %vm2142, %v2096, -inf
          %2270 = vmax.xlane.f32.xlu0 %v2269
          %v2271 = vpop.xlane.xlu0 %2270
          %v2272 = vsel %vm2142, %v2097, -inf
          %2273 = vmax.xlane.f32.xlu0 %v2272
          %v2274 = vpop.xlane.xlu0 %2273
          %v2275 = vsel %vm2142, %v2098, -inf
          %2276 = vmax.xlane.f32.xlu0 %v2275
          %v2277 = vpop.xlane.xlu0 %2276
          %v2278 = vsel %vm2142, %v2099, -inf
          %2279 = vmax.xlane.f32.xlu0 %v2278
          %v2280 = vpop.xlane.xlu0 %2279
          %v2281 = vsel %vm2142, %v2100, -inf
          %2282 = vmax.xlane.f32.xlu0 %v2281
          %v2283 = vpop.xlane.xlu0 %2282
          %v2284 = vsel %vm2142, %v2101, -inf
          %2285 = vmax.xlane.f32.xlu0 %v2284
          %v2286 = vpop.xlane.xlu0 %2285
          %v2287 = vsel %vm2142, %v2102, -inf
          %2288 = vmax.xlane.f32.xlu0 %v2287
          %v2289 = vpop.xlane.xlu0 %2288
          %v2290 = vsel %vm2142, %v2103, -inf
          %2291 = vmax.xlane.f32.xlu0 %v2290
          %v2292 = vpop.xlane.xlu0 %2291
          %v2293 = vsel %vm2142, %v2104, -inf
          %2294 = vmax.xlane.f32.xlu0 %v2293
          %v2295 = vpop.xlane.xlu0 %2294
          %v2296 = vsel %vm2142, %v2105, -inf
          %2297 = vmax.xlane.f32.xlu0 %v2296
          %v2298 = vpop.xlane.xlu0 %2297
          %v2299 = vsel %vm2142, %v2106, -inf
          %2300 = vmax.xlane.f32.xlu0 %v2299
          %v2301 = vpop.xlane.xlu0 %2300
          %v2302 = vsel %vm2142, %v2107, -inf
          %2303 = vmax.xlane.f32.xlu0 %v2302
          %v2304 = vpop.xlane.xlu0 %2303
          %v2305 = vsel %vm2142, %v2108, -inf
          %2306 = vmax.xlane.f32.xlu0 %v2305
          %v2307 = vpop.xlane.xlu0 %2306
          %v2308 = vsel %vm2142, %v2109, -inf
          %2309 = vmax.xlane.f32.xlu0 %v2308
          %v2310 = vpop.xlane.xlu0 %2309
          %v2311 = vsel %vm2142, %v2110, -inf
          %2312 = vmax.xlane.f32.xlu0 %v2311
          %v2313 = vpop.xlane.xlu0 %2312
          %v2314 = vsel %vm2142, %v2111, -inf
          %2315 = vmax.xlane.f32.xlu0 %v2314
          %v2316 = vpop.xlane.xlu0 %2315
          %v2317 = vsel %vm2142, %v2112, -inf
          %2318 = vmax.xlane.f32.xlu0 %v2317
          %v2319 = vpop.xlane.xlu0 %2318
          %v2320 = vsel %vm2142, %v2113, -inf
          %2321 = vmax.xlane.f32.xlu0 %v2320
          %v2322 = vpop.xlane.xlu0 %2321
          %v2323 = vsel %vm2142, %v2114, -inf
          %2324 = vmax.xlane.f32.xlu0 %v2323
          %v2325 = vpop.xlane.xlu0 %2324
          %v2326 = vsel %vm2142, %v2115, -inf
          %2327 = vmax.xlane.f32.xlu0 %v2326
          %v2328 = vpop.xlane.xlu0 %2327
          %v2329 = vsel %vm2142, %v2116, -inf
          %2330 = vmax.xlane.f32.xlu0 %v2329
          %v2331 = vpop.xlane.xlu0 %2330
          %v2332 = vsel %vm2142, %v2117, -inf
          %2333 = vmax.xlane.f32.xlu0 %v2332
          %v2334 = vpop.xlane.xlu0 %2333
          %v2335 = vsel %vm2142, %v2118, -inf
          %2336 = vmax.xlane.f32.xlu0 %v2335
          %v2337 = vpop.xlane.xlu0 %2336
          %v2338 = vsel %vm2142, %v2119, -inf
          %2339 = vmax.xlane.f32.xlu0 %v2338
          %v2340 = vpop.xlane.xlu0 %2339
          %v2341 = vsel %vm2142, %v2120, -inf
          %2342 = vmax.xlane.f32.xlu0 %v2341
          %v2343 = vpop.xlane.xlu0 %2342
          %v2344 = vsel %vm2142, %v2121, -inf
          %2345 = vmax.xlane.f32.xlu0 %v2344
          %v2346 = vpop.xlane.xlu0 %2345
          %v2347 = vsel %vm2142, %v2122, -inf
          %2348 = vmax.xlane.f32.xlu0 %v2347
          %v2349 = vpop.xlane.xlu0 %2348
          %v2350 = vsel %vm2142, %v2123, -inf
          %2351 = vmax.xlane.f32.xlu0 %v2350
          %v2352 = vpop.xlane.xlu0 %2351
          %v2353 = vsel %vm2142, %v2124, -inf
          %2354 = vmax.xlane.f32.xlu0 %v2353
          %v2355 = vpop.xlane.xlu0 %2354
          %v2356 = vsel %vm2142, %v2125, -inf
          %2357 = vmax.xlane.f32.xlu0 %v2356
          %v2358 = vpop.xlane.xlu0 %2357
          %v2359 = vsel %vm2142, %v2126, -inf
          %2360 = vmax.xlane.f32.xlu0 %v2359
          %v2361 = vpop.xlane.xlu0 %2360
          %v2362 = vsel %vm2142, %v2127, -inf
          %2363 = vmax.xlane.f32.xlu0 %v2362
          %v2364 = vpop.xlane.xlu0 %2363
          %v2365 = vsel %vm2142, %v2128, -inf
          %2366 = vmax.xlane.f32.xlu0 %v2365
          %v2367 = vpop.xlane.xlu0 %2366
          %v2368 = vsel %vm2142, %v2129, -inf
          %2369 = vmax.xlane.f32.xlu0 %v2368
          %v2370 = vpop.xlane.xlu0 %2369
          %v2371 = vsel %vm2142, %v2130, -inf
          %2372 = vmax.xlane.f32.xlu0 %v2371
          %v2373 = vpop.xlane.xlu0 %2372
          %v2374 = vsel %vm2142, %v2131, -inf
          %2375 = vmax.xlane.f32.xlu0 %v2374
          %v2376 = vpop.xlane.xlu0 %2375
          %v2377 = vsel %vm2142, %v2132, -inf
          %2378 = vmax.xlane.f32.xlu0 %v2377
          %v2379 = vpop.xlane.xlu0 %2378
          %v2380 = vsel %vm2142, %v2133, -inf
          %2381 = vmax.xlane.f32.xlu0 %v2380
          %v2382 = vpop.xlane.xlu0 %2381
          %v2383 = vsel %vm2142, %v2134, -inf
          %2384 = vmax.xlane.f32.xlu0 %v2383
          %v2385 = vpop.xlane.xlu0 %2384
          %v2386 = vsel %vm2142, %v2135, -inf
          %2387 = vmax.xlane.f32.xlu0 %v2386
          %v2388 = vpop.xlane.xlu0 %2387
          %v2389 = vsel %vm2142, %v2136, -inf
          %2390 = vmax.xlane.f32.xlu0 %v2389
          %v2391 = vpop.xlane.xlu0 %2390
          %v2392 = vsel %vm2142, %v2137, -inf
          %2393 = vmax.xlane.f32.xlu0 %v2392
          %v2394 = vpop.xlane.xlu0 %2393
          %v2395 = vsel %vm2142, %v2138, -inf
          %2396 = vmax.xlane.f32.xlu0 %v2395
          %v2397 = vpop.xlane.xlu0 %2396
          %v2398 = vsel %vm2142, %v2139, -inf
          %2399 = vmax.xlane.f32.xlu0 %v2398
          %v2400 = vpop.xlane.xlu0 %2399
          %v2401 = vsel %vm2142, %v2140, -inf
          %2402 = vmax.xlane.f32.xlu0 %v2401
          %v2403 = vpop.xlane.xlu0 %2402
          %v2404 = vsel %vm2142, %v2141, -inf
          %2405 = vmax.xlane.f32.xlu0 %v2404
          %v2406 = vpop.xlane.xlu0 %2405
          %v2407 = vsub.f32 %v2054, %v2145
          %v2408 = vsub.f32 %v2055, %v2148
          %v2409 = vsub.f32 %v2056, %v2151
          %v2410 = vsub.f32 %v2057, %v2154
          %v2411 = vsub.f32 %v2058, %v2157
          %v2412 = vsub.f32 %v2059, %v2160
          %v2413 = vsub.f32 %v2060, %v2163
          %v2414 = vsub.f32 %v2061, %v2166
          %v2415 = vsub.f32 %v2062, %v2169
          %v2416 = vsub.f32 %v2063, %v2172
          %v2417 = vsub.f32 %v2064, %v2175
          %v2418 = vsub.f32 %v2065, %v2178
          %v2419 = vsub.f32 %v2066, %v2181
          %v2420 = vsub.f32 %v2067, %v2184
          %v2421 = vsub.f32 %v2068, %v2187
          %v2422 = vsub.f32 %v2069, %v2190
          %v2423 = vsub.f32 %v2070, %v2193
          %v2424 = vsub.f32 %v2071, %v2196
          %v2425 = vsub.f32 %v2072, %v2199
          %v2426 = vsub.f32 %v2073, %v2202
          %v2427 = vsub.f32 %v2074, %v2205
          %v2428 = vsub.f32 %v2075, %v2208
          %v2429 = vsub.f32 %v2076, %v2211
          %v2430 = vsub.f32 %v2077, %v2214
          %v2431 = vsub.f32 %v2078, %v2217
          %v2432 = vsub.f32 %v2079, %v2220
          %v2433 = vsub.f32 %v2080, %v2223
          %v2434 = vsub.f32 %v2081, %v2226
          %v2435 = vsub.f32 %v2082, %v2229
          %v2436 = vsub.f32 %v2083, %v2232
          %v2437 = vsub.f32 %v2084, %v2235
          %v2438 = vsub.f32 %v2085, %v2238
          %v2439 = vsub.f32 %v2086, %v2241
          %v2440 = vsub.f32 %v2087, %v2244
          %v2441 = vsub.f32 %v2088, %v2247
          %v2442 = vsub.f32 %v2089, %v2250
          %v2443 = vsub.f32 %v2090, %v2253
          %v2444 = vsub.f32 %v2091, %v2256
          %v2445 = vsub.f32 %v2092, %v2259
          %v2446 = vsub.f32 %v2093, %v2262
          %v2447 = vsub.f32 %v2094, %v2265
          %v2448 = vsub.f32 %v2095, %v2268
          %v2449 = vsub.f32 %v2096, %v2271
          %v2450 = vsub.f32 %v2097, %v2274
          %v2451 = vsub.f32 %v2098, %v2277
          %v2452 = vsub.f32 %v2099, %v2280
          %v2453 = vsub.f32 %v2100, %v2283
          %v2454 = vsub.f32 %v2101, %v2286
          %v2455 = vsub.f32 %v2102, %v2289
          %v2456 = vsub.f32 %v2103, %v2292
          %v2457 = vsub.f32 %v2104, %v2295
          %v2458 = vsub.f32 %v2105, %v2298
          %v2459 = vsub.f32 %v2106, %v2301
          %v2460 = vsub.f32 %v2107, %v2304
          %v2461 = vsub.f32 %v2108, %v2307
          %v2462 = vsub.f32 %v2109, %v2310
          %v2463 = vsub.f32 %v2110, %v2313
          %v2464 = vsub.f32 %v2111, %v2316
          %v2465 = vsub.f32 %v2112, %v2319
          %v2466 = vsub.f32 %v2113, %v2322
          %v2467 = vsub.f32 %v2114, %v2325
          %v2468 = vsub.f32 %v2115, %v2328
          %v2469 = vsub.f32 %v2116, %v2331
          %v2470 = vsub.f32 %v2117, %v2334
          %v2471 = vsub.f32 %v2118, %v2337
          %v2472 = vsub.f32 %v2119, %v2340
          %v2473 = vsub.f32 %v2120, %v2343
          %v2474 = vsub.f32 %v2121, %v2346
          %v2475 = vsub.f32 %v2122, %v2349
          %v2476 = vsub.f32 %v2123, %v2352
          %v2477 = vsub.f32 %v2124, %v2355
          %v2478 = vsub.f32 %v2125, %v2358
          %v2479 = vsub.f32 %v2126, %v2361
          %v2480 = vsub.f32 %v2127, %v2364
          %v2481 = vsub.f32 %v2128, %v2367
          %v2482 = vsub.f32 %v2129, %v2370
          %v2483 = vsub.f32 %v2130, %v2373
          %v2484 = vsub.f32 %v2131, %v2376
          %v2485 = vsub.f32 %v2132, %v2379
          %v2486 = vsub.f32 %v2133, %v2382
          %v2487 = vsub.f32 %v2134, %v2385
          %v2488 = vsub.f32 %v2135, %v2388
          %v2489 = vsub.f32 %v2136, %v2391
          %v2490 = vsub.f32 %v2137, %v2394
          %v2491 = vsub.f32 %v2138, %v2397
          %v2492 = vsub.f32 %v2139, %v2400
          %v2493 = vsub.f32 %v2140, %v2403
          %v2494 = vsub.f32 %v2141, %v2406
          %v2495 = vmul.f32 %v2407, 1.442695
          %v2496 = vpow.pop %v2495
          %v2497 = vmul.f32 %v2408, 1.442695
          %v2498 = vpow.pop %v2497
          %v2499 = vmul.f32 %v2409, 1.442695
          %v2500 = vpow.pop %v2499
          %v2501 = vmul.f32 %v2410, 1.442695
          %v2502 = vpow.pop %v2501
          %v2503 = vmul.f32 %v2411, 1.442695
          %v2504 = vpow.pop %v2503
          %v2505 = vmul.f32 %v2412, 1.442695
          %v2506 = vpow.pop %v2505
          %v2507 = vmul.f32 %v2413, 1.442695
          %v2508 = vpow.pop %v2507
          %v2509 = vmul.f32 %v2414, 1.442695
          %v2510 = vpow.pop %v2509
          %v2511 = vmul.f32 %v2415, 1.442695
          %v2512 = vpow.pop %v2511
          %v2513 = vmul.f32 %v2416, 1.442695
          %v2514 = vpow.pop %v2513
          %v2515 = vmul.f32 %v2417, 1.442695
          %v2516 = vpow.pop %v2515
          %v2517 = vmul.f32 %v2418, 1.442695
          %v2518 = vpow.pop %v2517
          %v2519 = vmul.f32 %v2419, 1.442695
          %v2520 = vpow.pop %v2519
          %v2521 = vmul.f32 %v2420, 1.442695
          %v2522 = vpow.pop %v2521
          %v2523 = vmul.f32 %v2421, 1.442695
          %v2524 = vpow.pop %v2523
          %v2525 = vmul.f32 %v2422, 1.442695
          %v2526 = vpow.pop %v2525
          %v2527 = vmul.f32 %v2423, 1.442695
          %v2528 = vpow.pop %v2527
          %v2529 = vmul.f32 %v2424, 1.442695
          %v2530 = vpow.pop %v2529
          %v2531 = vmul.f32 %v2425, 1.442695
          %v2532 = vpow.pop %v2531
          %v2533 = vmul.f32 %v2426, 1.442695
          %v2534 = vpow.pop %v2533
          %v2535 = vmul.f32 %v2427, 1.442695
          %v2536 = vpow.pop %v2535
          %v2537 = vmul.f32 %v2428, 1.442695
          %v2538 = vpow.pop %v2537
          %v2539 = vmul.f32 %v2429, 1.442695
          %v2540 = vpow.pop %v2539
          %v2541 = vmul.f32 %v2430, 1.442695
          %v2542 = vpow.pop %v2541
          %v2543 = vmul.f32 %v2431, 1.442695
          %v2544 = vpow.pop %v2543
          %v2545 = vmul.f32 %v2432, 1.442695
          %v2546 = vpow.pop %v2545
          %v2547 = vmul.f32 %v2433, 1.442695
          %v2548 = vpow.pop %v2547
          %v2549 = vmul.f32 %v2434, 1.442695
          %v2550 = vpow.pop %v2549
          %v2551 = vmul.f32 %v2435, 1.442695
          %v2552 = vpow.pop %v2551
          %v2553 = vmul.f32 %v2436, 1.442695
          %v2554 = vpow.pop %v2553
          %v2555 = vmul.f32 %v2437, 1.442695
          %v2556 = vpow.pop %v2555
          %v2557 = vmul.f32 %v2438, 1.442695
          %v2558 = vpow.pop %v2557
          %v2559 = vmul.f32 %v2439, 1.442695
          %v2560 = vpow.pop %v2559
          %v2561 = vmul.f32 %v2440, 1.442695
          %v2562 = vpow.pop %v2561
          %v2563 = vmul.f32 %v2441, 1.442695
          %v2564 = vpow.pop %v2563
          %v2565 = vmul.f32 %v2442, 1.442695
          %v2566 = vpow.pop %v2565
          %v2567 = vmul.f32 %v2443, 1.442695
          %v2568 = vpow.pop %v2567
          %v2569 = vmul.f32 %v2444, 1.442695
          %v2570 = vpow.pop %v2569
          %v2571 = vmul.f32 %v2445, 1.442695
          %v2572 = vpow.pop %v2571
          %v2573 = vmul.f32 %v2446, 1.442695
          %v2574 = vpow.pop %v2573
          %v2575 = vmul.f32 %v2447, 1.442695
          %v2576 = vpow.pop %v2575
          %v2577 = vmul.f32 %v2448, 1.442695
          %v2578 = vpow.pop %v2577
          %v2579 = vmul.f32 %v2449, 1.442695
          %v2580 = vpow.pop %v2579
          %v2581 = vmul.f32 %v2450, 1.442695
          %v2582 = vpow.pop %v2581
          %v2583 = vmul.f32 %v2451, 1.442695
          %v2584 = vpow.pop %v2583
          %v2585 = vmul.f32 %v2452, 1.442695
          %v2586 = vpow.pop %v2585
          %v2587 = vmul.f32 %v2453, 1.442695
          %v2588 = vpow.pop %v2587
          %v2589 = vmul.f32 %v2454, 1.442695
          %v2590 = vpow.pop %v2589
          %v2591 = vmul.f32 %v2455, 1.442695
          %v2592 = vpow.pop %v2591
          %v2593 = vmul.f32 %v2456, 1.442695
          %v2594 = vpow.pop %v2593
          %v2595 = vmul.f32 %v2457, 1.442695
          %v2596 = vpow.pop %v2595
          %v2597 = vmul.f32 %v2458, 1.442695
          %v2598 = vpow.pop %v2597
          %v2599 = vmul.f32 %v2459, 1.442695
          %v2600 = vpow.pop %v2599
          %v2601 = vmul.f32 %v2460, 1.442695
          %v2602 = vpow.pop %v2601
          %v2603 = vmul.f32 %v2461, 1.442695
          %v2604 = vpow.pop %v2603
          %v2605 = vmul.f32 %v2462, 1.442695
          %v2606 = vpow.pop %v2605
          %v2607 = vmul.f32 %v2463, 1.442695
          %v2608 = vpow.pop %v2607
          %v2609 = vmul.f32 %v2464, 1.442695
          %v2610 = vpow.pop %v2609
          %v2611 = vmul.f32 %v2465, 1.442695
          %v2612 = vpow.pop %v2611
          %v2613 = vmul.f32 %v2466, 1.442695
          %v2614 = vpow.pop %v2613
          %v2615 = vmul.f32 %v2467, 1.442695
          %v2616 = vpow.pop %v2615
          %v2617 = vmul.f32 %v2468, 1.442695
          %v2618 = vpow.pop %v2617
          %v2619 = vmul.f32 %v2469, 1.442695
          %v2620 = vpow.pop %v2619
          %v2621 = vmul.f32 %v2470, 1.442695
          %v2622 = vpow.pop %v2621
          %v2623 = vmul.f32 %v2471, 1.442695
          %v2624 = vpow.pop %v2623
          %v2625 = vmul.f32 %v2472, 1.442695
          %v2626 = vpow.pop %v2625
          %v2627 = vmul.f32 %v2473, 1.442695
          %v2628 = vpow.pop %v2627
          %v2629 = vmul.f32 %v2474, 1.442695
          %v2630 = vpow.pop %v2629
          %v2631 = vmul.f32 %v2475, 1.442695
          %v2632 = vpow.pop %v2631
          %v2633 = vmul.f32 %v2476, 1.442695
          %v2634 = vpow.pop %v2633
          %v2635 = vmul.f32 %v2477, 1.442695
          %v2636 = vpow.pop %v2635
          %v2637 = vmul.f32 %v2478, 1.442695
          %v2638 = vpow.pop %v2637
          %v2639 = vmul.f32 %v2479, 1.442695
          %v2640 = vpow.pop %v2639
          %v2641 = vmul.f32 %v2480, 1.442695
          %v2642 = vpow.pop %v2641
          %v2643 = vmul.f32 %v2481, 1.442695
          %v2644 = vpow.pop %v2643
          %v2645 = vmul.f32 %v2482, 1.442695
          %v2646 = vpow.pop %v2645
          %v2647 = vmul.f32 %v2483, 1.442695
          %v2648 = vpow.pop %v2647
          %v2649 = vmul.f32 %v2484, 1.442695
          %v2650 = vpow.pop %v2649
          %v2651 = vmul.f32 %v2485, 1.442695
          %v2652 = vpow.pop %v2651
          %v2653 = vmul.f32 %v2486, 1.442695
          %v2654 = vpow.pop %v2653
          %v2655 = vmul.f32 %v2487, 1.442695
          %v2656 = vpow.pop %v2655
          %v2657 = vmul.f32 %v2488, 1.442695
          %v2658 = vpow.pop %v2657
          %v2659 = vmul.f32 %v2489, 1.442695
          %v2660 = vpow.pop %v2659
          %v2661 = vmul.f32 %v2490, 1.442695
          %v2662 = vpow.pop %v2661
          %v2663 = vmul.f32 %v2491, 1.442695
          %v2664 = vpow.pop %v2663
          %v2665 = vmul.f32 %v2492, 1.442695
          %v2666 = vpow.pop %v2665
          %v2667 = vmul.f32 %v2493, 1.442695
          %v2668 = vpow.pop %v2667
          %v2669 = vmul.f32 %v2494, 1.442695
          %v2670 = vpow.pop %v2669
          %v2671 = vsel %vm2142, %v2496, 0.0
          %2672 = vadd.xlane.f32.xlu0 %v2671
          %v2673 = vpop.xlane.xlu0 %2672
          %v2674 = vsel %vm2142, %v2498, 0.0
          %2675 = vadd.xlane.f32.xlu0 %v2674
          %v2676 = vpop.xlane.xlu0 %2675
          %v2677 = vsel %vm2142, %v2500, 0.0
          %2678 = vadd.xlane.f32.xlu0 %v2677
          %v2679 = vpop.xlane.xlu0 %2678
          %v2680 = vsel %vm2142, %v2502, 0.0
          %2681 = vadd.xlane.f32.xlu0 %v2680
          %v2682 = vpop.xlane.xlu0 %2681
          %v2683 = vsel %vm2142, %v2504, 0.0
          %2684 = vadd.xlane.f32.xlu0 %v2683
          %v2685 = vpop.xlane.xlu0 %2684
          %v2686 = vsel %vm2142, %v2506, 0.0
          %2687 = vadd.xlane.f32.xlu0 %v2686
          %v2688 = vpop.xlane.xlu0 %2687
          %v2689 = vsel %vm2142, %v2508, 0.0
          %2690 = vadd.xlane.f32.xlu0 %v2689
          %v2691 = vpop.xlane.xlu0 %2690
          %v2692 = vsel %vm2142, %v2510, 0.0
          %2693 = vadd.xlane.f32.xlu0 %v2692
          %v2694 = vpop.xlane.xlu0 %2693
          %v2695 = vsel %vm2142, %v2512, 0.0
          %2696 = vadd.xlane.f32.xlu0 %v2695
          %v2697 = vpop.xlane.xlu0 %2696
          %v2698 = vsel %vm2142, %v2514, 0.0
          %2699 = vadd.xlane.f32.xlu0 %v2698
          %v2700 = vpop.xlane.xlu0 %2699
          %v2701 = vsel %vm2142, %v2516, 0.0
          %2702 = vadd.xlane.f32.xlu0 %v2701
          %v2703 = vpop.xlane.xlu0 %2702
          %v2704 = vsel %vm2142, %v2518, 0.0
          %2705 = vadd.xlane.f32.xlu0 %v2704
          %v2706 = vpop.xlane.xlu0 %2705
          %v2707 = vsel %vm2142, %v2520, 0.0
          %2708 = vadd.xlane.f32.xlu0 %v2707
          %v2709 = vpop.xlane.xlu0 %2708
          %v2710 = vsel %vm2142, %v2522, 0.0
          %2711 = vadd.xlane.f32.xlu0 %v2710
          %v2712 = vpop.xlane.xlu0 %2711
          %v2713 = vsel %vm2142, %v2524, 0.0
          %2714 = vadd.xlane.f32.xlu0 %v2713
          %v2715 = vpop.xlane.xlu0 %2714
          %v2716 = vsel %vm2142, %v2526, 0.0
          %2717 = vadd.xlane.f32.xlu0 %v2716
          %v2718 = vpop.xlane.xlu0 %2717
          %v2719 = vsel %vm2142, %v2528, 0.0
          %2720 = vadd.xlane.f32.xlu0 %v2719
          %v2721 = vpop.xlane.xlu0 %2720
          %v2722 = vsel %vm2142, %v2530, 0.0
          %2723 = vadd.xlane.f32.xlu0 %v2722
          %v2724 = vpop.xlane.xlu0 %2723
          %v2725 = vsel %vm2142, %v2532, 0.0
          %2726 = vadd.xlane.f32.xlu0 %v2725
          %v2727 = vpop.xlane.xlu0 %2726
          %v2728 = vsel %vm2142, %v2534, 0.0
          %2729 = vadd.xlane.f32.xlu0 %v2728
          %v2730 = vpop.xlane.xlu0 %2729
          %v2731 = vsel %vm2142, %v2536, 0.0
          %2732 = vadd.xlane.f32.xlu0 %v2731
          %v2733 = vpop.xlane.xlu0 %2732
          %v2734 = vsel %vm2142, %v2538, 0.0
          %2735 = vadd.xlane.f32.xlu0 %v2734
          %v2736 = vpop.xlane.xlu0 %2735
          %v2737 = vsel %vm2142, %v2540, 0.0
          %2738 = vadd.xlane.f32.xlu0 %v2737
          %v2739 = vpop.xlane.xlu0 %2738
          %v2740 = vsel %vm2142, %v2542, 0.0
          %2741 = vadd.xlane.f32.xlu0 %v2740
          %v2742 = vpop.xlane.xlu0 %2741
          %v2743 = vsel %vm2142, %v2544, 0.0
          %2744 = vadd.xlane.f32.xlu0 %v2743
          %v2745 = vpop.xlane.xlu0 %2744
          %v2746 = vsel %vm2142, %v2546, 0.0
          %2747 = vadd.xlane.f32.xlu0 %v2746
          %v2748 = vpop.xlane.xlu0 %2747
          %v2749 = vsel %vm2142, %v2548, 0.0
          %2750 = vadd.xlane.f32.xlu0 %v2749
          %v2751 = vpop.xlane.xlu0 %2750
          %v2752 = vsel %vm2142, %v2550, 0.0
          %2753 = vadd.xlane.f32.xlu0 %v2752
          %v2754 = vpop.xlane.xlu0 %2753
          %v2755 = vsel %vm2142, %v2552, 0.0
          %2756 = vadd.xlane.f32.xlu0 %v2755
          %v2757 = vpop.xlane.xlu0 %2756
          %v2758 = vsel %vm2142, %v2554, 0.0
          %2759 = vadd.xlane.f32.xlu0 %v2758
          %v2760 = vpop.xlane.xlu0 %2759
          %v2761 = vsel %vm2142, %v2556, 0.0
          %2762 = vadd.xlane.f32.xlu0 %v2761
          %v2763 = vpop.xlane.xlu0 %2762
          %v2764 = vsel %vm2142, %v2558, 0.0
          %2765 = vadd.xlane.f32.xlu0 %v2764
          %v2766 = vpop.xlane.xlu0 %2765
          %v2767 = vsel %vm2142, %v2560, 0.0
          %2768 = vadd.xlane.f32.xlu0 %v2767
          %v2769 = vpop.xlane.xlu0 %2768
          %v2770 = vsel %vm2142, %v2562, 0.0
          %2771 = vadd.xlane.f32.xlu0 %v2770
          %v2772 = vpop.xlane.xlu0 %2771
          %v2773 = vsel %vm2142, %v2564, 0.0
          %2774 = vadd.xlane.f32.xlu0 %v2773
          %v2775 = vpop.xlane.xlu0 %2774
          %v2776 = vsel %vm2142, %v2566, 0.0
          %2777 = vadd.xlane.f32.xlu0 %v2776
          %v2778 = vpop.xlane.xlu0 %2777
          %v2779 = vsel %vm2142, %v2568, 0.0
          %2780 = vadd.xlane.f32.xlu0 %v2779
          %v2781 = vpop.xlane.xlu0 %2780
          %v2782 = vsel %vm2142, %v2570, 0.0
          %2783 = vadd.xlane.f32.xlu0 %v2782
          %v2784 = vpop.xlane.xlu0 %2783
          %v2785 = vsel %vm2142, %v2572, 0.0
          %2786 = vadd.xlane.f32.xlu0 %v2785
          %v2787 = vpop.xlane.xlu0 %2786
          %v2788 = vsel %vm2142, %v2574, 0.0
          %2789 = vadd.xlane.f32.xlu0 %v2788
          %v2790 = vpop.xlane.xlu0 %2789
          %v2791 = vsel %vm2142, %v2576, 0.0
          %2792 = vadd.xlane.f32.xlu0 %v2791
          %v2793 = vpop.xlane.xlu0 %2792
          %v2794 = vsel %vm2142, %v2578, 0.0
          %2795 = vadd.xlane.f32.xlu0 %v2794
          %v2796 = vpop.xlane.xlu0 %2795
          %v2797 = vsel %vm2142, %v2580, 0.0
          %2798 = vadd.xlane.f32.xlu0 %v2797
          %v2799 = vpop.xlane.xlu0 %2798
          %v2800 = vsel %vm2142, %v2582, 0.0
          %2801 = vadd.xlane.f32.xlu0 %v2800
          %v2802 = vpop.xlane.xlu0 %2801
          %v2803 = vsel %vm2142, %v2584, 0.0
          %2804 = vadd.xlane.f32.xlu0 %v2803
          %v2805 = vpop.xlane.xlu0 %2804
          %v2806 = vsel %vm2142, %v2586, 0.0
          %2807 = vadd.xlane.f32.xlu0 %v2806
          %v2808 = vpop.xlane.xlu0 %2807
          %v2809 = vsel %vm2142, %v2588, 0.0
          %2810 = vadd.xlane.f32.xlu0 %v2809
          %v2811 = vpop.xlane.xlu0 %2810
          %v2812 = vsel %vm2142, %v2590, 0.0
          %2813 = vadd.xlane.f32.xlu0 %v2812
          %v2814 = vpop.xlane.xlu0 %2813
          %v2815 = vsel %vm2142, %v2592, 0.0
          %2816 = vadd.xlane.f32.xlu0 %v2815
          %v2817 = vpop.xlane.xlu0 %2816
          %v2818 = vsel %vm2142, %v2594, 0.0
          %2819 = vadd.xlane.f32.xlu0 %v2818
          %v2820 = vpop.xlane.xlu0 %2819
          %v2821 = vsel %vm2142, %v2596, 0.0
          %2822 = vadd.xlane.f32.xlu0 %v2821
          %v2823 = vpop.xlane.xlu0 %2822
          %v2824 = vsel %vm2142, %v2598, 0.0
          %2825 = vadd.xlane.f32.xlu0 %v2824
          %v2826 = vpop.xlane.xlu0 %2825
          %v2827 = vsel %vm2142, %v2600, 0.0
          %2828 = vadd.xlane.f32.xlu0 %v2827
          %v2829 = vpop.xlane.xlu0 %2828
          %v2830 = vsel %vm2142, %v2602, 0.0
          %2831 = vadd.xlane.f32.xlu0 %v2830
          %v2832 = vpop.xlane.xlu0 %2831
          %v2833 = vsel %vm2142, %v2604, 0.0
          %2834 = vadd.xlane.f32.xlu0 %v2833
          %v2835 = vpop.xlane.xlu0 %2834
          %v2836 = vsel %vm2142, %v2606, 0.0
          %2837 = vadd.xlane.f32.xlu0 %v2836
          %v2838 = vpop.xlane.xlu0 %2837
          %v2839 = vsel %vm2142, %v2608, 0.0
          %2840 = vadd.xlane.f32.xlu0 %v2839
          %v2841 = vpop.xlane.xlu0 %2840
          %v2842 = vsel %vm2142, %v2610, 0.0
          %2843 = vadd.xlane.f32.xlu0 %v2842
          %v2844 = vpop.xlane.xlu0 %2843
          %v2845 = vsel %vm2142, %v2612, 0.0
          %2846 = vadd.xlane.f32.xlu0 %v2845
          %v2847 = vpop.xlane.xlu0 %2846
          %v2848 = vsel %vm2142, %v2614, 0.0
          %2849 = vadd.xlane.f32.xlu0 %v2848
          %v2850 = vpop.xlane.xlu0 %2849
          %v2851 = vsel %vm2142, %v2616, 0.0
          %2852 = vadd.xlane.f32.xlu0 %v2851
          %v2853 = vpop.xlane.xlu0 %2852
          %v2854 = vsel %vm2142, %v2618, 0.0
          %2855 = vadd.xlane.f32.xlu0 %v2854
          %v2856 = vpop.xlane.xlu0 %2855
          %v2857 = vsel %vm2142, %v2620, 0.0
          %2858 = vadd.xlane.f32.xlu0 %v2857
          %v2859 = vpop.xlane.xlu0 %2858
          %v2860 = vsel %vm2142, %v2622, 0.0
          %2861 = vadd.xlane.f32.xlu0 %v2860
          %v2862 = vpop.xlane.xlu0 %2861
          %v2863 = vsel %vm2142, %v2624, 0.0
          %2864 = vadd.xlane.f32.xlu0 %v2863
          %v2865 = vpop.xlane.xlu0 %2864
          %v2866 = vsel %vm2142, %v2626, 0.0
          %2867 = vadd.xlane.f32.xlu0 %v2866
          %v2868 = vpop.xlane.xlu0 %2867
          %v2869 = vsel %vm2142, %v2628, 0.0
          %2870 = vadd.xlane.f32.xlu0 %v2869
          %v2871 = vpop.xlane.xlu0 %2870
          %v2872 = vsel %vm2142, %v2630, 0.0
          %2873 = vadd.xlane.f32.xlu0 %v2872
          %v2874 = vpop.xlane.xlu0 %2873
          %v2875 = vsel %vm2142, %v2632, 0.0
          %2876 = vadd.xlane.f32.xlu0 %v2875
          %v2877 = vpop.xlane.xlu0 %2876
          %v2878 = vsel %vm2142, %v2634, 0.0
          %2879 = vadd.xlane.f32.xlu0 %v2878
          %v2880 = vpop.xlane.xlu0 %2879
          %v2881 = vsel %vm2142, %v2636, 0.0
          %2882 = vadd.xlane.f32.xlu0 %v2881
          %v2883 = vpop.xlane.xlu0 %2882
          %v2884 = vsel %vm2142, %v2638, 0.0
          %2885 = vadd.xlane.f32.xlu0 %v2884
          %v2886 = vpop.xlane.xlu0 %2885
          %v2887 = vsel %vm2142, %v2640, 0.0
          %2888 = vadd.xlane.f32.xlu0 %v2887
          %v2889 = vpop.xlane.xlu0 %2888
          %v2890 = vsel %vm2142, %v2642, 0.0
          %2891 = vadd.xlane.f32.xlu0 %v2890
          %v2892 = vpop.xlane.xlu0 %2891
          %v2893 = vsel %vm2142, %v2644, 0.0
          %2894 = vadd.xlane.f32.xlu0 %v2893
          %v2895 = vpop.xlane.xlu0 %2894
          %v2896 = vsel %vm2142, %v2646, 0.0
          %2897 = vadd.xlane.f32.xlu0 %v2896
          %v2898 = vpop.xlane.xlu0 %2897
          %v2899 = vsel %vm2142, %v2648, 0.0
          %2900 = vadd.xlane.f32.xlu0 %v2899
          %v2901 = vpop.xlane.xlu0 %2900
          %v2902 = vsel %vm2142, %v2650, 0.0
          %2903 = vadd.xlane.f32.xlu0 %v2902
          %v2904 = vpop.xlane.xlu0 %2903
          %v2905 = vsel %vm2142, %v2652, 0.0
          %2906 = vadd.xlane.f32.xlu0 %v2905
          %v2907 = vpop.xlane.xlu0 %2906
          %v2908 = vsel %vm2142, %v2654, 0.0
          %2909 = vadd.xlane.f32.xlu0 %v2908
          %v2910 = vpop.xlane.xlu0 %2909
          %v2911 = vsel %vm2142, %v2656, 0.0
          %2912 = vadd.xlane.f32.xlu0 %v2911
          %v2913 = vpop.xlane.xlu0 %2912
          %v2914 = vsel %vm2142, %v2658, 0.0
          %2915 = vadd.xlane.f32.xlu0 %v2914
          %v2916 = vpop.xlane.xlu0 %2915
          %v2917 = vsel %vm2142, %v2660, 0.0
          %2918 = vadd.xlane.f32.xlu0 %v2917
          %v2919 = vpop.xlane.xlu0 %2918
          %v2920 = vsel %vm2142, %v2662, 0.0
          %2921 = vadd.xlane.f32.xlu0 %v2920
          %v2922 = vpop.xlane.xlu0 %2921
          %v2923 = vsel %vm2142, %v2664, 0.0
          %2924 = vadd.xlane.f32.xlu0 %v2923
          %v2925 = vpop.xlane.xlu0 %2924
          %v2926 = vsel %vm2142, %v2666, 0.0
          %2927 = vadd.xlane.f32.xlu0 %v2926
          %v2928 = vpop.xlane.xlu0 %2927
          %v2929 = vsel %vm2142, %v2668, 0.0
          %2930 = vadd.xlane.f32.xlu0 %v2929
          %v2931 = vpop.xlane.xlu0 %2930
          %v2932 = vsel %vm2142, %v2670, 0.0
          %2933 = vadd.xlane.f32.xlu0 %v2932
          %v2934 = vpop.xlane.xlu0 %2933
          %v2935 = vrcp.pop %v2673
          %v2936 = vrcp.pop %v2676
          %v2937 = vrcp.pop %v2679
          %v2938 = vrcp.pop %v2682
          %v2939 = vrcp.pop %v2685
          %v2940 = vrcp.pop %v2688
          %v2941 = vrcp.pop %v2691
          %v2942 = vrcp.pop %v2694
          %v2943 = vrcp.pop %v2697
          %v2944 = vrcp.pop %v2700
          %v2945 = vrcp.pop %v2703
          %v2946 = vrcp.pop %v2706
          %v2947 = vrcp.pop %v2709
          %v2948 = vrcp.pop %v2712
          %v2949 = vrcp.pop %v2715
          %v2950 = vrcp.pop %v2718
          %v2951 = vrcp.pop %v2721
          %v2952 = vrcp.pop %v2724
          %v2953 = vrcp.pop %v2727
          %v2954 = vrcp.pop %v2730
          %v2955 = vrcp.pop %v2733
          %v2956 = vrcp.pop %v2736
          %v2957 = vrcp.pop %v2739
          %v2958 = vrcp.pop %v2742
          %v2959 = vrcp.pop %v2745
          %v2960 = vrcp.pop %v2748
          %v2961 = vrcp.pop %v2751
          %v2962 = vrcp.pop %v2754
          %v2963 = vrcp.pop %v2757
          %v2964 = vrcp.pop %v2760
          %v2965 = vrcp.pop %v2763
          %v2966 = vrcp.pop %v2766
          %v2967 = vrcp.pop %v2769
          %v2968 = vrcp.pop %v2772
          %v2969 = vrcp.pop %v2775
          %v2970 = vrcp.pop %v2778
          %v2971 = vrcp.pop %v2781
          %v2972 = vrcp.pop %v2784
          %v2973 = vrcp.pop %v2787
          %v2974 = vrcp.pop %v2790
          %v2975 = vrcp.pop %v2793
          %v2976 = vrcp.pop %v2796
          %v2977 = vrcp.pop %v2799
          %v2978 = vrcp.pop %v2802
          %v2979 = vrcp.pop %v2805
          %v2980 = vrcp.pop %v2808
          %v2981 = vrcp.pop %v2811
          %v2982 = vrcp.pop %v2814
          %v2983 = vrcp.pop %v2817
          %v2984 = vrcp.pop %v2820
          %v2985 = vrcp.pop %v2823
          %v2986 = vrcp.pop %v2826
          %v2987 = vrcp.pop %v2829
          %v2988 = vrcp.pop %v2832
          %v2989 = vrcp.pop %v2835
          %v2990 = vrcp.pop %v2838
          %v2991 = vrcp.pop %v2841
          %v2992 = vrcp.pop %v2844
          %v2993 = vrcp.pop %v2847
          %v2994 = vrcp.pop %v2850
          %v2995 = vrcp.pop %v2853
          %v2996 = vrcp.pop %v2856
          %v2997 = vrcp.pop %v2859
          %v2998 = vrcp.pop %v2862
          %v2999 = vrcp.pop %v2865
          %v3000 = vrcp.pop %v2868
          %v3001 = vrcp.pop %v2871
          %v3002 = vrcp.pop %v2874
          %v3003 = vrcp.pop %v2877
          %v3004 = vrcp.pop %v2880
          %v3005 = vrcp.pop %v2883
          %v3006 = vrcp.pop %v2886
          %v3007 = vrcp.pop %v2889
          %v3008 = vrcp.pop %v2892
          %v3009 = vrcp.pop %v2895
          %v3010 = vrcp.pop %v2898
          %v3011 = vrcp.pop %v2901
          %v3012 = vrcp.pop %v2904
          %v3013 = vrcp.pop %v2907
          %v3014 = vrcp.pop %v2910
          %v3015 = vrcp.pop %v2913
          %v3016 = vrcp.pop %v2916
          %v3017 = vrcp.pop %v2919
          %v3018 = vrcp.pop %v2922
          %v3019 = vrcp.pop %v2925
          %v3020 = vrcp.pop %v2928
          %v3021 = vrcp.pop %v2931
          %v3022 = vrcp.pop %v2934
          %v3023 = vmul.f32 %v2496, %v2935
          %v3024 = vmul.f32 %v2498, %v2936
          %v3025 = vmul.f32 %v2500, %v2937
          %v3026 = vmul.f32 %v2502, %v2938
          %v3027 = vmul.f32 %v2504, %v2939
          %v3028 = vmul.f32 %v2506, %v2940
          %v3029 = vmul.f32 %v2508, %v2941
          %v3030 = vmul.f32 %v2510, %v2942
          %v3031 = vmul.f32 %v2512, %v2943
          %v3032 = vmul.f32 %v2514, %v2944
          %v3033 = vmul.f32 %v2516, %v2945
          %v3034 = vmul.f32 %v2518, %v2946
          %v3035 = vmul.f32 %v2520, %v2947
          %v3036 = vmul.f32 %v2522, %v2948
          %v3037 = vmul.f32 %v2524, %v2949
          %v3038 = vmul.f32 %v2526, %v2950
          %v3039 = vmul.f32 %v2528, %v2951
          %v3040 = vmul.f32 %v2530, %v2952
          %v3041 = vmul.f32 %v2532, %v2953
          %v3042 = vmul.f32 %v2534, %v2954
          %v3043 = vmul.f32 %v2536, %v2955
          %v3044 = vmul.f32 %v2538, %v2956
          %v3045 = vmul.f32 %v2540, %v2957
          %v3046 = vmul.f32 %v2542, %v2958
          %v3047 = vmul.f32 %v2544, %v2959
          %v3048 = vmul.f32 %v2546, %v2960
          %v3049 = vmul.f32 %v2548, %v2961
          %v3050 = vmul.f32 %v2550, %v2962
          %v3051 = vmul.f32 %v2552, %v2963
          %v3052 = vmul.f32 %v2554, %v2964
          %v3053 = vmul.f32 %v2556, %v2965
          %v3054 = vmul.f32 %v2558, %v2966
          %v3055 = vmul.f32 %v2560, %v2967
          %v3056 = vmul.f32 %v2562, %v2968
          %v3057 = vmul.f32 %v2564, %v2969
          %v3058 = vmul.f32 %v2566, %v2970
          %v3059 = vmul.f32 %v2568, %v2971
          %v3060 = vmul.f32 %v2570, %v2972
          %v3061 = vmul.f32 %v2572, %v2973
          %v3062 = vmul.f32 %v2574, %v2974
          %v3063 = vmul.f32 %v2576, %v2975
          %v3064 = vmul.f32 %v2578, %v2976
          %v3065 = vmul.f32 %v2580, %v2977
          %v3066 = vmul.f32 %v2582, %v2978
          %v3067 = vmul.f32 %v2584, %v2979
          %v3068 = vmul.f32 %v2586, %v2980
          %v3069 = vmul.f32 %v2588, %v2981
          %v3070 = vmul.f32 %v2590, %v2982
          %v3071 = vmul.f32 %v2592, %v2983
          %v3072 = vmul.f32 %v2594, %v2984
          %v3073 = vmul.f32 %v2596, %v2985
          %v3074 = vmul.f32 %v2598, %v2986
          %v3075 = vmul.f32 %v2600, %v2987
          %v3076 = vmul.f32 %v2602, %v2988
          %v3077 = vmul.f32 %v2604, %v2989
          %v3078 = vmul.f32 %v2606, %v2990
          %v3079 = vmul.f32 %v2608, %v2991
          %v3080 = vmul.f32 %v2610, %v2992
          %v3081 = vmul.f32 %v2612, %v2993
          %v3082 = vmul.f32 %v2614, %v2994
          %v3083 = vmul.f32 %v2616, %v2995
          %v3084 = vmul.f32 %v2618, %v2996
          %v3085 = vmul.f32 %v2620, %v2997
          %v3086 = vmul.f32 %v2622, %v2998
          %v3087 = vmul.f32 %v2624, %v2999
          %v3088 = vmul.f32 %v2626, %v3000
          %v3089 = vmul.f32 %v2628, %v3001
          %v3090 = vmul.f32 %v2630, %v3002
          %v3091 = vmul.f32 %v2632, %v3003
          %v3092 = vmul.f32 %v2634, %v3004
          %v3093 = vmul.f32 %v2636, %v3005
          %v3094 = vmul.f32 %v2638, %v3006
          %v3095 = vmul.f32 %v2640, %v3007
          %v3096 = vmul.f32 %v2642, %v3008
          %v3097 = vmul.f32 %v2644, %v3009
          %v3098 = vmul.f32 %v2646, %v3010
          %v3099 = vmul.f32 %v2648, %v3011
          %v3100 = vmul.f32 %v2650, %v3012
          %v3101 = vmul.f32 %v2652, %v3013
          %v3102 = vmul.f32 %v2654, %v3014
          %v3103 = vmul.f32 %v2656, %v3015
          %v3104 = vmul.f32 %v2658, %v3016
          %v3105 = vmul.f32 %v2660, %v3017
          %v3106 = vmul.f32 %v2662, %v3018
          %v3107 = vmul.f32 %v2664, %v3019
          %v3108 = vmul.f32 %v2666, %v3020
          %v3109 = vmul.f32 %v2668, %v3021
          %v3110 = vmul.f32 %v2670, %v3022
          %v3111 = vpack.c.bf16 %v3024, %v3023
          %v3112 = vpack.c.bf16 %v3026, %v3025
          %v3113 = vpack.c.bf16 %v3028, %v3027
          %v3114 = vpack.c.bf16 %v3030, %v3029
          %v3115 = vpack.c.bf16 %v3032, %v3031
          %v3116 = vpack.c.bf16 %v3034, %v3033
          %v3117 = vpack.c.bf16 %v3036, %v3035
          %v3118 = vpack.c.bf16 %v3038, %v3037
          %v3119 = vpack.c.bf16 %v3040, %v3039
          %v3120 = vpack.c.bf16 %v3042, %v3041
          %v3121 = vpack.c.bf16 %v3044, %v3043
          %v3122 = vpack.c.bf16 %v3046, %v3045
          %v3123 = vpack.c.bf16 %v3048, %v3047
          %v3124 = vpack.c.bf16 %v3050, %v3049
          %v3125 = vpack.c.bf16 %v3052, %v3051
          %v3126 = vpack.c.bf16 %v3054, %v3053
          %v3127 = vpack.c.bf16 %v3056, %v3055
          %v3128 = vpack.c.bf16 %v3058, %v3057
          %v3129 = vpack.c.bf16 %v3060, %v3059
          %v3130 = vpack.c.bf16 %v3062, %v3061
          %v3131 = vpack.c.bf16 %v3064, %v3063
          %v3132 = vpack.c.bf16 %v3066, %v3065
          %v3133 = vpack.c.bf16 %v3068, %v3067
          %v3134 = vpack.c.bf16 %v3070, %v3069
          %v3135 = vpack.c.bf16 %v3072, %v3071
          %v3136 = vpack.c.bf16 %v3074, %v3073
          %v3137 = vpack.c.bf16 %v3076, %v3075
          %v3138 = vpack.c.bf16 %v3078, %v3077
          %v3139 = vpack.c.bf16 %v3080, %v3079
          %v3140 = vpack.c.bf16 %v3082, %v3081
          %v3141 = vpack.c.bf16 %v3084, %v3083
          %v3142 = vpack.c.bf16 %v3086, %v3085
          %v3143 = vpack.c.bf16 %v3088, %v3087
          %v3144 = vpack.c.bf16 %v3090, %v3089
          %v3145 = vpack.c.bf16 %v3092, %v3091
          %v3146 = vpack.c.bf16 %v3094, %v3093
          %v3147 = vpack.c.bf16 %v3096, %v3095
          %v3148 = vpack.c.bf16 %v3098, %v3097
          %v3149 = vpack.c.bf16 %v3100, %v3099
          %v3150 = vpack.c.bf16 %v3102, %v3101
          %v3151 = vpack.c.bf16 %v3104, %v3103
          %v3152 = vpack.c.bf16 %v3106, %v3105
          %v3153 = vpack.c.bf16 %v3108, %v3107
          %v3154 = vpack.c.bf16 %v3110, %v3109
          %v3156 = vsel %vm2142, %v3111, 0
          %v3159 = vsel %vm2142, %v3112, 0
          %v3162 = vsel %vm2142, %v3113, 0
          %v3165 = vsel %vm2142, %v3114, 0
          %v3168 = vsel %vm2142, %v3115, 0
          %v3171 = vsel %vm2142, %v3116, 0
          %v3174 = vsel %vm2142, %v3117, 0
          %v3177 = vsel %vm2142, %v3118, 0
          %v3180 = vsel %vm2142, %v3119, 0
          %v3183 = vsel %vm2142, %v3120, 0
          %v3186 = vsel %vm2142, %v3121, 0
          %v3189 = vsel %vm2142, %v3122, 0
          %v3192 = vsel %vm2142, %v3123, 0
          %v3195 = vsel %vm2142, %v3124, 0
          %v3198 = vsel %vm2142, %v3125, 0
          %v3201 = vsel %vm2142, %v3126, 0
          %v3204 = vsel %vm2142, %v3127, 0
          %v3207 = vsel %vm2142, %v3128, 0
          %v3210 = vsel %vm2142, %v3129, 0
          %v3213 = vsel %vm2142, %v3130, 0
          %v3216 = vsel %vm2142, %v3131, 0
          %v3219 = vsel %vm2142, %v3132, 0
          %v3222 = vsel %vm2142, %v3133, 0
          %v3225 = vsel %vm2142, %v3134, 0
          %v3228 = vsel %vm2142, %v3135, 0
          %v3231 = vsel %vm2142, %v3136, 0
          %v3234 = vsel %vm2142, %v3137, 0
          %v3237 = vsel %vm2142, %v3138, 0
          %v3240 = vsel %vm2142, %v3139, 0
          %v3243 = vsel %vm2142, %v3140, 0
          %v3246 = vsel %vm2142, %v3141, 0
          %v3249 = vsel %vm2142, %v3142, 0
          %v3252 = vsel %vm2142, %v3143, 0
          %v3255 = vsel %vm2142, %v3144, 0
          %v3258 = vsel %vm2142, %v3145, 0
          %v3261 = vsel %vm2142, %v3146, 0
          %v3264 = vsel %vm2142, %v3147, 0
          %v3267 = vsel %vm2142, %v3148, 0
          %v3270 = vsel %vm2142, %v3149, 0
          %v3273 = vsel %vm2142, %v3150, 0
          %v3276 = vsel %vm2142, %v3151, 0
          %v3279 = vsel %vm2142, %v3152, 0
          %v3282 = vsel %vm2142, %v3153, 0
          %v3285 = vsel %vm2142, %v3154, 0
          %v3288 = vsel %vm2142, %v1484, 0
          %v3291 = vsel %vm2142, %v1485, 0
          %3293 = vmatprep.subr.bf16.mxu0 0
          %3294 = vmatpush1.bf16.xpose.msra.mxu0 %v3288
          %3295 = vmatprep.subr.bf16.mxu0 0
          %3296 = vmatpush1.bf16.xpose.msra.mxu0 %v3291
          %3297 = vmatprep.subr.bf16.mxu0 0
          %3298 = vmatpush1.bf16.xpose.msra.mxu0 0
          %3299 = vmatprep.subr.bf16.mxu0 0
          %3300 = vmatpush1.bf16.xpose.msra.mxu0 0
          %3301 = vmatprep.subr.bf16.mxu0 0
          %3302 = vmatpush1.bf16.xpose.msra.mxu0 0
          %3303 = vmatprep.subr.bf16.mxu0 0
          %3304 = vmatpush1.bf16.xpose.msra.mxu0 0
          %3305 = vmatprep.subr.bf16.mxu0 0
          %3306 = vmatpush1.bf16.xpose.msra.mxu0 0
          %3307 = vmatprep.subr.bf16.mxu0 0
          %3308 = vmatpush1.bf16.xpose.msra.mxu0 0
          %3309 = vmatprep.subr.bf16.mxu0 0
          %3310 = vmatpush1.bf16.xpose.msra.mxu0 0
          %3311 = vmatprep.subr.bf16.mxu0 0
          %3312 = vmatpush1.bf16.xpose.msra.mxu0 0
          %3313 = vmatprep.subr.bf16.mxu0 0
          %3314 = vmatpush1.bf16.xpose.msra.mxu0 0
          %3315 = vmatprep.subr.bf16.mxu0 0
          %3316 = vmatpush1.bf16.xpose.msra.mxu0 0
          %3317 = vmatprep.subr.bf16.mxu0 0
          %3318 = vmatpush1.bf16.xpose.msra.mxu0 0
          %3319 = vmatprep.subr.bf16.mxu0 0
          %3320 = vmatpush1.bf16.xpose.msra.mxu0 0
          %3321 = vmatprep.subr.bf16.mxu0 0
          %3322 = vmatpush1.bf16.xpose.msra.mxu0 0
          %3323 = vmatprep.subr.bf16.mxu0 0
          %3324 = vmatpush1.bf16.xpose.msra.mxu0 0
          %3325 = vmatprep.mubr.bf16.mxu0 0
          %3326 = vmatmul.mubr.bf16.gmra.mrb[0].mxu0 %v3156
          %v3327 = vpop.f32.mrb[0].mxu0
          %v3328 = vadd.f32 0.0, %v3327
          %v3329 = vpop.f32.mrb[0].mxu0
          %v3330 = vpop.f32.mrb[0].mxu0
          %v3331 = vadd.f32 0.0, %v3330
          %v3332 = vpop.f32.mrb[0].mxu0
          %3333 = vmatprep.mubr.bf16.mxu0 0
          %3334 = vmatmul.mubr.bf16.gmra.mrb[0].mxu0 %v3159
          %v3335 = vpop.f32.mrb[0].mxu0
          %v3336 = vadd.f32 0.0, %v3335
          %v3337 = vpop.f32.mrb[0].mxu0
          %v3338 = vpop.f32.mrb[0].mxu0
          %v3339 = vadd.f32 0.0, %v3338
          %v3340 = vpop.f32.mrb[0].mxu0
          %3341 = vmatprep.mubr.bf16.mxu0 0
          %3342 = vmatmul.mubr.bf16.gmra.mrb[0].mxu0 %v3162
          %v3343 = vpop.f32.mrb[0].mxu0
          %v3344 = vadd.f32 0.0, %v3343
          %v3345 = vpop.f32.mrb[0].mxu0
          %v3346 = vpop.f32.mrb[0].mxu0
          %v3347 = vadd.f32 0.0, %v3346
          %v3348 = vpop.f32.mrb[0].mxu0
          %3349 = vmatprep.mubr.bf16.mxu0 0
          %3350 = vmatmul.mubr.bf16.gmra.mrb[0].mxu0 %v3165
          %v3351 = vpop.f32.mrb[0].mxu0
          %v3352 = vadd.f32 0.0, %v3351
          %v3353 = vpop.f32.mrb[0].mxu0
          %v3354 = vpop.f32.mrb[0].mxu0
          %v3355 = vadd.f32 0.0, %v3354
          %v3356 = vpop.f32.mrb[0].mxu0
          %3357 = vmatprep.mubr.bf16.mxu0 0
          %3358 = vmatmul.mubr.bf16.gmra.mrb[0].mxu0 %v3168
          %v3359 = vpop.f32.mrb[0].mxu0
          %v3360 = vadd.f32 0.0, %v3359
          %v3361 = vpop.f32.mrb[0].mxu0
          %v3362 = vpop.f32.mrb[0].mxu0
          %v3363 = vadd.f32 0.0, %v3362
          %v3364 = vpop.f32.mrb[0].mxu0
          %3365 = vmatprep.mubr.bf16.mxu0 0
          %3366 = vmatmul.mubr.bf16.gmra.mrb[0].mxu0 %v3171
          %v3367 = vpop.f32.mrb[0].mxu0
          %v3368 = vadd.f32 0.0, %v3367
          %v3369 = vpop.f32.mrb[0].mxu0
          %v3370 = vpop.f32.mrb[0].mxu0
          %v3371 = vadd.f32 0.0, %v3370
          %v3372 = vpop.f32.mrb[0].mxu0
          %3373 = vmatprep.mubr.bf16.mxu0 0
          %3374 = vmatmul.mubr.bf16.gmra.mrb[0].mxu0 %v3174
          %v3375 = vpop.f32.mrb[0].mxu0
          %v3376 = vadd.f32 0.0, %v3375
          %v3377 = vpop.f32.mrb[0].mxu0
          %v3378 = vpop.f32.mrb[0].mxu0
          %v3379 = vadd.f32 0.0, %v3378
          %v3380 = vpop.f32.mrb[0].mxu0
          %3381 = vmatprep.mubr.bf16.mxu0 0
          %3382 = vmatmul.mubr.bf16.gmra.mrb[0].mxu0 %v3177
          %v3383 = vpop.f32.mrb[0].mxu0
          %v3384 = vadd.f32 0.0, %v3383
          %v3385 = vpop.f32.mrb[0].mxu0
          %v3386 = vpop.f32.mrb[0].mxu0
          %v3387 = vadd.f32 0.0, %v3386
          %v3388 = vpop.f32.mrb[0].mxu0
          %3389 = vmatprep.mubr.bf16.mxu0 0
          %3390 = vmatmul.mubr.bf16.gmra.mrb[0].mxu0 %v3180
          %v3391 = vpop.f32.mrb[0].mxu0
          %v3392 = vadd.f32 0.0, %v3391
          %v3393 = vpop.f32.mrb[0].mxu0
          %v3394 = vpop.f32.mrb[0].mxu0
          %v3395 = vadd.f32 0.0, %v3394
          %v3396 = vpop.f32.mrb[0].mxu0
          %3397 = vmatprep.mubr.bf16.mxu0 0
          %3398 = vmatmul.mubr.bf16.gmra.mrb[0].mxu0 %v3183
          %v3399 = vpop.f32.mrb[0].mxu0
          %v3400 = vadd.f32 0.0, %v3399
          %v3401 = vpop.f32.mrb[0].mxu0
          %v3402 = vpop.f32.mrb[0].mxu0
          %v3403 = vadd.f32 0.0, %v3402
          %v3404 = vpop.f32.mrb[0].mxu0
          %3405 = vmatprep.mubr.bf16.mxu0 0
          %3406 = vmatmul.mubr.bf16.gmra.mrb[0].mxu0 %v3186
          %v3407 = vpop.f32.mrb[0].mxu0
          %v3408 = vadd.f32 0.0, %v3407
          %v3409 = vpop.f32.mrb[0].mxu0
          %v3410 = vpop.f32.mrb[0].mxu0
          %v3411 = vadd.f32 0.0, %v3410
          %v3412 = vpop.f32.mrb[0].mxu0
          %3413 = vmatprep.mubr.bf16.mxu0 0
          %3414 = vmatmul.mubr.bf16.gmra.mrb[0].mxu0 %v3189
          %v3415 = vpop.f32.mrb[0].mxu0
          %v3416 = vadd.f32 0.0, %v3415
          %v3417 = vpop.f32.mrb[0].mxu0
          %v3418 = vpop.f32.mrb[0].mxu0
          %v3419 = vadd.f32 0.0, %v3418
          %v3420 = vpop.f32.mrb[0].mxu0
          %3421 = vmatprep.mubr.bf16.mxu0 0
          %3422 = vmatmul.mubr.bf16.gmra.mrb[0].mxu0 %v3192
          %v3423 = vpop.f32.mrb[0].mxu0
          %v3424 = vadd.f32 0.0, %v3423
          %v3425 = vpop.f32.mrb[0].mxu0
          %v3426 = vpop.f32.mrb[0].mxu0
          %v3427 = vadd.f32 0.0, %v3426
          %v3428 = vpop.f32.mrb[0].mxu0
          %3429 = vmatprep.mubr.bf16.mxu0 0
          %3430 = vmatmul.mubr.bf16.gmra.mrb[0].mxu0 %v3195
          %v3431 = vpop.f32.mrb[0].mxu0
          %v3432 = vadd.f32 0.0, %v3431
          %v3433 = vpop.f32.mrb[0].mxu0
          %v3434 = vpop.f32.mrb[0].mxu0
          %v3435 = vadd.f32 0.0, %v3434
          %v3436 = vpop.f32.mrb[0].mxu0
          %3437 = vmatprep.mubr.bf16.mxu0 0
          %3438 = vmatmul.mubr.bf16.gmra.mrb[0].mxu0 %v3198
          %v3439 = vpop.f32.mrb[0].mxu0
          %v3440 = vadd.f32 0.0, %v3439
          %v3441 = vpop.f32.mrb[0].mxu0
          %v3442 = vpop.f32.mrb[0].mxu0
          %v3443 = vadd.f32 0.0, %v3442
          %v3444 = vpop.f32.mrb[0].mxu0
          %3445 = vmatprep.mubr.bf16.mxu0 0
          %3446 = vmatmul.mubr.bf16.gmra.mrb[0].mxu0 %v3201
          %v3447 = vpop.f32.mrb[0].mxu0
          %v3448 = vadd.f32 0.0, %v3447
          %v3449 = vpop.f32.mrb[0].mxu0
          %v3450 = vpop.f32.mrb[0].mxu0
          %v3451 = vadd.f32 0.0, %v3450
          %v3452 = vpop.f32.mrb[0].mxu0
          %3453 = vmatprep.mubr.bf16.mxu0 0
          %3454 = vmatmul.mubr.bf16.gmra.mrb[0].mxu0 %v3204
          %v3455 = vpop.f32.mrb[0].mxu0
          %v3456 = vadd.f32 0.0, %v3455
          %v3457 = vpop.f32.mrb[0].mxu0
          %v3458 = vpop.f32.mrb[0].mxu0
          %v3459 = vadd.f32 0.0, %v3458
          %v3460 = vpop.f32.mrb[0].mxu0
          %3461 = vmatprep.mubr.bf16.mxu0 0
          %3462 = vmatmul.mubr.bf16.gmra.mrb[0].mxu0 %v3207
          %v3463 = vpop.f32.mrb[0].mxu0
          %v3464 = vadd.f32 0.0, %v3463
          %v3465 = vpop.f32.mrb[0].mxu0
          %v3466 = vpop.f32.mrb[0].mxu0
          %v3467 = vadd.f32 0.0, %v3466
          %v3468 = vpop.f32.mrb[0].mxu0
          %3469 = vmatprep.mubr.bf16.mxu0 0
          %3470 = vmatmul.mubr.bf16.gmra.mrb[0].mxu0 %v3210
          %v3471 = vpop.f32.mrb[0].mxu0
          %v3472 = vadd.f32 0.0, %v3471
          %v3473 = vpop.f32.mrb[0].mxu0
          %v3474 = vpop.f32.mrb[0].mxu0
          %v3475 = vadd.f32 0.0, %v3474
          %v3476 = vpop.f32.mrb[0].mxu0
          %3477 = vmatprep.mubr.bf16.mxu0 0
          %3478 = vmatmul.mubr.bf16.gmra.mrb[0].mxu0 %v3213
          %v3479 = vpop.f32.mrb[0].mxu0
          %v3480 = vadd.f32 0.0, %v3479
          %v3481 = vpop.f32.mrb[0].mxu0
          %v3482 = vpop.f32.mrb[0].mxu0
          %v3483 = vadd.f32 0.0, %v3482
          %v3484 = vpop.f32.mrb[0].mxu0
          %3485 = vmatprep.mubr.bf16.mxu0 0
          %3486 = vmatmul.mubr.bf16.gmra.mrb[0].mxu0 %v3216
          %v3487 = vpop.f32.mrb[0].mxu0
          %v3488 = vadd.f32 0.0, %v3487
          %v3489 = vpop.f32.mrb[0].mxu0
          %v3490 = vpop.f32.mrb[0].mxu0
          %v3491 = vadd.f32 0.0, %v3490
          %v3492 = vpop.f32.mrb[0].mxu0
          %3493 = vmatprep.mubr.bf16.mxu0 0
          %3494 = vmatmul.mubr.bf16.gmra.mrb[0].mxu0 %v3219
          %v3495 = vpop.f32.mrb[0].mxu0
          %v3496 = vadd.f32 0.0, %v3495
          %v3497 = vpop.f32.mrb[0].mxu0
          %v3498 = vpop.f32.mrb[0].mxu0
          %v3499 = vadd.f32 0.0, %v3498
          %v3500 = vpop.f32.mrb[0].mxu0
          %3501 = vmatprep.mubr.bf16.mxu0 0
          %3502 = vmatmul.mubr.bf16.gmra.mrb[0].mxu0 %v3222
          %v3503 = vpop.f32.mrb[0].mxu0
          %v3504 = vadd.f32 0.0, %v3503
          %v3505 = vpop.f32.mrb[0].mxu0
          %v3506 = vpop.f32.mrb[0].mxu0
          %v3507 = vadd.f32 0.0, %v3506
          %v3508 = vpop.f32.mrb[0].mxu0
          %3509 = vmatprep.mubr.bf16.mxu0 0
          %3510 = vmatmul.mubr.bf16.gmra.mrb[0].mxu0 %v3225
          %v3511 = vpop.f32.mrb[0].mxu0
          %v3512 = vadd.f32 0.0, %v3511
          %v3513 = vpop.f32.mrb[0].mxu0
          %v3514 = vpop.f32.mrb[0].mxu0
          %v3515 = vadd.f32 0.0, %v3514
          %v3516 = vpop.f32.mrb[0].mxu0
          %3517 = vmatprep.mubr.bf16.mxu0 0
          %3518 = vmatmul.mubr.bf16.gmra.mrb[0].mxu0 %v3228
          %v3519 = vpop.f32.mrb[0].mxu0
          %v3520 = vadd.f32 0.0, %v3519
          %v3521 = vpop.f32.mrb[0].mxu0
          %v3522 = vpop.f32.mrb[0].mxu0
          %v3523 = vadd.f32 0.0, %v3522
          %v3524 = vpop.f32.mrb[0].mxu0
          %3525 = vmatprep.mubr.bf16.mxu0 0
          %3526 = vmatmul.mubr.bf16.gmra.mrb[0].mxu0 %v3231
          %v3527 = vpop.f32.mrb[0].mxu0
          %v3528 = vadd.f32 0.0, %v3527
          %v3529 = vpop.f32.mrb[0].mxu0
          %v3530 = vpop.f32.mrb[0].mxu0
          %v3531 = vadd.f32 0.0, %v3530
          %v3532 = vpop.f32.mrb[0].mxu0
          %3533 = vmatprep.mubr.bf16.mxu0 0
          %3534 = vmatmul.mubr.bf16.gmra.mrb[0].mxu0 %v3234
          %v3535 = vpop.f32.mrb[0].mxu0
          %v3536 = vadd.f32 0.0, %v3535
          %v3537 = vpop.f32.mrb[0].mxu0
          %v3538 = vpop.f32.mrb[0].mxu0
          %v3539 = vadd.f32 0.0, %v3538
          %v3540 = vpop.f32.mrb[0].mxu0
          %3541 = vmatprep.mubr.bf16.mxu0 0
          %3542 = vmatmul.mubr.bf16.gmra.mrb[0].mxu0 %v3237
          %v3543 = vpop.f32.mrb[0].mxu0
          %v3544 = vadd.f32 0.0, %v3543
          %v3545 = vpop.f32.mrb[0].mxu0
          %v3546 = vpop.f32.mrb[0].mxu0
          %v3547 = vadd.f32 0.0, %v3546
          %v3548 = vpop.f32.mrb[0].mxu0
          %3549 = vmatprep.mubr.bf16.mxu0 0
          %3550 = vmatmul.mubr.bf16.gmra.mrb[0].mxu0 %v3240
          %v3551 = vpop.f32.mrb[0].mxu0
          %v3552 = vadd.f32 0.0, %v3551
          %v3553 = vpop.f32.mrb[0].mxu0
          %v3554 = vpop.f32.mrb[0].mxu0
          %v3555 = vadd.f32 0.0, %v3554
          %v3556 = vpop.f32.mrb[0].mxu0
          %3557 = vmatprep.mubr.bf16.mxu0 0
          %3558 = vmatmul.mubr.bf16.gmra.mrb[0].mxu0 %v3243
          %v3559 = vpop.f32.mrb[0].mxu0
          %v3560 = vadd.f32 0.0, %v3559
          %v3561 = vpop.f32.mrb[0].mxu0
          %v3562 = vpop.f32.mrb[0].mxu0
          %v3563 = vadd.f32 0.0, %v3562
          %v3564 = vpop.f32.mrb[0].mxu0
          %3565 = vmatprep.mubr.bf16.mxu0 0
          %3566 = vmatmul.mubr.bf16.gmra.mrb[0].mxu0 %v3246
          %v3567 = vpop.f32.mrb[0].mxu0
          %v3568 = vadd.f32 0.0, %v3567
          %v3569 = vpop.f32.mrb[0].mxu0
          %v3570 = vpop.f32.mrb[0].mxu0
          %v3571 = vadd.f32 0.0, %v3570
          %v3572 = vpop.f32.mrb[0].mxu0
          %3573 = vmatprep.mubr.bf16.mxu0 0
          %3574 = vmatmul.mubr.bf16.gmra.mrb[0].mxu0 %v3249
          %v3575 = vpop.f32.mrb[0].mxu0
          %v3576 = vadd.f32 0.0, %v3575
          %v3577 = vpop.f32.mrb[0].mxu0
          %v3578 = vpop.f32.mrb[0].mxu0
          %v3579 = vadd.f32 0.0, %v3578
          %v3580 = vpop.f32.mrb[0].mxu0
          %3581 = vmatprep.mubr.bf16.mxu0 0
          %3582 = vmatmul.mubr.bf16.gmra.mrb[0].mxu0 %v3252
          %v3583 = vpop.f32.mrb[0].mxu0
          %v3584 = vadd.f32 0.0, %v3583
          %v3585 = vpop.f32.mrb[0].mxu0
          %v3586 = vpop.f32.mrb[0].mxu0
          %v3587 = vadd.f32 0.0, %v3586
          %v3588 = vpop.f32.mrb[0].mxu0
          %3589 = vmatprep.mubr.bf16.mxu0 0
          %3590 = vmatmul.mubr.bf16.gmra.mrb[0].mxu0 %v3255
          %v3591 = vpop.f32.mrb[0].mxu0
          %v3592 = vadd.f32 0.0, %v3591
          %v3593 = vpop.f32.mrb[0].mxu0
          %v3594 = vpop.f32.mrb[0].mxu0
          %v3595 = vadd.f32 0.0, %v3594
          %v3596 = vpop.f32.mrb[0].mxu0
          %3597 = vmatprep.mubr.bf16.mxu0 0
          %3598 = vmatmul.mubr.bf16.gmra.mrb[0].mxu0 %v3258
          %v3599 = vpop.f32.mrb[0].mxu0
          %v3600 = vadd.f32 0.0, %v3599
          %v3601 = vpop.f32.mrb[0].mxu0
          %v3602 = vpop.f32.mrb[0].mxu0
          %v3603 = vadd.f32 0.0, %v3602
          %v3604 = vpop.f32.mrb[0].mxu0
          %3605 = vmatprep.mubr.bf16.mxu0 0
          %3606 = vmatmul.mubr.bf16.gmra.mrb[0].mxu0 %v3261
          %v3607 = vpop.f32.mrb[0].mxu0
          %v3608 = vadd.f32 0.0, %v3607
          %v3609 = vpop.f32.mrb[0].mxu0
          %v3610 = vpop.f32.mrb[0].mxu0
          %v3611 = vadd.f32 0.0, %v3610
          %v3612 = vpop.f32.mrb[0].mxu0
          %3613 = vmatprep.mubr.bf16.mxu0 0
          %3614 = vmatmul.mubr.bf16.gmra.mrb[0].mxu0 %v3264
          %v3615 = vpop.f32.mrb[0].mxu0
          %v3616 = vadd.f32 0.0, %v3615
          %v3617 = vpop.f32.mrb[0].mxu0
          %v3618 = vpop.f32.mrb[0].mxu0
          %v3619 = vadd.f32 0.0, %v3618
          %v3620 = vpop.f32.mrb[0].mxu0
          %3621 = vmatprep.mubr.bf16.mxu0 0
          %3622 = vmatmul.mubr.bf16.gmra.mrb[0].mxu0 %v3267
          %v3623 = vpop.f32.mrb[0].mxu0
          %v3624 = vadd.f32 0.0, %v3623
          %v3625 = vpop.f32.mrb[0].mxu0
          %v3626 = vpop.f32.mrb[0].mxu0
          %v3627 = vadd.f32 0.0, %v3626
          %v3628 = vpop.f32.mrb[0].mxu0
          %3629 = vmatprep.mubr.bf16.mxu0 0
          %3630 = vmatmul.mubr.bf16.gmra.mrb[0].mxu0 %v3270
          %v3631 = vpop.f32.mrb[0].mxu0
          %v3632 = vadd.f32 0.0, %v3631
          %v3633 = vpop.f32.mrb[0].mxu0
          %v3634 = vpop.f32.mrb[0].mxu0
          %v3635 = vadd.f32 0.0, %v3634
          %v3636 = vpop.f32.mrb[0].mxu0
          %3637 = vmatprep.mubr.bf16.mxu0 0
          %3638 = vmatmul.mubr.bf16.gmra.mrb[0].mxu0 %v3273
          %v3639 = vpop.f32.mrb[0].mxu0
          %v3640 = vadd.f32 0.0, %v3639
          %v3641 = vpop.f32.mrb[0].mxu0
          %v3642 = vpop.f32.mrb[0].mxu0
          %v3643 = vadd.f32 0.0, %v3642
          %v3644 = vpop.f32.mrb[0].mxu0
          %3645 = vmatprep.mubr.bf16.mxu0 0
          %3646 = vmatmul.mubr.bf16.gmra.mrb[0].mxu0 %v3276
          %v3647 = vpop.f32.mrb[0].mxu0
          %v3648 = vadd.f32 0.0, %v3647
          %v3649 = vpop.f32.mrb[0].mxu0
          %v3650 = vpop.f32.mrb[0].mxu0
          %v3651 = vadd.f32 0.0, %v3650
          %v3652 = vpop.f32.mrb[0].mxu0
          %3653 = vmatprep.mubr.bf16.mxu0 0
          %3654 = vmatmul.mubr.bf16.gmra.mrb[0].mxu0 %v3279
          %v3655 = vpop.f32.mrb[0].mxu0
          %v3656 = vadd.f32 0.0, %v3655
          %v3657 = vpop.f32.mrb[0].mxu0
          %v3658 = vpop.f32.mrb[0].mxu0
          %v3659 = vadd.f32 0.0, %v3658
          %v3660 = vpop.f32.mrb[0].mxu0
          %3661 = vmatprep.mubr.bf16.mxu0 0
          %3662 = vmatmul.mubr.bf16.gmra.mrb[0].mxu0 %v3282
          %v3663 = vpop.f32.mrb[0].mxu0
          %v3664 = vadd.f32 0.0, %v3663
          %v3665 = vpop.f32.mrb[0].mxu0
          %v3666 = vpop.f32.mrb[0].mxu0
          %v3667 = vadd.f32 0.0, %v3666
          %v3668 = vpop.f32.mrb[0].mxu0
          %3669 = vmatprep.mubr.bf16.mxu0 0
          %3670 = vmatmul.mubr.bf16.gmra.mrb[0].mxu0 %v3285
          %v3671 = vpop.f32.mrb[0].mxu0
          %v3672 = vadd.f32 0.0, %v3671
          %v3673 = vpop.f32.mrb[0].mxu0
          %v3674 = vpop.f32.mrb[0].mxu0
          %v3675 = vadd.f32 0.0, %v3674
          %v3676 = vpop.f32.mrb[0].mxu0
          %3677 = vdwg.mxu0
          %v3678 = vpack.c.bf16 %v3331, %v3328
          %v3679 = vpack.c.bf16 %v3339, %v3336
          %v3680 = vpack.c.bf16 %v3347, %v3344
          %v3681 = vpack.c.bf16 %v3355, %v3352
          %v3682 = vpack.c.bf16 %v3363, %v3360
          %v3683 = vpack.c.bf16 %v3371, %v3368
          %v3684 = vpack.c.bf16 %v3379, %v3376
          %v3685 = vpack.c.bf16 %v3387, %v3384
          %v3686 = vpack.c.bf16 %v3395, %v3392
          %v3687 = vpack.c.bf16 %v3403, %v3400
          %v3688 = vpack.c.bf16 %v3411, %v3408
          %v3689 = vpack.c.bf16 %v3419, %v3416
          %v3690 = vpack.c.bf16 %v3427, %v3424
          %v3691 = vpack.c.bf16 %v3435, %v3432
          %v3692 = vpack.c.bf16 %v3443, %v3440
          %v3693 = vpack.c.bf16 %v3451, %v3448
          %v3694 = vpack.c.bf16 %v3459, %v3456
          %v3695 = vpack.c.bf16 %v3467, %v3464
          %v3696 = vpack.c.bf16 %v3475, %v3472
          %v3697 = vpack.c.bf16 %v3483, %v3480
          %v3698 = vpack.c.bf16 %v3491, %v3488
          %v3699 = vpack.c.bf16 %v3499, %v3496
          %v3700 = vpack.c.bf16 %v3507, %v3504
          %v3701 = vpack.c.bf16 %v3515, %v3512
          %v3702 = vpack.c.bf16 %v3523, %v3520
          %v3703 = vpack.c.bf16 %v3531, %v3528
          %v3704 = vpack.c.bf16 %v3539, %v3536
          %v3705 = vpack.c.bf16 %v3547, %v3544
          %v3706 = vpack.c.bf16 %v3555, %v3552
          %v3707 = vpack.c.bf16 %v3563, %v3560
          %v3708 = vpack.c.bf16 %v3571, %v3568
          %v3709 = vpack.c.bf16 %v3579, %v3576
          %v3710 = vpack.c.bf16 %v3587, %v3584
          %v3711 = vpack.c.bf16 %v3595, %v3592
          %v3712 = vpack.c.bf16 %v3603, %v3600
          %v3713 = vpack.c.bf16 %v3611, %v3608
          %v3714 = vpack.c.bf16 %v3619, %v3616
          %v3715 = vpack.c.bf16 %v3627, %v3624
          %v3716 = vpack.c.bf16 %v3635, %v3632
          %v3717 = vpack.c.bf16 %v3643, %v3640
          %v3718 = vpack.c.bf16 %v3651, %v3648
          %v3719 = vpack.c.bf16 %v3659, %v3656
          %v3720 = vpack.c.bf16 %v3667, %v3664
          %v3721 = vpack.c.bf16 %v3675, %v3672
          %v3723 = vlaneseq
          %v3724 = vshrl.u32 %v3723, 7
          %v3725 = vsub.s32 0, %v3724
          %v3726 = vrot.slane %v1492, %v3725
          %v3729 = vsel %vm1030, %v3678, 0
          %v3732 = vsel %vm1030, %v3679, 0
          %v3735 = vsel %vm1030, %v3680, 0
          %v3738 = vsel %vm1030, %v3681, 0
          %v3741 = vsel %vm1030, %v3682, 0
          %v3744 = vsel %vm1030, %v3683, 0
          %v3747 = vsel %vm1030, %v3684, 0
          %v3750 = vsel %vm1030, %v3685, 0
          %v3753 = vsel %vm1030, %v3686, 0
          %v3756 = vsel %vm1030, %v3687, 0
          %v3759 = vsel %vm1030, %v3688, 0
          %v3762 = vsel %vm1030, %v3689, 0
          %v3765 = vsel %vm1030, %v3690, 0
          %v3768 = vsel %vm1030, %v3691, 0
          %v3771 = vsel %vm1030, %v3692, 0
          %v3774 = vsel %vm1030, %v3693, 0
          %v3777 = vsel %vm1030, %v3694, 0
          %v3780 = vsel %vm1030, %v3695, 0
          %v3783 = vsel %vm1030, %v3696, 0
          %v3786 = vsel %vm1030, %v3697, 0
          %v3789 = vsel %vm1030, %v3698, 0
          %v3792 = vsel %vm1030, %v3699, 0
          %v3795 = vsel %vm1030, %v3700, 0
          %v3798 = vsel %vm1030, %v3701, 0
          %v3801 = vsel %vm1030, %v3702, 0
          %v3804 = vsel %vm1030, %v3703, 0
          %v3807 = vsel %vm1030, %v3704, 0
          %v3810 = vsel %vm1030, %v3705, 0
          %v3813 = vsel %vm1030, %v3706, 0
          %v3816 = vsel %vm1030, %v3707, 0
          %v3819 = vsel %vm1030, %v3708, 0
          %v3822 = vsel %vm1030, %v3709, 0
          %v3825 = vsel %vm1030, %v3710, 0
          %v3828 = vsel %vm1030, %v3711, 0
          %v3831 = vsel %vm1030, %v3712, 0
          %v3834 = vsel %vm1030, %v3713, 0
          %v3837 = vsel %vm1030, %v3714, 0
          %v3840 = vsel %vm1030, %v3715, 0
          %v3843 = vsel %vm1030, %v3716, 0
          %v3846 = vsel %vm1030, %v3717, 0
          %v3849 = vsel %vm1030, %v3718, 0
          %v3852 = vsel %vm1030, %v3719, 0
          %v3855 = vsel %vm1030, %v3720, 0
          %v3858 = vsel %vm1030, %v3721, 0
          %v3861 = vsel %vm1030, %v1490, 0
          %v3864 = vsel %vm1030, %v1491, 0
          %3866 = vmatprep.subr.bf16.mxu0 0
          %3867 = vmatpush1.bf16.xpose.msra.mxu0 %v3861
          %3868 = vmatprep.subr.bf16.mxu0 0
          %3869 = vmatpush1.bf16.xpose.msra.mxu0 %v3864
          %3870 = vmatprep.subr.bf16.mxu0 0
          %3871 = vmatpush1.bf16.xpose.msra.mxu0 0
          %3872 = vmatprep.subr.bf16.mxu0 0
          %3873 = vmatpush1.bf16.xpose.msra.mxu0 0
          %3874 = vmatprep.subr.bf16.mxu0 0
          %3875 = vmatpush1.bf16.xpose.msra.mxu0 0
          %3876 = vmatprep.subr.bf16.mxu0 0
          %3877 = vmatpush1.bf16.xpose.msra.mxu0 0
          %3878 = vmatprep.subr.bf16.mxu0 0
          %3879 = vmatpush1.bf16.xpose.msra.mxu0 0
          %3880 = vmatprep.subr.bf16.mxu0 0
          %3881 = vmatpush1.bf16.xpose.msra.mxu0 0
          %3882 = vmatprep.subr.bf16.mxu0 0
          %3883 = vmatpush1.bf16.xpose.msra.mxu0 0
          %3884 = vmatprep.subr.bf16.mxu0 0
          %3885 = vmatpush1.bf16.xpose.msra.mxu0 0
          %3886 = vmatprep.subr.bf16.mxu0 0
          %3887 = vmatpush1.bf16.xpose.msra.mxu0 0
          %3888 = vmatprep.subr.bf16.mxu0 0
          %3889 = vmatpush1.bf16.xpose.msra.mxu0 0
          %3890 = vmatprep.subr.bf16.mxu0 0
          %3891 = vmatpush1.bf16.xpose.msra.mxu0 0
          %3892 = vmatprep.subr.bf16.mxu0 0
          %3893 = vmatpush1.bf16.xpose.msra.mxu0 0
          %3894 = vmatprep.subr.bf16.mxu0 0
          %3895 = vmatpush1.bf16.xpose.msra.mxu0 0
          %3896 = vmatprep.subr.bf16.mxu0 0
          %3897 = vmatpush1.bf16.xpose.msra.mxu0 0
          %3898 = vmatprep.mubr.bf16.mxu0 0
          %3899 = vmatmul.mubr.bf16.gmra.mrb[0].mxu0 %v3729
          %v3900 = vpop.f32.mrb[0].mxu0
          %v3901 = vadd.f32 %v3726, %v3900
          %v3902 = vpop.f32.mrb[0].mxu0
          %v3903 = vpop.f32.mrb[0].mxu0
          %v3904 = vadd.f32 %v3726, %v3903
          %v3905 = vpop.f32.mrb[0].mxu0
          %3906 = vmatprep.mubr.bf16.mxu0 0
          %3907 = vmatmul.mubr.bf16.gmra.mrb[0].mxu0 %v3732
          %v3908 = vpop.f32.mrb[0].mxu0
          %v3909 = vadd.f32 %v3726, %v3908
          %v3910 = vpop.f32.mrb[0].mxu0
          %v3911 = vpop.f32.mrb[0].mxu0
          %v3912 = vadd.f32 %v3726, %v3911
          %v3913 = vpop.f32.mrb[0].mxu0
          %3914 = vmatprep.mubr.bf16.mxu0 0
          %3915 = vmatmul.mubr.bf16.gmra.mrb[0].mxu0 %v3735
          %v3916 = vpop.f32.mrb[0].mxu0
          %v3917 = vadd.f32 %v3726, %v3916
          %v3918 = vpop.f32.mrb[0].mxu0
          %v3919 = vpop.f32.mrb[0].mxu0
          %v3920 = vadd.f32 %v3726, %v3919
          %v3921 = vpop.f32.mrb[0].mxu0
          %3922 = vmatprep.mubr.bf16.mxu0 0
          %3923 = vmatmul.mubr.bf16.gmra.mrb[0].mxu0 %v3738
          %v3924 = vpop.f32.mrb[0].mxu0
          %v3925 = vadd.f32 %v3726, %v3924
          %v3926 = vpop.f32.mrb[0].mxu0
          %v3927 = vpop.f32.mrb[0].mxu0
          %v3928 = vadd.f32 %v3726, %v3927
          %v3929 = vpop.f32.mrb[0].mxu0
          %3930 = vmatprep.mubr.bf16.mxu0 0
          %3931 = vmatmul.mubr.bf16.gmra.mrb[0].mxu0 %v3741
          %v3932 = vpop.f32.mrb[0].mxu0
          %v3933 = vadd.f32 %v3726, %v3932
          %v3934 = vpop.f32.mrb[0].mxu0
          %v3935 = vpop.f32.mrb[0].mxu0
          %v3936 = vadd.f32 %v3726, %v3935
          %v3937 = vpop.f32.mrb[0].mxu0
          %3938 = vmatprep.mubr.bf16.mxu0 0
          %3939 = vmatmul.mubr.bf16.gmra.mrb[0].mxu0 %v3744
          %v3940 = vpop.f32.mrb[0].mxu0
          %v3941 = vadd.f32 %v3726, %v3940
          %v3942 = vpop.f32.mrb[0].mxu0
          %v3943 = vpop.f32.mrb[0].mxu0
          %v3944 = vadd.f32 %v3726, %v3943
          %v3945 = vpop.f32.mrb[0].mxu0
          %3946 = vmatprep.mubr.bf16.mxu0 0
          %3947 = vmatmul.mubr.bf16.gmra.mrb[0].mxu0 %v3747
          %v3948 = vpop.f32.mrb[0].mxu0
          %v3949 = vadd.f32 %v3726, %v3948
          %v3950 = vpop.f32.mrb[0].mxu0
          %v3951 = vpop.f32.mrb[0].mxu0
          %v3952 = vadd.f32 %v3726, %v3951
          %v3953 = vpop.f32.mrb[0].mxu0
          %3954 = vmatprep.mubr.bf16.mxu0 0
          %3955 = vmatmul.mubr.bf16.gmra.mrb[0].mxu0 %v3750
          %v3956 = vpop.f32.mrb[0].mxu0
          %v3957 = vadd.f32 %v3726, %v3956
          %v3958 = vpop.f32.mrb[0].mxu0
          %v3959 = vpop.f32.mrb[0].mxu0
          %v3960 = vadd.f32 %v3726, %v3959
          %v3961 = vpop.f32.mrb[0].mxu0
          %3962 = vmatprep.mubr.bf16.mxu0 0
          %3963 = vmatmul.mubr.bf16.gmra.mrb[0].mxu0 %v3753
          %v3964 = vpop.f32.mrb[0].mxu0
          %v3965 = vadd.f32 %v3726, %v3964
          %v3966 = vpop.f32.mrb[0].mxu0
          %v3967 = vpop.f32.mrb[0].mxu0
          %v3968 = vadd.f32 %v3726, %v3967
          %v3969 = vpop.f32.mrb[0].mxu0
          %3970 = vmatprep.mubr.bf16.mxu0 0
          %3971 = vmatmul.mubr.bf16.gmra.mrb[0].mxu0 %v3756
          %v3972 = vpop.f32.mrb[0].mxu0
          %v3973 = vadd.f32 %v3726, %v3972
          %v3974 = vpop.f32.mrb[0].mxu0
          %v3975 = vpop.f32.mrb[0].mxu0
          %v3976 = vadd.f32 %v3726, %v3975
          %v3977 = vpop.f32.mrb[0].mxu0
          %3978 = vmatprep.mubr.bf16.mxu0 0
          %3979 = vmatmul.mubr.bf16.gmra.mrb[0].mxu0 %v3759
          %v3980 = vpop.f32.mrb[0].mxu0
          %v3981 = vadd.f32 %v3726, %v3980
          %v3982 = vpop.f32.mrb[0].mxu0
          %v3983 = vpop.f32.mrb[0].mxu0
          %v3984 = vadd.f32 %v3726, %v3983
          %v3985 = vpop.f32.mrb[0].mxu0
          %3986 = vmatprep.mubr.bf16.mxu0 0
          %3987 = vmatmul.mubr.bf16.gmra.mrb[0].mxu0 %v3762
          %v3988 = vpop.f32.mrb[0].mxu0
          %v3989 = vadd.f32 %v3726, %v3988
          %v3990 = vpop.f32.mrb[0].mxu0
          %v3991 = vpop.f32.mrb[0].mxu0
          %v3992 = vadd.f32 %v3726, %v3991
          %v3993 = vpop.f32.mrb[0].mxu0
          %3994 = vmatprep.mubr.bf16.mxu0 0
          %3995 = vmatmul.mubr.bf16.gmra.mrb[0].mxu0 %v3765
          %v3996 = vpop.f32.mrb[0].mxu0
          %v3997 = vadd.f32 %v3726, %v3996
          %v3998 = vpop.f32.mrb[0].mxu0
          %v3999 = vpop.f32.mrb[0].mxu0
          %v4000 = vadd.f32 %v3726, %v3999
          %v4001 = vpop.f32.mrb[0].mxu0
          %4002 = vmatprep.mubr.bf16.mxu0 0
          %4003 = vmatmul.mubr.bf16.gmra.mrb[0].mxu0 %v3768
          %v4004 = vpop.f32.mrb[0].mxu0
          %v4005 = vadd.f32 %v3726, %v4004
          %v4006 = vpop.f32.mrb[0].mxu0
          %v4007 = vpop.f32.mrb[0].mxu0
          %v4008 = vadd.f32 %v3726, %v4007
          %v4009 = vpop.f32.mrb[0].mxu0
          %4010 = vmatprep.mubr.bf16.mxu0 0
          %4011 = vmatmul.mubr.bf16.gmra.mrb[0].mxu0 %v3771
          %v4012 = vpop.f32.mrb[0].mxu0
          %v4013 = vadd.f32 %v3726, %v4012
          %v4014 = vpop.f32.mrb[0].mxu0
          %v4015 = vpop.f32.mrb[0].mxu0
          %v4016 = vadd.f32 %v3726, %v4015
          %v4017 = vpop.f32.mrb[0].mxu0
          %4018 = vmatprep.mubr.bf16.mxu0 0
          %4019 = vmatmul.mubr.bf16.gmra.mrb[0].mxu0 %v3774
          %v4020 = vpop.f32.mrb[0].mxu0
          %v4021 = vadd.f32 %v3726, %v4020
          %v4022 = vpop.f32.mrb[0].mxu0
          %v4023 = vpop.f32.mrb[0].mxu0
          %v4024 = vadd.f32 %v3726, %v4023
          %v4025 = vpop.f32.mrb[0].mxu0
          %4026 = vmatprep.mubr.bf16.mxu0 0
          %4027 = vmatmul.mubr.bf16.gmra.mrb[0].mxu0 %v3777
          %v4028 = vpop.f32.mrb[0].mxu0
          %v4029 = vadd.f32 %v3726, %v4028
          %v4030 = vpop.f32.mrb[0].mxu0
          %v4031 = vpop.f32.mrb[0].mxu0
          %v4032 = vadd.f32 %v3726, %v4031
          %v4033 = vpop.f32.mrb[0].mxu0
          %4034 = vmatprep.mubr.bf16.mxu0 0
          %4035 = vmatmul.mubr.bf16.gmra.mrb[0].mxu0 %v3780
          %v4036 = vpop.f32.mrb[0].mxu0
          %v4037 = vadd.f32 %v3726, %v4036
          %v4038 = vpop.f32.mrb[0].mxu0
          %v4039 = vpop.f32.mrb[0].mxu0
          %v4040 = vadd.f32 %v3726, %v4039
          %v4041 = vpop.f32.mrb[0].mxu0
          %4042 = vmatprep.mubr.bf16.mxu0 0
          %4043 = vmatmul.mubr.bf16.gmra.mrb[0].mxu0 %v3783
          %v4044 = vpop.f32.mrb[0].mxu0
          %v4045 = vadd.f32 %v3726, %v4044
          %v4046 = vpop.f32.mrb[0].mxu0
          %v4047 = vpop.f32.mrb[0].mxu0
          %v4048 = vadd.f32 %v3726, %v4047
          %v4049 = vpop.f32.mrb[0].mxu0
          %4050 = vmatprep.mubr.bf16.mxu0 0
          %4051 = vmatmul.mubr.bf16.gmra.mrb[0].mxu0 %v3786
          %v4052 = vpop.f32.mrb[0].mxu0
          %v4053 = vadd.f32 %v3726, %v4052
          %v4054 = vpop.f32.mrb[0].mxu0
          %v4055 = vpop.f32.mrb[0].mxu0
          %v4056 = vadd.f32 %v3726, %v4055
          %v4057 = vpop.f32.mrb[0].mxu0
          %4058 = vmatprep.mubr.bf16.mxu0 0
          %4059 = vmatmul.mubr.bf16.gmra.mrb[0].mxu0 %v3789
          %v4060 = vpop.f32.mrb[0].mxu0
          %v4061 = vadd.f32 %v3726, %v4060
          %v4062 = vpop.f32.mrb[0].mxu0
          %v4063 = vpop.f32.mrb[0].mxu0
          %v4064 = vadd.f32 %v3726, %v4063
          %v4065 = vpop.f32.mrb[0].mxu0
          %4066 = vmatprep.mubr.bf16.mxu0 0
          %4067 = vmatmul.mubr.bf16.gmra.mrb[0].mxu0 %v3792
          %v4068 = vpop.f32.mrb[0].mxu0
          %v4069 = vadd.f32 %v3726, %v4068
          %v4070 = vpop.f32.mrb[0].mxu0
          %v4071 = vpop.f32.mrb[0].mxu0
          %v4072 = vadd.f32 %v3726, %v4071
          %v4073 = vpop.f32.mrb[0].mxu0
          %4074 = vmatprep.mubr.bf16.mxu0 0
          %4075 = vmatmul.mubr.bf16.gmra.mrb[0].mxu0 %v3795
          %v4076 = vpop.f32.mrb[0].mxu0
          %v4077 = vadd.f32 %v3726, %v4076
          %v4078 = vpop.f32.mrb[0].mxu0
          %v4079 = vpop.f32.mrb[0].mxu0
          %v4080 = vadd.f32 %v3726, %v4079
          %v4081 = vpop.f32.mrb[0].mxu0
          %4082 = vmatprep.mubr.bf16.mxu0 0
          %4083 = vmatmul.mubr.bf16.gmra.mrb[0].mxu0 %v3798
          %v4084 = vpop.f32.mrb[0].mxu0
          %v4085 = vadd.f32 %v3726, %v4084
          %v4086 = vpop.f32.mrb[0].mxu0
          %v4087 = vpop.f32.mrb[0].mxu0
          %v4088 = vadd.f32 %v3726, %v4087
          %v4089 = vpop.f32.mrb[0].mxu0
          %4090 = vmatprep.mubr.bf16.mxu0 0
          %4091 = vmatmul.mubr.bf16.gmra.mrb[0].mxu0 %v3801
          %v4092 = vpop.f32.mrb[0].mxu0
          %v4093 = vadd.f32 %v3726, %v4092
          %v4094 = vpop.f32.mrb[0].mxu0
          %v4095 = vpop.f32.mrb[0].mxu0
          %v4096 = vadd.f32 %v3726, %v4095
          %v4097 = vpop.f32.mrb[0].mxu0
          %4098 = vmatprep.mubr.bf16.mxu0 0
          %4099 = vmatmul.mubr.bf16.gmra.mrb[0].mxu0 %v3804
          %v4100 = vpop.f32.mrb[0].mxu0
          %v4101 = vadd.f32 %v3726, %v4100
          %v4102 = vpop.f32.mrb[0].mxu0
          %v4103 = vpop.f32.mrb[0].mxu0
          %v4104 = vadd.f32 %v3726, %v4103
          %v4105 = vpop.f32.mrb[0].mxu0
          %4106 = vmatprep.mubr.bf16.mxu0 0
          %4107 = vmatmul.mubr.bf16.gmra.mrb[0].mxu0 %v3807
          %v4108 = vpop.f32.mrb[0].mxu0
          %v4109 = vadd.f32 %v3726, %v4108
          %v4110 = vpop.f32.mrb[0].mxu0
          %v4111 = vpop.f32.mrb[0].mxu0
          %v4112 = vadd.f32 %v3726, %v4111
          %v4113 = vpop.f32.mrb[0].mxu0
          %4114 = vmatprep.mubr.bf16.mxu0 0
          %4115 = vmatmul.mubr.bf16.gmra.mrb[0].mxu0 %v3810
          %v4116 = vpop.f32.mrb[0].mxu0
          %v4117 = vadd.f32 %v3726, %v4116
          %v4118 = vpop.f32.mrb[0].mxu0
          %v4119 = vpop.f32.mrb[0].mxu0
          %v4120 = vadd.f32 %v3726, %v4119
          %v4121 = vpop.f32.mrb[0].mxu0
          %4122 = vmatprep.mubr.bf16.mxu0 0
          %4123 = vmatmul.mubr.bf16.gmra.mrb[0].mxu0 %v3813
          %v4124 = vpop.f32.mrb[0].mxu0
          %v4125 = vadd.f32 %v3726, %v4124
          %v4126 = vpop.f32.mrb[0].mxu0
          %v4127 = vpop.f32.mrb[0].mxu0
          %v4128 = vadd.f32 %v3726, %v4127
          %v4129 = vpop.f32.mrb[0].mxu0
          %4130 = vmatprep.mubr.bf16.mxu0 0
          %4131 = vmatmul.mubr.bf16.gmra.mrb[0].mxu0 %v3816
          %v4132 = vpop.f32.mrb[0].mxu0
          %v4133 = vadd.f32 %v3726, %v4132
          %v4134 = vpop.f32.mrb[0].mxu0
          %v4135 = vpop.f32.mrb[0].mxu0
          %v4136 = vadd.f32 %v3726, %v4135
          %v4137 = vpop.f32.mrb[0].mxu0
          %4138 = vmatprep.mubr.bf16.mxu0 0
          %4139 = vmatmul.mubr.bf16.gmra.mrb[0].mxu0 %v3819
          %v4140 = vpop.f32.mrb[0].mxu0
          %v4141 = vadd.f32 %v3726, %v4140
          %v4142 = vpop.f32.mrb[0].mxu0
          %v4143 = vpop.f32.mrb[0].mxu0
          %v4144 = vadd.f32 %v3726, %v4143
          %v4145 = vpop.f32.mrb[0].mxu0
          %4146 = vmatprep.mubr.bf16.mxu0 0
          %4147 = vmatmul.mubr.bf16.gmra.mrb[0].mxu0 %v3822
          %v4148 = vpop.f32.mrb[0].mxu0
          %v4149 = vadd.f32 %v3726, %v4148
          %v4150 = vpop.f32.mrb[0].mxu0
          %v4151 = vpop.f32.mrb[0].mxu0
          %v4152 = vadd.f32 %v3726, %v4151
          %v4153 = vpop.f32.mrb[0].mxu0
          %4154 = vmatprep.mubr.bf16.mxu0 0
          %4155 = vmatmul.mubr.bf16.gmra.mrb[0].mxu0 %v3825
          %v4156 = vpop.f32.mrb[0].mxu0
          %v4157 = vadd.f32 %v3726, %v4156
          %v4158 = vpop.f32.mrb[0].mxu0
          %v4159 = vpop.f32.mrb[0].mxu0
          %v4160 = vadd.f32 %v3726, %v4159
          %v4161 = vpop.f32.mrb[0].mxu0
          %4162 = vmatprep.mubr.bf16.mxu0 0
          %4163 = vmatmul.mubr.bf16.gmra.mrb[0].mxu0 %v3828
          %v4164 = vpop.f32.mrb[0].mxu0
          %v4165 = vadd.f32 %v3726, %v4164
          %v4166 = vpop.f32.mrb[0].mxu0
          %v4167 = vpop.f32.mrb[0].mxu0
          %v4168 = vadd.f32 %v3726, %v4167
          %v4169 = vpop.f32.mrb[0].mxu0
          %4170 = vmatprep.mubr.bf16.mxu0 0
          %4171 = vmatmul.mubr.bf16.gmra.mrb[0].mxu0 %v3831
          %v4172 = vpop.f32.mrb[0].mxu0
          %v4173 = vadd.f32 %v3726, %v4172
          %v4174 = vpop.f32.mrb[0].mxu0
          %v4175 = vpop.f32.mrb[0].mxu0
          %v4176 = vadd.f32 %v3726, %v4175
          %v4177 = vpop.f32.mrb[0].mxu0
          %4178 = vmatprep.mubr.bf16.mxu0 0
          %4179 = vmatmul.mubr.bf16.gmra.mrb[0].mxu0 %v3834
          %v4180 = vpop.f32.mrb[0].mxu0
          %v4181 = vadd.f32 %v3726, %v4180
          %v4182 = vpop.f32.mrb[0].mxu0
          %v4183 = vpop.f32.mrb[0].mxu0
          %v4184 = vadd.f32 %v3726, %v4183
          %v4185 = vpop.f32.mrb[0].mxu0
          %4186 = vmatprep.mubr.bf16.mxu0 0
          %4187 = vmatmul.mubr.bf16.gmra.mrb[0].mxu0 %v3837
          %v4188 = vpop.f32.mrb[0].mxu0
          %v4189 = vadd.f32 %v3726, %v4188
          %v4190 = vpop.f32.mrb[0].mxu0
          %v4191 = vpop.f32.mrb[0].mxu0
          %v4192 = vadd.f32 %v3726, %v4191
          %v4193 = vpop.f32.mrb[0].mxu0
          %4194 = vmatprep.mubr.bf16.mxu0 0
          %4195 = vmatmul.mubr.bf16.gmra.mrb[0].mxu0 %v3840
          %v4196 = vpop.f32.mrb[0].mxu0
          %v4197 = vadd.f32 %v3726, %v4196
          %v4198 = vpop.f32.mrb[0].mxu0
          %v4199 = vpop.f32.mrb[0].mxu0
          %v4200 = vadd.f32 %v3726, %v4199
          %v4201 = vpop.f32.mrb[0].mxu0
          %4202 = vmatprep.mubr.bf16.mxu0 0
          %4203 = vmatmul.mubr.bf16.gmra.mrb[0].mxu0 %v3843
          %v4204 = vpop.f32.mrb[0].mxu0
          %v4205 = vadd.f32 %v3726, %v4204
          %v4206 = vpop.f32.mrb[0].mxu0
          %v4207 = vpop.f32.mrb[0].mxu0
          %v4208 = vadd.f32 %v3726, %v4207
          %v4209 = vpop.f32.mrb[0].mxu0
          %4210 = vmatprep.mubr.bf16.mxu0 0
          %4211 = vmatmul.mubr.bf16.gmra.mrb[0].mxu0 %v3846
          %v4212 = vpop.f32.mrb[0].mxu0
          %v4213 = vadd.f32 %v3726, %v4212
          %v4214 = vpop.f32.mrb[0].mxu0
          %v4215 = vpop.f32.mrb[0].mxu0
          %v4216 = vadd.f32 %v3726, %v4215
          %v4217 = vpop.f32.mrb[0].mxu0
          %4218 = vmatprep.mubr.bf16.mxu0 0
          %4219 = vmatmul.mubr.bf16.gmra.mrb[0].mxu0 %v3849
          %v4220 = vpop.f32.mrb[0].mxu0
          %v4221 = vadd.f32 %v3726, %v4220
          %v4222 = vpop.f32.mrb[0].mxu0
          %v4223 = vpop.f32.mrb[0].mxu0
          %v4224 = vadd.f32 %v3726, %v4223
          %v4225 = vpop.f32.mrb[0].mxu0
          %4226 = vmatprep.mubr.bf16.mxu0 0
          %4227 = vmatmul.mubr.bf16.gmra.mrb[0].mxu0 %v3852
          %v4228 = vpop.f32.mrb[0].mxu0
          %v4229 = vadd.f32 %v3726, %v4228
          %v4230 = vpop.f32.mrb[0].mxu0
          %v4231 = vpop.f32.mrb[0].mxu0
          %v4232 = vadd.f32 %v3726, %v4231
          %v4233 = vpop.f32.mrb[0].mxu0
          %4234 = vmatprep.mubr.bf16.mxu0 0
          %4235 = vmatmul.mubr.bf16.gmra.mrb[0].mxu0 %v3855
          %v4236 = vpop.f32.mrb[0].mxu0
          %v4237 = vadd.f32 %v3726, %v4236
          %v4238 = vpop.f32.mrb[0].mxu0
          %v4239 = vpop.f32.mrb[0].mxu0
          %v4240 = vadd.f32 %v3726, %v4239
          %v4241 = vpop.f32.mrb[0].mxu0
          %4242 = vmatprep.mubr.bf16.mxu0 0
          %4243 = vmatmul.mubr.bf16.gmra.mrb[0].mxu0 %v3858
          %v4244 = vpop.f32.mrb[0].mxu0
          %v4245 = vadd.f32 %v3726, %v4244
          %v4246 = vpop.f32.mrb[0].mxu0
          %v4247 = vpop.f32.mrb[0].mxu0
          %v4248 = vadd.f32 %v3726, %v4247
          %v4249 = vpop.f32.mrb[0].mxu0
          %4250 = vdwg.mxu0
          %v4251 = vld [vmem:[#allocation2] sm:$0xff]
          %v4252 = vld [vmem:[#allocation2 + $0x8] sm:$0xff]
          %v4253 = vld [vmem:[#allocation2 + $0x10] sm:$0xff]
          %v4254 = vld [vmem:[#allocation2 + $0x18] sm:$0xff]
          %v4255 = vld [vmem:[#allocation2 + $0x20] sm:$0xff]
          %v4256 = vld [vmem:[#allocation2 + $0x28] sm:$0xff]
          %v4257 = vld [vmem:[#allocation2 + $0x30] sm:$0xff]
          %v4258 = vld [vmem:[#allocation2 + $0x38] sm:$0xff]
          %v4259 = vld [vmem:[#allocation2 + $0x40] sm:$0xff]
          %v4260 = vld [vmem:[#allocation2 + $0x48] sm:$0xff]
          %v4261 = vld [vmem:[#allocation2 + $0x50] sm:$0xff]
          %v4262 = vld [vmem:[#allocation2 + $0x58] sm:$0xff]
          %v4263 = vld [vmem:[#allocation2 + $0x60] sm:$0xff]
          %v4264 = vld [vmem:[#allocation2 + $0x68] sm:$0xff]
          %v4265 = vld [vmem:[#allocation2 + $0x70] sm:$0xff]
          %v4266 = vld [vmem:[#allocation2 + $0x78] sm:$0xff]
          %v4267 = vld [vmem:[#allocation2 + $0x80] sm:$0xff]
          %v4268 = vld [vmem:[#allocation2 + $0x88] sm:$0xff]
          %v4269 = vld [vmem:[#allocation2 + $0x90] sm:$0xff]
          %v4270 = vld [vmem:[#allocation2 + $0x98] sm:$0xff]
          %v4271 = vld [vmem:[#allocation2 + $0xa0] sm:$0xff]
          %v4272 = vld [vmem:[#allocation2 + $0xa8] sm:$0xff]
          %v4273 = vld [vmem:[#allocation2 + $0xb0] sm:$0xff]
          %v4274 = vld [vmem:[#allocation2 + $0xb8] sm:$0xff]
          %v4275 = vld [vmem:[#allocation2 + $0xc0] sm:$0xff]
          %v4276 = vld [vmem:[#allocation2 + $0xc8] sm:$0xff]
          %v4277 = vld [vmem:[#allocation2 + $0xd0] sm:$0xff]
          %v4278 = vld [vmem:[#allocation2 + $0xd8] sm:$0xff]
          %v4279 = vld [vmem:[#allocation2 + $0xe0] sm:$0xff]
          %v4280 = vld [vmem:[#allocation2 + $0xe8] sm:$0xff]
          %v4281 = vld [vmem:[#allocation2 + $0xf0] sm:$0xff]
          %v4282 = vld [vmem:[#allocation2 + $0xf8] sm:$0xff]
          %v4283 = vld [vmem:[#allocation2 + $0x100] sm:$0xff]
          %v4284 = vld [vmem:[#allocation2 + $0x108] sm:$0xff]
          %v4285 = vld [vmem:[#allocation2 + $0x110] sm:$0xff]
          %v4286 = vld [vmem:[#allocation2 + $0x118] sm:$0xff]
          %v4287 = vld [vmem:[#allocation2 + $0x120] sm:$0xff]
          %v4288 = vld [vmem:[#allocation2 + $0x128] sm:$0xff]
          %v4289 = vld [vmem:[#allocation2 + $0x130] sm:$0xff]
          %v4290 = vld [vmem:[#allocation2 + $0x138] sm:$0xff]
          %v4291 = vld [vmem:[#allocation2 + $0x140] sm:$0xff]
          %v4292 = vld [vmem:[#allocation2 + $0x148] sm:$0xff]
          %v4293 = vld [vmem:[#allocation2 + $0x150] sm:$0xff]
          %v4294 = vld [vmem:[#allocation2 + $0x158] sm:$0xff]
          %v4295 = vld [vmem:[#allocation2 + $0x160] sm:$0xff]
          %v4296 = vld [vmem:[#allocation2 + $0x168] sm:$0xff]
          %v4297 = vld [vmem:[#allocation2 + $0x170] sm:$0xff]
          %v4298 = vld [vmem:[#allocation2 + $0x178] sm:$0xff]
          %v4299 = vld [vmem:[#allocation2 + $0x180] sm:$0xff]
          %v4300 = vld [vmem:[#allocation2 + $0x188] sm:$0xff]
          %v4301 = vld [vmem:[#allocation2 + $0x190] sm:$0xff]
          %v4302 = vld [vmem:[#allocation2 + $0x198] sm:$0xff]
          %v4303 = vld [vmem:[#allocation2 + $0x1a0] sm:$0xff]
          %v4304 = vld [vmem:[#allocation2 + $0x1a8] sm:$0xff]
          %v4305 = vld [vmem:[#allocation2 + $0x1b0] sm:$0xff]
          %v4306 = vld [vmem:[#allocation2 + $0x1b8] sm:$0xff]
          %v4307 = vld [vmem:[#allocation2 + $0x1c0] sm:$0xff]
          %v4308 = vld [vmem:[#allocation2 + $0x1c8] sm:$0xff]
          %v4309 = vld [vmem:[#allocation2 + $0x1d0] sm:$0xff]
          %v4310 = vld [vmem:[#allocation2 + $0x1d8] sm:$0xff]
          %v4311 = vld [vmem:[#allocation2 + $0x1e0] sm:$0xff]
          %v4312 = vld [vmem:[#allocation2 + $0x1e8] sm:$0xff]
          %v4313 = vld [vmem:[#allocation2 + $0x1f0] sm:$0xff]
          %v4314 = vld [vmem:[#allocation2 + $0x1f8] sm:$0xff]
          %v4315 = vld [vmem:[#allocation2 + $0x200] sm:$0xff]
          %v4316 = vld [vmem:[#allocation2 + $0x208] sm:$0xff]
          %v4317 = vld [vmem:[#allocation2 + $0x210] sm:$0xff]
          %v4318 = vld [vmem:[#allocation2 + $0x218] sm:$0xff]
          %v4319 = vld [vmem:[#allocation2 + $0x220] sm:$0xff]
          %v4320 = vld [vmem:[#allocation2 + $0x228] sm:$0xff]
          %v4321 = vld [vmem:[#allocation2 + $0x230] sm:$0xff]
          %v4322 = vld [vmem:[#allocation2 + $0x238] sm:$0xff]
          %v4323 = vld [vmem:[#allocation2 + $0x240] sm:$0xff]
          %v4324 = vld [vmem:[#allocation2 + $0x248] sm:$0xff]
          %v4325 = vld [vmem:[#allocation2 + $0x250] sm:$0xff]
          %v4326 = vld [vmem:[#allocation2 + $0x258] sm:$0xff]
          %v4327 = vld [vmem:[#allocation2 + $0x260] sm:$0xff]
          %v4328 = vld [vmem:[#allocation2 + $0x268] sm:$0xff]
          %v4329 = vld [vmem:[#allocation2 + $0x270] sm:$0xff]
          %v4330 = vld [vmem:[#allocation2 + $0x278] sm:$0xff]
          %v4331 = vld [vmem:[#allocation2 + $0x280] sm:$0xff]
          %v4332 = vld [vmem:[#allocation2 + $0x288] sm:$0xff]
          %v4333 = vld [vmem:[#allocation2 + $0x290] sm:$0xff]
          %v4334 = vld [vmem:[#allocation2 + $0x298] sm:$0xff]
          %v4335 = vld [vmem:[#allocation2 + $0x2a0] sm:$0xff]
          %v4336 = vld [vmem:[#allocation2 + $0x2a8] sm:$0xff]
          %v4337 = vld [vmem:[#allocation2 + $0x2b0] sm:$0xff]
          %v4338 = vld [vmem:[#allocation2 + $0x2b8] sm:$0xff]
          %v4339 = vadd.f32 %v3901, %v4251
          %v4340 = vadd.f32 %v3904, %v4252
          %v4341 = vadd.f32 %v3909, %v4253
          %v4342 = vadd.f32 %v3912, %v4254
          %v4343 = vadd.f32 %v3917, %v4255
          %v4344 = vadd.f32 %v3920, %v4256
          %v4345 = vadd.f32 %v3925, %v4257
          %v4346 = vadd.f32 %v3928, %v4258
          %v4347 = vadd.f32 %v3933, %v4259
          %v4348 = vadd.f32 %v3936, %v4260
          %v4349 = vadd.f32 %v3941, %v4261
          %v4350 = vadd.f32 %v3944, %v4262
          %v4351 = vadd.f32 %v3949, %v4263
          %v4352 = vadd.f32 %v3952, %v4264
          %v4353 = vadd.f32 %v3957, %v4265
          %v4354 = vadd.f32 %v3960, %v4266
          %v4355 = vadd.f32 %v3965, %v4267
          %v4356 = vadd.f32 %v3968, %v4268
          %v4357 = vadd.f32 %v3973, %v4269
          %v4358 = vadd.f32 %v3976, %v4270
          %v4359 = vadd.f32 %v3981, %v4271
          %v4360 = vadd.f32 %v3984, %v4272
          %v4361 = vadd.f32 %v3989, %v4273
          %v4362 = vadd.f32 %v3992, %v4274
          %v4363 = vadd.f32 %v3997, %v4275
          %v4364 = vadd.f32 %v4000, %v4276
          %v4365 = vadd.f32 %v4005, %v4277
          %v4366 = vadd.f32 %v4008, %v4278
          %v4367 = vadd.f32 %v4013, %v4279
          %v4368 = vadd.f32 %v4016, %v4280
          %v4369 = vadd.f32 %v4021, %v4281
          %v4370 = vadd.f32 %v4024, %v4282
          %v4371 = vadd.f32 %v4029, %v4283
          %v4372 = vadd.f32 %v4032, %v4284
          %v4373 = vadd.f32 %v4037, %v4285
          %v4374 = vadd.f32 %v4040, %v4286
          %v4375 = vadd.f32 %v4045, %v4287
          %v4376 = vadd.f32 %v4048, %v4288
          %v4377 = vadd.f32 %v4053, %v4289
          %v4378 = vadd.f32 %v4056, %v4290
          %v4379 = vadd.f32 %v4061, %v4291
          %v4380 = vadd.f32 %v4064, %v4292
          %v4381 = vadd.f32 %v4069, %v4293
          %v4382 = vadd.f32 %v4072, %v4294
          %v4383 = vadd.f32 %v4077, %v4295
          %v4384 = vadd.f32 %v4080, %v4296
          %v4385 = vadd.f32 %v4085, %v4297
          %v4386 = vadd.f32 %v4088, %v4298
          %v4387 = vadd.f32 %v4093, %v4299
          %v4388 = vadd.f32 %v4096, %v4300
          %v4389 = vadd.f32 %v4101, %v4301
          %v4390 = vadd.f32 %v4104, %v4302
          %v4391 = vadd.f32 %v4109, %v4303
          %v4392 = vadd.f32 %v4112, %v4304
          %v4393 = vadd.f32 %v4117, %v4305
          %v4394 = vadd.f32 %v4120, %v4306
          %v4395 = vadd.f32 %v4125, %v4307
          %v4396 = vadd.f32 %v4128, %v4308
          %v4397 = vadd.f32 %v4133, %v4309
          %v4398 = vadd.f32 %v4136, %v4310
          %v4399 = vadd.f32 %v4141, %v4311
          %v4400 = vadd.f32 %v4144, %v4312
          %v4401 = vadd.f32 %v4149, %v4313
          %v4402 = vadd.f32 %v4152, %v4314
          %v4403 = vadd.f32 %v4157, %v4315
          %v4404 = vadd.f32 %v4160, %v4316
          %v4405 = vadd.f32 %v4165, %v4317
          %v4406 = vadd.f32 %v4168, %v4318
          %v4407 = vadd.f32 %v4173, %v4319
          %v4408 = vadd.f32 %v4176, %v4320
          %v4409 = vadd.f32 %v4181, %v4321
          %v4410 = vadd.f32 %v4184, %v4322
          %v4411 = vadd.f32 %v4189, %v4323
          %v4412 = vadd.f32 %v4192, %v4324
          %v4413 = vadd.f32 %v4197, %v4325
          %v4414 = vadd.f32 %v4200, %v4326
          %v4415 = vadd.f32 %v4205, %v4327
          %v4416 = vadd.f32 %v4208, %v4328
          %v4417 = vadd.f32 %v4213, %v4329
          %v4418 = vadd.f32 %v4216, %v4330
          %v4419 = vadd.f32 %v4221, %v4331
          %v4420 = vadd.f32 %v4224, %v4332
          %v4421 = vadd.f32 %v4229, %v4333
          %v4422 = vadd.f32 %v4232, %v4334
          %v4423 = vadd.f32 %v4237, %v4335
          %v4424 = vadd.f32 %v4240, %v4336
          %v4425 = vadd.f32 %v4245, %v4337
          %v4426 = vadd.f32 %v4248, %v4338
          %v4427 = vsel %vm1030, %v4339, 0.0
          %4428 = vadd.xlane.f32.xlu0 %v4427
          %v4429 = vpop.xlane.xlu0 %4428
          %v4430 = vsel %vm1030, %v4340, 0.0
          %4431 = vadd.xlane.f32.xlu0 %v4430
          %v4432 = vpop.xlane.xlu0 %4431
          %v4433 = vsel %vm1030, %v4341, 0.0
          %4434 = vadd.xlane.f32.xlu0 %v4433
          %v4435 = vpop.xlane.xlu0 %4434
          %v4436 = vsel %vm1030, %v4342, 0.0
          %4437 = vadd.xlane.f32.xlu0 %v4436
          %v4438 = vpop.xlane.xlu0 %4437
          %v4439 = vsel %vm1030, %v4343, 0.0
          %4440 = vadd.xlane.f32.xlu0 %v4439
          %v4441 = vpop.xlane.xlu0 %4440
          %v4442 = vsel %vm1030, %v4344, 0.0
          %4443 = vadd.xlane.f32.xlu0 %v4442
          %v4444 = vpop.xlane.xlu0 %4443
          %v4445 = vsel %vm1030, %v4345, 0.0
          %4446 = vadd.xlane.f32.xlu0 %v4445
          %v4447 = vpop.xlane.xlu0 %4446
          %v4448 = vsel %vm1030, %v4346, 0.0
          %4449 = vadd.xlane.f32.xlu0 %v4448
          %v4450 = vpop.xlane.xlu0 %4449
          %v4451 = vsel %vm1030, %v4347, 0.0
          %4452 = vadd.xlane.f32.xlu0 %v4451
          %v4453 = vpop.xlane.xlu0 %4452
          %v4454 = vsel %vm1030, %v4348, 0.0
          %4455 = vadd.xlane.f32.xlu0 %v4454
          %v4456 = vpop.xlane.xlu0 %4455
          %v4457 = vsel %vm1030, %v4349, 0.0
          %4458 = vadd.xlane.f32.xlu0 %v4457
          %v4459 = vpop.xlane.xlu0 %4458
          %v4460 = vsel %vm1030, %v4350, 0.0
          %4461 = vadd.xlane.f32.xlu0 %v4460
          %v4462 = vpop.xlane.xlu0 %4461
          %v4463 = vsel %vm1030, %v4351, 0.0
          %4464 = vadd.xlane.f32.xlu0 %v4463
          %v4465 = vpop.xlane.xlu0 %4464
          %v4466 = vsel %vm1030, %v4352, 0.0
          %4467 = vadd.xlane.f32.xlu0 %v4466
          %v4468 = vpop.xlane.xlu0 %4467
          %v4469 = vsel %vm1030, %v4353, 0.0
          %4470 = vadd.xlane.f32.xlu0 %v4469
          %v4471 = vpop.xlane.xlu0 %4470
          %v4472 = vsel %vm1030, %v4354, 0.0
          %4473 = vadd.xlane.f32.xlu0 %v4472
          %v4474 = vpop.xlane.xlu0 %4473
          %v4475 = vsel %vm1030, %v4355, 0.0
          %4476 = vadd.xlane.f32.xlu0 %v4475
          %v4477 = vpop.xlane.xlu0 %4476
          %v4478 = vsel %vm1030, %v4356, 0.0
          %4479 = vadd.xlane.f32.xlu0 %v4478
          %v4480 = vpop.xlane.xlu0 %4479
          %v4481 = vsel %vm1030, %v4357, 0.0
          %4482 = vadd.xlane.f32.xlu0 %v4481
          %v4483 = vpop.xlane.xlu0 %4482
          %v4484 = vsel %vm1030, %v4358, 0.0
          %4485 = vadd.xlane.f32.xlu0 %v4484
          %v4486 = vpop.xlane.xlu0 %4485
          %v4487 = vsel %vm1030, %v4359, 0.0
          %4488 = vadd.xlane.f32.xlu0 %v4487
          %v4489 = vpop.xlane.xlu0 %4488
          %v4490 = vsel %vm1030, %v4360, 0.0
          %4491 = vadd.xlane.f32.xlu0 %v4490
          %v4492 = vpop.xlane.xlu0 %4491
          %v4493 = vsel %vm1030, %v4361, 0.0
          %4494 = vadd.xlane.f32.xlu0 %v4493
          %v4495 = vpop.xlane.xlu0 %4494
          %v4496 = vsel %vm1030, %v4362, 0.0
          %4497 = vadd.xlane.f32.xlu0 %v4496
          %v4498 = vpop.xlane.xlu0 %4497
          %v4499 = vsel %vm1030, %v4363, 0.0
          %4500 = vadd.xlane.f32.xlu0 %v4499
          %v4501 = vpop.xlane.xlu0 %4500
          %v4502 = vsel %vm1030, %v4364, 0.0
          %4503 = vadd.xlane.f32.xlu0 %v4502
          %v4504 = vpop.xlane.xlu0 %4503
          %v4505 = vsel %vm1030, %v4365, 0.0
          %4506 = vadd.xlane.f32.xlu0 %v4505
          %v4507 = vpop.xlane.xlu0 %4506
          %v4508 = vsel %vm1030, %v4366, 0.0
          %4509 = vadd.xlane.f32.xlu0 %v4508
          %v4510 = vpop.xlane.xlu0 %4509
          %v4511 = vsel %vm1030, %v4367, 0.0
          %4512 = vadd.xlane.f32.xlu0 %v4511
          %v4513 = vpop.xlane.xlu0 %4512
          %v4514 = vsel %vm1030, %v4368, 0.0
          %4515 = vadd.xlane.f32.xlu0 %v4514
          %v4516 = vpop.xlane.xlu0 %4515
          %v4517 = vsel %vm1030, %v4369, 0.0
          %4518 = vadd.xlane.f32.xlu0 %v4517
          %v4519 = vpop.xlane.xlu0 %4518
          %v4520 = vsel %vm1030, %v4370, 0.0
          %4521 = vadd.xlane.f32.xlu0 %v4520
          %v4522 = vpop.xlane.xlu0 %4521
          %v4523 = vsel %vm1030, %v4371, 0.0
          %4524 = vadd.xlane.f32.xlu0 %v4523
          %v4525 = vpop.xlane.xlu0 %4524
          %v4526 = vsel %vm1030, %v4372, 0.0
          %4527 = vadd.xlane.f32.xlu0 %v4526
          %v4528 = vpop.xlane.xlu0 %4527
          %v4529 = vsel %vm1030, %v4373, 0.0
          %4530 = vadd.xlane.f32.xlu0 %v4529
          %v4531 = vpop.xlane.xlu0 %4530
          %v4532 = vsel %vm1030, %v4374, 0.0
          %4533 = vadd.xlane.f32.xlu0 %v4532
          %v4534 = vpop.xlane.xlu0 %4533
          %v4535 = vsel %vm1030, %v4375, 0.0
          %4536 = vadd.xlane.f32.xlu0 %v4535
          %v4537 = vpop.xlane.xlu0 %4536
          %v4538 = vsel %vm1030, %v4376, 0.0
          %4539 = vadd.xlane.f32.xlu0 %v4538
          %v4540 = vpop.xlane.xlu0 %4539
          %v4541 = vsel %vm1030, %v4377, 0.0
          %4542 = vadd.xlane.f32.xlu0 %v4541
          %v4543 = vpop.xlane.xlu0 %4542
          %v4544 = vsel %vm1030, %v4378, 0.0
          %4545 = vadd.xlane.f32.xlu0 %v4544
          %v4546 = vpop.xlane.xlu0 %4545
          %v4547 = vsel %vm1030, %v4379, 0.0
          %4548 = vadd.xlane.f32.xlu0 %v4547
          %v4549 = vpop.xlane.xlu0 %4548
          %v4550 = vsel %vm1030, %v4380, 0.0
          %4551 = vadd.xlane.f32.xlu0 %v4550
          %v4552 = vpop.xlane.xlu0 %4551
          %v4553 = vsel %vm1030, %v4381, 0.0
          %4554 = vadd.xlane.f32.xlu0 %v4553
          %v4555 = vpop.xlane.xlu0 %4554
          %v4556 = vsel %vm1030, %v4382, 0.0
          %4557 = vadd.xlane.f32.xlu0 %v4556
          %v4558 = vpop.xlane.xlu0 %4557
          %v4559 = vsel %vm1030, %v4383, 0.0
          %4560 = vadd.xlane.f32.xlu0 %v4559
          %v4561 = vpop.xlane.xlu0 %4560
          %v4562 = vsel %vm1030, %v4384, 0.0
          %4563 = vadd.xlane.f32.xlu0 %v4562
          %v4564 = vpop.xlane.xlu0 %4563
          %v4565 = vsel %vm1030, %v4385, 0.0
          %4566 = vadd.xlane.f32.xlu0 %v4565
          %v4567 = vpop.xlane.xlu0 %4566
          %v4568 = vsel %vm1030, %v4386, 0.0
          %4569 = vadd.xlane.f32.xlu0 %v4568
          %v4570 = vpop.xlane.xlu0 %4569
          %v4571 = vsel %vm1030, %v4387, 0.0
          %4572 = vadd.xlane.f32.xlu0 %v4571
          %v4573 = vpop.xlane.xlu0 %4572
          %v4574 = vsel %vm1030, %v4388, 0.0
          %4575 = vadd.xlane.f32.xlu0 %v4574
          %v4576 = vpop.xlane.xlu0 %4575
          %v4577 = vsel %vm1030, %v4389, 0.0
          %4578 = vadd.xlane.f32.xlu0 %v4577
          %v4579 = vpop.xlane.xlu0 %4578
          %v4580 = vsel %vm1030, %v4390, 0.0
          %4581 = vadd.xlane.f32.xlu0 %v4580
          %v4582 = vpop.xlane.xlu0 %4581
          %v4583 = vsel %vm1030, %v4391, 0.0
          %4584 = vadd.xlane.f32.xlu0 %v4583
          %v4585 = vpop.xlane.xlu0 %4584
          %v4586 = vsel %vm1030, %v4392, 0.0
          %4587 = vadd.xlane.f32.xlu0 %v4586
          %v4588 = vpop.xlane.xlu0 %4587
          %v4589 = vsel %vm1030, %v4393, 0.0
          %4590 = vadd.xlane.f32.xlu0 %v4589
          %v4591 = vpop.xlane.xlu0 %4590
          %v4592 = vsel %vm1030, %v4394, 0.0
          %4593 = vadd.xlane.f32.xlu0 %v4592
          %v4594 = vpop.xlane.xlu0 %4593
          %v4595 = vsel %vm1030, %v4395, 0.0
          %4596 = vadd.xlane.f32.xlu0 %v4595
          %v4597 = vpop.xlane.xlu0 %4596
          %v4598 = vsel %vm1030, %v4396, 0.0
          %4599 = vadd.xlane.f32.xlu0 %v4598
          %v4600 = vpop.xlane.xlu0 %4599
          %v4601 = vsel %vm1030, %v4397, 0.0
          %4602 = vadd.xlane.f32.xlu0 %v4601
          %v4603 = vpop.xlane.xlu0 %4602
          %v4604 = vsel %vm1030, %v4398, 0.0
          %4605 = vadd.xlane.f32.xlu0 %v4604
          %v4606 = vpop.xlane.xlu0 %4605
          %v4607 = vsel %vm1030, %v4399, 0.0
          %4608 = vadd.xlane.f32.xlu0 %v4607
          %v4609 = vpop.xlane.xlu0 %4608
          %v4610 = vsel %vm1030, %v4400, 0.0
          %4611 = vadd.xlane.f32.xlu0 %v4610
          %v4612 = vpop.xlane.xlu0 %4611
          %v4613 = vsel %vm1030, %v4401, 0.0
          %4614 = vadd.xlane.f32.xlu0 %v4613
          %v4615 = vpop.xlane.xlu0 %4614
          %v4616 = vsel %vm1030, %v4402, 0.0
          %4617 = vadd.xlane.f32.xlu0 %v4616
          %v4618 = vpop.xlane.xlu0 %4617
          %v4619 = vsel %vm1030, %v4403, 0.0
          %4620 = vadd.xlane.f32.xlu0 %v4619
          %v4621 = vpop.xlane.xlu0 %4620
          %v4622 = vsel %vm1030, %v4404, 0.0
          %4623 = vadd.xlane.f32.xlu0 %v4622
          %v4624 = vpop.xlane.xlu0 %4623
          %v4625 = vsel %vm1030, %v4405, 0.0
          %4626 = vadd.xlane.f32.xlu0 %v4625
          %v4627 = vpop.xlane.xlu0 %4626
          %v4628 = vsel %vm1030, %v4406, 0.0
          %4629 = vadd.xlane.f32.xlu0 %v4628
          %v4630 = vpop.xlane.xlu0 %4629
          %v4631 = vsel %vm1030, %v4407, 0.0
          %4632 = vadd.xlane.f32.xlu0 %v4631
          %v4633 = vpop.xlane.xlu0 %4632
          %v4634 = vsel %vm1030, %v4408, 0.0
          %4635 = vadd.xlane.f32.xlu0 %v4634
          %v4636 = vpop.xlane.xlu0 %4635
          %v4637 = vsel %vm1030, %v4409, 0.0
          %4638 = vadd.xlane.f32.xlu0 %v4637
          %v4639 = vpop.xlane.xlu0 %4638
          %v4640 = vsel %vm1030, %v4410, 0.0
          %4641 = vadd.xlane.f32.xlu0 %v4640
          %v4642 = vpop.xlane.xlu0 %4641
          %v4643 = vsel %vm1030, %v4411, 0.0
          %4644 = vadd.xlane.f32.xlu0 %v4643
          %v4645 = vpop.xlane.xlu0 %4644
          %v4646 = vsel %vm1030, %v4412, 0.0
          %4647 = vadd.xlane.f32.xlu0 %v4646
          %v4648 = vpop.xlane.xlu0 %4647
          %v4649 = vsel %vm1030, %v4413, 0.0
          %4650 = vadd.xlane.f32.xlu0 %v4649
          %v4651 = vpop.xlane.xlu0 %4650
          %v4652 = vsel %vm1030, %v4414, 0.0
          %4653 = vadd.xlane.f32.xlu0 %v4652
          %v4654 = vpop.xlane.xlu0 %4653
          %v4655 = vsel %vm1030, %v4415, 0.0
          %4656 = vadd.xlane.f32.xlu0 %v4655
          %v4657 = vpop.xlane.xlu0 %4656
          %v4658 = vsel %vm1030, %v4416, 0.0
          %4659 = vadd.xlane.f32.xlu0 %v4658
          %v4660 = vpop.xlane.xlu0 %4659
          %v4661 = vsel %vm1030, %v4417, 0.0
          %4662 = vadd.xlane.f32.xlu0 %v4661
          %v4663 = vpop.xlane.xlu0 %4662
          %v4664 = vsel %vm1030, %v4418, 0.0
          %4665 = vadd.xlane.f32.xlu0 %v4664
          %v4666 = vpop.xlane.xlu0 %4665
          %v4667 = vsel %vm1030, %v4419, 0.0
          %4668 = vadd.xlane.f32.xlu0 %v4667
          %v4669 = vpop.xlane.xlu0 %4668
          %v4670 = vsel %vm1030, %v4420, 0.0
          %4671 = vadd.xlane.f32.xlu0 %v4670
          %v4672 = vpop.xlane.xlu0 %4671
          %v4673 = vsel %vm1030, %v4421, 0.0
          %4674 = vadd.xlane.f32.xlu0 %v4673
          %v4675 = vpop.xlane.xlu0 %4674
          %v4676 = vsel %vm1030, %v4422, 0.0
          %4677 = vadd.xlane.f32.xlu0 %v4676
          %v4678 = vpop.xlane.xlu0 %4677
          %v4679 = vsel %vm1030, %v4423, 0.0
          %4680 = vadd.xlane.f32.xlu0 %v4679
          %v4681 = vpop.xlane.xlu0 %4680
          %v4682 = vsel %vm1030, %v4424, 0.0
          %4683 = vadd.xlane.f32.xlu0 %v4682
          %v4684 = vpop.xlane.xlu0 %4683
          %v4685 = vsel %vm1030, %v4425, 0.0
          %4686 = vadd.xlane.f32.xlu0 %v4685
          %v4687 = vpop.xlane.xlu0 %4686
          %v4688 = vsel %vm1030, %v4426, 0.0
          %4689 = vadd.xlane.f32.xlu0 %v4688
          %v4690 = vpop.xlane.xlu0 %4689
          %v4691 = vrcp.pop 32.0
          %v4692 = vmul.f32 %v4429, %v4691
          %v4693 = vmul.f32 %v4432, %v4691
          %v4694 = vmul.f32 %v4435, %v4691
          %v4695 = vmul.f32 %v4438, %v4691
          %v4696 = vmul.f32 %v4441, %v4691
          %v4697 = vmul.f32 %v4444, %v4691
          %v4698 = vmul.f32 %v4447, %v4691
          %v4699 = vmul.f32 %v4450, %v4691
          %v4700 = vmul.f32 %v4453, %v4691
          %v4701 = vmul.f32 %v4456, %v4691
          %v4702 = vmul.f32 %v4459, %v4691
          %v4703 = vmul.f32 %v4462, %v4691
          %v4704 = vmul.f32 %v4465, %v4691
          %v4705 = vmul.f32 %v4468, %v4691
          %v4706 = vmul.f32 %v4471, %v4691
          %v4707 = vmul.f32 %v4474, %v4691
          %v4708 = vmul.f32 %v4477, %v4691
          %v4709 = vmul.f32 %v4480, %v4691
          %v4710 = vmul.f32 %v4483, %v4691
          %v4711 = vmul.f32 %v4486, %v4691
          %v4712 = vmul.f32 %v4489, %v4691
          %v4713 = vmul.f32 %v4492, %v4691
          %v4714 = vmul.f32 %v4495, %v4691
          %v4715 = vmul.f32 %v4498, %v4691
          %v4716 = vmul.f32 %v4501, %v4691
          %v4717 = vmul.f32 %v4504, %v4691
          %v4718 = vmul.f32 %v4507, %v4691
          %v4719 = vmul.f32 %v4510, %v4691
          %v4720 = vmul.f32 %v4513, %v4691
          %v4721 = vmul.f32 %v4516, %v4691
          %v4722 = vmul.f32 %v4519, %v4691
          %v4723 = vmul.f32 %v4522, %v4691
          %v4724 = vmul.f32 %v4525, %v4691
          %v4725 = vmul.f32 %v4528, %v4691
          %v4726 = vmul.f32 %v4531, %v4691
          %v4727 = vmul.f32 %v4534, %v4691
          %v4728 = vmul.f32 %v4537, %v4691
          %v4729 = vmul.f32 %v4540, %v4691
          %v4730 = vmul.f32 %v4543, %v4691
          %v4731 = vmul.f32 %v4546, %v4691
          %v4732 = vmul.f32 %v4549, %v4691
          %v4733 = vmul.f32 %v4552, %v4691
          %v4734 = vmul.f32 %v4555, %v4691
          %v4735 = vmul.f32 %v4558, %v4691
          %v4736 = vmul.f32 %v4561, %v4691
          %v4737 = vmul.f32 %v4564, %v4691
          %v4738 = vmul.f32 %v4567, %v4691
          %v4739 = vmul.f32 %v4570, %v4691
          %v4740 = vmul.f32 %v4573, %v4691
          %v4741 = vmul.f32 %v4576, %v4691
          %v4742 = vmul.f32 %v4579, %v4691
          %v4743 = vmul.f32 %v4582, %v4691
          %v4744 = vmul.f32 %v4585, %v4691
          %v4745 = vmul.f32 %v4588, %v4691
          %v4746 = vmul.f32 %v4591, %v4691
          %v4747 = vmul.f32 %v4594, %v4691
          %v4748 = vmul.f32 %v4597, %v4691
          %v4749 = vmul.f32 %v4600, %v4691
          %v4750 = vmul.f32 %v4603, %v4691
          %v4751 = vmul.f32 %v4606, %v4691
          %v4752 = vmul.f32 %v4609, %v4691
          %v4753 = vmul.f32 %v4612, %v4691
          %v4754 = vmul.f32 %v4615, %v4691
          %v4755 = vmul.f32 %v4618, %v4691
          %v4756 = vmul.f32 %v4621, %v4691
          %v4757 = vmul.f32 %v4624, %v4691
          %v4758 = vmul.f32 %v4627, %v4691
          %v4759 = vmul.f32 %v4630, %v4691
          %v4760 = vmul.f32 %v4633, %v4691
          %v4761 = vmul.f32 %v4636, %v4691
          %v4762 = vmul.f32 %v4639, %v4691
          %v4763 = vmul.f32 %v4642, %v4691
          %v4764 = vmul.f32 %v4645, %v4691
          %v4765 = vmul.f32 %v4648, %v4691
          %v4766 = vmul.f32 %v4651, %v4691
          %v4767 = vmul.f32 %v4654, %v4691
          %v4768 = vmul.f32 %v4657, %v4691
          %v4769 = vmul.f32 %v4660, %v4691
          %v4770 = vmul.f32 %v4663, %v4691
          %v4771 = vmul.f32 %v4666, %v4691
          %v4772 = vmul.f32 %v4669, %v4691
          %v4773 = vmul.f32 %v4672, %v4691
          %v4774 = vmul.f32 %v4675, %v4691
          %v4775 = vmul.f32 %v4678, %v4691
          %v4776 = vmul.f32 %v4681, %v4691
          %v4777 = vmul.f32 %v4684, %v4691
          %v4778 = vmul.f32 %v4687, %v4691
          %v4779 = vmul.f32 %v4690, %v4691
          %v4780 = vsub.f32 %v4339, %v4692
          %v4781 = vsub.f32 %v4340, %v4693
          %v4782 = vsub.f32 %v4341, %v4694
          %v4783 = vsub.f32 %v4342, %v4695
          %v4784 = vsub.f32 %v4343, %v4696
          %v4785 = vsub.f32 %v4344, %v4697
          %v4786 = vsub.f32 %v4345, %v4698
          %v4787 = vsub.f32 %v4346, %v4699
          %v4788 = vsub.f32 %v4347, %v4700
          %v4789 = vsub.f32 %v4348, %v4701
          %v4790 = vsub.f32 %v4349, %v4702
          %v4791 = vsub.f32 %v4350, %v4703
          %v4792 = vsub.f32 %v4351, %v4704
          %v4793 = vsub.f32 %v4352, %v4705
          %v4794 = vsub.f32 %v4353, %v4706
          %v4795 = vsub.f32 %v4354, %v4707
          %v4796 = vsub.f32 %v4355, %v4708
          %v4797 = vsub.f32 %v4356, %v4709
          %v4798 = vsub.f32 %v4357, %v4710
          %v4799 = vsub.f32 %v4358, %v4711
          %v4800 = vsub.f32 %v4359, %v4712
          %v4801 = vsub.f32 %v4360, %v4713
          %v4802 = vsub.f32 %v4361, %v4714
          %v4803 = vsub.f32 %v4362, %v4715
          %v4804 = vsub.f32 %v4363, %v4716
          %v4805 = vsub.f32 %v4364, %v4717
          %v4806 = vsub.f32 %v4365, %v4718
          %v4807 = vsub.f32 %v4366, %v4719
          %v4808 = vsub.f32 %v4367, %v4720
          %v4809 = vsub.f32 %v4368, %v4721
          %v4810 = vsub.f32 %v4369, %v4722
          %v4811 = vsub.f32 %v4370, %v4723
          %v4812 = vsub.f32 %v4371, %v4724
          %v4813 = vsub.f32 %v4372, %v4725
          %v4814 = vsub.f32 %v4373, %v4726
          %v4815 = vsub.f32 %v4374, %v4727
          %v4816 = vsub.f32 %v4375, %v4728
          %v4817 = vsub.f32 %v4376, %v4729
          %v4818 = vsub.f32 %v4377, %v4730
          %v4819 = vsub.f32 %v4378, %v4731
          %v4820 = vsub.f32 %v4379, %v4732
          %v4821 = vsub.f32 %v4380, %v4733
          %v4822 = vsub.f32 %v4381, %v4734
          %v4823 = vsub.f32 %v4382, %v4735
          %v4824 = vsub.f32 %v4383, %v4736
          %v4825 = vsub.f32 %v4384, %v4737
          %v4826 = vsub.f32 %v4385, %v4738
          %v4827 = vsub.f32 %v4386, %v4739
          %v4828 = vsub.f32 %v4387, %v4740
          %v4829 = vsub.f32 %v4388, %v4741
          %v4830 = vsub.f32 %v4389, %v4742
          %v4831 = vsub.f32 %v4390, %v4743
          %v4832 = vsub.f32 %v4391, %v4744
          %v4833 = vsub.f32 %v4392, %v4745
          %v4834 = vsub.f32 %v4393, %v4746
          %v4835 = vsub.f32 %v4394, %v4747
          %v4836 = vsub.f32 %v4395, %v4748
          %v4837 = vsub.f32 %v4396, %v4749
          %v4838 = vsub.f32 %v4397, %v4750
          %v4839 = vsub.f32 %v4398, %v4751
          %v4840 = vsub.f32 %v4399, %v4752
          %v4841 = vsub.f32 %v4400, %v4753
          %v4842 = vsub.f32 %v4401, %v4754
          %v4843 = vsub.f32 %v4402, %v4755
          %v4844 = vsub.f32 %v4403, %v4756
          %v4845 = vsub.f32 %v4404, %v4757
          %v4846 = vsub.f32 %v4405, %v4758
          %v4847 = vsub.f32 %v4406, %v4759
          %v4848 = vsub.f32 %v4407, %v4760
          %v4849 = vsub.f32 %v4408, %v4761
          %v4850 = vsub.f32 %v4409, %v4762
          %v4851 = vsub.f32 %v4410, %v4763
          %v4852 = vsub.f32 %v4411, %v4764
          %v4853 = vsub.f32 %v4412, %v4765
          %v4854 = vsub.f32 %v4413, %v4766
          %v4855 = vsub.f32 %v4414, %v4767
          %v4856 = vsub.f32 %v4415, %v4768
          %v4857 = vsub.f32 %v4416, %v4769
          %v4858 = vsub.f32 %v4417, %v4770
          %v4859 = vsub.f32 %v4418, %v4771
          %v4860 = vsub.f32 %v4419, %v4772
          %v4861 = vsub.f32 %v4420, %v4773
          %v4862 = vsub.f32 %v4421, %v4774
          %v4863 = vsub.f32 %v4422, %v4775
          %v4864 = vsub.f32 %v4423, %v4776
          %v4865 = vsub.f32 %v4424, %v4777
          %v4866 = vsub.f32 %v4425, %v4778
          %v4867 = vsub.f32 %v4426, %v4779
          %v4868 = vmul.f32 %v4780, %v4780
          %v4869 = vmul.f32 %v4781, %v4781
          %v4870 = vmul.f32 %v4782, %v4782
          %v4871 = vmul.f32 %v4783, %v4783
          %v4872 = vmul.f32 %v4784, %v4784
          %v4873 = vmul.f32 %v4785, %v4785
          %v4874 = vmul.f32 %v4786, %v4786
          %v4875 = vmul.f32 %v4787, %v4787
          %v4876 = vmul.f32 %v4788, %v4788
          %v4877 = vmul.f32 %v4789, %v4789
          %v4878 = vmul.f32 %v4790, %v4790
          %v4879 = vmul.f32 %v4791, %v4791
          %v4880 = vmul.f32 %v4792, %v4792
          %v4881 = vmul.f32 %v4793, %v4793
          %v4882 = vmul.f32 %v4794, %v4794
          %v4883 = vmul.f32 %v4795, %v4795
          %v4884 = vmul.f32 %v4796, %v4796
          %v4885 = vmul.f32 %v4797, %v4797
          %v4886 = vmul.f32 %v4798, %v4798
          %v4887 = vmul.f32 %v4799, %v4799
          %v4888 = vmul.f32 %v4800, %v4800
          %v4889 = vmul.f32 %v4801, %v4801
          %v4890 = vmul.f32 %v4802, %v4802
          %v4891 = vmul.f32 %v4803, %v4803
          %v4892 = vmul.f32 %v4804, %v4804
          %v4893 = vmul.f32 %v4805, %v4805
          %v4894 = vmul.f32 %v4806, %v4806
          %v4895 = vmul.f32 %v4807, %v4807
          %v4896 = vmul.f32 %v4808, %v4808
          %v4897 = vmul.f32 %v4809, %v4809
          %v4898 = vmul.f32 %v4810, %v4810
          %v4899 = vmul.f32 %v4811, %v4811
          %v4900 = vmul.f32 %v4812, %v4812
          %v4901 = vmul.f32 %v4813, %v4813
          %v4902 = vmul.f32 %v4814, %v4814
          %v4903 = vmul.f32 %v4815, %v4815
          %v4904 = vmul.f32 %v4816, %v4816
          %v4905 = vmul.f32 %v4817, %v4817
          %v4906 = vmul.f32 %v4818, %v4818
          %v4907 = vmul.f32 %v4819, %v4819
          %v4908 = vmul.f32 %v4820, %v4820
          %v4909 = vmul.f32 %v4821, %v4821
          %v4910 = vmul.f32 %v4822, %v4822
          %v4911 = vmul.f32 %v4823, %v4823
          %v4912 = vmul.f32 %v4824, %v4824
          %v4913 = vmul.f32 %v4825, %v4825
          %v4914 = vmul.f32 %v4826, %v4826
          %v4915 = vmul.f32 %v4827, %v4827
          %v4916 = vmul.f32 %v4828, %v4828
          %v4917 = vmul.f32 %v4829, %v4829
          %v4918 = vmul.f32 %v4830, %v4830
          %v4919 = vmul.f32 %v4831, %v4831
          %v4920 = vmul.f32 %v4832, %v4832
          %v4921 = vmul.f32 %v4833, %v4833
          %v4922 = vmul.f32 %v4834, %v4834
          %v4923 = vmul.f32 %v4835, %v4835
          %v4924 = vmul.f32 %v4836, %v4836
          %v4925 = vmul.f32 %v4837, %v4837
          %v4926 = vmul.f32 %v4838, %v4838
          %v4927 = vmul.f32 %v4839, %v4839
          %v4928 = vmul.f32 %v4840, %v4840
          %v4929 = vmul.f32 %v4841, %v4841
          %v4930 = vmul.f32 %v4842, %v4842
          %v4931 = vmul.f32 %v4843, %v4843
          %v4932 = vmul.f32 %v4844, %v4844
          %v4933 = vmul.f32 %v4845, %v4845
          %v4934 = vmul.f32 %v4846, %v4846
          %v4935 = vmul.f32 %v4847, %v4847
          %v4936 = vmul.f32 %v4848, %v4848
          %v4937 = vmul.f32 %v4849, %v4849
          %v4938 = vmul.f32 %v4850, %v4850
          %v4939 = vmul.f32 %v4851, %v4851
          %v4940 = vmul.f32 %v4852, %v4852
          %v4941 = vmul.f32 %v4853, %v4853
          %v4942 = vmul.f32 %v4854, %v4854
          %v4943 = vmul.f32 %v4855, %v4855
          %v4944 = vmul.f32 %v4856, %v4856
          %v4945 = vmul.f32 %v4857, %v4857
          %v4946 = vmul.f32 %v4858, %v4858
          %v4947 = vmul.f32 %v4859, %v4859
          %v4948 = vmul.f32 %v4860, %v4860
          %v4949 = vmul.f32 %v4861, %v4861
          %v4950 = vmul.f32 %v4862, %v4862
          %v4951 = vmul.f32 %v4863, %v4863
          %v4952 = vmul.f32 %v4864, %v4864
          %v4953 = vmul.f32 %v4865, %v4865
          %v4954 = vmul.f32 %v4866, %v4866
          %v4955 = vmul.f32 %v4867, %v4867
          %v4956 = vsel %vm1030, %v4868, 0.0
          %4957 = vadd.xlane.f32.xlu0 %v4956
          %v4958 = vpop.xlane.xlu0 %4957
          %v4959 = vsel %vm1030, %v4869, 0.0
          %4960 = vadd.xlane.f32.xlu0 %v4959
          %v4961 = vpop.xlane.xlu0 %4960
          %v4962 = vsel %vm1030, %v4870, 0.0
          %4963 = vadd.xlane.f32.xlu0 %v4962
          %v4964 = vpop.xlane.xlu0 %4963
          %v4965 = vsel %vm1030, %v4871, 0.0
          %4966 = vadd.xlane.f32.xlu0 %v4965
          %v4967 = vpop.xlane.xlu0 %4966
          %v4968 = vsel %vm1030, %v4872, 0.0
          %4969 = vadd.xlane.f32.xlu0 %v4968
          %v4970 = vpop.xlane.xlu0 %4969
          %v4971 = vsel %vm1030, %v4873, 0.0
          %4972 = vadd.xlane.f32.xlu0 %v4971
          %v4973 = vpop.xlane.xlu0 %4972
          %v4974 = vsel %vm1030, %v4874, 0.0
          %4975 = vadd.xlane.f32.xlu0 %v4974
          %v4976 = vpop.xlane.xlu0 %4975
          %v4977 = vsel %vm1030, %v4875, 0.0
          %4978 = vadd.xlane.f32.xlu0 %v4977
          %v4979 = vpop.xlane.xlu0 %4978
          %v4980 = vsel %vm1030, %v4876, 0.0
          %4981 = vadd.xlane.f32.xlu0 %v4980
          %v4982 = vpop.xlane.xlu0 %4981
          %v4983 = vsel %vm1030, %v4877, 0.0
          %4984 = vadd.xlane.f32.xlu0 %v4983
          %v4985 = vpop.xlane.xlu0 %4984
          %v4986 = vsel %vm1030, %v4878, 0.0
          %4987 = vadd.xlane.f32.xlu0 %v4986
          %v4988 = vpop.xlane.xlu0 %4987
          %v4989 = vsel %vm1030, %v4879, 0.0
          %4990 = vadd.xlane.f32.xlu0 %v4989
          %v4991 = vpop.xlane.xlu0 %4990
          %v4992 = vsel %vm1030, %v4880, 0.0
          %4993 = vadd.xlane.f32.xlu0 %v4992
          %v4994 = vpop.xlane.xlu0 %4993
          %v4995 = vsel %vm1030, %v4881, 0.0
          %4996 = vadd.xlane.f32.xlu0 %v4995
          %v4997 = vpop.xlane.xlu0 %4996
          %v4998 = vsel %vm1030, %v4882, 0.0
          %4999 = vadd.xlane.f32.xlu0 %v4998
          %v5000 = vpop.xlane.xlu0 %4999
          %v5001 = vsel %vm1030, %v4883, 0.0
          %5002 = vadd.xlane.f32.xlu0 %v5001
          %v5003 = vpop.xlane.xlu0 %5002
          %v5004 = vsel %vm1030, %v4884, 0.0
          %5005 = vadd.xlane.f32.xlu0 %v5004
          %v5006 = vpop.xlane.xlu0 %5005
          %v5007 = vsel %vm1030, %v4885, 0.0
          %5008 = vadd.xlane.f32.xlu0 %v5007
          %v5009 = vpop.xlane.xlu0 %5008
          %v5010 = vsel %vm1030, %v4886, 0.0
          %5011 = vadd.xlane.f32.xlu0 %v5010
          %v5012 = vpop.xlane.xlu0 %5011
          %v5013 = vsel %vm1030, %v4887, 0.0
          %5014 = vadd.xlane.f32.xlu0 %v5013
          %v5015 = vpop.xlane.xlu0 %5014
          %v5016 = vsel %vm1030, %v4888, 0.0
          %5017 = vadd.xlane.f32.xlu0 %v5016
          %v5018 = vpop.xlane.xlu0 %5017
          %v5019 = vsel %vm1030, %v4889, 0.0
          %5020 = vadd.xlane.f32.xlu0 %v5019
          %v5021 = vpop.xlane.xlu0 %5020
          %v5022 = vsel %vm1030, %v4890, 0.0
          %5023 = vadd.xlane.f32.xlu0 %v5022
          %v5024 = vpop.xlane.xlu0 %5023
          %v5025 = vsel %vm1030, %v4891, 0.0
          %5026 = vadd.xlane.f32.xlu0 %v5025
          %v5027 = vpop.xlane.xlu0 %5026
          %v5028 = vsel %vm1030, %v4892, 0.0
          %5029 = vadd.xlane.f32.xlu0 %v5028
          %v5030 = vpop.xlane.xlu0 %5029
          %v5031 = vsel %vm1030, %v4893, 0.0
          %5032 = vadd.xlane.f32.xlu0 %v5031
          %v5033 = vpop.xlane.xlu0 %5032
          %v5034 = vsel %vm1030, %v4894, 0.0
          %5035 = vadd.xlane.f32.xlu0 %v5034
          %v5036 = vpop.xlane.xlu0 %5035
          %v5037 = vsel %vm1030, %v4895, 0.0
          %5038 = vadd.xlane.f32.xlu0 %v5037
          %v5039 = vpop.xlane.xlu0 %5038
          %v5040 = vsel %vm1030, %v4896, 0.0
          %5041 = vadd.xlane.f32.xlu0 %v5040
          %v5042 = vpop.xlane.xlu0 %5041
          %v5043 = vsel %vm1030, %v4897, 0.0
          %5044 = vadd.xlane.f32.xlu0 %v5043
          %v5045 = vpop.xlane.xlu0 %5044
          %v5046 = vsel %vm1030, %v4898, 0.0
          %5047 = vadd.xlane.f32.xlu0 %v5046
          %v5048 = vpop.xlane.xlu0 %5047
          %v5049 = vsel %vm1030, %v4899, 0.0
          %5050 = vadd.xlane.f32.xlu0 %v5049
          %v5051 = vpop.xlane.xlu0 %5050
          %v5052 = vsel %vm1030, %v4900, 0.0
          %5053 = vadd.xlane.f32.xlu0 %v5052
          %v5054 = vpop.xlane.xlu0 %5053
          %v5055 = vsel %vm1030, %v4901, 0.0
          %5056 = vadd.xlane.f32.xlu0 %v5055
          %v5057 = vpop.xlane.xlu0 %5056
          %v5058 = vsel %vm1030, %v4902, 0.0
          %5059 = vadd.xlane.f32.xlu0 %v5058
          %v5060 = vpop.xlane.xlu0 %5059
          %v5061 = vsel %vm1030, %v4903, 0.0
          %5062 = vadd.xlane.f32.xlu0 %v5061
          %v5063 = vpop.xlane.xlu0 %5062
          %v5064 = vsel %vm1030, %v4904, 0.0
          %5065 = vadd.xlane.f32.xlu0 %v5064
          %v5066 = vpop.xlane.xlu0 %5065
          %v5067 = vsel %vm1030, %v4905, 0.0
          %5068 = vadd.xlane.f32.xlu0 %v5067
          %v5069 = vpop.xlane.xlu0 %5068
          %v5070 = vsel %vm1030, %v4906, 0.0
          %5071 = vadd.xlane.f32.xlu0 %v5070
          %v5072 = vpop.xlane.xlu0 %5071
          %v5073 = vsel %vm1030, %v4907, 0.0
          %5074 = vadd.xlane.f32.xlu0 %v5073
          %v5075 = vpop.xlane.xlu0 %5074
          %v5076 = vsel %vm1030, %v4908, 0.0
          %5077 = vadd.xlane.f32.xlu0 %v5076
          %v5078 = vpop.xlane.xlu0 %5077
          %v5079 = vsel %vm1030, %v4909, 0.0
          %5080 = vadd.xlane.f32.xlu0 %v5079
          %v5081 = vpop.xlane.xlu0 %5080
          %v5082 = vsel %vm1030, %v4910, 0.0
          %5083 = vadd.xlane.f32.xlu0 %v5082
          %v5084 = vpop.xlane.xlu0 %5083
          %v5085 = vsel %vm1030, %v4911, 0.0
          %5086 = vadd.xlane.f32.xlu0 %v5085
          %v5087 = vpop.xlane.xlu0 %5086
          %v5088 = vsel %vm1030, %v4912, 0.0
          %5089 = vadd.xlane.f32.xlu0 %v5088
          %v5090 = vpop.xlane.xlu0 %5089
          %v5091 = vsel %vm1030, %v4913, 0.0
          %5092 = vadd.xlane.f32.xlu0 %v5091
          %v5093 = vpop.xlane.xlu0 %5092
          %v5094 = vsel %vm1030, %v4914, 0.0
          %5095 = vadd.xlane.f32.xlu0 %v5094
          %v5096 = vpop.xlane.xlu0 %5095
          %v5097 = vsel %vm1030, %v4915, 0.0
          %5098 = vadd.xlane.f32.xlu0 %v5097
          %v5099 = vpop.xlane.xlu0 %5098
          %v5100 = vsel %vm1030, %v4916, 0.0
          %5101 = vadd.xlane.f32.xlu0 %v5100
          %v5102 = vpop.xlane.xlu0 %5101
          %v5103 = vsel %vm1030, %v4917, 0.0
          %5104 = vadd.xlane.f32.xlu0 %v5103
          %v5105 = vpop.xlane.xlu0 %5104
          %v5106 = vsel %vm1030, %v4918, 0.0
          %5107 = vadd.xlane.f32.xlu0 %v5106
          %v5108 = vpop.xlane.xlu0 %5107
          %v5109 = vsel %vm1030, %v4919, 0.0
          %5110 = vadd.xlane.f32.xlu0 %v5109
          %v5111 = vpop.xlane.xlu0 %5110
          %v5112 = vsel %vm1030, %v4920, 0.0
          %5113 = vadd.xlane.f32.xlu0 %v5112
          %v5114 = vpop.xlane.xlu0 %5113
          %v5115 = vsel %vm1030, %v4921, 0.0
          %5116 = vadd.xlane.f32.xlu0 %v5115
          %v5117 = vpop.xlane.xlu0 %5116
          %v5118 = vsel %vm1030, %v4922, 0.0
          %5119 = vadd.xlane.f32.xlu0 %v5118
          %v5120 = vpop.xlane.xlu0 %5119
          %v5121 = vsel %vm1030, %v4923, 0.0
          %5122 = vadd.xlane.f32.xlu0 %v5121
          %v5123 = vpop.xlane.xlu0 %5122
          %v5124 = vsel %vm1030, %v4924, 0.0
          %5125 = vadd.xlane.f32.xlu0 %v5124
          %v5126 = vpop.xlane.xlu0 %5125
          %v5127 = vsel %vm1030, %v4925, 0.0
          %5128 = vadd.xlane.f32.xlu0 %v5127
          %v5129 = vpop.xlane.xlu0 %5128
          %v5130 = vsel %vm1030, %v4926, 0.0
          %5131 = vadd.xlane.f32.xlu0 %v5130
          %v5132 = vpop.xlane.xlu0 %5131
          %v5133 = vsel %vm1030, %v4927, 0.0
          %5134 = vadd.xlane.f32.xlu0 %v5133
          %v5135 = vpop.xlane.xlu0 %5134
          %v5136 = vsel %vm1030, %v4928, 0.0
          %5137 = vadd.xlane.f32.xlu0 %v5136
          %v5138 = vpop.xlane.xlu0 %5137
          %v5139 = vsel %vm1030, %v4929, 0.0
          %5140 = vadd.xlane.f32.xlu0 %v5139
          %v5141 = vpop.xlane.xlu0 %5140
          %v5142 = vsel %vm1030, %v4930, 0.0
          %5143 = vadd.xlane.f32.xlu0 %v5142
          %v5144 = vpop.xlane.xlu0 %5143
          %v5145 = vsel %vm1030, %v4931, 0.0
          %5146 = vadd.xlane.f32.xlu0 %v5145
          %v5147 = vpop.xlane.xlu0 %5146
          %v5148 = vsel %vm1030, %v4932, 0.0
          %5149 = vadd.xlane.f32.xlu0 %v5148
          %v5150 = vpop.xlane.xlu0 %5149
          %v5151 = vsel %vm1030, %v4933, 0.0
          %5152 = vadd.xlane.f32.xlu0 %v5151
          %v5153 = vpop.xlane.xlu0 %5152
          %v5154 = vsel %vm1030, %v4934, 0.0
          %5155 = vadd.xlane.f32.xlu0 %v5154
          %v5156 = vpop.xlane.xlu0 %5155
          %v5157 = vsel %vm1030, %v4935, 0.0
          %5158 = vadd.xlane.f32.xlu0 %v5157
          %v5159 = vpop.xlane.xlu0 %5158
          %v5160 = vsel %vm1030, %v4936, 0.0
          %5161 = vadd.xlane.f32.xlu0 %v5160
          %v5162 = vpop.xlane.xlu0 %5161
          %v5163 = vsel %vm1030, %v4937, 0.0
          %5164 = vadd.xlane.f32.xlu0 %v5163
          %v5165 = vpop.xlane.xlu0 %5164
          %v5166 = vsel %vm1030, %v4938, 0.0
          %5167 = vadd.xlane.f32.xlu0 %v5166
          %v5168 = vpop.xlane.xlu0 %5167
          %v5169 = vsel %vm1030, %v4939, 0.0
          %5170 = vadd.xlane.f32.xlu0 %v5169
          %v5171 = vpop.xlane.xlu0 %5170
          %v5172 = vsel %vm1030, %v4940, 0.0
          %5173 = vadd.xlane.f32.xlu0 %v5172
          %v5174 = vpop.xlane.xlu0 %5173
          %v5175 = vsel %vm1030, %v4941, 0.0
          %5176 = vadd.xlane.f32.xlu0 %v5175
          %v5177 = vpop.xlane.xlu0 %5176
          %v5178 = vsel %vm1030, %v4942, 0.0
          %5179 = vadd.xlane.f32.xlu0 %v5178
          %v5180 = vpop.xlane.xlu0 %5179
          %v5181 = vsel %vm1030, %v4943, 0.0
          %5182 = vadd.xlane.f32.xlu0 %v5181
          %v5183 = vpop.xlane.xlu0 %5182
          %v5184 = vsel %vm1030, %v4944, 0.0
          %5185 = vadd.xlane.f32.xlu0 %v5184
          %v5186 = vpop.xlane.xlu0 %5185
          %v5187 = vsel %vm1030, %v4945, 0.0
          %5188 = vadd.xlane.f32.xlu0 %v5187
          %v5189 = vpop.xlane.xlu0 %5188
          %v5190 = vsel %vm1030, %v4946, 0.0
          %5191 = vadd.xlane.f32.xlu0 %v5190
          %v5192 = vpop.xlane.xlu0 %5191
          %v5193 = vsel %vm1030, %v4947, 0.0
          %5194 = vadd.xlane.f32.xlu0 %v5193
          %v5195 = vpop.xlane.xlu0 %5194
          %v5196 = vsel %vm1030, %v4948, 0.0
          %5197 = vadd.xlane.f32.xlu0 %v5196
          %v5198 = vpop.xlane.xlu0 %5197
          %v5199 = vsel %vm1030, %v4949, 0.0
          %5200 = vadd.xlane.f32.xlu0 %v5199
          %v5201 = vpop.xlane.xlu0 %5200
          %v5202 = vsel %vm1030, %v4950, 0.0
          %5203 = vadd.xlane.f32.xlu0 %v5202
          %v5204 = vpop.xlane.xlu0 %5203
          %v5205 = vsel %vm1030, %v4951, 0.0
          %5206 = vadd.xlane.f32.xlu0 %v5205
          %v5207 = vpop.xlane.xlu0 %5206
          %v5208 = vsel %vm1030, %v4952, 0.0
          %5209 = vadd.xlane.f32.xlu0 %v5208
          %v5210 = vpop.xlane.xlu0 %5209
          %v5211 = vsel %vm1030, %v4953, 0.0
          %5212 = vadd.xlane.f32.xlu0 %v5211
          %v5213 = vpop.xlane.xlu0 %5212
          %v5214 = vsel %vm1030, %v4954, 0.0
          %5215 = vadd.xlane.f32.xlu0 %v5214
          %v5216 = vpop.xlane.xlu0 %5215
          %v5217 = vsel %vm1030, %v4955, 0.0
          %5218 = vadd.xlane.f32.xlu0 %v5217
          %v5219 = vpop.xlane.xlu0 %5218
          %v5220 = vmul.f32 %v4958, %v4691
          %v5221 = vmul.f32 %v4961, %v4691
          %v5222 = vmul.f32 %v4964, %v4691
          %v5223 = vmul.f32 %v4967, %v4691
          %v5224 = vmul.f32 %v4970, %v4691
          %v5225 = vmul.f32 %v4973, %v4691
          %v5226 = vmul.f32 %v4976, %v4691
          %v5227 = vmul.f32 %v4979, %v4691
          %v5228 = vmul.f32 %v4982, %v4691
          %v5229 = vmul.f32 %v4985, %v4691
          %v5230 = vmul.f32 %v4988, %v4691
          %v5231 = vmul.f32 %v4991, %v4691
          %v5232 = vmul.f32 %v4994, %v4691
          %v5233 = vmul.f32 %v4997, %v4691
          %v5234 = vmul.f32 %v5000, %v4691
          %v5235 = vmul.f32 %v5003, %v4691
          %v5236 = vmul.f32 %v5006, %v4691
          %v5237 = vmul.f32 %v5009, %v4691
          %v5238 = vmul.f32 %v5012, %v4691
          %v5239 = vmul.f32 %v5015, %v4691
          %v5240 = vmul.f32 %v5018, %v4691
          %v5241 = vmul.f32 %v5021, %v4691
          %v5242 = vmul.f32 %v5024, %v4691
          %v5243 = vmul.f32 %v5027, %v4691
          %v5244 = vmul.f32 %v5030, %v4691
          %v5245 = vmul.f32 %v5033, %v4691
          %v5246 = vmul.f32 %v5036, %v4691
          %v5247 = vmul.f32 %v5039, %v4691
          %v5248 = vmul.f32 %v5042, %v4691
          %v5249 = vmul.f32 %v5045, %v4691
          %v5250 = vmul.f32 %v5048, %v4691
          %v5251 = vmul.f32 %v5051, %v4691
          %v5252 = vmul.f32 %v5054, %v4691
          %v5253 = vmul.f32 %v5057, %v4691
          %v5254 = vmul.f32 %v5060, %v4691
          %v5255 = vmul.f32 %v5063, %v4691
          %v5256 = vmul.f32 %v5066, %v4691
          %v5257 = vmul.f32 %v5069, %v4691
          %v5258 = vmul.f32 %v5072, %v4691
          %v5259 = vmul.f32 %v5075, %v4691
          %v5260 = vmul.f32 %v5078, %v4691
          %v5261 = vmul.f32 %v5081, %v4691
          %v5262 = vmul.f32 %v5084, %v4691
          %v5263 = vmul.f32 %v5087, %v4691
          %v5264 = vmul.f32 %v5090, %v4691
          %v5265 = vmul.f32 %v5093, %v4691
          %v5266 = vmul.f32 %v5096, %v4691
          %v5267 = vmul.f32 %v5099, %v4691
          %v5268 = vmul.f32 %v5102, %v4691
          %v5269 = vmul.f32 %v5105, %v4691
          %v5270 = vmul.f32 %v5108, %v4691
          %v5271 = vmul.f32 %v5111, %v4691
          %v5272 = vmul.f32 %v5114, %v4691
          %v5273 = vmul.f32 %v5117, %v4691
          %v5274 = vmul.f32 %v5120, %v4691
          %v5275 = vmul.f32 %v5123, %v4691
          %v5276 = vmul.f32 %v5126, %v4691
          %v5277 = vmul.f32 %v5129, %v4691
          %v5278 = vmul.f32 %v5132, %v4691
          %v5279 = vmul.f32 %v5135, %v4691
          %v5280 = vmul.f32 %v5138, %v4691
          %v5281 = vmul.f32 %v5141, %v4691
          %v5282 = vmul.f32 %v5144, %v4691
          %v5283 = vmul.f32 %v5147, %v4691
          %v5284 = vmul.f32 %v5150, %v4691
          %v5285 = vmul.f32 %v5153, %v4691
          %v5286 = vmul.f32 %v5156, %v4691
          %v5287 = vmul.f32 %v5159, %v4691
          %v5288 = vmul.f32 %v5162, %v4691
          %v5289 = vmul.f32 %v5165, %v4691
          %v5290 = vmul.f32 %v5168, %v4691
          %v5291 = vmul.f32 %v5171, %v4691
          %v5292 = vmul.f32 %v5174, %v4691
          %v5293 = vmul.f32 %v5177, %v4691
          %v5294 = vmul.f32 %v5180, %v4691
          %v5295 = vmul.f32 %v5183, %v4691
          %v5296 = vmul.f32 %v5186, %v4691
          %v5297 = vmul.f32 %v5189, %v4691
          %v5298 = vmul.f32 %v5192, %v4691
          %v5299 = vmul.f32 %v5195, %v4691
          %v5300 = vmul.f32 %v5198, %v4691
          %v5301 = vmul.f32 %v5201, %v4691
          %v5302 = vmul.f32 %v5204, %v4691
          %v5303 = vmul.f32 %v5207, %v4691
          %v5304 = vmul.f32 %v5210, %v4691
          %v5305 = vmul.f32 %v5213, %v4691
          %v5306 = vmul.f32 %v5216, %v4691
          %v5307 = vmul.f32 %v5219, %v4691
          %v5308 = vadd.f32 %v5220, 1e-05
          %v5309 = vadd.f32 %v5221, 1e-05
          %v5310 = vadd.f32 %v5222, 1e-05
          %v5311 = vadd.f32 %v5223, 1e-05
          %v5312 = vadd.f32 %v5224, 1e-05
          %v5313 = vadd.f32 %v5225, 1e-05
          %v5314 = vadd.f32 %v5226, 1e-05
          %v5315 = vadd.f32 %v5227, 1e-05
          %v5316 = vadd.f32 %v5228, 1e-05
          %v5317 = vadd.f32 %v5229, 1e-05
          %v5318 = vadd.f32 %v5230, 1e-05
          %v5319 = vadd.f32 %v5231, 1e-05
          %v5320 = vadd.f32 %v5232, 1e-05
          %v5321 = vadd.f32 %v5233, 1e-05
          %v5322 = vadd.f32 %v5234, 1e-05
          %v5323 = vadd.f32 %v5235, 1e-05
          %v5324 = vadd.f32 %v5236, 1e-05
          %v5325 = vadd.f32 %v5237, 1e-05
          %v5326 = vadd.f32 %v5238, 1e-05
          %v5327 = vadd.f32 %v5239, 1e-05
          %v5328 = vadd.f32 %v5240, 1e-05
          %v5329 = vadd.f32 %v5241, 1e-05
          %v5330 = vadd.f32 %v5242, 1e-05
          %v5331 = vadd.f32 %v5243, 1e-05
          %v5332 = vadd.f32 %v5244, 1e-05
          %v5333 = vadd.f32 %v5245, 1e-05
          %v5334 = vadd.f32 %v5246, 1e-05
          %v5335 = vadd.f32 %v5247, 1e-05
          %v5336 = vadd.f32 %v5248, 1e-05
          %v5337 = vadd.f32 %v5249, 1e-05
          %v5338 = vadd.f32 %v5250, 1e-05
          %v5339 = vadd.f32 %v5251, 1e-05
          %v5340 = vadd.f32 %v5252, 1e-05
          %v5341 = vadd.f32 %v5253, 1e-05
          %v5342 = vadd.f32 %v5254, 1e-05
          %v5343 = vadd.f32 %v5255, 1e-05
          %v5344 = vadd.f32 %v5256, 1e-05
          %v5345 = vadd.f32 %v5257, 1e-05
          %v5346 = vadd.f32 %v5258, 1e-05
          %v5347 = vadd.f32 %v5259, 1e-05
          %v5348 = vadd.f32 %v5260, 1e-05
          %v5349 = vadd.f32 %v5261, 1e-05
          %v5350 = vadd.f32 %v5262, 1e-05
          %v5351 = vadd.f32 %v5263, 1e-05
          %v5352 = vadd.f32 %v5264, 1e-05
          %v5353 = vadd.f32 %v5265, 1e-05
          %v5354 = vadd.f32 %v5266, 1e-05
          %v5355 = vadd.f32 %v5267, 1e-05
          %v5356 = vadd.f32 %v5268, 1e-05
          %v5357 = vadd.f32 %v5269, 1e-05
          %v5358 = vadd.f32 %v5270, 1e-05
          %v5359 = vadd.f32 %v5271, 1e-05
          %v5360 = vadd.f32 %v5272, 1e-05
          %v5361 = vadd.f32 %v5273, 1e-05
          %v5362 = vadd.f32 %v5274, 1e-05
          %v5363 = vadd.f32 %v5275, 1e-05
          %v5364 = vadd.f32 %v5276, 1e-05
          %v5365 = vadd.f32 %v5277, 1e-05
          %v5366 = vadd.f32 %v5278, 1e-05
          %v5367 = vadd.f32 %v5279, 1e-05
          %v5368 = vadd.f32 %v5280, 1e-05
          %v5369 = vadd.f32 %v5281, 1e-05
          %v5370 = vadd.f32 %v5282, 1e-05
          %v5371 = vadd.f32 %v5283, 1e-05
          %v5372 = vadd.f32 %v5284, 1e-05
          %v5373 = vadd.f32 %v5285, 1e-05
          %v5374 = vadd.f32 %v5286, 1e-05
          %v5375 = vadd.f32 %v5287, 1e-05
          %v5376 = vadd.f32 %v5288, 1e-05
          %v5377 = vadd.f32 %v5289, 1e-05
          %v5378 = vadd.f32 %v5290, 1e-05
          %v5379 = vadd.f32 %v5291, 1e-05
          %v5380 = vadd.f32 %v5292, 1e-05
          %v5381 = vadd.f32 %v5293, 1e-05
          %v5382 = vadd.f32 %v5294, 1e-05
          %v5383 = vadd.f32 %v5295, 1e-05
          %v5384 = vadd.f32 %v5296, 1e-05
          %v5385 = vadd.f32 %v5297, 1e-05
          %v5386 = vadd.f32 %v5298, 1e-05
          %v5387 = vadd.f32 %v5299, 1e-05
          %v5388 = vadd.f32 %v5300, 1e-05
          %v5389 = vadd.f32 %v5301, 1e-05
          %v5390 = vadd.f32 %v5302, 1e-05
          %v5391 = vadd.f32 %v5303, 1e-05
          %v5392 = vadd.f32 %v5304, 1e-05
          %v5393 = vadd.f32 %v5305, 1e-05
          %v5394 = vadd.f32 %v5306, 1e-05
          %v5395 = vadd.f32 %v5307, 1e-05
          %v5396 = vrsqrt.pop %v5308
          %v5397 = vrsqrt.pop %v5309
          %v5398 = vrsqrt.pop %v5310
          %v5399 = vrsqrt.pop %v5311
          %v5400 = vrsqrt.pop %v5312
          %v5401 = vrsqrt.pop %v5313
          %v5402 = vrsqrt.pop %v5314
          %v5403 = vrsqrt.pop %v5315
          %v5404 = vrsqrt.pop %v5316
          %v5405 = vrsqrt.pop %v5317
          %v5406 = vrsqrt.pop %v5318
          %v5407 = vrsqrt.pop %v5319
          %v5408 = vrsqrt.pop %v5320
          %v5409 = vrsqrt.pop %v5321
          %v5410 = vrsqrt.pop %v5322
          %v5411 = vrsqrt.pop %v5323
          %v5412 = vrsqrt.pop %v5324
          %v5413 = vrsqrt.pop %v5325
          %v5414 = vrsqrt.pop %v5326
          %v5415 = vrsqrt.pop %v5327
          %v5416 = vrsqrt.pop %v5328
          %v5417 = vrsqrt.pop %v5329
          %v5418 = vrsqrt.pop %v5330
          %v5419 = vrsqrt.pop %v5331
          %v5420 = vrsqrt.pop %v5332
          %v5421 = vrsqrt.pop %v5333
          %v5422 = vrsqrt.pop %v5334
          %v5423 = vrsqrt.pop %v5335
          %v5424 = vrsqrt.pop %v5336
          %v5425 = vrsqrt.pop %v5337
          %v5426 = vrsqrt.pop %v5338
          %v5427 = vrsqrt.pop %v5339
          %v5428 = vrsqrt.pop %v5340
          %v5429 = vrsqrt.pop %v5341
          %v5430 = vrsqrt.pop %v5342
          %v5431 = vrsqrt.pop %v5343
          %v5432 = vrsqrt.pop %v5344
          %v5433 = vrsqrt.pop %v5345
          %v5434 = vrsqrt.pop %v5346
          %v5435 = vrsqrt.pop %v5347
          %v5436 = vrsqrt.pop %v5348
          %v5437 = vrsqrt.pop %v5349
          %v5438 = vrsqrt.pop %v5350
          %v5439 = vrsqrt.pop %v5351
          %v5440 = vrsqrt.pop %v5352
          %v5441 = vrsqrt.pop %v5353
          %v5442 = vrsqrt.pop %v5354
          %v5443 = vrsqrt.pop %v5355
          %v5444 = vrsqrt.pop %v5356
          %v5445 = vrsqrt.pop %v5357
          %v5446 = vrsqrt.pop %v5358
          %v5447 = vrsqrt.pop %v5359
          %v5448 = vrsqrt.pop %v5360
          %v5449 = vrsqrt.pop %v5361
          %v5450 = vrsqrt.pop %v5362
          %v5451 = vrsqrt.pop %v5363
          %v5452 = vrsqrt.pop %v5364
          %v5453 = vrsqrt.pop %v5365
          %v5454 = vrsqrt.pop %v5366
          %v5455 = vrsqrt.pop %v5367
          %v5456 = vrsqrt.pop %v5368
          %v5457 = vrsqrt.pop %v5369
          %v5458 = vrsqrt.pop %v5370
          %v5459 = vrsqrt.pop %v5371
          %v5460 = vrsqrt.pop %v5372
          %v5461 = vrsqrt.pop %v5373
          %v5462 = vrsqrt.pop %v5374
          %v5463 = vrsqrt.pop %v5375
          %v5464 = vrsqrt.pop %v5376
          %v5465 = vrsqrt.pop %v5377
          %v5466 = vrsqrt.pop %v5378
          %v5467 = vrsqrt.pop %v5379
          %v5468 = vrsqrt.pop %v5380
          %v5469 = vrsqrt.pop %v5381
          %v5470 = vrsqrt.pop %v5382
          %v5471 = vrsqrt.pop %v5383
          %v5472 = vrsqrt.pop %v5384
          %v5473 = vrsqrt.pop %v5385
          %v5474 = vrsqrt.pop %v5386
          %v5475 = vrsqrt.pop %v5387
          %v5476 = vrsqrt.pop %v5388
          %v5477 = vrsqrt.pop %v5389
          %v5478 = vrsqrt.pop %v5390
          %v5479 = vrsqrt.pop %v5391
          %v5480 = vrsqrt.pop %v5392
          %v5481 = vrsqrt.pop %v5393
          %v5482 = vrsqrt.pop %v5394
          %v5483 = vrsqrt.pop %v5395
          %v5484 = vmul.f32 %v4780, %v5396
          %v5485 = vmul.f32 %v4781, %v5397
          %v5486 = vmul.f32 %v4782, %v5398
          %v5487 = vmul.f32 %v4783, %v5399
          %v5488 = vmul.f32 %v4784, %v5400
          %v5489 = vmul.f32 %v4785, %v5401
          %v5490 = vmul.f32 %v4786, %v5402
          %v5491 = vmul.f32 %v4787, %v5403
          %v5492 = vmul.f32 %v4788, %v5404
          %v5493 = vmul.f32 %v4789, %v5405
          %v5494 = vmul.f32 %v4790, %v5406
          %v5495 = vmul.f32 %v4791, %v5407
          %v5496 = vmul.f32 %v4792, %v5408
          %v5497 = vmul.f32 %v4793, %v5409
          %v5498 = vmul.f32 %v4794, %v5410
          %v5499 = vmul.f32 %v4795, %v5411
          %v5500 = vmul.f32 %v4796, %v5412
          %v5501 = vmul.f32 %v4797, %v5413
          %v5502 = vmul.f32 %v4798, %v5414
          %v5503 = vmul.f32 %v4799, %v5415
          %v5504 = vmul.f32 %v4800, %v5416
          %v5505 = vmul.f32 %v4801, %v5417
          %v5506 = vmul.f32 %v4802, %v5418
          %v5507 = vmul.f32 %v4803, %v5419
          %v5508 = vmul.f32 %v4804, %v5420
          %v5509 = vmul.f32 %v4805, %v5421
          %v5510 = vmul.f32 %v4806, %v5422
          %v5511 = vmul.f32 %v4807, %v5423
          %v5512 = vmul.f32 %v4808, %v5424
          %v5513 = vmul.f32 %v4809, %v5425
          %v5514 = vmul.f32 %v4810, %v5426
          %v5515 = vmul.f32 %v4811, %v5427
          %v5516 = vmul.f32 %v4812, %v5428
          %v5517 = vmul.f32 %v4813, %v5429
          %v5518 = vmul.f32 %v4814, %v5430
          %v5519 = vmul.f32 %v4815, %v5431
          %v5520 = vmul.f32 %v4816, %v5432
          %v5521 = vmul.f32 %v4817, %v5433
          %v5522 = vmul.f32 %v4818, %v5434
          %v5523 = vmul.f32 %v4819, %v5435
          %v5524 = vmul.f32 %v4820, %v5436
          %v5525 = vmul.f32 %v4821, %v5437
          %v5526 = vmul.f32 %v4822, %v5438
          %v5527 = vmul.f32 %v4823, %v5439
          %v5528 = vmul.f32 %v4824, %v5440
          %v5529 = vmul.f32 %v4825, %v5441
          %v5530 = vmul.f32 %v4826, %v5442
          %v5531 = vmul.f32 %v4827, %v5443
          %v5532 = vmul.f32 %v4828, %v5444
          %v5533 = vmul.f32 %v4829, %v5445
          %v5534 = vmul.f32 %v4830, %v5446
          %v5535 = vmul.f32 %v4831, %v5447
          %v5536 = vmul.f32 %v4832, %v5448
          %v5537 = vmul.f32 %v4833, %v5449
          %v5538 = vmul.f32 %v4834, %v5450
          %v5539 = vmul.f32 %v4835, %v5451
          %v5540 = vmul.f32 %v4836, %v5452
          %v5541 = vmul.f32 %v4837, %v5453
          %v5542 = vmul.f32 %v4838, %v5454
          %v5543 = vmul.f32 %v4839, %v5455
          %v5544 = vmul.f32 %v4840, %v5456
          %v5545 = vmul.f32 %v4841, %v5457
          %v5546 = vmul.f32 %v4842, %v5458
          %v5547 = vmul.f32 %v4843, %v5459
          %v5548 = vmul.f32 %v4844, %v5460
          %v5549 = vmul.f32 %v4845, %v5461
          %v5550 = vmul.f32 %v4846, %v5462
          %v5551 = vmul.f32 %v4847, %v5463
          %v5552 = vmul.f32 %v4848, %v5464
          %v5553 = vmul.f32 %v4849, %v5465
          %v5554 = vmul.f32 %v4850, %v5466
          %v5555 = vmul.f32 %v4851, %v5467
          %v5556 = vmul.f32 %v4852, %v5468
          %v5557 = vmul.f32 %v4853, %v5469
          %v5558 = vmul.f32 %v4854, %v5470
          %v5559 = vmul.f32 %v4855, %v5471
          %v5560 = vmul.f32 %v4856, %v5472
          %v5561 = vmul.f32 %v4857, %v5473
          %v5562 = vmul.f32 %v4858, %v5474
          %v5563 = vmul.f32 %v4859, %v5475
          %v5564 = vmul.f32 %v4860, %v5476
          %v5565 = vmul.f32 %v4861, %v5477
          %v5566 = vmul.f32 %v4862, %v5478
          %v5567 = vmul.f32 %v4863, %v5479
          %v5568 = vmul.f32 %v4864, %v5480
          %v5569 = vmul.f32 %v4865, %v5481
          %v5570 = vmul.f32 %v4866, %v5482
          %v5571 = vmul.f32 %v4867, %v5483
          %5572 = vst.msk [vmem:[#allocation2] sm:$0xff] %vm1030, %v5484
          %5573 = vst.msk [vmem:[#allocation2 + $0x8] sm:$0xff] %vm1030, %v5485
          %5574 = vst.msk [vmem:[#allocation2 + $0x10] sm:$0xff] %vm1030, %v5486
          %5575 = vst.msk [vmem:[#allocation2 + $0x18] sm:$0xff] %vm1030, %v5487
          %5576 = vst.msk [vmem:[#allocation2 + $0x20] sm:$0xff] %vm1030, %v5488
          %5577 = vst.msk [vmem:[#allocation2 + $0x28] sm:$0xff] %vm1030, %v5489
          %5578 = vst.msk [vmem:[#allocation2 + $0x30] sm:$0xff] %vm1030, %v5490
          %5579 = vst.msk [vmem:[#allocation2 + $0x38] sm:$0xff] %vm1030, %v5491
          %5580 = vst.msk [vmem:[#allocation2 + $0x40] sm:$0xff] %vm1030, %v5492
          %5581 = vst.msk [vmem:[#allocation2 + $0x48] sm:$0xff] %vm1030, %v5493
          %5582 = vst.msk [vmem:[#allocation2 + $0x50] sm:$0xff] %vm1030, %v5494
          %5583 = vst.msk [vmem:[#allocation2 + $0x58] sm:$0xff] %vm1030, %v5495
          %5584 = vst.msk [vmem:[#allocation2 + $0x60] sm:$0xff] %vm1030, %v5496
          %5585 = vst.msk [vmem:[#allocation2 + $0x68] sm:$0xff] %vm1030, %v5497
          %5586 = vst.msk [vmem:[#allocation2 + $0x70] sm:$0xff] %vm1030, %v5498
          %5587 = vst.msk [vmem:[#allocation2 + $0x78] sm:$0xff] %vm1030, %v5499
          %5588 = vst.msk [vmem:[#allocation2 + $0x80] sm:$0xff] %vm1030, %v5500
          %5589 = vst.msk [vmem:[#allocation2 + $0x88] sm:$0xff] %vm1030, %v5501
          %5590 = vst.msk [vmem:[#allocation2 + $0x90] sm:$0xff] %vm1030, %v5502
          %5591 = vst.msk [vmem:[#allocation2 + $0x98] sm:$0xff] %vm1030, %v5503
          %5592 = vst.msk [vmem:[#allocation2 + $0xa0] sm:$0xff] %vm1030, %v5504
          %5593 = vst.msk [vmem:[#allocation2 + $0xa8] sm:$0xff] %vm1030, %v5505
          %5594 = vst.msk [vmem:[#allocation2 + $0xb0] sm:$0xff] %vm1030, %v5506
          %5595 = vst.msk [vmem:[#allocation2 + $0xb8] sm:$0xff] %vm1030, %v5507
          %5596 = vst.msk [vmem:[#allocation2 + $0xc0] sm:$0xff] %vm1030, %v5508
          %5597 = vst.msk [vmem:[#allocation2 + $0xc8] sm:$0xff] %vm1030, %v5509
          %5598 = vst.msk [vmem:[#allocation2 + $0xd0] sm:$0xff] %vm1030, %v5510
          %5599 = vst.msk [vmem:[#allocation2 + $0xd8] sm:$0xff] %vm1030, %v5511
          %5600 = vst.msk [vmem:[#allocation2 + $0xe0] sm:$0xff] %vm1030, %v5512
          %5601 = vst.msk [vmem:[#allocation2 + $0xe8] sm:$0xff] %vm1030, %v5513
          %5602 = vst.msk [vmem:[#allocation2 + $0xf0] sm:$0xff] %vm1030, %v5514
          %5603 = vst.msk [vmem:[#allocation2 + $0xf8] sm:$0xff] %vm1030, %v5515
          %5604 = vst.msk [vmem:[#allocation2 + $0x100] sm:$0xff] %vm1030, %v5516
          %5605 = vst.msk [vmem:[#allocation2 + $0x108] sm:$0xff] %vm1030, %v5517
          %5606 = vst.msk [vmem:[#allocation2 + $0x110] sm:$0xff] %vm1030, %v5518
          %5607 = vst.msk [vmem:[#allocation2 + $0x118] sm:$0xff] %vm1030, %v5519
          %5608 = vst.msk [vmem:[#allocation2 + $0x120] sm:$0xff] %vm1030, %v5520
          %5609 = vst.msk [vmem:[#allocation2 + $0x128] sm:$0xff] %vm1030, %v5521
          %5610 = vst.msk [vmem:[#allocation2 + $0x130] sm:$0xff] %vm1030, %v5522
          %5611 = vst.msk [vmem:[#allocation2 + $0x138] sm:$0xff] %vm1030, %v5523
          %5612 = vst.msk [vmem:[#allocation2 + $0x140] sm:$0xff] %vm1030, %v5524
          %5613 = vst.msk [vmem:[#allocation2 + $0x148] sm:$0xff] %vm1030, %v5525
          %5614 = vst.msk [vmem:[#allocation2 + $0x150] sm:$0xff] %vm1030, %v5526
          %5615 = vst.msk [vmem:[#allocation2 + $0x158] sm:$0xff] %vm1030, %v5527
          %5616 = vst.msk [vmem:[#allocation2 + $0x160] sm:$0xff] %vm1030, %v5528
          %5617 = vst.msk [vmem:[#allocation2 + $0x168] sm:$0xff] %vm1030, %v5529
          %5618 = vst.msk [vmem:[#allocation2 + $0x170] sm:$0xff] %vm1030, %v5530
          %5619 = vst.msk [vmem:[#allocation2 + $0x178] sm:$0xff] %vm1030, %v5531
          %5620 = vst.msk [vmem:[#allocation2 + $0x180] sm:$0xff] %vm1030, %v5532
          %5621 = vst.msk [vmem:[#allocation2 + $0x188] sm:$0xff] %vm1030, %v5533
          %5622 = vst.msk [vmem:[#allocation2 + $0x190] sm:$0xff] %vm1030, %v5534
          %5623 = vst.msk [vmem:[#allocation2 + $0x198] sm:$0xff] %vm1030, %v5535
          %5624 = vst.msk [vmem:[#allocation2 + $0x1a0] sm:$0xff] %vm1030, %v5536
          %5625 = vst.msk [vmem:[#allocation2 + $0x1a8] sm:$0xff] %vm1030, %v5537
          %5626 = vst.msk [vmem:[#allocation2 + $0x1b0] sm:$0xff] %vm1030, %v5538
          %5627 = vst.msk [vmem:[#allocation2 + $0x1b8] sm:$0xff] %vm1030, %v5539
          %5628 = vst.msk [vmem:[#allocation2 + $0x1c0] sm:$0xff] %vm1030, %v5540
          %5629 = vst.msk [vmem:[#allocation2 + $0x1c8] sm:$0xff] %vm1030, %v5541
          %5630 = vst.msk [vmem:[#allocation2 + $0x1d0] sm:$0xff] %vm1030, %v5542
          %5631 = vst.msk [vmem:[#allocation2 + $0x1d8] sm:$0xff] %vm1030, %v5543
          %5632 = vst.msk [vmem:[#allocation2 + $0x1e0] sm:$0xff] %vm1030, %v5544
          %5633 = vst.msk [vmem:[#allocation2 + $0x1e8] sm:$0xff] %vm1030, %v5545
          %5634 = vst.msk [vmem:[#allocation2 + $0x1f0] sm:$0xff] %vm1030, %v5546
          %5635 = vst.msk [vmem:[#allocation2 + $0x1f8] sm:$0xff] %vm1030, %v5547
          %5636 = vst.msk [vmem:[#allocation2 + $0x200] sm:$0xff] %vm1030, %v5548
          %5637 = vst.msk [vmem:[#allocation2 + $0x208] sm:$0xff] %vm1030, %v5549
          %5638 = vst.msk [vmem:[#allocation2 + $0x210] sm:$0xff] %vm1030, %v5550
          %5639 = vst.msk [vmem:[#allocation2 + $0x218] sm:$0xff] %vm1030, %v5551
          %5640 = vst.msk [vmem:[#allocation2 + $0x220] sm:$0xff] %vm1030, %v5552
          %5641 = vst.msk [vmem:[#allocation2 + $0x228] sm:$0xff] %vm1030, %v5553
          %5642 = vst.msk [vmem:[#allocation2 + $0x230] sm:$0xff] %vm1030, %v5554
          %5643 = vst.msk [vmem:[#allocation2 + $0x238] sm:$0xff] %vm1030, %v5555
          %5644 = vst.msk [vmem:[#allocation2 + $0x240] sm:$0xff] %vm1030, %v5556
          %5645 = vst.msk [vmem:[#allocation2 + $0x248] sm:$0xff] %vm1030, %v5557
          %5646 = vst.msk [vmem:[#allocation2 + $0x250] sm:$0xff] %vm1030, %v5558
          %5647 = vst.msk [vmem:[#allocation2 + $0x258] sm:$0xff] %vm1030, %v5559
          %5648 = vst.msk [vmem:[#allocation2 + $0x260] sm:$0xff] %vm1030, %v5560
          %5649 = vst.msk [vmem:[#allocation2 + $0x268] sm:$0xff] %vm1030, %v5561
          %5650 = vst.msk [vmem:[#allocation2 + $0x270] sm:$0xff] %vm1030, %v5562
          %5651 = vst.msk [vmem:[#allocation2 + $0x278] sm:$0xff] %vm1030, %v5563
          %5652 = vst.msk [vmem:[#allocation2 + $0x280] sm:$0xff] %vm1030, %v5564
          %5653 = vst.msk [vmem:[#allocation2 + $0x288] sm:$0xff] %vm1030, %v5565
          %5654 = vst.msk [vmem:[#allocation2 + $0x290] sm:$0xff] %vm1030, %v5566
          %5655 = vst.msk [vmem:[#allocation2 + $0x298] sm:$0xff] %vm1030, %v5567
          %5656 = vst.msk [vmem:[#allocation2 + $0x2a0] sm:$0xff] %vm1030, %v5568
          %5657 = vst.msk [vmem:[#allocation2 + $0x2a8] sm:$0xff] %vm1030, %v5569
          %5658 = vst.msk [vmem:[#allocation2 + $0x2b0] sm:$0xff] %vm1030, %v5570
          %5659 = vst.msk [vmem:[#allocation2 + $0x2b8] sm:$0xff] %vm1030, %v5571
          %v5660 = vpack.c.bf16 %v5485, %v5484
          %v5661 = vpack.c.bf16 %v5487, %v5486
          %v5662 = vpack.c.bf16 %v5489, %v5488
          %v5663 = vpack.c.bf16 %v5491, %v5490
          %v5664 = vpack.c.bf16 %v5493, %v5492
          %v5665 = vpack.c.bf16 %v5495, %v5494
          %v5666 = vpack.c.bf16 %v5497, %v5496
          %v5667 = vpack.c.bf16 %v5499, %v5498
          %v5668 = vpack.c.bf16 %v5501, %v5500
          %v5669 = vpack.c.bf16 %v5503, %v5502
          %v5670 = vpack.c.bf16 %v5505, %v5504
          %v5671 = vpack.c.bf16 %v5507, %v5506
          %v5672 = vpack.c.bf16 %v5509, %v5508
          %v5673 = vpack.c.bf16 %v5511, %v5510
          %v5674 = vpack.c.bf16 %v5513, %v5512
          %v5675 = vpack.c.bf16 %v5515, %v5514
          %v5676 = vpack.c.bf16 %v5517, %v5516
          %v5677 = vpack.c.bf16 %v5519, %v5518
          %v5678 = vpack.c.bf16 %v5521, %v5520
          %v5679 = vpack.c.bf16 %v5523, %v5522
          %v5680 = vpack.c.bf16 %v5525, %v5524
          %v5681 = vpack.c.bf16 %v5527, %v5526
          %v5682 = vpack.c.bf16 %v5529, %v5528
          %v5683 = vpack.c.bf16 %v5531, %v5530
          %v5684 = vpack.c.bf16 %v5533, %v5532
          %v5685 = vpack.c.bf16 %v5535, %v5534
          %v5686 = vpack.c.bf16 %v5537, %v5536
          %v5687 = vpack.c.bf16 %v5539, %v5538
          %v5688 = vpack.c.bf16 %v5541, %v5540
          %v5689 = vpack.c.bf16 %v5543, %v5542
          %v5690 = vpack.c.bf16 %v5545, %v5544
          %v5691 = vpack.c.bf16 %v5547, %v5546
          %v5692 = vpack.c.bf16 %v5549, %v5548
          %v5693 = vpack.c.bf16 %v5551, %v5550
          %v5694 = vpack.c.bf16 %v5553, %v5552
          %v5695 = vpack.c.bf16 %v5555, %v5554
          %v5696 = vpack.c.bf16 %v5557, %v5556
          %v5697 = vpack.c.bf16 %v5559, %v5558
          %v5698 = vpack.c.bf16 %v5561, %v5560
          %v5699 = vpack.c.bf16 %v5563, %v5562
          %v5700 = vpack.c.bf16 %v5565, %v5564
          %v5701 = vpack.c.bf16 %v5567, %v5566
          %v5702 = vpack.c.bf16 %v5569, %v5568
          %v5703 = vpack.c.bf16 %v5571, %v5570
          %5704 = vst.msk [vmem:[#allocation3] sm:$0xff] %vm1030, %v5660
          %5705 = vst.msk [vmem:[#allocation3 + $0x8] sm:$0xff] %vm1030, %v5661
          %5706 = vst.msk [vmem:[#allocation3 + $0x10] sm:$0xff] %vm1030, %v5662
          %5707 = vst.msk [vmem:[#allocation3 + $0x18] sm:$0xff] %vm1030, %v5663
          %5708 = vst.msk [vmem:[#allocation3 + $0x20] sm:$0xff] %vm1030, %v5664
          %5709 = vst.msk [vmem:[#allocation3 + $0x28] sm:$0xff] %vm1030, %v5665
          %5710 = vst.msk [vmem:[#allocation3 + $0x30] sm:$0xff] %vm1030, %v5666
          %5711 = vst.msk [vmem:[#allocation3 + $0x38] sm:$0xff] %vm1030, %v5667
          %5712 = vst.msk [vmem:[#allocation3 + $0x40] sm:$0xff] %vm1030, %v5668
          %5713 = vst.msk [vmem:[#allocation3 + $0x48] sm:$0xff] %vm1030, %v5669
          %5714 = vst.msk [vmem:[#allocation3 + $0x50] sm:$0xff] %vm1030, %v5670
          %5715 = vst.msk [vmem:[#allocation3 + $0x58] sm:$0xff] %vm1030, %v5671
          %5716 = vst.msk [vmem:[#allocation3 + $0x60] sm:$0xff] %vm1030, %v5672
          %5717 = vst.msk [vmem:[#allocation3 + $0x68] sm:$0xff] %vm1030, %v5673
          %5718 = vst.msk [vmem:[#allocation3 + $0x70] sm:$0xff] %vm1030, %v5674
          %5719 = vst.msk [vmem:[#allocation3 + $0x78] sm:$0xff] %vm1030, %v5675
          %5720 = vst.msk [vmem:[#allocation3 + $0x80] sm:$0xff] %vm1030, %v5676
          %5721 = vst.msk [vmem:[#allocation3 + $0x88] sm:$0xff] %vm1030, %v5677
          %5722 = vst.msk [vmem:[#allocation3 + $0x90] sm:$0xff] %vm1030, %v5678
          %5723 = vst.msk [vmem:[#allocation3 + $0x98] sm:$0xff] %vm1030, %v5679
          %5724 = vst.msk [vmem:[#allocation3 + $0xa0] sm:$0xff] %vm1030, %v5680
          %5725 = vst.msk [vmem:[#allocation3 + $0xa8] sm:$0xff] %vm1030, %v5681
          %5726 = vst.msk [vmem:[#allocation3 + $0xb0] sm:$0xff] %vm1030, %v5682
          %5727 = vst.msk [vmem:[#allocation3 + $0xb8] sm:$0xff] %vm1030, %v5683
          %5728 = vst.msk [vmem:[#allocation3 + $0xc0] sm:$0xff] %vm1030, %v5684
          %5729 = vst.msk [vmem:[#allocation3 + $0xc8] sm:$0xff] %vm1030, %v5685
          %5730 = vst.msk [vmem:[#allocation3 + $0xd0] sm:$0xff] %vm1030, %v5686
          %5731 = vst.msk [vmem:[#allocation3 + $0xd8] sm:$0xff] %vm1030, %v5687
          %5732 = vst.msk [vmem:[#allocation3 + $0xe0] sm:$0xff] %vm1030, %v5688
          %5733 = vst.msk [vmem:[#allocation3 + $0xe8] sm:$0xff] %vm1030, %v5689
          %5734 = vst.msk [vmem:[#allocation3 + $0xf0] sm:$0xff] %vm1030, %v5690
          %5735 = vst.msk [vmem:[#allocation3 + $0xf8] sm:$0xff] %vm1030, %v5691
          %5736 = vst.msk [vmem:[#allocation3 + $0x100] sm:$0xff] %vm1030, %v5692
          %5737 = vst.msk [vmem:[#allocation3 + $0x108] sm:$0xff] %vm1030, %v5693
          %5738 = vst.msk [vmem:[#allocation3 + $0x110] sm:$0xff] %vm1030, %v5694
          %5739 = vst.msk [vmem:[#allocation3 + $0x118] sm:$0xff] %vm1030, %v5695
          %5740 = vst.msk [vmem:[#allocation3 + $0x120] sm:$0xff] %vm1030, %v5696
          %5741 = vst.msk [vmem:[#allocation3 + $0x128] sm:$0xff] %vm1030, %v5697
          %5742 = vst.msk [vmem:[#allocation3 + $0x130] sm:$0xff] %vm1030, %v5698
          %5743 = vst.msk [vmem:[#allocation3 + $0x138] sm:$0xff] %vm1030, %v5699
          %5744 = vst.msk [vmem:[#allocation3 + $0x140] sm:$0xff] %vm1030, %v5700
          %5745 = vst.msk [vmem:[#allocation3 + $0x148] sm:$0xff] %vm1030, %v5701
          %5746 = vst.msk [vmem:[#allocation3 + $0x150] sm:$0xff] %vm1030, %v5702
          %5747 = vst.msk [vmem:[#allocation3 + $0x158] sm:$0xff] %vm1030, %v5703
          %v5748 = vld [vmem:[#allocation5] sm:$0xff]
          %v5749 = vld [vmem:[#allocation5 + $0x8] sm:$0xff]
          %v5750 = vld [vmem:[#allocation5 + $0x10] sm:$0xff]
          %v5751 = vld [vmem:[#allocation5 + $0x18] sm:$0xff]
          %v5752 = vld [vmem:[#allocation5 + $0x20] sm:$0xff]
          %v5753 = vld [vmem:[#allocation5 + $0x28] sm:$0xff]
          %v5754 = vld [vmem:[#allocation5 + $0x30] sm:$0xff]
          %v5755 = vld [vmem:[#allocation5 + $0x38] sm:$0xff]
          %v5756 = vld [vmem:[#allocation5 + $0x40] sm:$0xff]
          %v5757 = vld [vmem:[#allocation5 + $0x48] sm:$0xff]
          %v5758 = vld [vmem:[#allocation5 + $0x50] sm:$0xff]
          %v5759 = vld [vmem:[#allocation5 + $0x58] sm:$0xff]
          %v5760 = vld [vmem:[#allocation5 + $0x60] sm:$0xff]
          %v5761 = vld [vmem:[#allocation5 + $0x68] sm:$0xff]
          %v5762 = vld [vmem:[#allocation5 + $0x70] sm:$0xff]
          %v5763 = vld [vmem:[#allocation5 + $0x78] sm:$0xff]
          %v5764 = vld [vmem:[#allocation5 + $0x80] sm:$0xff]
          %v5765 = vld [vmem:[#allocation5 + $0x88] sm:$0xff]
          %v5766 = vld [vmem:[#allocation5 + $0x90] sm:$0xff]
          %v5767 = vld [vmem:[#allocation5 + $0x98] sm:$0xff]
          %v5768 = vld [vmem:[#allocation5 + $0xa0] sm:$0xff]
          %v5769 = vld [vmem:[#allocation5 + $0xa8] sm:$0xff]
          %v5770 = vld [vmem:[#allocation5 + $0xb0] sm:$0xff]
          %v5771 = vld [vmem:[#allocation5 + $0xb8] sm:$0xff]
          %v5772 = vld [vmem:[#allocation5 + $0xc0] sm:$0xff]
          %v5773 = vld [vmem:[#allocation5 + $0xc8] sm:$0xff]
          %v5774 = vld [vmem:[#allocation5 + $0xd0] sm:$0xff]
          %v5775 = vld [vmem:[#allocation5 + $0xd8] sm:$0xff]
          %v5776 = vld [vmem:[#allocation5 + $0xe0] sm:$0xff]
          %v5777 = vld [vmem:[#allocation5 + $0xe8] sm:$0xff]
          %v5778 = vld [vmem:[#allocation5 + $0xf0] sm:$0xff]
          %v5779 = vld [vmem:[#allocation5 + $0xf8] sm:$0xff]
          %v5780 = vld [vmem:[#allocation5 + $0x100] sm:$0xff]
          %v5781 = vld [vmem:[#allocation5 + $0x108] sm:$0xff]
          %v5782 = vld [vmem:[#allocation5 + $0x110] sm:$0xff]
          %v5783 = vld [vmem:[#allocation5 + $0x118] sm:$0xff]
          %v5784 = vld [vmem:[#allocation5 + $0x120] sm:$0xff]
          %v5785 = vld [vmem:[#allocation5 + $0x128] sm:$0xff]
          %v5786 = vld [vmem:[#allocation5 + $0x130] sm:$0xff]
          %v5787 = vld [vmem:[#allocation5 + $0x138] sm:$0xff]
          %v5788 = vld [vmem:[#allocation5 + $0x140] sm:$0xff]
          %v5789 = vld [vmem:[#allocation5 + $0x148] sm:$0xff]
          %v5790 = vld [vmem:[#allocation5 + $0x150] sm:$0xff]
          %v5791 = vld [vmem:[#allocation5 + $0x158] sm:$0xff]
          %v5792 = vld [vmem:[#allocation5 + $0x160] sm:$0xff]
          %v5793 = vld [vmem:[#allocation5 + $0x168] sm:$0xff]
          %v5794 = vld [vmem:[#allocation5 + $0x170] sm:$0xff]
          %v5795 = vld [vmem:[#allocation5 + $0x178] sm:$0xff]
          %v5796 = vld [vmem:[#allocation5 + $0x180] sm:$0xff]
          %v5797 = vld [vmem:[#allocation5 + $0x188] sm:$0xff]
          %v5798 = vld [vmem:[#allocation5 + $0x190] sm:$0xff]
          %v5799 = vld [vmem:[#allocation5 + $0x198] sm:$0xff]
          %v5800 = vld [vmem:[#allocation5 + $0x1a0] sm:$0xff]
          %v5801 = vld [vmem:[#allocation5 + $0x1a8] sm:$0xff]
          %v5802 = vld [vmem:[#allocation5 + $0x1b0] sm:$0xff]
          %v5803 = vld [vmem:[#allocation5 + $0x1b8] sm:$0xff]
          %v5804 = vld [vmem:[#allocation5 + $0x1c0] sm:$0xff]
          %v5805 = vld [vmem:[#allocation5 + $0x1c8] sm:$0xff]
          %v5806 = vld [vmem:[#allocation5 + $0x1d0] sm:$0xff]
          %v5807 = vld [vmem:[#allocation5 + $0x1d8] sm:$0xff]
          %v5808 = vld [vmem:[#allocation5 + $0x1e0] sm:$0xff]
          %v5809 = vld [vmem:[#allocation5 + $0x1e8] sm:$0xff]
          %v5810 = vld [vmem:[#allocation5 + $0x1f0] sm:$0xff]
          %v5811 = vld [vmem:[#allocation5 + $0x1f8] sm:$0xff]
          %v5812 = vld [vmem:[#allocation5 + $0x200] sm:$0xff]
          %v5813 = vld [vmem:[#allocation5 + $0x208] sm:$0xff]
          %v5814 = vld [vmem:[#allocation5 + $0x210] sm:$0xff]
          %v5815 = vld [vmem:[#allocation5 + $0x218] sm:$0xff]
          %v5816 = vld [vmem:[#allocation5 + $0x220] sm:$0xff]
          %v5817 = vld [vmem:[#allocation5 + $0x228] sm:$0xff]
          %v5818 = vld [vmem:[#allocation5 + $0x230] sm:$0xff]
          %v5819 = vld [vmem:[#allocation5 + $0x238] sm:$0xff]
          %v5820 = vld [vmem:[#allocation5 + $0x240] sm:$0xff]
          %v5821 = vld [vmem:[#allocation5 + $0x248] sm:$0xff]
          %v5822 = vld [vmem:[#allocation5 + $0x250] sm:$0xff]
          %v5823 = vld [vmem:[#allocation5 + $0x258] sm:$0xff]
          %v5824 = vld [vmem:[#allocation5 + $0x260] sm:$0xff]
          %v5825 = vld [vmem:[#allocation5 + $0x268] sm:$0xff]
          %v5826 = vld [vmem:[#allocation5 + $0x270] sm:$0xff]
          %v5827 = vld [vmem:[#allocation5 + $0x278] sm:$0xff]
          %v5828 = vld [vmem:[#allocation5 + $0x280] sm:$0xff]
          %v5829 = vld [vmem:[#allocation5 + $0x288] sm:$0xff]
          %v5830 = vld [vmem:[#allocation5 + $0x290] sm:$0xff]
          %v5831 = vld [vmem:[#allocation5 + $0x298] sm:$0xff]
          %v5832 = vld [vmem:[#allocation5 + $0x2a0] sm:$0xff]
          %v5833 = vld [vmem:[#allocation5 + $0x2a8] sm:$0xff]
          %v5834 = vld [vmem:[#allocation5 + $0x2b0] sm:$0xff]
          %v5835 = vld [vmem:[#allocation5 + $0x2b8] sm:$0xff]
          %v5836 = vadd.f32 %v5748, %v5484
          %v5837 = vadd.f32 %v5749, %v5485
          %v5838 = vadd.f32 %v5750, %v5486
          %v5839 = vadd.f32 %v5751, %v5487
          %v5840 = vadd.f32 %v5752, %v5488
          %v5841 = vadd.f32 %v5753, %v5489
          %v5842 = vadd.f32 %v5754, %v5490
          %v5843 = vadd.f32 %v5755, %v5491
          %v5844 = vadd.f32 %v5756, %v5492
          %v5845 = vadd.f32 %v5757, %v5493
          %v5846 = vadd.f32 %v5758, %v5494
          %v5847 = vadd.f32 %v5759, %v5495
          %v5848 = vadd.f32 %v5760, %v5496
          %v5849 = vadd.f32 %v5761, %v5497
          %v5850 = vadd.f32 %v5762, %v5498
          %v5851 = vadd.f32 %v5763, %v5499
          %v5852 = vadd.f32 %v5764, %v5500
          %v5853 = vadd.f32 %v5765, %v5501
          %v5854 = vadd.f32 %v5766, %v5502
          %v5855 = vadd.f32 %v5767, %v5503
          %v5856 = vadd.f32 %v5768, %v5504
          %v5857 = vadd.f32 %v5769, %v5505
          %v5858 = vadd.f32 %v5770, %v5506
          %v5859 = vadd.f32 %v5771, %v5507
          %v5860 = vadd.f32 %v5772, %v5508
          %v5861 = vadd.f32 %v5773, %v5509
          %v5862 = vadd.f32 %v5774, %v5510
          %v5863 = vadd.f32 %v5775, %v5511
          %v5864 = vadd.f32 %v5776, %v5512
          %v5865 = vadd.f32 %v5777, %v5513
          %v5866 = vadd.f32 %v5778, %v5514
          %v5867 = vadd.f32 %v5779, %v5515
          %v5868 = vadd.f32 %v5780, %v5516
          %v5869 = vadd.f32 %v5781, %v5517
          %v5870 = vadd.f32 %v5782, %v5518
          %v5871 = vadd.f32 %v5783, %v5519
          %v5872 = vadd.f32 %v5784, %v5520
          %v5873 = vadd.f32 %v5785, %v5521
          %v5874 = vadd.f32 %v5786, %v5522
          %v5875 = vadd.f32 %v5787, %v5523
          %v5876 = vadd.f32 %v5788, %v5524
          %v5877 = vadd.f32 %v5789, %v5525
          %v5878 = vadd.f32 %v5790, %v5526
          %v5879 = vadd.f32 %v5791, %v5527
          %v5880 = vadd.f32 %v5792, %v5528
          %v5881 = vadd.f32 %v5793, %v5529
          %v5882 = vadd.f32 %v5794, %v5530
          %v5883 = vadd.f32 %v5795, %v5531
          %v5884 = vadd.f32 %v5796, %v5532
          %v5885 = vadd.f32 %v5797, %v5533
          %v5886 = vadd.f32 %v5798, %v5534
          %v5887 = vadd.f32 %v5799, %v5535
          %v5888 = vadd.f32 %v5800, %v5536
          %v5889 = vadd.f32 %v5801, %v5537
          %v5890 = vadd.f32 %v5802, %v5538
          %v5891 = vadd.f32 %v5803, %v5539
          %v5892 = vadd.f32 %v5804, %v5540
          %v5893 = vadd.f32 %v5805, %v5541
          %v5894 = vadd.f32 %v5806, %v5542
          %v5895 = vadd.f32 %v5807, %v5543
          %v5896 = vadd.f32 %v5808, %v5544
          %v5897 = vadd.f32 %v5809, %v5545
          %v5898 = vadd.f32 %v5810, %v5546
          %v5899 = vadd.f32 %v5811, %v5547
          %v5900 = vadd.f32 %v5812, %v5548
          %v5901 = vadd.f32 %v5813, %v5549
          %v5902 = vadd.f32 %v5814, %v5550
          %v5903 = vadd.f32 %v5815, %v5551
          %v5904 = vadd.f32 %v5816, %v5552
          %v5905 = vadd.f32 %v5817, %v5553
          %v5906 = vadd.f32 %v5818, %v5554
          %v5907 = vadd.f32 %v5819, %v5555
          %v5908 = vadd.f32 %v5820, %v5556
          %v5909 = vadd.f32 %v5821, %v5557
          %v5910 = vadd.f32 %v5822, %v5558
          %v5911 = vadd.f32 %v5823, %v5559
          %v5912 = vadd.f32 %v5824, %v5560
          %v5913 = vadd.f32 %v5825, %v5561
          %v5914 = vadd.f32 %v5826, %v5562
          %v5915 = vadd.f32 %v5827, %v5563
          %v5916 = vadd.f32 %v5828, %v5564
          %v5917 = vadd.f32 %v5829, %v5565
          %v5918 = vadd.f32 %v5830, %v5566
          %v5919 = vadd.f32 %v5831, %v5567
          %v5920 = vadd.f32 %v5832, %v5568
          %v5921 = vadd.f32 %v5833, %v5569
          %v5922 = vadd.f32 %v5834, %v5570
          %v5923 = vadd.f32 %v5835, %v5571
          %5924 = vst.msk [vmem:[#allocation5] sm:$0xff] %vm1030, %v5836
          %5925 = vst.msk [vmem:[#allocation5 + $0x8] sm:$0xff] %vm1030, %v5837
          %5926 = vst.msk [vmem:[#allocation5 + $0x10] sm:$0xff] %vm1030, %v5838
          %5927 = vst.msk [vmem:[#allocation5 + $0x18] sm:$0xff] %vm1030, %v5839
          %5928 = vst.msk [vmem:[#allocation5 + $0x20] sm:$0xff] %vm1030, %v5840
          %5929 = vst.msk [vmem:[#allocation5 + $0x28] sm:$0xff] %vm1030, %v5841
          %5930 = vst.msk [vmem:[#allocation5 + $0x30] sm:$0xff] %vm1030, %v5842
          %5931 = vst.msk [vmem:[#allocation5 + $0x38] sm:$0xff] %vm1030, %v5843
          %5932 = vst.msk [vmem:[#allocation5 + $0x40] sm:$0xff] %vm1030, %v5844
          %5933 = vst.msk [vmem:[#allocation5 + $0x48] sm:$0xff] %vm1030, %v5845
          %5934 = vst.msk [vmem:[#allocation5 + $0x50] sm:$0xff] %vm1030, %v5846
          %5935 = vst.msk [vmem:[#allocation5 + $0x58] sm:$0xff] %vm1030, %v5847
          %5936 = vst.msk [vmem:[#allocation5 + $0x60] sm:$0xff] %vm1030, %v5848
          %5937 = vst.msk [vmem:[#allocation5 + $0x68] sm:$0xff] %vm1030, %v5849
          %5938 = vst.msk [vmem:[#allocation5 + $0x70] sm:$0xff] %vm1030, %v5850
          %5939 = vst.msk [vmem:[#allocation5 + $0x78] sm:$0xff] %vm1030, %v5851
          %5940 = vst.msk [vmem:[#allocation5 + $0x80] sm:$0xff] %vm1030, %v5852
          %5941 = vst.msk [vmem:[#allocation5 + $0x88] sm:$0xff] %vm1030, %v5853
          %5942 = vst.msk [vmem:[#allocation5 + $0x90] sm:$0xff] %vm1030, %v5854
          %5943 = vst.msk [vmem:[#allocation5 + $0x98] sm:$0xff] %vm1030, %v5855
          %5944 = vst.msk [vmem:[#allocation5 + $0xa0] sm:$0xff] %vm1030, %v5856
          %5945 = vst.msk [vmem:[#allocation5 + $0xa8] sm:$0xff] %vm1030, %v5857
          %5946 = vst.msk [vmem:[#allocation5 + $0xb0] sm:$0xff] %vm1030, %v5858
          %5947 = vst.msk [vmem:[#allocation5 + $0xb8] sm:$0xff] %vm1030, %v5859
          %5948 = vst.msk [vmem:[#allocation5 + $0xc0] sm:$0xff] %vm1030, %v5860
          %5949 = vst.msk [vmem:[#allocation5 + $0xc8] sm:$0xff] %vm1030, %v5861
          %5950 = vst.msk [vmem:[#allocation5 + $0xd0] sm:$0xff] %vm1030, %v5862
          %5951 = vst.msk [vmem:[#allocation5 + $0xd8] sm:$0xff] %vm1030, %v5863
          %5952 = vst.msk [vmem:[#allocation5 + $0xe0] sm:$0xff] %vm1030, %v5864
          %5953 = vst.msk [vmem:[#allocation5 + $0xe8] sm:$0xff] %vm1030, %v5865
          %5954 = vst.msk [vmem:[#allocation5 + $0xf0] sm:$0xff] %vm1030, %v5866
          %5955 = vst.msk [vmem:[#allocation5 + $0xf8] sm:$0xff] %vm1030, %v5867
          %5956 = vst.msk [vmem:[#allocation5 + $0x100] sm:$0xff] %vm1030, %v5868
          %5957 = vst.msk [vmem:[#allocation5 + $0x108] sm:$0xff] %vm1030, %v5869
          %5958 = vst.msk [vmem:[#allocation5 + $0x110] sm:$0xff] %vm1030, %v5870
          %5959 = vst.msk [vmem:[#allocation5 + $0x118] sm:$0xff] %vm1030, %v5871
          %5960 = vst.msk [vmem:[#allocation5 + $0x120] sm:$0xff] %vm1030, %v5872
          %5961 = vst.msk [vmem:[#allocation5 + $0x128] sm:$0xff] %vm1030, %v5873
          %5962 = vst.msk [vmem:[#allocation5 + $0x130] sm:$0xff] %vm1030, %v5874
          %5963 = vst.msk [vmem:[#allocation5 + $0x138] sm:$0xff] %vm1030, %v5875
          %5964 = vst.msk [vmem:[#allocation5 + $0x140] sm:$0xff] %vm1030, %v5876
          %5965 = vst.msk [vmem:[#allocation5 + $0x148] sm:$0xff] %vm1030, %v5877
          %5966 = vst.msk [vmem:[#allocation5 + $0x150] sm:$0xff] %vm1030, %v5878
          %5967 = vst.msk [vmem:[#allocation5 + $0x158] sm:$0xff] %vm1030, %v5879
          %5968 = vst.msk [vmem:[#allocation5 + $0x160] sm:$0xff] %vm1030, %v5880
          %5969 = vst.msk [vmem:[#allocation5 + $0x168] sm:$0xff] %vm1030, %v5881
          %5970 = vst.msk [vmem:[#allocation5 + $0x170] sm:$0xff] %vm1030, %v5882
          %5971 = vst.msk [vmem:[#allocation5 + $0x178] sm:$0xff] %vm1030, %v5883
          %5972 = vst.msk [vmem:[#allocation5 + $0x180] sm:$0xff] %vm1030, %v5884
          %5973 = vst.msk [vmem:[#allocation5 + $0x188] sm:$0xff] %vm1030, %v5885
          %5974 = vst.msk [vmem:[#allocation5 + $0x190] sm:$0xff] %vm1030, %v5886
          %5975 = vst.msk [vmem:[#allocation5 + $0x198] sm:$0xff] %vm1030, %v5887
          %5976 = vst.msk [vmem:[#allocation5 + $0x1a0] sm:$0xff] %vm1030, %v5888
          %5977 = vst.msk [vmem:[#allocation5 + $0x1a8] sm:$0xff] %vm1030, %v5889
          %5978 = vst.msk [vmem:[#allocation5 + $0x1b0] sm:$0xff] %vm1030, %v5890
          %5979 = vst.msk [vmem:[#allocation5 + $0x1b8] sm:$0xff] %vm1030, %v5891
          %5980 = vst.msk [vmem:[#allocation5 + $0x1c0] sm:$0xff] %vm1030, %v5892
          %5981 = vst.msk [vmem:[#allocation5 + $0x1c8] sm:$0xff] %vm1030, %v5893
          %5982 = vst.msk [vmem:[#allocation5 + $0x1d0] sm:$0xff] %vm1030, %v5894
          %5983 = vst.msk [vmem:[#allocation5 + $0x1d8] sm:$0xff] %vm1030, %v5895
          %5984 = vst.msk [vmem:[#allocation5 + $0x1e0] sm:$0xff] %vm1030, %v5896
          %5985 = vst.msk [vmem:[#allocation5 + $0x1e8] sm:$0xff] %vm1030, %v5897
          %5986 = vst.msk [vmem:[#allocation5 + $0x1f0] sm:$0xff] %vm1030, %v5898
          %5987 = vst.msk [vmem:[#allocation5 + $0x1f8] sm:$0xff] %vm1030, %v5899
          %5988 = vst.msk [vmem:[#allocation5 + $0x200] sm:$0xff] %vm1030, %v5900
          %5989 = vst.msk [vmem:[#allocation5 + $0x208] sm:$0xff] %vm1030, %v5901
          %5990 = vst.msk [vmem:[#allocation5 + $0x210] sm:$0xff] %vm1030, %v5902
          %5991 = vst.msk [vmem:[#allocation5 + $0x218] sm:$0xff] %vm1030, %v5903
          %5992 = vst.msk [vmem:[#allocation5 + $0x220] sm:$0xff] %vm1030, %v5904
          %5993 = vst.msk [vmem:[#allocation5 + $0x228] sm:$0xff] %vm1030, %v5905
          %5994 = vst.msk [vmem:[#allocation5 + $0x230] sm:$0xff] %vm1030, %v5906
          %5995 = vst.msk [vmem:[#allocation5 + $0x238] sm:$0xff] %vm1030, %v5907
          %5996 = vst.msk [vmem:[#allocation5 + $0x240] sm:$0xff] %vm1030, %v5908
          %5997 = vst.msk [vmem:[#allocation5 + $0x248] sm:$0xff] %vm1030, %v5909
          %5998 = vst.msk [vmem:[#allocation5 + $0x250] sm:$0xff] %vm1030, %v5910
          %5999 = vst.msk [vmem:[#allocation5 + $0x258] sm:$0xff] %vm1030, %v5911
          %6000 = vst.msk [vmem:[#allocation5 + $0x260] sm:$0xff] %vm1030, %v5912
          %6001 = vst.msk [vmem:[#allocation5 + $0x268] sm:$0xff] %vm1030, %v5913
          %6002 = vst.msk [vmem:[#allocation5 + $0x270] sm:$0xff] %vm1030, %v5914
          %6003 = vst.msk [vmem:[#allocation5 + $0x278] sm:$0xff] %vm1030, %v5915
          %6004 = vst.msk [vmem:[#allocation5 + $0x280] sm:$0xff] %vm1030, %v5916
          %6005 = vst.msk [vmem:[#allocation5 + $0x288] sm:$0xff] %vm1030, %v5917
          %6006 = vst.msk [vmem:[#allocation5 + $0x290] sm:$0xff] %vm1030, %v5918
          %6007 = vst.msk [vmem:[#allocation5 + $0x298] sm:$0xff] %vm1030, %v5919
          %6008 = vst.msk [vmem:[#allocation5 + $0x2a0] sm:$0xff] %vm1030, %v5920
          %6009 = vst.msk [vmem:[#allocation5 + $0x2a8] sm:$0xff] %vm1030, %v5921
          %6010 = vst.msk [vmem:[#allocation5 + $0x2b0] sm:$0xff] %vm1030, %v5922
          %6011 = vst.msk [vmem:[#allocation5 + $0x2b8] sm:$0xff] %vm1030, %v5923
          %v6012 = vld [vmem:[#allocation6] sm:$0xff]
          %v6013 = vld [vmem:[#allocation6 + $0x8] sm:$0xff]
          %v6014 = vld [vmem:[#allocation6 + $0x10] sm:$0xff]
          %v6015 = vld [vmem:[#allocation6 + $0x18] sm:$0xff]
          %v6016 = vld [vmem:[#allocation6 + $0x20] sm:$0xff]
          %v6017 = vld [vmem:[#allocation6 + $0x28] sm:$0xff]
          %v6018 = vld [vmem:[#allocation6 + $0x30] sm:$0xff]
          %v6019 = vld [vmem:[#allocation6 + $0x38] sm:$0xff]
          %v6020 = vld [vmem:[#allocation6 + $0x40] sm:$0xff]
          %v6021 = vld [vmem:[#allocation6 + $0x48] sm:$0xff]
          %v6022 = vld [vmem:[#allocation6 + $0x50] sm:$0xff]
          %v6023 = vld [vmem:[#allocation6 + $0x58] sm:$0xff]
          %v6024 = vld [vmem:[#allocation6 + $0x60] sm:$0xff]
          %v6025 = vld [vmem:[#allocation6 + $0x68] sm:$0xff]
          %v6026 = vld [vmem:[#allocation6 + $0x70] sm:$0xff]
          %v6027 = vld [vmem:[#allocation6 + $0x78] sm:$0xff]
          %v6028 = vld [vmem:[#allocation6 + $0x80] sm:$0xff]
          %v6029 = vld [vmem:[#allocation6 + $0x88] sm:$0xff]
          %v6030 = vld [vmem:[#allocation6 + $0x90] sm:$0xff]
          %v6031 = vld [vmem:[#allocation6 + $0x98] sm:$0xff]
          %v6032 = vld [vmem:[#allocation6 + $0xa0] sm:$0xff]
          %v6033 = vld [vmem:[#allocation6 + $0xa8] sm:$0xff]
          %v6034 = vld [vmem:[#allocation6 + $0xb0] sm:$0xff]
          %v6035 = vld [vmem:[#allocation6 + $0xb8] sm:$0xff]
          %v6036 = vld [vmem:[#allocation6 + $0xc0] sm:$0xff]
          %v6037 = vld [vmem:[#allocation6 + $0xc8] sm:$0xff]
          %v6038 = vld [vmem:[#allocation6 + $0xd0] sm:$0xff]
          %v6039 = vld [vmem:[#allocation6 + $0xd8] sm:$0xff]
          %v6040 = vld [vmem:[#allocation6 + $0xe0] sm:$0xff]
          %v6041 = vld [vmem:[#allocation6 + $0xe8] sm:$0xff]
          %v6042 = vld [vmem:[#allocation6 + $0xf0] sm:$0xff]
          %v6043 = vld [vmem:[#allocation6 + $0xf8] sm:$0xff]
          %v6044 = vld [vmem:[#allocation6 + $0x100] sm:$0xff]
          %v6045 = vld [vmem:[#allocation6 + $0x108] sm:$0xff]
          %v6046 = vld [vmem:[#allocation6 + $0x110] sm:$0xff]
          %v6047 = vld [vmem:[#allocation6 + $0x118] sm:$0xff]
          %v6048 = vld [vmem:[#allocation6 + $0x120] sm:$0xff]
          %v6049 = vld [vmem:[#allocation6 + $0x128] sm:$0xff]
          %v6050 = vld [vmem:[#allocation6 + $0x130] sm:$0xff]
          %v6051 = vld [vmem:[#allocation6 + $0x138] sm:$0xff]
          %v6052 = vld [vmem:[#allocation6 + $0x140] sm:$0xff]
          %v6053 = vld [vmem:[#allocation6 + $0x148] sm:$0xff]
          %v6054 = vld [vmem:[#allocation6 + $0x150] sm:$0xff]
          %v6055 = vld [vmem:[#allocation6 + $0x158] sm:$0xff]
          %v6056 = vld [vmem:[#allocation6 + $0x160] sm:$0xff]
          %v6057 = vld [vmem:[#allocation6 + $0x168] sm:$0xff]
          %v6058 = vld [vmem:[#allocation6 + $0x170] sm:$0xff]
          %v6059 = vld [vmem:[#allocation6 + $0x178] sm:$0xff]
          %v6060 = vld [vmem:[#allocation6 + $0x180] sm:$0xff]
          %v6061 = vld [vmem:[#allocation6 + $0x188] sm:$0xff]
          %v6062 = vld [vmem:[#allocation6 + $0x190] sm:$0xff]
          %v6063 = vld [vmem:[#allocation6 + $0x198] sm:$0xff]
          %v6064 = vld [vmem:[#allocation6 + $0x1a0] sm:$0xff]
          %v6065 = vld [vmem:[#allocation6 + $0x1a8] sm:$0xff]
          %v6066 = vld [vmem:[#allocation6 + $0x1b0] sm:$0xff]
          %v6067 = vld [vmem:[#allocation6 + $0x1b8] sm:$0xff]
          %v6068 = vld [vmem:[#allocation6 + $0x1c0] sm:$0xff]
          %v6069 = vld [vmem:[#allocation6 + $0x1c8] sm:$0xff]
          %v6070 = vld [vmem:[#allocation6 + $0x1d0] sm:$0xff]
          %v6071 = vld [vmem:[#allocation6 + $0x1d8] sm:$0xff]
          %v6072 = vld [vmem:[#allocation6 + $0x1e0] sm:$0xff]
          %v6073 = vld [vmem:[#allocation6 + $0x1e8] sm:$0xff]
          %v6074 = vld [vmem:[#allocation6 + $0x1f0] sm:$0xff]
          %v6075 = vld [vmem:[#allocation6 + $0x1f8] sm:$0xff]
          %v6076 = vld [vmem:[#allocation6 + $0x200] sm:$0xff]
          %v6077 = vld [vmem:[#allocation6 + $0x208] sm:$0xff]
          %v6078 = vld [vmem:[#allocation6 + $0x210] sm:$0xff]
          %v6079 = vld [vmem:[#allocation6 + $0x218] sm:$0xff]
          %v6080 = vld [vmem:[#allocation6 + $0x220] sm:$0xff]
          %v6081 = vld [vmem:[#allocation6 + $0x228] sm:$0xff]
          %v6082 = vld [vmem:[#allocation6 + $0x230] sm:$0xff]
          %v6083 = vld [vmem:[#allocation6 + $0x238] sm:$0xff]
          %v6084 = vld [vmem:[#allocation6 + $0x240] sm:$0xff]
          %v6085 = vld [vmem:[#allocation6 + $0x248] sm:$0xff]
          %v6086 = vld [vmem:[#allocation6 + $0x250] sm:$0xff]
          %v6087 = vld [vmem:[#allocation6 + $0x258] sm:$0xff]
          %v6088 = vld [vmem:[#allocation6 + $0x260] sm:$0xff]
          %v6089 = vld [vmem:[#allocation6 + $0x268] sm:$0xff]
          %v6090 = vld [vmem:[#allocation6 + $0x270] sm:$0xff]
          %v6091 = vld [vmem:[#allocation6 + $0x278] sm:$0xff]
          %v6092 = vld [vmem:[#allocation6 + $0x280] sm:$0xff]
          %v6093 = vld [vmem:[#allocation6 + $0x288] sm:$0xff]
          %v6094 = vld [vmem:[#allocation6 + $0x290] sm:$0xff]
          %v6095 = vld [vmem:[#allocation6 + $0x298] sm:$0xff]
          %v6096 = vld [vmem:[#allocation6 + $0x2a0] sm:$0xff]
          %v6097 = vld [vmem:[#allocation6 + $0x2a8] sm:$0xff]
          %v6098 = vld [vmem:[#allocation6 + $0x2b0] sm:$0xff]
          %v6099 = vld [vmem:[#allocation6 + $0x2b8] sm:$0xff]
          %v6100 = vadd.f32 %v6012, %v1392
          %v6101 = vadd.f32 %v6013, %v1393
          %v6102 = vadd.f32 %v6014, %v1394
          %v6103 = vadd.f32 %v6015, %v1395
          %v6104 = vadd.f32 %v6016, %v1396
          %v6105 = vadd.f32 %v6017, %v1397
          %v6106 = vadd.f32 %v6018, %v1398
          %v6107 = vadd.f32 %v6019, %v1399
          %v6108 = vadd.f32 %v6020, %v1400
          %v6109 = vadd.f32 %v6021, %v1401
          %v6110 = vadd.f32 %v6022, %v1402
          %v6111 = vadd.f32 %v6023, %v1403
          %v6112 = vadd.f32 %v6024, %v1404
          %v6113 = vadd.f32 %v6025, %v1405
          %v6114 = vadd.f32 %v6026, %v1406
          %v6115 = vadd.f32 %v6027, %v1407
          %v6116 = vadd.f32 %v6028, %v1408
          %v6117 = vadd.f32 %v6029, %v1409
          %v6118 = vadd.f32 %v6030, %v1410
          %v6119 = vadd.f32 %v6031, %v1411
          %v6120 = vadd.f32 %v6032, %v1412
          %v6121 = vadd.f32 %v6033, %v1413
          %v6122 = vadd.f32 %v6034, %v1414
          %v6123 = vadd.f32 %v6035, %v1415
          %v6124 = vadd.f32 %v6036, %v1416
          %v6125 = vadd.f32 %v6037, %v1417
          %v6126 = vadd.f32 %v6038, %v1418
          %v6127 = vadd.f32 %v6039, %v1419
          %v6128 = vadd.f32 %v6040, %v1420
          %v6129 = vadd.f32 %v6041, %v1421
          %v6130 = vadd.f32 %v6042, %v1422
          %v6131 = vadd.f32 %v6043, %v1423
          %v6132 = vadd.f32 %v6044, %v1424
          %v6133 = vadd.f32 %v6045, %v1425
          %v6134 = vadd.f32 %v6046, %v1426
          %v6135 = vadd.f32 %v6047, %v1427
          %v6136 = vadd.f32 %v6048, %v1428
          %v6137 = vadd.f32 %v6049, %v1429
          %v6138 = vadd.f32 %v6050, %v1430
          %v6139 = vadd.f32 %v6051, %v1431
          %v6140 = vadd.f32 %v6052, %v1432
          %v6141 = vadd.f32 %v6053, %v1433
          %v6142 = vadd.f32 %v6054, %v1434
          %v6143 = vadd.f32 %v6055, %v1435
          %v6144 = vadd.f32 %v6056, %v1436
          %v6145 = vadd.f32 %v6057, %v1437
          %v6146 = vadd.f32 %v6058, %v1438
          %v6147 = vadd.f32 %v6059, %v1439
          %v6148 = vadd.f32 %v6060, %v1440
          %v6149 = vadd.f32 %v6061, %v1441
          %v6150 = vadd.f32 %v6062, %v1442
          %v6151 = vadd.f32 %v6063, %v1443
          %v6152 = vadd.f32 %v6064, %v1444
          %v6153 = vadd.f32 %v6065, %v1445
          %v6154 = vadd.f32 %v6066, %v1446
          %v6155 = vadd.f32 %v6067, %v1447
          %v6156 = vadd.f32 %v6068, %v1448
          %v6157 = vadd.f32 %v6069, %v1449
          %v6158 = vadd.f32 %v6070, %v1450
          %v6159 = vadd.f32 %v6071, %v1451
          %v6160 = vadd.f32 %v6072, %v1452
          %v6161 = vadd.f32 %v6073, %v1453
          %v6162 = vadd.f32 %v6074, %v1454
          %v6163 = vadd.f32 %v6075, %v1455
          %v6164 = vadd.f32 %v6076, %v1456
          %v6165 = vadd.f32 %v6077, %v1457
          %v6166 = vadd.f32 %v6078, %v1458
          %v6167 = vadd.f32 %v6079, %v1459
          %v6168 = vadd.f32 %v6080, %v1460
          %v6169 = vadd.f32 %v6081, %v1461
          %v6170 = vadd.f32 %v6082, %v1462
          %v6171 = vadd.f32 %v6083, %v1463
          %v6172 = vadd.f32 %v6084, %v1464
          %v6173 = vadd.f32 %v6085, %v1465
          %v6174 = vadd.f32 %v6086, %v1466
          %v6175 = vadd.f32 %v6087, %v1467
          %v6176 = vadd.f32 %v6088, %v1468
          %v6177 = vadd.f32 %v6089, %v1469
          %v6178 = vadd.f32 %v6090, %v1470
          %v6179 = vadd.f32 %v6091, %v1471
          %v6180 = vadd.f32 %v6092, %v1472
          %v6181 = vadd.f32 %v6093, %v1473
          %v6182 = vadd.f32 %v6094, %v1474
          %v6183 = vadd.f32 %v6095, %v1475
          %v6184 = vadd.f32 %v6096, %v1476
          %v6185 = vadd.f32 %v6097, %v1477
          %v6186 = vadd.f32 %v6098, %v1478
          %v6187 = vadd.f32 %v6099, %v1479
          %6188 = vst.msk [vmem:[#allocation6] sm:$0xff] %vm1030, %v6100
          %6189 = vst.msk [vmem:[#allocation6 + $0x8] sm:$0xff] %vm1030, %v6101
          %6190 = vst.msk [vmem:[#allocation6 + $0x10] sm:$0xff] %vm1030, %v6102
          %6191 = vst.msk [vmem:[#allocation6 + $0x18] sm:$0xff] %vm1030, %v6103
          %6192 = vst.msk [vmem:[#allocation6 + $0x20] sm:$0xff] %vm1030, %v6104
          %6193 = vst.msk [vmem:[#allocation6 + $0x28] sm:$0xff] %vm1030, %v6105
          %6194 = vst.msk [vmem:[#allocation6 + $0x30] sm:$0xff] %vm1030, %v6106
          %6195 = vst.msk [vmem:[#allocation6 + $0x38] sm:$0xff] %vm1030, %v6107
          %6196 = vst.msk [vmem:[#allocation6 + $0x40] sm:$0xff] %vm1030, %v6108
          %6197 = vst.msk [vmem:[#allocation6 + $0x48] sm:$0xff] %vm1030, %v6109
          %6198 = vst.msk [vmem:[#allocation6 + $0x50] sm:$0xff] %vm1030, %v6110
          %6199 = vst.msk [vmem:[#allocation6 + $0x58] sm:$0xff] %vm1030, %v6111
          %6200 = vst.msk [vmem:[#allocation6 + $0x60] sm:$0xff] %vm1030, %v6112
          %6201 = vst.msk [vmem:[#allocation6 + $0x68] sm:$0xff] %vm1030, %v6113
          %6202 = vst.msk [vmem:[#allocation6 + $0x70] sm:$0xff] %vm1030, %v6114
          %6203 = vst.msk [vmem:[#allocation6 + $0x78] sm:$0xff] %vm1030, %v6115
          %6204 = vst.msk [vmem:[#allocation6 + $0x80] sm:$0xff] %vm1030, %v6116
          %6205 = vst.msk [vmem:[#allocation6 + $0x88] sm:$0xff] %vm1030, %v6117
          %6206 = vst.msk [vmem:[#allocation6 + $0x90] sm:$0xff] %vm1030, %v6118
          %6207 = vst.msk [vmem:[#allocation6 + $0x98] sm:$0xff] %vm1030, %v6119
          %6208 = vst.msk [vmem:[#allocation6 + $0xa0] sm:$0xff] %vm1030, %v6120
          %6209 = vst.msk [vmem:[#allocation6 + $0xa8] sm:$0xff] %vm1030, %v6121
          %6210 = vst.msk [vmem:[#allocation6 + $0xb0] sm:$0xff] %vm1030, %v6122
          %6211 = vst.msk [vmem:[#allocation6 + $0xb8] sm:$0xff] %vm1030, %v6123
          %6212 = vst.msk [vmem:[#allocation6 + $0xc0] sm:$0xff] %vm1030, %v6124
          %6213 = vst.msk [vmem:[#allocation6 + $0xc8] sm:$0xff] %vm1030, %v6125
          %6214 = vst.msk [vmem:[#allocation6 + $0xd0] sm:$0xff] %vm1030, %v6126
          %6215 = vst.msk [vmem:[#allocation6 + $0xd8] sm:$0xff] %vm1030, %v6127
          %6216 = vst.msk [vmem:[#allocation6 + $0xe0] sm:$0xff] %vm1030, %v6128
          %6217 = vst.msk [vmem:[#allocation6 + $0xe8] sm:$0xff] %vm1030, %v6129
          %6218 = vst.msk [vmem:[#allocation6 + $0xf0] sm:$0xff] %vm1030, %v6130
          %6219 = vst.msk [vmem:[#allocation6 + $0xf8] sm:$0xff] %vm1030, %v6131
          %6220 = vst.msk [vmem:[#allocation6 + $0x100] sm:$0xff] %vm1030, %v6132
          %6221 = vst.msk [vmem:[#allocation6 + $0x108] sm:$0xff] %vm1030, %v6133
          %6222 = vst.msk [vmem:[#allocation6 + $0x110] sm:$0xff] %vm1030, %v6134
          %6223 = vst.msk [vmem:[#allocation6 + $0x118] sm:$0xff] %vm1030, %v6135
          %6224 = vst.msk [vmem:[#allocation6 + $0x120] sm:$0xff] %vm1030, %v6136
          %6225 = vst.msk [vmem:[#allocation6 + $0x128] sm:$0xff] %vm1030, %v6137
          %6226 = vst.msk [vmem:[#allocation6 + $0x130] sm:$0xff] %vm1030, %v6138
          %6227 = vst.msk [vmem:[#allocation6 + $0x138] sm:$0xff] %vm1030, %v6139
          %6228 = vst.msk [vmem:[#allocation6 + $0x140] sm:$0xff] %vm1030, %v6140
          %6229 = vst.msk [vmem:[#allocation6 + $0x148] sm:$0xff] %vm1030, %v6141
          %6230 = vst.msk [vmem:[#allocation6 + $0x150] sm:$0xff] %vm1030, %v6142
          %6231 = vst.msk [vmem:[#allocation6 + $0x158] sm:$0xff] %vm1030, %v6143
          %6232 = vst.msk [vmem:[#allocation6 + $0x160] sm:$0xff] %vm1030, %v6144
          %6233 = vst.msk [vmem:[#allocation6 + $0x168] sm:$0xff] %vm1030, %v6145
          %6234 = vst.msk [vmem:[#allocation6 + $0x170] sm:$0xff] %vm1030, %v6146
          %6235 = vst.msk [vmem:[#allocation6 + $0x178] sm:$0xff] %vm1030, %v6147
          %6236 = vst.msk [vmem:[#allocation6 + $0x180] sm:$0xff] %vm1030, %v6148
          %6237 = vst.msk [vmem:[#allocation6 + $0x188] sm:$0xff] %vm1030, %v6149
          %6238 = vst.msk [vmem:[#allocation6 + $0x190] sm:$0xff] %vm1030, %v6150
          %6239 = vst.msk [vmem:[#allocation6 + $0x198] sm:$0xff] %vm1030, %v6151
          %6240 = vst.msk [vmem:[#allocation6 + $0x1a0] sm:$0xff] %vm1030, %v6152
          %6241 = vst.msk [vmem:[#allocation6 + $0x1a8] sm:$0xff] %vm1030, %v6153
          %6242 = vst.msk [vmem:[#allocation6 + $0x1b0] sm:$0xff] %vm1030, %v6154
          %6243 = vst.msk [vmem:[#allocation6 + $0x1b8] sm:$0xff] %vm1030, %v6155
          %6244 = vst.msk [vmem:[#allocation6 + $0x1c0] sm:$0xff] %vm1030, %v6156
          %6245 = vst.msk [vmem:[#allocation6 + $0x1c8] sm:$0xff] %vm1030, %v6157
          %6246 = vst.msk [vmem:[#allocation6 + $0x1d0] sm:$0xff] %vm1030, %v6158
          %6247 = vst.msk [vmem:[#allocation6 + $0x1d8] sm:$0xff] %vm1030, %v6159
          %6248 = vst.msk [vmem:[#allocation6 + $0x1e0] sm:$0xff] %vm1030, %v6160
          %6249 = vst.msk [vmem:[#allocation6 + $0x1e8] sm:$0xff] %vm1030, %v6161
          %6250 = vst.msk [vmem:[#allocation6 + $0x1f0] sm:$0xff] %vm1030, %v6162
          %6251 = vst.msk [vmem:[#allocation6 + $0x1f8] sm:$0xff] %vm1030, %v6163
          %6252 = vst.msk [vmem:[#allocation6 + $0x200] sm:$0xff] %vm1030, %v6164
          %6253 = vst.msk [vmem:[#allocation6 + $0x208] sm:$0xff] %vm1030, %v6165
          %6254 = vst.msk [vmem:[#allocation6 + $0x210] sm:$0xff] %vm1030, %v6166
          %6255 = vst.msk [vmem:[#allocation6 + $0x218] sm:$0xff] %vm1030, %v6167
          %6256 = vst.msk [vmem:[#allocation6 + $0x220] sm:$0xff] %vm1030, %v6168
          %6257 = vst.msk [vmem:[#allocation6 + $0x228] sm:$0xff] %vm1030, %v6169
          %6258 = vst.msk [vmem:[#allocation6 + $0x230] sm:$0xff] %vm1030, %v6170
          %6259 = vst.msk [vmem:[#allocation6 + $0x238] sm:$0xff] %vm1030, %v6171
          %6260 = vst.msk [vmem:[#allocation6 + $0x240] sm:$0xff] %vm1030, %v6172
          %6261 = vst.msk [vmem:[#allocation6 + $0x248] sm:$0xff] %vm1030, %v6173
          %6262 = vst.msk [vmem:[#allocation6 + $0x250] sm:$0xff] %vm1030, %v6174
          %6263 = vst.msk [vmem:[#allocation6 + $0x258] sm:$0xff] %vm1030, %v6175
          %6264 = vst.msk [vmem:[#allocation6 + $0x260] sm:$0xff] %vm1030, %v6176
          %6265 = vst.msk [vmem:[#allocation6 + $0x268] sm:$0xff] %vm1030, %v6177
          %6266 = vst.msk [vmem:[#allocation6 + $0x270] sm:$0xff] %vm1030, %v6178
          %6267 = vst.msk [vmem:[#allocation6 + $0x278] sm:$0xff] %vm1030, %v6179
          %6268 = vst.msk [vmem:[#allocation6 + $0x280] sm:$0xff] %vm1030, %v6180
          %6269 = vst.msk [vmem:[#allocation6 + $0x288] sm:$0xff] %vm1030, %v6181
          %6270 = vst.msk [vmem:[#allocation6 + $0x290] sm:$0xff] %vm1030, %v6182
          %6271 = vst.msk [vmem:[#allocation6 + $0x298] sm:$0xff] %vm1030, %v6183
          %6272 = vst.msk [vmem:[#allocation6 + $0x2a0] sm:$0xff] %vm1030, %v6184
          %6273 = vst.msk [vmem:[#allocation6 + $0x2a8] sm:$0xff] %vm1030, %v6185
          %6274 = vst.msk [vmem:[#allocation6 + $0x2b0] sm:$0xff] %vm1030, %v6186
          %6275 = vst.msk [vmem:[#allocation6 + $0x2b8] sm:$0xff] %vm1030, %v6187
        $region90: #{intentgcl_forward.1} parent=73 // pred_fallthru
          _
        %p6276 = scmp.eq.s32.totalorder %s21, 1
        %p6277 = pnand %p6276, %p1386
        %p6278 = pneg %p6277
        %p6279 = pnand %p6278, %p1387
        %p6280 = pneg %p6279
        // Predicated region
        $region91: #{intentgcl_forward.1} parent=73 // pred_check
          _
        $region92: #{intentgcl_forward.1} parent=73 // pred_check_branch
          %6282 = sbr.rel (%p6279) target = $region94
        $region93: #{intentgcl_forward.1} parent=73 // pred_region
          %v6283 = vld [vmem:[#allocation5] sm:$0xff]
          %v6284 = vld [vmem:[#allocation5 + $0x8] sm:$0xff]
          %v6285 = vld [vmem:[#allocation5 + $0x10] sm:$0xff]
          %v6286 = vld [vmem:[#allocation5 + $0x18] sm:$0xff]
          %v6287 = vld [vmem:[#allocation5 + $0x20] sm:$0xff]
          %v6288 = vld [vmem:[#allocation5 + $0x28] sm:$0xff]
          %v6289 = vld [vmem:[#allocation5 + $0x30] sm:$0xff]
          %v6290 = vld [vmem:[#allocation5 + $0x38] sm:$0xff]
          %v6291 = vld [vmem:[#allocation5 + $0x40] sm:$0xff]
          %v6292 = vld [vmem:[#allocation5 + $0x48] sm:$0xff]
          %v6293 = vld [vmem:[#allocation5 + $0x50] sm:$0xff]
          %v6294 = vld [vmem:[#allocation5 + $0x58] sm:$0xff]
          %v6295 = vld [vmem:[#allocation5 + $0x60] sm:$0xff]
          %v6296 = vld [vmem:[#allocation5 + $0x68] sm:$0xff]
          %v6297 = vld [vmem:[#allocation5 + $0x70] sm:$0xff]
          %v6298 = vld [vmem:[#allocation5 + $0x78] sm:$0xff]
          %v6299 = vld [vmem:[#allocation5 + $0x80] sm:$0xff]
          %v6300 = vld [vmem:[#allocation5 + $0x88] sm:$0xff]
          %v6301 = vld [vmem:[#allocation5 + $0x90] sm:$0xff]
          %v6302 = vld [vmem:[#allocation5 + $0x98] sm:$0xff]
          %v6303 = vld [vmem:[#allocation5 + $0xa0] sm:$0xff]
          %v6304 = vld [vmem:[#allocation5 + $0xa8] sm:$0xff]
          %v6305 = vld [vmem:[#allocation5 + $0xb0] sm:$0xff]
          %v6306 = vld [vmem:[#allocation5 + $0xb8] sm:$0xff]
          %v6307 = vld [vmem:[#allocation5 + $0xc0] sm:$0xff]
          %v6308 = vld [vmem:[#allocation5 + $0xc8] sm:$0xff]
          %v6309 = vld [vmem:[#allocation5 + $0xd0] sm:$0xff]
          %v6310 = vld [vmem:[#allocation5 + $0xd8] sm:$0xff]
          %v6311 = vld [vmem:[#allocation5 + $0xe0] sm:$0xff]
          %v6312 = vld [vmem:[#allocation5 + $0xe8] sm:$0xff]
          %v6313 = vld [vmem:[#allocation5 + $0xf0] sm:$0xff]
          %v6314 = vld [vmem:[#allocation5 + $0xf8] sm:$0xff]
          %v6315 = vld [vmem:[#allocation5 + $0x100] sm:$0xff]
          %v6316 = vld [vmem:[#allocation5 + $0x108] sm:$0xff]
          %v6317 = vld [vmem:[#allocation5 + $0x110] sm:$0xff]
          %v6318 = vld [vmem:[#allocation5 + $0x118] sm:$0xff]
          %v6319 = vld [vmem:[#allocation5 + $0x120] sm:$0xff]
          %v6320 = vld [vmem:[#allocation5 + $0x128] sm:$0xff]
          %v6321 = vld [vmem:[#allocation5 + $0x130] sm:$0xff]
          %v6322 = vld [vmem:[#allocation5 + $0x138] sm:$0xff]
          %v6323 = vld [vmem:[#allocation5 + $0x140] sm:$0xff]
          %v6324 = vld [vmem:[#allocation5 + $0x148] sm:$0xff]
          %v6325 = vld [vmem:[#allocation5 + $0x150] sm:$0xff]
          %v6326 = vld [vmem:[#allocation5 + $0x158] sm:$0xff]
          %v6327 = vld [vmem:[#allocation5 + $0x160] sm:$0xff]
          %v6328 = vld [vmem:[#allocation5 + $0x168] sm:$0xff]
          %v6329 = vld [vmem:[#allocation5 + $0x170] sm:$0xff]
          %v6330 = vld [vmem:[#allocation5 + $0x178] sm:$0xff]
          %v6331 = vld [vmem:[#allocation5 + $0x180] sm:$0xff]
          %v6332 = vld [vmem:[#allocation5 + $0x188] sm:$0xff]
          %v6333 = vld [vmem:[#allocation5 + $0x190] sm:$0xff]
          %v6334 = vld [vmem:[#allocation5 + $0x198] sm:$0xff]
          %v6335 = vld [vmem:[#allocation5 + $0x1a0] sm:$0xff]
          %v6336 = vld [vmem:[#allocation5 + $0x1a8] sm:$0xff]
          %v6337 = vld [vmem:[#allocation5 + $0x1b0] sm:$0xff]
          %v6338 = vld [vmem:[#allocation5 + $0x1b8] sm:$0xff]
          %v6339 = vld [vmem:[#allocation5 + $0x1c0] sm:$0xff]
          %v6340 = vld [vmem:[#allocation5 + $0x1c8] sm:$0xff]
          %v6341 = vld [vmem:[#allocation5 + $0x1d0] sm:$0xff]
          %v6342 = vld [vmem:[#allocation5 + $0x1d8] sm:$0xff]
          %v6343 = vld [vmem:[#allocation5 + $0x1e0] sm:$0xff]
          %v6344 = vld [vmem:[#allocation5 + $0x1e8] sm:$0xff]
          %v6345 = vld [vmem:[#allocation5 + $0x1f0] sm:$0xff]
          %v6346 = vld [vmem:[#allocation5 + $0x1f8] sm:$0xff]
          %v6347 = vld [vmem:[#allocation5 + $0x200] sm:$0xff]
          %v6348 = vld [vmem:[#allocation5 + $0x208] sm:$0xff]
          %v6349 = vld [vmem:[#allocation5 + $0x210] sm:$0xff]
          %v6350 = vld [vmem:[#allocation5 + $0x218] sm:$0xff]
          %v6351 = vld [vmem:[#allocation5 + $0x220] sm:$0xff]
          %v6352 = vld [vmem:[#allocation5 + $0x228] sm:$0xff]
          %v6353 = vld [vmem:[#allocation5 + $0x230] sm:$0xff]
          %v6354 = vld [vmem:[#allocation5 + $0x238] sm:$0xff]
          %v6355 = vld [vmem:[#allocation5 + $0x240] sm:$0xff]
          %v6356 = vld [vmem:[#allocation5 + $0x248] sm:$0xff]
          %v6357 = vld [vmem:[#allocation5 + $0x250] sm:$0xff]
          %v6358 = vld [vmem:[#allocation5 + $0x258] sm:$0xff]
          %v6359 = vld [vmem:[#allocation5 + $0x260] sm:$0xff]
          %v6360 = vld [vmem:[#allocation5 + $0x268] sm:$0xff]
          %v6361 = vld [vmem:[#allocation5 + $0x270] sm:$0xff]
          %v6362 = vld [vmem:[#allocation5 + $0x278] sm:$0xff]
          %v6363 = vld [vmem:[#allocation5 + $0x280] sm:$0xff]
          %v6364 = vld [vmem:[#allocation5 + $0x288] sm:$0xff]
          %v6365 = vld [vmem:[#allocation5 + $0x290] sm:$0xff]
          %v6366 = vld [vmem:[#allocation5 + $0x298] sm:$0xff]
          %v6367 = vld [vmem:[#allocation5 + $0x2a0] sm:$0xff]
          %v6368 = vld [vmem:[#allocation5 + $0x2a8] sm:$0xff]
          %v6369 = vld [vmem:[#allocation5 + $0x2b0] sm:$0xff]
          %v6370 = vld [vmem:[#allocation5 + $0x2b8] sm:$0xff]
          %v6371 = vmul.f32 %v6283, 0.33333334
          %v6372 = vmul.f32 %v6284, 0.33333334
          %v6373 = vmul.f32 %v6285, 0.33333334
          %v6374 = vmul.f32 %v6286, 0.33333334
          %v6375 = vmul.f32 %v6287, 0.33333334
          %v6376 = vmul.f32 %v6288, 0.33333334
          %v6377 = vmul.f32 %v6289, 0.33333334
          %v6378 = vmul.f32 %v6290, 0.33333334
          %v6379 = vmul.f32 %v6291, 0.33333334
          %v6380 = vmul.f32 %v6292, 0.33333334
          %v6381 = vmul.f32 %v6293, 0.33333334
          %v6382 = vmul.f32 %v6294, 0.33333334
          %v6383 = vmul.f32 %v6295, 0.33333334
          %v6384 = vmul.f32 %v6296, 0.33333334
          %v6385 = vmul.f32 %v6297, 0.33333334
          %v6386 = vmul.f32 %v6298, 0.33333334
          %v6387 = vmul.f32 %v6299, 0.33333334
          %v6388 = vmul.f32 %v6300, 0.33333334
          %v6389 = vmul.f32 %v6301, 0.33333334
          %v6390 = vmul.f32 %v6302, 0.33333334
          %v6391 = vmul.f32 %v6303, 0.33333334
          %v6392 = vmul.f32 %v6304, 0.33333334
          %v6393 = vmul.f32 %v6305, 0.33333334
          %v6394 = vmul.f32 %v6306, 0.33333334
          %v6395 = vmul.f32 %v6307, 0.33333334
          %v6396 = vmul.f32 %v6308, 0.33333334
          %v6397 = vmul.f32 %v6309, 0.33333334
          %v6398 = vmul.f32 %v6310, 0.33333334
          %v6399 = vmul.f32 %v6311, 0.33333334
          %v6400 = vmul.f32 %v6312, 0.33333334
          %v6401 = vmul.f32 %v6313, 0.33333334
          %v6402 = vmul.f32 %v6314, 0.33333334
          %v6403 = vmul.f32 %v6315, 0.33333334
          %v6404 = vmul.f32 %v6316, 0.33333334
          %v6405 = vmul.f32 %v6317, 0.33333334
          %v6406 = vmul.f32 %v6318, 0.33333334
          %v6407 = vmul.f32 %v6319, 0.33333334
          %v6408 = vmul.f32 %v6320, 0.33333334
          %v6409 = vmul.f32 %v6321, 0.33333334
          %v6410 = vmul.f32 %v6322, 0.33333334
          %v6411 = vmul.f32 %v6323, 0.33333334
          %v6412 = vmul.f32 %v6324, 0.33333334
          %v6413 = vmul.f32 %v6325, 0.33333334
          %v6414 = vmul.f32 %v6326, 0.33333334
          %v6415 = vmul.f32 %v6327, 0.33333334
          %v6416 = vmul.f32 %v6328, 0.33333334
          %v6417 = vmul.f32 %v6329, 0.33333334
          %v6418 = vmul.f32 %v6330, 0.33333334
          %v6419 = vmul.f32 %v6331, 0.33333334
          %v6420 = vmul.f32 %v6332, 0.33333334
          %v6421 = vmul.f32 %v6333, 0.33333334
          %v6422 = vmul.f32 %v6334, 0.33333334
          %v6423 = vmul.f32 %v6335, 0.33333334
          %v6424 = vmul.f32 %v6336, 0.33333334
          %v6425 = vmul.f32 %v6337, 0.33333334
          %v6426 = vmul.f32 %v6338, 0.33333334
          %v6427 = vmul.f32 %v6339, 0.33333334
          %v6428 = vmul.f32 %v6340, 0.33333334
          %v6429 = vmul.f32 %v6341, 0.33333334
          %v6430 = vmul.f32 %v6342, 0.33333334
          %v6431 = vmul.f32 %v6343, 0.33333334
          %v6432 = vmul.f32 %v6344, 0.33333334
          %v6433 = vmul.f32 %v6345, 0.33333334
          %v6434 = vmul.f32 %v6346, 0.33333334
          %v6435 = vmul.f32 %v6347, 0.33333334
          %v6436 = vmul.f32 %v6348, 0.33333334
          %v6437 = vmul.f32 %v6349, 0.33333334
          %v6438 = vmul.f32 %v6350, 0.33333334
          %v6439 = vmul.f32 %v6351, 0.33333334
          %v6440 = vmul.f32 %v6352, 0.33333334
          %v6441 = vmul.f32 %v6353, 0.33333334
          %v6442 = vmul.f32 %v6354, 0.33333334
          %v6443 = vmul.f32 %v6355, 0.33333334
          %v6444 = vmul.f32 %v6356, 0.33333334
          %v6445 = vmul.f32 %v6357, 0.33333334
          %v6446 = vmul.f32 %v6358, 0.33333334
          %v6447 = vmul.f32 %v6359, 0.33333334
          %v6448 = vmul.f32 %v6360, 0.33333334
          %v6449 = vmul.f32 %v6361, 0.33333334
          %v6450 = vmul.f32 %v6362, 0.33333334
          %v6451 = vmul.f32 %v6363, 0.33333334
          %v6452 = vmul.f32 %v6364, 0.33333334
          %v6453 = vmul.f32 %v6365, 0.33333334
          %v6454 = vmul.f32 %v6366, 0.33333334
          %v6455 = vmul.f32 %v6367, 0.33333334
          %v6456 = vmul.f32 %v6368, 0.33333334
          %v6457 = vmul.f32 %v6369, 0.33333334
          %v6458 = vmul.f32 %v6370, 0.33333334
          %v6459 = vld [vmem:[#allocation6] sm:$0xff]
          %v6460 = vld [vmem:[#allocation6 + $0x8] sm:$0xff]
          %v6461 = vld [vmem:[#allocation6 + $0x10] sm:$0xff]
          %v6462 = vld [vmem:[#allocation6 + $0x18] sm:$0xff]
          %v6463 = vld [vmem:[#allocation6 + $0x20] sm:$0xff]
          %v6464 = vld [vmem:[#allocation6 + $0x28] sm:$0xff]
          %v6465 = vld [vmem:[#allocation6 + $0x30] sm:$0xff]
          %v6466 = vld [vmem:[#allocation6 + $0x38] sm:$0xff]
          %v6467 = vld [vmem:[#allocation6 + $0x40] sm:$0xff]
          %v6468 = vld [vmem:[#allocation6 + $0x48] sm:$0xff]
          %v6469 = vld [vmem:[#allocation6 + $0x50] sm:$0xff]
          %v6470 = vld [vmem:[#allocation6 + $0x58] sm:$0xff]
          %v6471 = vld [vmem:[#allocation6 + $0x60] sm:$0xff]
          %v6472 = vld [vmem:[#allocation6 + $0x68] sm:$0xff]
          %v6473 = vld [vmem:[#allocation6 + $0x70] sm:$0xff]
          %v6474 = vld [vmem:[#allocation6 + $0x78] sm:$0xff]
          %v6475 = vld [vmem:[#allocation6 + $0x80] sm:$0xff]
          %v6476 = vld [vmem:[#allocation6 + $0x88] sm:$0xff]
          %v6477 = vld [vmem:[#allocation6 + $0x90] sm:$0xff]
          %v6478 = vld [vmem:[#allocation6 + $0x98] sm:$0xff]
          %v6479 = vld [vmem:[#allocation6 + $0xa0] sm:$0xff]
          %v6480 = vld [vmem:[#allocation6 + $0xa8] sm:$0xff]
          %v6481 = vld [vmem:[#allocation6 + $0xb0] sm:$0xff]
          %v6482 = vld [vmem:[#allocation6 + $0xb8] sm:$0xff]
          %v6483 = vld [vmem:[#allocation6 + $0xc0] sm:$0xff]
          %v6484 = vld [vmem:[#allocation6 + $0xc8] sm:$0xff]
          %v6485 = vld [vmem:[#allocation6 + $0xd0] sm:$0xff]
          %v6486 = vld [vmem:[#allocation6 + $0xd8] sm:$0xff]
          %v6487 = vld [vmem:[#allocation6 + $0xe0] sm:$0xff]
          %v6488 = vld [vmem:[#allocation6 + $0xe8] sm:$0xff]
          %v6489 = vld [vmem:[#allocation6 + $0xf0] sm:$0xff]
          %v6490 = vld [vmem:[#allocation6 + $0xf8] sm:$0xff]
          %v6491 = vld [vmem:[#allocation6 + $0x100] sm:$0xff]
          %v6492 = vld [vmem:[#allocation6 + $0x108] sm:$0xff]
          %v6493 = vld [vmem:[#allocation6 + $0x110] sm:$0xff]
          %v6494 = vld [vmem:[#allocation6 + $0x118] sm:$0xff]
          %v6495 = vld [vmem:[#allocation6 + $0x120] sm:$0xff]
          %v6496 = vld [vmem:[#allocation6 + $0x128] sm:$0xff]
          %v6497 = vld [vmem:[#allocation6 + $0x130] sm:$0xff]
          %v6498 = vld [vmem:[#allocation6 + $0x138] sm:$0xff]
          %v6499 = vld [vmem:[#allocation6 + $0x140] sm:$0xff]
          %v6500 = vld [vmem:[#allocation6 + $0x148] sm:$0xff]
          %v6501 = vld [vmem:[#allocation6 + $0x150] sm:$0xff]
          %v6502 = vld [vmem:[#allocation6 + $0x158] sm:$0xff]
          %v6503 = vld [vmem:[#allocation6 + $0x160] sm:$0xff]
          %v6504 = vld [vmem:[#allocation6 + $0x168] sm:$0xff]
          %v6505 = vld [vmem:[#allocation6 + $0x170] sm:$0xff]
          %v6506 = vld [vmem:[#allocation6 + $0x178] sm:$0xff]
          %v6507 = vld [vmem:[#allocation6 + $0x180] sm:$0xff]
          %v6508 = vld [vmem:[#allocation6 + $0x188] sm:$0xff]
          %v6509 = vld [vmem:[#allocation6 + $0x190] sm:$0xff]
          %v6510 = vld [vmem:[#allocation6 + $0x198] sm:$0xff]
          %v6511 = vld [vmem:[#allocation6 + $0x1a0] sm:$0xff]
          %v6512 = vld [vmem:[#allocation6 + $0x1a8] sm:$0xff]
          %v6513 = vld [vmem:[#allocation6 + $0x1b0] sm:$0xff]
          %v6514 = vld [vmem:[#allocation6 + $0x1b8] sm:$0xff]
          %v6515 = vld [vmem:[#allocation6 + $0x1c0] sm:$0xff]
          %v6516 = vld [vmem:[#allocation6 + $0x1c8] sm:$0xff]
          %v6517 = vld [vmem:[#allocation6 + $0x1d0] sm:$0xff]
          %v6518 = vld [vmem:[#allocation6 + $0x1d8] sm:$0xff]
          %v6519 = vld [vmem:[#allocation6 + $0x1e0] sm:$0xff]
          %v6520 = vld [vmem:[#allocation6 + $0x1e8] sm:$0xff]
          %v6521 = vld [vmem:[#allocation6 + $0x1f0] sm:$0xff]
          %v6522 = vld [vmem:[#allocation6 + $0x1f8] sm:$0xff]
          %v6523 = vld [vmem:[#allocation6 + $0x200] sm:$0xff]
          %v6524 = vld [vmem:[#allocation6 + $0x208] sm:$0xff]
          %v6525 = vld [vmem:[#allocation6 + $0x210] sm:$0xff]
          %v6526 = vld [vmem:[#allocation6 + $0x218] sm:$0xff]
          %v6527 = vld [vmem:[#allocation6 + $0x220] sm:$0xff]
          %v6528 = vld [vmem:[#allocation6 + $0x228] sm:$0xff]
          %v6529 = vld [vmem:[#allocation6 + $0x230] sm:$0xff]
          %v6530 = vld [vmem:[#allocation6 + $0x238] sm:$0xff]
          %v6531 = vld [vmem:[#allocation6 + $0x240] sm:$0xff]
          %v6532 = vld [vmem:[#allocation6 + $0x248] sm:$0xff]
          %v6533 = vld [vmem:[#allocation6 + $0x250] sm:$0xff]
          %v6534 = vld [vmem:[#allocation6 + $0x258] sm:$0xff]
          %v6535 = vld [vmem:[#allocation6 + $0x260] sm:$0xff]
          %v6536 = vld [vmem:[#allocation6 + $0x268] sm:$0xff]
          %v6537 = vld [vmem:[#allocation6 + $0x270] sm:$0xff]
          %v6538 = vld [vmem:[#allocation6 + $0x278] sm:$0xff]
          %v6539 = vld [vmem:[#allocation6 + $0x280] sm:$0xff]
          %v6540 = vld [vmem:[#allocation6 + $0x288] sm:$0xff]
          %v6541 = vld [vmem:[#allocation6 + $0x290] sm:$0xff]
          %v6542 = vld [vmem:[#allocation6 + $0x298] sm:$0xff]
          %v6543 = vld [vmem:[#allocation6 + $0x2a0] sm:$0xff]
          %v6544 = vld [vmem:[#allocation6 + $0x2a8] sm:$0xff]
          %v6545 = vld [vmem:[#allocation6 + $0x2b0] sm:$0xff]
          %v6546 = vld [vmem:[#allocation6 + $0x2b8] sm:$0xff]
          %v6547 = vmul.f32 %v6459, 0.5
          %v6548 = vmul.f32 %v6460, 0.5
          %v6549 = vmul.f32 %v6461, 0.5
          %v6550 = vmul.f32 %v6462, 0.5
          %v6551 = vmul.f32 %v6463, 0.5
          %v6552 = vmul.f32 %v6464, 0.5
          %v6553 = vmul.f32 %v6465, 0.5
          %v6554 = vmul.f32 %v6466, 0.5
          %v6555 = vmul.f32 %v6467, 0.5
          %v6556 = vmul.f32 %v6468, 0.5
          %v6557 = vmul.f32 %v6469, 0.5
          %v6558 = vmul.f32 %v6470, 0.5
          %v6559 = vmul.f32 %v6471, 0.5
          %v6560 = vmul.f32 %v6472, 0.5
          %v6561 = vmul.f32 %v6473, 0.5
          %v6562 = vmul.f32 %v6474, 0.5
          %v6563 = vmul.f32 %v6475, 0.5
          %v6564 = vmul.f32 %v6476, 0.5
          %v6565 = vmul.f32 %v6477, 0.5
          %v6566 = vmul.f32 %v6478, 0.5
          %v6567 = vmul.f32 %v6479, 0.5
          %v6568 = vmul.f32 %v6480, 0.5
          %v6569 = vmul.f32 %v6481, 0.5
          %v6570 = vmul.f32 %v6482, 0.5
          %v6571 = vmul.f32 %v6483, 0.5
          %v6572 = vmul.f32 %v6484, 0.5
          %v6573 = vmul.f32 %v6485, 0.5
          %v6574 = vmul.f32 %v6486, 0.5
          %v6575 = vmul.f32 %v6487, 0.5
          %v6576 = vmul.f32 %v6488, 0.5
          %v6577 = vmul.f32 %v6489, 0.5
          %v6578 = vmul.f32 %v6490, 0.5
          %v6579 = vmul.f32 %v6491, 0.5
          %v6580 = vmul.f32 %v6492, 0.5
          %v6581 = vmul.f32 %v6493, 0.5
          %v6582 = vmul.f32 %v6494, 0.5
          %v6583 = vmul.f32 %v6495, 0.5
          %v6584 = vmul.f32 %v6496, 0.5
          %v6585 = vmul.f32 %v6497, 0.5
          %v6586 = vmul.f32 %v6498, 0.5
          %v6587 = vmul.f32 %v6499, 0.5
          %v6588 = vmul.f32 %v6500, 0.5
          %v6589 = vmul.f32 %v6501, 0.5
          %v6590 = vmul.f32 %v6502, 0.5
          %v6591 = vmul.f32 %v6503, 0.5
          %v6592 = vmul.f32 %v6504, 0.5
          %v6593 = vmul.f32 %v6505, 0.5
          %v6594 = vmul.f32 %v6506, 0.5
          %v6595 = vmul.f32 %v6507, 0.5
          %v6596 = vmul.f32 %v6508, 0.5
          %v6597 = vmul.f32 %v6509, 0.5
          %v6598 = vmul.f32 %v6510, 0.5
          %v6599 = vmul.f32 %v6511, 0.5
          %v6600 = vmul.f32 %v6512, 0.5
          %v6601 = vmul.f32 %v6513, 0.5
          %v6602 = vmul.f32 %v6514, 0.5
          %v6603 = vmul.f32 %v6515, 0.5
          %v6604 = vmul.f32 %v6516, 0.5
          %v6605 = vmul.f32 %v6517, 0.5
          %v6606 = vmul.f32 %v6518, 0.5
          %v6607 = vmul.f32 %v6519, 0.5
          %v6608 = vmul.f32 %v6520, 0.5
          %v6609 = vmul.f32 %v6521, 0.5
          %v6610 = vmul.f32 %v6522, 0.5
          %v6611 = vmul.f32 %v6523, 0.5
          %v6612 = vmul.f32 %v6524, 0.5
          %v6613 = vmul.f32 %v6525, 0.5
          %v6614 = vmul.f32 %v6526, 0.5
          %v6615 = vmul.f32 %v6527, 0.5
          %v6616 = vmul.f32 %v6528, 0.5
          %v6617 = vmul.f32 %v6529, 0.5
          %v6618 = vmul.f32 %v6530, 0.5
          %v6619 = vmul.f32 %v6531, 0.5
          %v6620 = vmul.f32 %v6532, 0.5
          %v6621 = vmul.f32 %v6533, 0.5
          %v6622 = vmul.f32 %v6534, 0.5
          %v6623 = vmul.f32 %v6535, 0.5
          %v6624 = vmul.f32 %v6536, 0.5
          %v6625 = vmul.f32 %v6537, 0.5
          %v6626 = vmul.f32 %v6538, 0.5
          %v6627 = vmul.f32 %v6539, 0.5
          %v6628 = vmul.f32 %v6540, 0.5
          %v6629 = vmul.f32 %v6541, 0.5
          %v6630 = vmul.f32 %v6542, 0.5
          %v6631 = vmul.f32 %v6543, 0.5
          %v6632 = vmul.f32 %v6544, 0.5
          %v6633 = vmul.f32 %v6545, 0.5
          %v6634 = vmul.f32 %v6546, 0.5
          %6723 = vrot.lane.b32.xlu0 %v6547, 32
          %v6724 = vpop.permute.xlu0 %6723
          %6725 = vrot.lane.b32.xlu0 %v6548, 32
          %v6726 = vpop.permute.xlu0 %6725
          %6727 = vrot.lane.b32.xlu0 %v6549, 32
          %v6728 = vpop.permute.xlu0 %6727
          %6729 = vrot.lane.b32.xlu0 %v6550, 32
          %v6730 = vpop.permute.xlu0 %6729
          %6731 = vrot.lane.b32.xlu0 %v6551, 32
          %v6732 = vpop.permute.xlu0 %6731
          %6733 = vrot.lane.b32.xlu0 %v6552, 32
          %v6734 = vpop.permute.xlu0 %6733
          %6735 = vrot.lane.b32.xlu0 %v6553, 32
          %v6736 = vpop.permute.xlu0 %6735
          %6737 = vrot.lane.b32.xlu0 %v6554, 32
          %v6738 = vpop.permute.xlu0 %6737
          %6739 = vrot.lane.b32.xlu0 %v6555, 32
          %v6740 = vpop.permute.xlu0 %6739
          %6741 = vrot.lane.b32.xlu0 %v6556, 32
          %v6742 = vpop.permute.xlu0 %6741
          %6743 = vrot.lane.b32.xlu0 %v6557, 32
          %v6744 = vpop.permute.xlu0 %6743
          %6745 = vrot.lane.b32.xlu0 %v6558, 32
          %v6746 = vpop.permute.xlu0 %6745
          %6747 = vrot.lane.b32.xlu0 %v6559, 32
          %v6748 = vpop.permute.xlu0 %6747
          %6749 = vrot.lane.b32.xlu0 %v6560, 32
          %v6750 = vpop.permute.xlu0 %6749
          %6751 = vrot.lane.b32.xlu0 %v6561, 32
          %v6752 = vpop.permute.xlu0 %6751
          %6753 = vrot.lane.b32.xlu0 %v6562, 32
          %v6754 = vpop.permute.xlu0 %6753
          %6755 = vrot.lane.b32.xlu0 %v6563, 32
          %v6756 = vpop.permute.xlu0 %6755
          %6757 = vrot.lane.b32.xlu0 %v6564, 32
          %v6758 = vpop.permute.xlu0 %6757
          %6759 = vrot.lane.b32.xlu0 %v6565, 32
          %v6760 = vpop.permute.xlu0 %6759
          %6761 = vrot.lane.b32.xlu0 %v6566, 32
          %v6762 = vpop.permute.xlu0 %6761
          %6763 = vrot.lane.b32.xlu0 %v6567, 32
          %v6764 = vpop.permute.xlu0 %6763
          %6765 = vrot.lane.b32.xlu0 %v6568, 32
          %v6766 = vpop.permute.xlu0 %6765
          %6767 = vrot.lane.b32.xlu0 %v6569, 32
          %v6768 = vpop.permute.xlu0 %6767
          %6769 = vrot.lane.b32.xlu0 %v6570, 32
          %v6770 = vpop.permute.xlu0 %6769
          %6771 = vrot.lane.b32.xlu0 %v6571, 32
          %v6772 = vpop.permute.xlu0 %6771
          %6773 = vrot.lane.b32.xlu0 %v6572, 32
          %v6774 = vpop.permute.xlu0 %6773
          %6775 = vrot.lane.b32.xlu0 %v6573, 32
          %v6776 = vpop.permute.xlu0 %6775
          %6777 = vrot.lane.b32.xlu0 %v6574, 32
          %v6778 = vpop.permute.xlu0 %6777
          %6779 = vrot.lane.b32.xlu0 %v6575, 32
          %v6780 = vpop.permute.xlu0 %6779
          %6781 = vrot.lane.b32.xlu0 %v6576, 32
          %v6782 = vpop.permute.xlu0 %6781
          %6783 = vrot.lane.b32.xlu0 %v6577, 32
          %v6784 = vpop.permute.xlu0 %6783
          %6785 = vrot.lane.b32.xlu0 %v6578, 32
          %v6786 = vpop.permute.xlu0 %6785
          %6787 = vrot.lane.b32.xlu0 %v6579, 32
          %v6788 = vpop.permute.xlu0 %6787
          %6789 = vrot.lane.b32.xlu0 %v6580, 32
          %v6790 = vpop.permute.xlu0 %6789
          %6791 = vrot.lane.b32.xlu0 %v6581, 32
          %v6792 = vpop.permute.xlu0 %6791
          %6793 = vrot.lane.b32.xlu0 %v6582, 32
          %v6794 = vpop.permute.xlu0 %6793
          %6795 = vrot.lane.b32.xlu0 %v6583, 32
          %v6796 = vpop.permute.xlu0 %6795
          %6797 = vrot.lane.b32.xlu0 %v6584, 32
          %v6798 = vpop.permute.xlu0 %6797
          %6799 = vrot.lane.b32.xlu0 %v6585, 32
          %v6800 = vpop.permute.xlu0 %6799
          %6801 = vrot.lane.b32.xlu0 %v6586, 32
          %v6802 = vpop.permute.xlu0 %6801
          %6803 = vrot.lane.b32.xlu0 %v6587, 32
          %v6804 = vpop.permute.xlu0 %6803
          %6805 = vrot.lane.b32.xlu0 %v6588, 32
          %v6806 = vpop.permute.xlu0 %6805
          %6807 = vrot.lane.b32.xlu0 %v6589, 32
          %v6808 = vpop.permute.xlu0 %6807
          %6809 = vrot.lane.b32.xlu0 %v6590, 32
          %v6810 = vpop.permute.xlu0 %6809
          %6811 = vrot.lane.b32.xlu0 %v6591, 32
          %v6812 = vpop.permute.xlu0 %6811
          %6813 = vrot.lane.b32.xlu0 %v6592, 32
          %v6814 = vpop.permute.xlu0 %6813
          %6815 = vrot.lane.b32.xlu0 %v6593, 32
          %v6816 = vpop.permute.xlu0 %6815
          %6817 = vrot.lane.b32.xlu0 %v6594, 32
          %v6818 = vpop.permute.xlu0 %6817
          %6819 = vrot.lane.b32.xlu0 %v6595, 32
          %v6820 = vpop.permute.xlu0 %6819
          %6821 = vrot.lane.b32.xlu0 %v6596, 32
          %v6822 = vpop.permute.xlu0 %6821
          %6823 = vrot.lane.b32.xlu0 %v6597, 32
          %v6824 = vpop.permute.xlu0 %6823
          %6825 = vrot.lane.b32.xlu0 %v6598, 32
          %v6826 = vpop.permute.xlu0 %6825
          %6827 = vrot.lane.b32.xlu0 %v6599, 32
          %v6828 = vpop.permute.xlu0 %6827
          %6829 = vrot.lane.b32.xlu0 %v6600, 32
          %v6830 = vpop.permute.xlu0 %6829
          %6831 = vrot.lane.b32.xlu0 %v6601, 32
          %v6832 = vpop.permute.xlu0 %6831
          %6833 = vrot.lane.b32.xlu0 %v6602, 32
          %v6834 = vpop.permute.xlu0 %6833
          %6835 = vrot.lane.b32.xlu0 %v6603, 32
          %v6836 = vpop.permute.xlu0 %6835
          %6837 = vrot.lane.b32.xlu0 %v6604, 32
          %v6838 = vpop.permute.xlu0 %6837
          %6839 = vrot.lane.b32.xlu0 %v6605, 32
          %v6840 = vpop.permute.xlu0 %6839
          %6841 = vrot.lane.b32.xlu0 %v6606, 32
          %v6842 = vpop.permute.xlu0 %6841
          %6843 = vrot.lane.b32.xlu0 %v6607, 32
          %v6844 = vpop.permute.xlu0 %6843
          %6845 = vrot.lane.b32.xlu0 %v6608, 32
          %v6846 = vpop.permute.xlu0 %6845
          %6847 = vrot.lane.b32.xlu0 %v6609, 32
          %v6848 = vpop.permute.xlu0 %6847
          %6849 = vrot.lane.b32.xlu0 %v6610, 32
          %v6850 = vpop.permute.xlu0 %6849
          %6851 = vrot.lane.b32.xlu0 %v6611, 32
          %v6852 = vpop.permute.xlu0 %6851
          %6853 = vrot.lane.b32.xlu0 %v6612, 32
          %v6854 = vpop.permute.xlu0 %6853
          %6855 = vrot.lane.b32.xlu0 %v6613, 32
          %v6856 = vpop.permute.xlu0 %6855
          %6857 = vrot.lane.b32.xlu0 %v6614, 32
          %v6858 = vpop.permute.xlu0 %6857
          %6859 = vrot.lane.b32.xlu0 %v6615, 32
          %v6860 = vpop.permute.xlu0 %6859
          %6861 = vrot.lane.b32.xlu0 %v6616, 32
          %v6862 = vpop.permute.xlu0 %6861
          %6863 = vrot.lane.b32.xlu0 %v6617, 32
          %v6864 = vpop.permute.xlu0 %6863
          %6865 = vrot.lane.b32.xlu0 %v6618, 32
          %v6866 = vpop.permute.xlu0 %6865
          %6867 = vrot.lane.b32.xlu0 %v6619, 32
          %v6868 = vpop.permute.xlu0 %6867
          %6869 = vrot.lane.b32.xlu0 %v6620, 32
          %v6870 = vpop.permute.xlu0 %6869
          %6871 = vrot.lane.b32.xlu0 %v6621, 32
          %v6872 = vpop.permute.xlu0 %6871
          %6873 = vrot.lane.b32.xlu0 %v6622, 32
          %v6874 = vpop.permute.xlu0 %6873
          %6875 = vrot.lane.b32.xlu0 %v6623, 32
          %v6876 = vpop.permute.xlu0 %6875
          %6877 = vrot.lane.b32.xlu0 %v6624, 32
          %v6878 = vpop.permute.xlu0 %6877
          %6879 = vrot.lane.b32.xlu0 %v6625, 32
          %v6880 = vpop.permute.xlu0 %6879
          %6881 = vrot.lane.b32.xlu0 %v6626, 32
          %v6882 = vpop.permute.xlu0 %6881
          %6883 = vrot.lane.b32.xlu0 %v6627, 32
          %v6884 = vpop.permute.xlu0 %6883
          %6885 = vrot.lane.b32.xlu0 %v6628, 32
          %v6886 = vpop.permute.xlu0 %6885
          %6887 = vrot.lane.b32.xlu0 %v6629, 32
          %v6888 = vpop.permute.xlu0 %6887
          %6889 = vrot.lane.b32.xlu0 %v6630, 32
          %v6890 = vpop.permute.xlu0 %6889
          %6891 = vrot.lane.b32.xlu0 %v6631, 32
          %v6892 = vpop.permute.xlu0 %6891
          %6893 = vrot.lane.b32.xlu0 %v6632, 32
          %v6894 = vpop.permute.xlu0 %6893
          %6895 = vrot.lane.b32.xlu0 %v6633, 32
          %v6896 = vpop.permute.xlu0 %6895
          %6897 = vrot.lane.b32.xlu0 %v6634, 32
          %v6898 = vpop.permute.xlu0 %6897
          %v6987 = vsel %vm1030, %v6371, %v6724
          %v6988 = vsel %vm1030, %v6372, %v6726
          %v6989 = vsel %vm1030, %v6373, %v6728
          %v6990 = vsel %vm1030, %v6374, %v6730
          %v6991 = vsel %vm1030, %v6375, %v6732
          %v6992 = vsel %vm1030, %v6376, %v6734
          %v6993 = vsel %vm1030, %v6377, %v6736
          %v6994 = vsel %vm1030, %v6378, %v6738
          %v6995 = vsel %vm1030, %v6379, %v6740
          %v6996 = vsel %vm1030, %v6380, %v6742
          %v6997 = vsel %vm1030, %v6381, %v6744
          %v6998 = vsel %vm1030, %v6382, %v6746
          %v6999 = vsel %vm1030, %v6383, %v6748
          %v7000 = vsel %vm1030, %v6384, %v6750
          %v7001 = vsel %vm1030, %v6385, %v6752
          %v7002 = vsel %vm1030, %v6386, %v6754
          %v7003 = vsel %vm1030, %v6387, %v6756
          %v7004 = vsel %vm1030, %v6388, %v6758
          %v7005 = vsel %vm1030, %v6389, %v6760
          %v7006 = vsel %vm1030, %v6390, %v6762
          %v7007 = vsel %vm1030, %v6391, %v6764
          %v7008 = vsel %vm1030, %v6392, %v6766
          %v7009 = vsel %vm1030, %v6393, %v6768
          %v7010 = vsel %vm1030, %v6394, %v6770
          %v7011 = vsel %vm1030, %v6395, %v6772
          %v7012 = vsel %vm1030, %v6396, %v6774
          %v7013 = vsel %vm1030, %v6397, %v6776
          %v7014 = vsel %vm1030, %v6398, %v6778
          %v7015 = vsel %vm1030, %v6399, %v6780
          %v7016 = vsel %vm1030, %v6400, %v6782
          %v7017 = vsel %vm1030, %v6401, %v6784
          %v7018 = vsel %vm1030, %v6402, %v6786
          %v7019 = vsel %vm1030, %v6403, %v6788
          %v7020 = vsel %vm1030, %v6404, %v6790
          %v7021 = vsel %vm1030, %v6405, %v6792
          %v7022 = vsel %vm1030, %v6406, %v6794
          %v7023 = vsel %vm1030, %v6407, %v6796
          %v7024 = vsel %vm1030, %v6408, %v6798
          %v7025 = vsel %vm1030, %v6409, %v6800
          %v7026 = vsel %vm1030, %v6410, %v6802
          %v7027 = vsel %vm1030, %v6411, %v6804
          %v7028 = vsel %vm1030, %v6412, %v6806
          %v7029 = vsel %vm1030, %v6413, %v6808
          %v7030 = vsel %vm1030, %v6414, %v6810
          %v7031 = vsel %vm1030, %v6415, %v6812
          %v7032 = vsel %vm1030, %v6416, %v6814
          %v7033 = vsel %vm1030, %v6417, %v6816
          %v7034 = vsel %vm1030, %v6418, %v6818
          %v7035 = vsel %vm1030, %v6419, %v6820
          %v7036 = vsel %vm1030, %v6420, %v6822
          %v7037 = vsel %vm1030, %v6421, %v6824
          %v7038 = vsel %vm1030, %v6422, %v6826
          %v7039 = vsel %vm1030, %v6423, %v6828
          %v7040 = vsel %vm1030, %v6424, %v6830
          %v7041 = vsel %vm1030, %v6425, %v6832
          %v7042 = vsel %vm1030, %v6426, %v6834
          %v7043 = vsel %vm1030, %v6427, %v6836
          %v7044 = vsel %vm1030, %v6428, %v6838
          %v7045 = vsel %vm1030, %v6429, %v6840
          %v7046 = vsel %vm1030, %v6430, %v6842
          %v7047 = vsel %vm1030, %v6431, %v6844
          %v7048 = vsel %vm1030, %v6432, %v6846
          %v7049 = vsel %vm1030, %v6433, %v6848
          %v7050 = vsel %vm1030, %v6434, %v6850
          %v7051 = vsel %vm1030, %v6435, %v6852
          %v7052 = vsel %vm1030, %v6436, %v6854
          %v7053 = vsel %vm1030, %v6437, %v6856
          %v7054 = vsel %vm1030, %v6438, %v6858
          %v7055 = vsel %vm1030, %v6439, %v6860
          %v7056 = vsel %vm1030, %v6440, %v6862
          %v7057 = vsel %vm1030, %v6441, %v6864
          %v7058 = vsel %vm1030, %v6442, %v6866
          %v7059 = vsel %vm1030, %v6443, %v6868
          %v7060 = vsel %vm1030, %v6444, %v6870
          %v7061 = vsel %vm1030, %v6445, %v6872
          %v7062 = vsel %vm1030, %v6446, %v6874
          %v7063 = vsel %vm1030, %v6447, %v6876
          %v7064 = vsel %vm1030, %v6448, %v6878
          %v7065 = vsel %vm1030, %v6449, %v6880
          %v7066 = vsel %vm1030, %v6450, %v6882
          %v7067 = vsel %vm1030, %v6451, %v6884
          %v7068 = vsel %vm1030, %v6452, %v6886
          %v7069 = vsel %vm1030, %v6453, %v6888
          %v7070 = vsel %vm1030, %v6454, %v6890
          %v7071 = vsel %vm1030, %v6455, %v6892
          %v7072 = vsel %vm1030, %v6456, %v6894
          %v7073 = vsel %vm1030, %v6457, %v6896
          %v7074 = vsel %vm1030, %v6458, %v6898
          %7075 = vst.msk [vmem:[%s5] sm:$0xff] %vm1112, %v6987
          %7076 = vst.msk [vmem:[%s5 + $0x8] sm:$0xff] %vm1112, %v6988
          %7077 = vst.msk [vmem:[%s5 + $0x10] sm:$0xff] %vm1112, %v6989
          %7078 = vst.msk [vmem:[%s5 + $0x18] sm:$0xff] %vm1112, %v6990
          %7079 = vst.msk [vmem:[%s5 + $0x20] sm:$0xff] %vm1112, %v6991
          %7080 = vst.msk [vmem:[%s5 + $0x28] sm:$0xff] %vm1112, %v6992
          %7081 = vst.msk [vmem:[%s5 + $0x30] sm:$0xff] %vm1112, %v6993
          %7082 = vst.msk [vmem:[%s5 + $0x38] sm:$0xff] %vm1112, %v6994
          %7083 = vst.msk [vmem:[%s5 + $0x40] sm:$0xff] %vm1112, %v6995
          %7084 = vst.msk [vmem:[%s5 + $0x48] sm:$0xff] %vm1112, %v6996
          %7085 = vst.msk [vmem:[%s5 + $0x50] sm:$0xff] %vm1112, %v6997
          %7086 = vst.msk [vmem:[%s5 + $0x58] sm:$0xff] %vm1112, %v6998
          %7087 = vst.msk [vmem:[%s5 + $0x60] sm:$0xff] %vm1112, %v6999
          %7088 = vst.msk [vmem:[%s5 + $0x68] sm:$0xff] %vm1112, %v7000
          %7089 = vst.msk [vmem:[%s5 + $0x70] sm:$0xff] %vm1112, %v7001
          %7090 = vst.msk [vmem:[%s5 + $0x78] sm:$0xff] %vm1112, %v7002
          %7091 = vst.msk [vmem:[%s5 + $0x80] sm:$0xff] %vm1112, %v7003
          %7092 = vst.msk [vmem:[%s5 + $0x88] sm:$0xff] %vm1112, %v7004
          %7093 = vst.msk [vmem:[%s5 + $0x90] sm:$0xff] %vm1112, %v7005
          %7094 = vst.msk [vmem:[%s5 + $0x98] sm:$0xff] %vm1112, %v7006
          %7095 = vst.msk [vmem:[%s5 + $0xa0] sm:$0xff] %vm1112, %v7007
          %7096 = vst.msk [vmem:[%s5 + $0xa8] sm:$0xff] %vm1112, %v7008
          %7097 = vst.msk [vmem:[%s5 + $0xb0] sm:$0xff] %vm1112, %v7009
          %7098 = vst.msk [vmem:[%s5 + $0xb8] sm:$0xff] %vm1112, %v7010
          %7099 = vst.msk [vmem:[%s5 + $0xc0] sm:$0xff] %vm1112, %v7011
          %7100 = vst.msk [vmem:[%s5 + $0xc8] sm:$0xff] %vm1112, %v7012
          %7101 = vst.msk [vmem:[%s5 + $0xd0] sm:$0xff] %vm1112, %v7013
          %7102 = vst.msk [vmem:[%s5 + $0xd8] sm:$0xff] %vm1112, %v7014
          %7103 = vst.msk [vmem:[%s5 + $0xe0] sm:$0xff] %vm1112, %v7015
          %7104 = vst.msk [vmem:[%s5 + $0xe8] sm:$0xff] %vm1112, %v7016
          %7105 = vst.msk [vmem:[%s5 + $0xf0] sm:$0xff] %vm1112, %v7017
          %7106 = vst.msk [vmem:[%s5 + $0xf8] sm:$0xff] %vm1112, %v7018
          %7107 = vst.msk [vmem:[%s5 + $0x100] sm:$0xff] %vm1112, %v7019
          %7108 = vst.msk [vmem:[%s5 + $0x108] sm:$0xff] %vm1112, %v7020
          %7109 = vst.msk [vmem:[%s5 + $0x110] sm:$0xff] %vm1112, %v7021
          %7110 = vst.msk [vmem:[%s5 + $0x118] sm:$0xff] %vm1112, %v7022
          %7111 = vst.msk [vmem:[%s5 + $0x120] sm:$0xff] %vm1112, %v7023
          %7112 = vst.msk [vmem:[%s5 + $0x128] sm:$0xff] %vm1112, %v7024
          %7113 = vst.msk [vmem:[%s5 + $0x130] sm:$0xff] %vm1112, %v7025
          %7114 = vst.msk [vmem:[%s5 + $0x138] sm:$0xff] %vm1112, %v7026
          %7115 = vst.msk [vmem:[%s5 + $0x140] sm:$0xff] %vm1112, %v7027
          %7116 = vst.msk [vmem:[%s5 + $0x148] sm:$0xff] %vm1112, %v7028
          %7117 = vst.msk [vmem:[%s5 + $0x150] sm:$0xff] %vm1112, %v7029
          %7118 = vst.msk [vmem:[%s5 + $0x158] sm:$0xff] %vm1112, %v7030
          %7119 = vst.msk [vmem:[%s5 + $0x160] sm:$0xff] %vm1112, %v7031
          %7120 = vst.msk [vmem:[%s5 + $0x168] sm:$0xff] %vm1112, %v7032
          %7121 = vst.msk [vmem:[%s5 + $0x170] sm:$0xff] %vm1112, %v7033
          %7122 = vst.msk [vmem:[%s5 + $0x178] sm:$0xff] %vm1112, %v7034
          %7123 = vst.msk [vmem:[%s5 + $0x180] sm:$0xff] %vm1112, %v7035
          %7124 = vst.msk [vmem:[%s5 + $0x188] sm:$0xff] %vm1112, %v7036
          %7125 = vst.msk [vmem:[%s5 + $0x190] sm:$0xff] %vm1112, %v7037
          %7126 = vst.msk [vmem:[%s5 + $0x198] sm:$0xff] %vm1112, %v7038
          %7127 = vst.msk [vmem:[%s5 + $0x1a0] sm:$0xff] %vm1112, %v7039
          %7128 = vst.msk [vmem:[%s5 + $0x1a8] sm:$0xff] %vm1112, %v7040
          %7129 = vst.msk [vmem:[%s5 + $0x1b0] sm:$0xff] %vm1112, %v7041
          %7130 = vst.msk [vmem:[%s5 + $0x1b8] sm:$0xff] %vm1112, %v7042
          %7131 = vst.msk [vmem:[%s5 + $0x1c0] sm:$0xff] %vm1112, %v7043
          %7132 = vst.msk [vmem:[%s5 + $0x1c8] sm:$0xff] %vm1112, %v7044
          %7133 = vst.msk [vmem:[%s5 + $0x1d0] sm:$0xff] %vm1112, %v7045
          %7134 = vst.msk [vmem:[%s5 + $0x1d8] sm:$0xff] %vm1112, %v7046
          %7135 = vst.msk [vmem:[%s5 + $0x1e0] sm:$0xff] %vm1112, %v7047
          %7136 = vst.msk [vmem:[%s5 + $0x1e8] sm:$0xff] %vm1112, %v7048
          %7137 = vst.msk [vmem:[%s5 + $0x1f0] sm:$0xff] %vm1112, %v7049
          %7138 = vst.msk [vmem:[%s5 + $0x1f8] sm:$0xff] %vm1112, %v7050
          %7139 = vst.msk [vmem:[%s5 + $0x200] sm:$0xff] %vm1112, %v7051
          %7140 = vst.msk [vmem:[%s5 + $0x208] sm:$0xff] %vm1112, %v7052
          %7141 = vst.msk [vmem:[%s5 + $0x210] sm:$0xff] %vm1112, %v7053
          %7142 = vst.msk [vmem:[%s5 + $0x218] sm:$0xff] %vm1112, %v7054
          %7143 = vst.msk [vmem:[%s5 + $0x220] sm:$0xff] %vm1112, %v7055
          %7144 = vst.msk [vmem:[%s5 + $0x228] sm:$0xff] %vm1112, %v7056
          %7145 = vst.msk [vmem:[%s5 + $0x230] sm:$0xff] %vm1112, %v7057
          %7146 = vst.msk [vmem:[%s5 + $0x238] sm:$0xff] %vm1112, %v7058
          %7147 = vst.msk [vmem:[%s5 + $0x240] sm:$0xff] %vm1112, %v7059
          %7148 = vst.msk [vmem:[%s5 + $0x248] sm:$0xff] %vm1112, %v7060
          %7149 = vst.msk [vmem:[%s5 + $0x250] sm:$0xff] %vm1112, %v7061
          %7150 = vst.msk [vmem:[%s5 + $0x258] sm:$0xff] %vm1112, %v7062
          %7151 = vst.msk [vmem:[%s5 + $0x260] sm:$0xff] %vm1112, %v7063
          %7152 = vst.msk [vmem:[%s5 + $0x268] sm:$0xff] %vm1112, %v7064
          %7153 = vst.msk [vmem:[%s5 + $0x270] sm:$0xff] %vm1112, %v7065
          %7154 = vst.msk [vmem:[%s5 + $0x278] sm:$0xff] %vm1112, %v7066
          %7155 = vst.msk [vmem:[%s5 + $0x280] sm:$0xff] %vm1112, %v7067
          %7156 = vst.msk [vmem:[%s5 + $0x288] sm:$0xff] %vm1112, %v7068
          %7157 = vst.msk [vmem:[%s5 + $0x290] sm:$0xff] %vm1112, %v7069
          %7158 = vst.msk [vmem:[%s5 + $0x298] sm:$0xff] %vm1112, %v7070
          %7159 = vst.msk [vmem:[%s5 + $0x2a0] sm:$0xff] %vm1112, %v7071
          %7160 = vst.msk [vmem:[%s5 + $0x2a8] sm:$0xff] %vm1112, %v7072
          %7161 = vst.msk [vmem:[%s5 + $0x2b0] sm:$0xff] %vm1112, %v7073
          %7162 = vst.msk [vmem:[%s5 + $0x2b8] sm:$0xff] %vm1112, %v7074
        $region94: #{intentgcl_forward.1} parent=73 // pred_fallthru
          _
        // Predicated region
        $region95: #{intentgcl_forward.1} parent=73 // pred_check
          %p7163 = pneg %p170
        $region96: #{intentgcl_forward.1} parent=73 // pred_check_branch
          %7165 = sbr.rel (%p7163) target = $region98
        $region97: #{intentgcl_forward.1} parent=73 // pred_region
          _
        $region98: #{intentgcl_forward.1} parent=73 // pred_fallthru
          _
        // Predicated region
        $region99: #{intentgcl_forward.1} parent=73 // pred_check
          %p7166 = pneg %p170
        $region100: #{intentgcl_forward.1} parent=73 // pred_check_branch
          %7168 = sbr.rel (%p7166) target = $region102
        $region101: #{intentgcl_forward.1} parent=73 // pred_region
          _
        $region102: #{intentgcl_forward.1} parent=73 // pred_fallthru
          _
      $region74: #{intentgcl_forward.1} parent=5 // pred_fallthru
        _
      %p7169 = scmp.le.s32.totalorder 2, %s11
      // Predicated region
      $region103: #{intentgcl_forward.1} parent=5 // pred_check
        %p7170 = pneg %p7169
      $region104: #{intentgcl_forward.1} parent=5 // pred_check_branch
        %7172 = sbr.rel (%p7170) target = $region106
      $region105: #{intentgcl_forward.1} parent=5 // pred_region
        %s7173 = ssub.s32 %s11, 2
      $region106: #{intentgcl_forward.1} parent=5 // pred_fallthru
        _
    $region6: #{intentgcl_forward.1} parent=1 // loop_footer
      %s15 = sadd.s32 1, %s11
    $region7: #{intentgcl_forward.1} parent=1 // loop_footer_branch
      %10 = sbr.rel target = $region3
    $region8: #{intentgcl_forward.1} parent=1 // loop_exit
      _

</llo_original>
